<compile_context>
chip_gen: v6e
topology: v6e:2x2x1
jax: 0.10.0
libtpu: 0.0.40
codegen_flags: <defaults>
</compile_context>

<pallas_src>
import functools

import jax
import jax.numpy as jnp
from jax.experimental import pallas as pl
from jax.experimental.pallas import tpu as pltpu


MXU_DTYPE = jnp.bfloat16  # MXU operand dtype (accumulation stays float32)


# --------------------------- in-kernel 3x3 conv ------------------------------

def _conv3x3(x, w_ref, s, bias, *, W, HW, m_l, m_r, m_t, m_b):
    """3x3 'same' conv on a flat (HW, Cin) pixel slab.

    Taps are aligned XLU sublane rotations of the slab (no unaligned VMEM
    slices).  Zero padding at row/column boundaries is enforced with (HW, 1)
    masks: column masks are applied once per shifted input slab, row masks
    once per accumulated di-group result (per-row masks commute with the
    matmul).  w_ref[s, k] is the (Cin, Cout) weight of tap k = (di+1)*3+(dj+1).
    """
    c = {
        -1: pltpu.roll(x, shift=1, axis=0) * m_l,              # x[p - 1]
        0: x,
        1: pltpu.roll(x, shift=(HW - 1) % HW, axis=0) * m_r,   # x[p + 1]
    }
    acc = None
    for di in (-1, 0, 1):
        part = None
        for dj in (-1, 0, 1):
            k = (di + 1) * 3 + (dj + 1)
            tap = c[dj] if di == 0 else pltpu.roll(
                c[dj], shift=(-di * W) % HW, axis=0)
            d = jnp.dot(tap.astype(MXU_DTYPE), w_ref[s, k],
                        preferred_element_type=jnp.float32)
            part = d if part is None else part + d
        if di == -1:
            part = part * m_t
        elif di == 1:
            part = part * m_b
        acc = part if acc is None else acc + part
    return acc + bias


# ------------------------- fused per-level kernel ----------------------------

def _level_kernel(x_ref, wmix_ref, bmix_ref, w1_ref, b1_ref, w2_ref, b2_ref,
                  w3_ref, b3_ref, pswap_ref, out_ref, ld_ref,
                  *, S, H, W, Cb, C, F):
    f32 = jnp.float32
    HW = H * W

    # Spatial boundary masks, built in-kernel (no extra HBM operands).
    pix = jax.lax.broadcasted_iota(jnp.int32, (HW, 1), 0)
    col = pix % W
    m_l = (col != 0).astype(f32)        # zero where j == 0     (dj = -1 taps)
    m_r = (col != W - 1).astype(f32)    # zero where j == W-1   (dj = +1 taps)
    m_t = (pix >= W).astype(f32)        # zero in first row     (di = -1 taps)
    m_b = (pix < HW - W).astype(f32)    # zero in last row      (di = +1 taps)

    # Channel-half lane masks: a-half is passed through, b-half is coupled.
    lane = jax.lax.broadcasted_iota(jnp.int32, (1, C), 1)
    cmask_b = (lane >= Cb).astype(f32)
    cmask_a = 1.0 - cmask_b

    pswap = pswap_ref[...]              # (C, C) half-swap permutation (bf16)

    x = x_ref[0]                        # (HW, C) f32, VMEM-resident all steps
    ld = jnp.zeros((1, 1), f32)

    for s in range(S):                  # all flow steps of this level, fused
        # --- ActNorm + invertible 1x1 conv (ActNorm folded into the weight):
        #     ONE lane-dense (HW, C) @ (C, C) matmul.
        y = jnp.dot(x.astype(MXU_DTYPE), wmix_ref[s],
                    preferred_element_type=f32) + bmix_ref[s]

        # --- coupling net: 3x3(C->F) -> relu -> 1x1(F->F) -> relu -> 3x3(F->C)
        #     w1's b-half input rows are zero, so feeding the full-width y is
        #     exactly a conv over the a-half (avoids an unaligned lane slice).
        h = _conv3x3(y, w1_ref, s, b1_ref[s], W=W, HW=HW,
                     m_l=m_l, m_r=m_r, m_t=m_t, m_b=m_b)
        h = jnp.maximum(h, 0.0)
        h = jnp.dot(h.astype(MXU_DTYPE), w2_ref[s],
                    preferred_element_type=f32) + b2_ref[s]
        h = jnp.maximum(h, 0.0)
        # conv3 emits [raw | t] merged in one lane-dense (HW, C) slab.
        out3 = _conv3x3(h, w3_ref, s, b3_ref[s], W=W, HW=HW,
                        m_l=m_l, m_r=m_r, m_t=m_t, m_b=m_b)

        # --- affine coupling.  raw must scale the b-half lanes, so swap the
        #     halves with a tiny permutation matmul (MXU has slack here).
        raw_b = jnp.dot(out3.astype(MXU_DTYPE), pswap,
                        preferred_element_type=f32)
        z = raw_b + 2.0
        logs = jnp.minimum(z, 0.0) - jnp.log(1.0 + jnp.exp(-jnp.abs(z)))
        sgate = jnp.exp(logs)           # sigmoid(raw + 2), numerically stable
        # a-half: y_a unchanged; b-half: (y_b + t) * s
        x = y * cmask_a + ((y + out3) * cmask_b) * sgate

        # per-sample logdet contribution of this step (b-half lanes only)
        ld = ld + jnp.sum(jnp.sum(logs * cmask_b, axis=1, keepdims=True),
                          axis=0, keepdims=True)

    out_ref[0] = x
    ld_ref[...] = jnp.zeros((1, 1, 128), f32) + ld[0, 0]


# ------------------------------ call wrapper ---------------------------------

def _dim_semantics():
    # v7x has 2 TensorCores per chip: split the batch grid across them.  On
    # single-core parts (v5e/v6e) fall back to plain "parallel".
    n_tc = 1
    try:
        n_tc = int(getattr(jax.devices()[0], "num_cores", 1) or 1)
    except Exception:
        n_tc = 1
    return (pltpu.CORE_PARALLEL,) if n_tc > 1 else ("parallel",)


def _vmem_limit_bytes(need_bytes):
    cap = 128 * 1024 * 1024
    try:
        cap = int(pltpu.get_tpu_info().vmem_capacity_bytes)
    except Exception:
        pass
    # ~96-100 MiB on 128 MiB parts (v5e/v6e), ~48 MiB on 64 MiB v7x.
    hi = min(cap * 3 // 4, 100 * 1024 * 1024)
    return int(min(max(need_bytes, 32 * 1024 * 1024), hi))


def flow_level(x_slab, wmix, bmix, w1, b1, w2, b2, w3, b3, pswap,
               *, N, H, W, C, F, S):
    HW = H * W
    Cb = C // 2
    kern = functools.partial(_level_kernel, S=S, H=H, W=W, Cb=Cb, C=C, F=F)

    def full(a):
        nd = a.ndim
        return pl.BlockSpec(a.shape, lambda n: (0,) * nd)

    weights = (wmix, bmix, w1, b1, w2, b2, w3, b3, pswap)
    w_bytes = sum(int(a.size) * a.dtype.itemsize for a in weights)
    need = (4 * HW * C * 4               # x + out blocks, double-buffered
            + 2 * w_bytes                # stacked weights
            + 32 * HW * max(C, F) * 4)   # headroom for in-flight values

    out, ld = pl.pallas_call(
        kern,
        out_shape=(jax.ShapeDtypeStruct((N, HW, C), jnp.float32),
                   jax.ShapeDtypeStruct((N, 1, 128), jnp.float32)),
        grid=(N,),
        in_specs=[pl.BlockSpec((1, HW, C), lambda n: (n, 0, 0))]
                + [full(a) for a in weights],
        out_specs=(pl.BlockSpec((1, HW, C), lambda n: (n, 0, 0)),
                   pl.BlockSpec((1, 1, 128), lambda n: (n, 0, 0))),
        compiler_params=pltpu.CompilerParams(
            dimension_semantics=_dim_semantics(),
            vmem_limit_bytes=_vmem_limit_bytes(need)),
    )(x_slab, *weights)
    return out, ld[:, 0, 0]


# ------------------------------- JAX glue ------------------------------------

def squeeze2(x):
    # NHWC space-to-depth by factor 2: (N,H,W,C) -> (N,H/2,W/2,4C)
    N, H, W, C = x.shape
    x = x.reshape(N, H // 2, 2, W // 2, 2, C)
    x = jnp.transpose(x, (0, 1, 3, 2, 4, 5))
    return x.reshape(N, H // 2, W // 2, 4 * C)


def init_lrflow_params(key, in_channels=1, hidden_channels=64, n_levels=3,
                       n_flow_steps=4):
    params = {"levels": []}
    c = in_channels
    for _ in range(n_levels):
        c = c * 4
        cb = c // 2
        steps = []
        for _ in range(n_flow_steps):
            key, *ks = jax.random.split(key, 9)
            an_s = jnp.exp(0.1 * jax.random.normal(ks[0], (1, c), jnp.float32))
            an_b = 0.1 * jax.random.normal(ks[1], (1, c), jnp.float32)
            w_perm, _ = jnp.linalg.qr(
                jax.random.normal(ks[2], (c, c), jnp.float32))
            _, w_logdet = jnp.linalg.slogdet(w_perm)  # tiny CxC, stays in JAX
            w1 = (jax.random.normal(ks[3], (9 * cb, hidden_channels), jnp.float32)
                  * (2.0 / (9 * cb)) ** 0.5)
            b1 = jnp.zeros((1, hidden_channels), jnp.float32)
            w2 = (jax.random.normal(ks[4], (hidden_channels, hidden_channels),
                                    jnp.float32)
                  * (2.0 / hidden_channels) ** 0.5)
            b2 = jnp.zeros((1, hidden_channels), jnp.float32)
            w3 = 0.01 * jax.random.normal(
                ks[5], (9 * hidden_channels, 2 * cb), jnp.float32)
            b3 = jnp.zeros((1, 2 * cb), jnp.float32)
            steps.append(dict(an_s=an_s, an_b=an_b, w_perm=w_perm,
                              w_logdet=w_logdet, w1=w1, b1=b1, w2=w2, b2=b2,
                              w3=w3, b3=b3))
        params["levels"].append({"steps": steps})
    return params


def flow_forward(params, x_nchw):
    x = jnp.transpose(x_nchw, (0, 2, 3, 1)).astype(jnp.float32)  # NCHW -> NHWC
    N = x.shape[0]
    logdet = jnp.zeros((N,), jnp.float32)
    for level in params["levels"]:
        x = squeeze2(x)
        _, H, W, C = x.shape
        Cb, HW = C // 2, H * W
        assert HW % 8 == 0, "pixel-slab rolls want H*W to be a multiple of 8"
        steps = level["steps"]
        S = len(steps)
        F = steps[0]["w2"].shape[0]

        # Fold ActNorm into the 1x1-conv weight ((x*s+b)@W = x@(diag(s)W)+b@W)
        # and stack all per-step parameters along a leading step axis.
        wmix = jnp.stack([st["an_s"].reshape(C, 1) * st["w_perm"]
                          for st in steps]).astype(MXU_DTYPE)          # (S,C,C)
        bmix = jnp.stack([st["an_b"] @ st["w_perm"] for st in steps])  # (S,1,C)
        w1 = jnp.stack([jnp.zeros((9, C, F), jnp.float32)
                        .at[:, :Cb, :].set(st["w1"].reshape(9, Cb, F))
                        for st in steps]).astype(MXU_DTYPE)      # b-half rows 0
        b1 = jnp.stack([st["b1"] for st in steps])
        w2 = jnp.stack([st["w2"] for st in steps]).astype(MXU_DTYPE)
        b2 = jnp.stack([st["b2"] for st in steps])
        w3 = jnp.stack([st["w3"].reshape(9, F, C)
                        for st in steps]).astype(MXU_DTYPE)      # cols [raw|t]
        b3 = jnp.stack([st["b3"] for st in steps])               # (S,1,C)
        # half-swap permutation: dot(v, P)[:, j] = v[:, (j - Cb) % C]
        ar = jnp.arange(C)
        pswap = (((ar[None, :] - ar[:, None]) % C) == Cb).astype(MXU_DTYPE)

        x_slab = x.reshape(N, HW, C)
        out, ld_part = flow_level(x_slab, wmix, bmix, w1, b1, w2, b2, w3, b3,
                                  pswap, N=N, H=H, W=W, C=C, F=F, S=S)

        # constant logdet parts (ActNorm scale + 1x1-conv slogdet), per step
        const_ld = 0.0
        for st in steps:
            const_ld = const_ld + HW * (jnp.sum(jnp.log(jnp.abs(st["an_s"])))
                                        + st["w_logdet"])
        logdet = logdet + ld_part + const_ld
        x = out.reshape(N, H, W, C)
    z = jnp.transpose(x, (0, 3, 1, 2))  # back to NCHW
    return z, logdet


def lrflow_forward(params, x=None, reverse=False, z=None):
    if not reverse:
        z, logdet = flow_forward(params, x)
        z_c, z_d = jnp.split(z, 2, axis=1)  # torch.chunk(z, 2, dim=1)
        return z_c, z_d, logdet
    # TODO(synk): reverse (sampling / flow inverse) path not implemented.
    raise NotImplementedError("reverse path not implemented")


# --------------------------------- main --------------------------------------

if __name__ == "__main__":
    key = jax.random.PRNGKey(0)
    pkey, xkey = jax.random.split(key)

    # Small config consistent with LRFlow(in_channels=1, ...)
    params = init_lrflow_params(pkey, in_channels=1, hidden_channels=16,
                                n_levels=2, n_flow_steps=2)
    x = jax.random.normal(xkey, (2, 1, 16, 16), jnp.float32)  # NCHW

    fwd = jax.jit(lambda p, xx: lrflow_forward(p, xx))
    z_c, z_d, logdet = fwd(params, x)
    jax.block_until_ready((z_c, z_d, logdet))

    assert z_c.shape == (2, 8, 4, 4), z_c.shape
    assert z_d.shape == (2, 8, 4, 4), z_d.shape
    assert logdet.shape == (2,), logdet.shape
    assert jnp.all(jnp.isfinite(z_c)) and jnp.all(jnp.isfinite(z_d))
    assert jnp.all(jnp.isfinite(logdet))
    print("KERNEL_OK")
</pallas_src>

<mosaic_0001>
module attributes {stable_mosaic.version = 11 : i64} {
  func.func @_level_kernel(%arg0: i32, %arg1: memref<1x64x4xf32, #tpu.memory_space<vmem>>, %arg2: memref<2x4x4xbf16, #tpu.memory_space<vmem>>, %arg3: memref<2x1x4xf32, #tpu.memory_space<vmem>>, %arg4: memref<2x9x4x16xbf16, #tpu.memory_space<vmem>>, %arg5: memref<2x1x16xf32, #tpu.memory_space<vmem>>, %arg6: memref<2x16x16xbf16, #tpu.memory_space<vmem>>, %arg7: memref<2x1x16xf32, #tpu.memory_space<vmem>>, %arg8: memref<2x9x16x4xbf16, #tpu.memory_space<vmem>>, %arg9: memref<2x1x4xf32, #tpu.memory_space<vmem>>, %arg10: memref<4x4xbf16, #tpu.memory_space<vmem>>, %arg11: memref<1x64x4xf32, #tpu.memory_space<vmem>>, %arg12: memref<1x1x128xf32, #tpu.memory_space<vmem>>) attributes {dimension_semantics = [#tpu.dimension_semantics<parallel>], iteration_bounds = array<i64: 2>, scalar_prefetch = 0 : i64, scratch_operands = 0 : i64, tpu.core_type = #tpu.core_type<tc>, window_params = [{transform_indices = @transform_0, window_bounds = array<i64: 1, 64, 4>}, {pipeline_mode = #tpu.pipeline_mode<synchronous>, transform_indices = @transform_1, window_bounds = array<i64: 2, 4, 4>}, {pipeline_mode = #tpu.pipeline_mode<synchronous>, transform_indices = @transform_2, window_bounds = array<i64: 2, 1, 4>}, {pipeline_mode = #tpu.pipeline_mode<synchronous>, transform_indices = @transform_3, window_bounds = array<i64: 2, 9, 4, 16>}, {pipeline_mode = #tpu.pipeline_mode<synchronous>, transform_indices = @transform_4, window_bounds = array<i64: 2, 1, 16>}, {pipeline_mode = #tpu.pipeline_mode<synchronous>, transform_indices = @transform_5, window_bounds = array<i64: 2, 16, 16>}, {pipeline_mode = #tpu.pipeline_mode<synchronous>, transform_indices = @transform_6, window_bounds = array<i64: 2, 1, 16>}, {pipeline_mode = #tpu.pipeline_mode<synchronous>, transform_indices = @transform_7, window_bounds = array<i64: 2, 9, 16, 4>}, {pipeline_mode = #tpu.pipeline_mode<synchronous>, transform_indices = @transform_8, window_bounds = array<i64: 2, 1, 4>}, {pipeline_mode = #tpu.pipeline_mode<synchronous>, transform_indices = @transform_9, window_bounds = array<i64: 4, 4>}, {transform_indices = @transform_10, window_bounds = array<i64: 1, 64, 4>}, {transform_indices = @transform_11, window_bounds = array<i64: 1, 1, 128>}]} {
    %0 = tpu.iota {dimensions = array<i32: 0>} : vector<64x1xi32>
    %c8_i32 = arith.constant 8 : i32
    %c0_i32 = arith.constant 0 : i32
    %1 = arith.cmpi eq, %c8_i32, %c0_i32 : i32
    %c1_i32 = arith.constant 1 : i32
    %2 = arith.select %1, %c1_i32, %c8_i32 : i32
    %3 = vector.broadcast %2 : i32 to vector<64x1xi32>
    %4 = arith.remsi %0, %3 : vector<64x1xi32>
    %c0_i32_0 = arith.constant 0 : i32
    %5 = vector.broadcast %c0_i32_0 : i32 to vector<64x1xi32>
    %6 = arith.cmpi ne, %4, %5 : vector<64x1xi32>
    %c0_i32_1 = arith.constant 0 : i32
    %7 = vector.broadcast %c0_i32_1 : i32 to vector<64x1xi32>
    %8 = arith.cmpi slt, %4, %7 : vector<64x1xi32>
    %c0_i32_2 = arith.constant 0 : i32
    %9 = arith.cmpi slt, %2, %c0_i32_2 : i32
    %10 = vector.broadcast %9 : i1 to vector<64x1xi1>
    %11 = vector.broadcast %10 : vector<64x1xi1> to vector<64x1xi1>
    %12 = arith.xori %8, %11 : vector<64x1xi1>
    %13 = arith.andi %12, %6 : vector<64x1xi1>
    %14 = vector.broadcast %2 : i32 to vector<64x1xi32>
    %15 = arith.addi %4, %14 : vector<64x1xi32>
    %16 = arith.select %13, %15, %4 : vector<64x1xi1>, vector<64x1xi32>
    %c0_i32_3 = arith.constant 0 : i32
    %17 = vector.broadcast %c0_i32_3 : i32 to vector<64x1xi32>
    %18 = arith.cmpi ne, %16, %17 : vector<64x1xi32>
    %19 = arith.extui %18 : vector<64x1xi1> to vector<64x1xi32>
    %20 = arith.sitofp %19 : vector<64x1xi32> to vector<64x1xf32>
    %c7_i32 = arith.constant 7 : i32
    %21 = vector.broadcast %c7_i32 : i32 to vector<64x1xi32>
    %22 = arith.cmpi ne, %16, %21 : vector<64x1xi32>
    %23 = arith.extui %22 : vector<64x1xi1> to vector<64x1xi32>
    %24 = arith.sitofp %23 : vector<64x1xi32> to vector<64x1xf32>
    %c8_i32_4 = arith.constant 8 : i32
    %25 = vector.broadcast %c8_i32_4 : i32 to vector<64x1xi32>
    %26 = arith.cmpi sge, %0, %25 : vector<64x1xi32>
    %27 = arith.extui %26 : vector<64x1xi1> to vector<64x1xi32>
    %28 = arith.sitofp %27 : vector<64x1xi32> to vector<64x1xf32>
    %c56_i32 = arith.constant 56 : i32
    %29 = vector.broadcast %c56_i32 : i32 to vector<64x1xi32>
    %30 = arith.cmpi slt, %0, %29 : vector<64x1xi32>
    %31 = arith.extui %30 : vector<64x1xi1> to vector<64x1xi32>
    %32 = arith.sitofp %31 : vector<64x1xi32> to vector<64x1xf32>
    %33 = tpu.iota {dimensions = array<i32: 1>} : vector<1x4xi32>
    %c2_i32 = arith.constant 2 : i32
    %34 = vector.broadcast %c2_i32 : i32 to vector<1x4xi32>
    %35 = arith.cmpi sge, %33, %34 : vector<1x4xi32>
    %36 = arith.extui %35 : vector<1x4xi1> to vector<1x4xi32>
    %37 = arith.sitofp %36 : vector<1x4xi32> to vector<1x4xf32>
    %cst = arith.constant 1.000000e+00 : f32
    %38 = vector.broadcast %cst : f32 to vector<1x4xf32>
    %39 = arith.subf %38, %37 : vector<1x4xf32>
    %c0 = arith.constant 0 : index
    %c0_5 = arith.constant 0 : index
    %40 = vector.load %arg10[%c0, %c0_5] : memref<4x4xbf16, #tpu.memory_space<vmem>>, vector<4x4xbf16>
    %c0_6 = arith.constant 0 : index
    %c0_7 = arith.constant 0 : index
    %c0_8 = arith.constant 0 : index
    %41 = vector.load %arg1[%c0_6, %c0_7, %c0_8] : memref<1x64x4xf32, #tpu.memory_space<vmem>>, vector<1x64x4xf32>
    %42 = vector.shape_cast %41 : vector<1x64x4xf32> to vector<64x4xf32>
    %cst_9 = arith.constant 0.000000e+00 : f32
    %43 = vector.broadcast %cst_9 : f32 to vector<1x1xf32>
    %44 = arith.truncf %42 : vector<64x4xf32> to vector<64x4xbf16>
    %c0_10 = arith.constant 0 : index
    %c0_11 = arith.constant 0 : index
    %c0_12 = arith.constant 0 : index
    %45 = vector.load %arg2[%c0_10, %c0_11, %c0_12] : memref<2x4x4xbf16, #tpu.memory_space<vmem>>, vector<1x4x4xbf16>
    %46 = vector.shape_cast %45 : vector<1x4x4xbf16> to vector<4x4xbf16>
    %cst_13 = arith.constant dense<0.000000e+00> : vector<64x4xf32>
    %47 = tpu.matmul %44, %46, %cst_13 {dimension_numbers = #tpu.dot_dimension_numbers<[1], [0], [0], [1], [0, 0, 1, 1], [], []>} : vector<64x4xbf16>, vector<4x4xbf16>, vector<64x4xf32> -> vector<64x4xf32>
    %c0_14 = arith.constant 0 : index
    %c0_15 = arith.constant 0 : index
    %c0_16 = arith.constant 0 : index
    %48 = vector.load %arg3[%c0_14, %c0_15, %c0_16] : memref<2x1x4xf32, #tpu.memory_space<vmem>>, vector<1x1x4xf32>
    %49 = vector.shape_cast %48 : vector<1x1x4xf32> to vector<1x4xf32>
    %50 = vector.broadcast %49 : vector<1x4xf32> to vector<64x4xf32>
    %51 = arith.addf %47, %50 : vector<64x4xf32>
    %c0_17 = arith.constant 0 : index
    %c0_18 = arith.constant 0 : index
    %c0_19 = arith.constant 0 : index
    %52 = vector.load %arg5[%c0_17, %c0_18, %c0_19] : memref<2x1x16xf32, #tpu.memory_space<vmem>>, vector<1x1x16xf32>
    %53 = vector.shape_cast %52 : vector<1x1x16xf32> to vector<1x16xf32>
    %c1_i32_20 = arith.constant 1 : i32
    %54 = tpu.dynamic_rotate %51 by %c1_i32_20 dim 0 : vector<64x4xf32>, i32 -> vector<64x4xf32>
    %55 = vector.broadcast %20 : vector<64x1xf32> to vector<64x4xf32>
    %56 = arith.mulf %54, %55 : vector<64x4xf32>
    %c63_i32 = arith.constant 63 : i32
    %57 = tpu.dynamic_rotate %51 by %c63_i32 dim 0 : vector<64x4xf32>, i32 -> vector<64x4xf32>
    %58 = vector.broadcast %24 : vector<64x1xf32> to vector<64x4xf32>
    %59 = arith.mulf %57, %58 : vector<64x4xf32>
    %c8_i32_21 = arith.constant 8 : i32
    %60 = tpu.dynamic_rotate %56 by %c8_i32_21 dim 0 : vector<64x4xf32>, i32 -> vector<64x4xf32>
    %61 = arith.truncf %60 : vector<64x4xf32> to vector<64x4xbf16>
    %c0_22 = arith.constant 0 : index
    %c0_23 = arith.constant 0 : index
    %c0_24 = arith.constant 0 : index
    %c0_25 = arith.constant 0 : index
    %62 = vector.load %arg4[%c0_22, %c0_23, %c0_24, %c0_25] : memref<2x9x4x16xbf16, #tpu.memory_space<vmem>>, vector<1x1x4x16xbf16>
    %63 = vector.shape_cast %62 : vector<1x1x4x16xbf16> to vector<4x16xbf16>
    %cst_26 = arith.constant dense<0.000000e+00> : vector<64x16xf32>
    %64 = tpu.matmul %61, %63, %cst_26 {dimension_numbers = #tpu.dot_dimension_numbers<[1], [0], [0], [1], [0, 0, 1, 1], [], []>} : vector<64x4xbf16>, vector<4x16xbf16>, vector<64x16xf32> -> vector<64x16xf32>
    %c8_i32_27 = arith.constant 8 : i32
    %65 = tpu.dynamic_rotate %51 by %c8_i32_27 dim 0 : vector<64x4xf32>, i32 -> vector<64x4xf32>
    %66 = arith.truncf %65 : vector<64x4xf32> to vector<64x4xbf16>
    %c0_28 = arith.constant 0 : index
    %c1 = arith.constant 1 : index
    %c0_29 = arith.constant 0 : index
    %c0_30 = arith.constant 0 : index
    %67 = vector.load %arg4[%c0_28, %c1, %c0_29, %c0_30] : memref<2x9x4x16xbf16, #tpu.memory_space<vmem>>, vector<1x1x4x16xbf16>
    %68 = vector.shape_cast %67 : vector<1x1x4x16xbf16> to vector<4x16xbf16>
    %cst_31 = arith.constant dense<0.000000e+00> : vector<64x16xf32>
    %69 = tpu.matmul %66, %68, %cst_31 {dimension_numbers = #tpu.dot_dimension_numbers<[1], [0], [0], [1], [0, 0, 1, 1], [], []>} : vector<64x4xbf16>, vector<4x16xbf16>, vector<64x16xf32> -> vector<64x16xf32>
    %70 = arith.addf %64, %69 : vector<64x16xf32>
    %c8_i32_32 = arith.constant 8 : i32
    %71 = tpu.dynamic_rotate %59 by %c8_i32_32 dim 0 : vector<64x4xf32>, i32 -> vector<64x4xf32>
    %72 = arith.truncf %71 : vector<64x4xf32> to vector<64x4xbf16>
    %c0_33 = arith.constant 0 : index
    %c2 = arith.constant 2 : index
    %c0_34 = arith.constant 0 : index
    %c0_35 = arith.constant 0 : index
    %73 = vector.load %arg4[%c0_33, %c2, %c0_34, %c0_35] : memref<2x9x4x16xbf16, #tpu.memory_space<vmem>>, vector<1x1x4x16xbf16>
    %74 = vector.shape_cast %73 : vector<1x1x4x16xbf16> to vector<4x16xbf16>
    %cst_36 = arith.constant dense<0.000000e+00> : vector<64x16xf32>
    %75 = tpu.matmul %72, %74, %cst_36 {dimension_numbers = #tpu.dot_dimension_numbers<[1], [0], [0], [1], [0, 0, 1, 1], [], []>} : vector<64x4xbf16>, vector<4x16xbf16>, vector<64x16xf32> -> vector<64x16xf32>
    %76 = arith.addf %70, %75 : vector<64x16xf32>
    %77 = vector.broadcast %28 : vector<64x1xf32> to vector<64x16xf32>
    %78 = arith.mulf %76, %77 : vector<64x16xf32>
    %79 = arith.truncf %56 : vector<64x4xf32> to vector<64x4xbf16>
    %c0_37 = arith.constant 0 : index
    %c3 = arith.constant 3 : index
    %c0_38 = arith.constant 0 : index
    %c0_39 = arith.constant 0 : index
    %80 = vector.load %arg4[%c0_37, %c3, %c0_38, %c0_39] : memref<2x9x4x16xbf16, #tpu.memory_space<vmem>>, vector<1x1x4x16xbf16>
    %81 = vector.shape_cast %80 : vector<1x1x4x16xbf16> to vector<4x16xbf16>
    %cst_40 = arith.constant dense<0.000000e+00> : vector<64x16xf32>
    %82 = tpu.matmul %79, %81, %cst_40 {dimension_numbers = #tpu.dot_dimension_numbers<[1], [0], [0], [1], [0, 0, 1, 1], [], []>} : vector<64x4xbf16>, vector<4x16xbf16>, vector<64x16xf32> -> vector<64x16xf32>
    %83 = arith.truncf %51 : vector<64x4xf32> to vector<64x4xbf16>
    %c0_41 = arith.constant 0 : index
    %c4 = arith.constant 4 : index
    %c0_42 = arith.constant 0 : index
    %c0_43 = arith.constant 0 : index
    %84 = vector.load %arg4[%c0_41, %c4, %c0_42, %c0_43] : memref<2x9x4x16xbf16, #tpu.memory_space<vmem>>, vector<1x1x4x16xbf16>
    %85 = vector.shape_cast %84 : vector<1x1x4x16xbf16> to vector<4x16xbf16>
    %cst_44 = arith.constant dense<0.000000e+00> : vector<64x16xf32>
    %86 = tpu.matmul %83, %85, %cst_44 {dimension_numbers = #tpu.dot_dimension_numbers<[1], [0], [0], [1], [0, 0, 1, 1], [], []>} : vector<64x4xbf16>, vector<4x16xbf16>, vector<64x16xf32> -> vector<64x16xf32>
    %87 = arith.addf %82, %86 : vector<64x16xf32>
    %88 = arith.truncf %59 : vector<64x4xf32> to vector<64x4xbf16>
    %c0_45 = arith.constant 0 : index
    %c5 = arith.constant 5 : index
    %c0_46 = arith.constant 0 : index
    %c0_47 = arith.constant 0 : index
    %89 = vector.load %arg4[%c0_45, %c5, %c0_46, %c0_47] : memref<2x9x4x16xbf16, #tpu.memory_space<vmem>>, vector<1x1x4x16xbf16>
    %90 = vector.shape_cast %89 : vector<1x1x4x16xbf16> to vector<4x16xbf16>
    %cst_48 = arith.constant dense<0.000000e+00> : vector<64x16xf32>
    %91 = tpu.matmul %88, %90, %cst_48 {dimension_numbers = #tpu.dot_dimension_numbers<[1], [0], [0], [1], [0, 0, 1, 1], [], []>} : vector<64x4xbf16>, vector<4x16xbf16>, vector<64x16xf32> -> vector<64x16xf32>
    %92 = arith.addf %87, %91 : vector<64x16xf32>
    %93 = arith.addf %78, %92 : vector<64x16xf32>
    %c56_i32_49 = arith.constant 56 : i32
    %94 = tpu.dynamic_rotate %56 by %c56_i32_49 dim 0 : vector<64x4xf32>, i32 -> vector<64x4xf32>
    %95 = arith.truncf %94 : vector<64x4xf32> to vector<64x4xbf16>
    %c0_50 = arith.constant 0 : index
    %c6 = arith.constant 6 : index
    %c0_51 = arith.constant 0 : index
    %c0_52 = arith.constant 0 : index
    %96 = vector.load %arg4[%c0_50, %c6, %c0_51, %c0_52] : memref<2x9x4x16xbf16, #tpu.memory_space<vmem>>, vector<1x1x4x16xbf16>
    %97 = vector.shape_cast %96 : vector<1x1x4x16xbf16> to vector<4x16xbf16>
    %cst_53 = arith.constant dense<0.000000e+00> : vector<64x16xf32>
    %98 = tpu.matmul %95, %97, %cst_53 {dimension_numbers = #tpu.dot_dimension_numbers<[1], [0], [0], [1], [0, 0, 1, 1], [], []>} : vector<64x4xbf16>, vector<4x16xbf16>, vector<64x16xf32> -> vector<64x16xf32>
    %c56_i32_54 = arith.constant 56 : i32
    %99 = tpu.dynamic_rotate %51 by %c56_i32_54 dim 0 : vector<64x4xf32>, i32 -> vector<64x4xf32>
    %100 = arith.truncf %99 : vector<64x4xf32> to vector<64x4xbf16>
    %c0_55 = arith.constant 0 : index
    %c7 = arith.constant 7 : index
    %c0_56 = arith.constant 0 : index
    %c0_57 = arith.constant 0 : index
    %101 = vector.load %arg4[%c0_55, %c7, %c0_56, %c0_57] : memref<2x9x4x16xbf16, #tpu.memory_space<vmem>>, vector<1x1x4x16xbf16>
    %102 = vector.shape_cast %101 : vector<1x1x4x16xbf16> to vector<4x16xbf16>
    %cst_58 = arith.constant dense<0.000000e+00> : vector<64x16xf32>
    %103 = tpu.matmul %100, %102, %cst_58 {dimension_numbers = #tpu.dot_dimension_numbers<[1], [0], [0], [1], [0, 0, 1, 1], [], []>} : vector<64x4xbf16>, vector<4x16xbf16>, vector<64x16xf32> -> vector<64x16xf32>
    %104 = arith.addf %98, %103 : vector<64x16xf32>
    %c56_i32_59 = arith.constant 56 : i32
    %105 = tpu.dynamic_rotate %59 by %c56_i32_59 dim 0 : vector<64x4xf32>, i32 -> vector<64x4xf32>
    %106 = arith.truncf %105 : vector<64x4xf32> to vector<64x4xbf16>
    %c0_60 = arith.constant 0 : index
    %c8 = arith.constant 8 : index
    %c0_61 = arith.constant 0 : index
    %c0_62 = arith.constant 0 : index
    %107 = vector.load %arg4[%c0_60, %c8, %c0_61, %c0_62] : memref<2x9x4x16xbf16, #tpu.memory_space<vmem>>, vector<1x1x4x16xbf16>
    %108 = vector.shape_cast %107 : vector<1x1x4x16xbf16> to vector<4x16xbf16>
    %cst_63 = arith.constant dense<0.000000e+00> : vector<64x16xf32>
    %109 = tpu.matmul %106, %108, %cst_63 {dimension_numbers = #tpu.dot_dimension_numbers<[1], [0], [0], [1], [0, 0, 1, 1], [], []>} : vector<64x4xbf16>, vector<4x16xbf16>, vector<64x16xf32> -> vector<64x16xf32>
    %110 = arith.addf %104, %109 : vector<64x16xf32>
    %111 = vector.broadcast %32 : vector<64x1xf32> to vector<64x16xf32>
    %112 = arith.mulf %110, %111 : vector<64x16xf32>
    %113 = arith.addf %93, %112 : vector<64x16xf32>
    %114 = vector.broadcast %53 : vector<1x16xf32> to vector<64x16xf32>
    %115 = arith.addf %113, %114 : vector<64x16xf32>
    %cst_64 = arith.constant 0.000000e+00 : f32
    %116 = vector.broadcast %cst_64 : f32 to vector<64x16xf32>
    %117 = arith.maximumf %115, %116 : vector<64x16xf32>
    %118 = arith.truncf %117 : vector<64x16xf32> to vector<64x16xbf16>
    %c0_65 = arith.constant 0 : index
    %c0_66 = arith.constant 0 : index
    %c0_67 = arith.constant 0 : index
    %119 = vector.load %arg6[%c0_65, %c0_66, %c0_67] : memref<2x16x16xbf16, #tpu.memory_space<vmem>>, vector<1x16x16xbf16>
    %120 = vector.shape_cast %119 : vector<1x16x16xbf16> to vector<16x16xbf16>
    %cst_68 = arith.constant dense<0.000000e+00> : vector<64x16xf32>
    %121 = tpu.matmul %118, %120, %cst_68 {dimension_numbers = #tpu.dot_dimension_numbers<[1], [0], [0], [1], [0, 0, 1, 1], [], []>} : vector<64x16xbf16>, vector<16x16xbf16>, vector<64x16xf32> -> vector<64x16xf32>
    %c0_69 = arith.constant 0 : index
    %c0_70 = arith.constant 0 : index
    %c0_71 = arith.constant 0 : index
    %122 = vector.load %arg7[%c0_69, %c0_70, %c0_71] : memref<2x1x16xf32, #tpu.memory_space<vmem>>, vector<1x1x16xf32>
    %123 = vector.shape_cast %122 : vector<1x1x16xf32> to vector<1x16xf32>
    %124 = vector.broadcast %123 : vector<1x16xf32> to vector<64x16xf32>
    %125 = arith.addf %121, %124 : vector<64x16xf32>
    %cst_72 = arith.constant 0.000000e+00 : f32
    %126 = vector.broadcast %cst_72 : f32 to vector<64x16xf32>
    %127 = arith.maximumf %125, %126 : vector<64x16xf32>
    %c0_73 = arith.constant 0 : index
    %c0_74 = arith.constant 0 : index
    %c0_75 = arith.constant 0 : index
    %128 = vector.load %arg9[%c0_73, %c0_74, %c0_75] : memref<2x1x4xf32, #tpu.memory_space<vmem>>, vector<1x1x4xf32>
    %129 = vector.shape_cast %128 : vector<1x1x4xf32> to vector<1x4xf32>
    %c1_i32_76 = arith.constant 1 : i32
    %130 = tpu.dynamic_rotate %127 by %c1_i32_76 dim 0 : vector<64x16xf32>, i32 -> vector<64x16xf32>
    %131 = vector.broadcast %20 : vector<64x1xf32> to vector<64x16xf32>
    %132 = arith.mulf %130, %131 : vector<64x16xf32>
    %c63_i32_77 = arith.constant 63 : i32
    %133 = tpu.dynamic_rotate %127 by %c63_i32_77 dim 0 : vector<64x16xf32>, i32 -> vector<64x16xf32>
    %134 = vector.broadcast %24 : vector<64x1xf32> to vector<64x16xf32>
    %135 = arith.mulf %133, %134 : vector<64x16xf32>
    %c8_i32_78 = arith.constant 8 : i32
    %136 = tpu.dynamic_rotate %132 by %c8_i32_78 dim 0 : vector<64x16xf32>, i32 -> vector<64x16xf32>
    %137 = arith.truncf %136 : vector<64x16xf32> to vector<64x16xbf16>
    %c0_79 = arith.constant 0 : index
    %c0_80 = arith.constant 0 : index
    %c0_81 = arith.constant 0 : index
    %c0_82 = arith.constant 0 : index
    %138 = vector.load %arg8[%c0_79, %c0_80, %c0_81, %c0_82] : memref<2x9x16x4xbf16, #tpu.memory_space<vmem>>, vector<1x1x16x4xbf16>
    %139 = vector.shape_cast %138 : vector<1x1x16x4xbf16> to vector<16x4xbf16>
    %cst_83 = arith.constant dense<0.000000e+00> : vector<64x4xf32>
    %140 = tpu.matmul %137, %139, %cst_83 {dimension_numbers = #tpu.dot_dimension_numbers<[1], [0], [0], [1], [0, 0, 1, 1], [], []>} : vector<64x16xbf16>, vector<16x4xbf16>, vector<64x4xf32> -> vector<64x4xf32>
    %c8_i32_84 = arith.constant 8 : i32
    %141 = tpu.dynamic_rotate %127 by %c8_i32_84 dim 0 : vector<64x16xf32>, i32 -> vector<64x16xf32>
    %142 = arith.truncf %141 : vector<64x16xf32> to vector<64x16xbf16>
    %c0_85 = arith.constant 0 : index
    %c1_86 = arith.constant 1 : index
    %c0_87 = arith.constant 0 : index
    %c0_88 = arith.constant 0 : index
    %143 = vector.load %arg8[%c0_85, %c1_86, %c0_87, %c0_88] : memref<2x9x16x4xbf16, #tpu.memory_space<vmem>>, vector<1x1x16x4xbf16>
    %144 = vector.shape_cast %143 : vector<1x1x16x4xbf16> to vector<16x4xbf16>
    %cst_89 = arith.constant dense<0.000000e+00> : vector<64x4xf32>
    %145 = tpu.matmul %142, %144, %cst_89 {dimension_numbers = #tpu.dot_dimension_numbers<[1], [0], [0], [1], [0, 0, 1, 1], [], []>} : vector<64x16xbf16>, vector<16x4xbf16>, vector<64x4xf32> -> vector<64x4xf32>
    %146 = arith.addf %140, %145 : vector<64x4xf32>
    %c8_i32_90 = arith.constant 8 : i32
    %147 = tpu.dynamic_rotate %135 by %c8_i32_90 dim 0 : vector<64x16xf32>, i32 -> vector<64x16xf32>
    %148 = arith.truncf %147 : vector<64x16xf32> to vector<64x16xbf16>
    %c0_91 = arith.constant 0 : index
    %c2_92 = arith.constant 2 : index
    %c0_93 = arith.constant 0 : index
    %c0_94 = arith.constant 0 : index
    %149 = vector.load %arg8[%c0_91, %c2_92, %c0_93, %c0_94] : memref<2x9x16x4xbf16, #tpu.memory_space<vmem>>, vector<1x1x16x4xbf16>
    %150 = vector.shape_cast %149 : vector<1x1x16x4xbf16> to vector<16x4xbf16>
    %cst_95 = arith.constant dense<0.000000e+00> : vector<64x4xf32>
    %151 = tpu.matmul %148, %150, %cst_95 {dimension_numbers = #tpu.dot_dimension_numbers<[1], [0], [0], [1], [0, 0, 1, 1], [], []>} : vector<64x16xbf16>, vector<16x4xbf16>, vector<64x4xf32> -> vector<64x4xf32>
    %152 = arith.addf %146, %151 : vector<64x4xf32>
    %153 = vector.broadcast %28 : vector<64x1xf32> to vector<64x4xf32>
    %154 = arith.mulf %152, %153 : vector<64x4xf32>
    %155 = arith.truncf %132 : vector<64x16xf32> to vector<64x16xbf16>
    %c0_96 = arith.constant 0 : index
    %c3_97 = arith.constant 3 : index
    %c0_98 = arith.constant 0 : index
    %c0_99 = arith.constant 0 : index
    %156 = vector.load %arg8[%c0_96, %c3_97, %c0_98, %c0_99] : memref<2x9x16x4xbf16, #tpu.memory_space<vmem>>, vector<1x1x16x4xbf16>
    %157 = vector.shape_cast %156 : vector<1x1x16x4xbf16> to vector<16x4xbf16>
    %cst_100 = arith.constant dense<0.000000e+00> : vector<64x4xf32>
    %158 = tpu.matmul %155, %157, %cst_100 {dimension_numbers = #tpu.dot_dimension_numbers<[1], [0], [0], [1], [0, 0, 1, 1], [], []>} : vector<64x16xbf16>, vector<16x4xbf16>, vector<64x4xf32> -> vector<64x4xf32>
    %159 = arith.truncf %127 : vector<64x16xf32> to vector<64x16xbf16>
    %c0_101 = arith.constant 0 : index
    %c4_102 = arith.constant 4 : index
    %c0_103 = arith.constant 0 : index
    %c0_104 = arith.constant 0 : index
    %160 = vector.load %arg8[%c0_101, %c4_102, %c0_103, %c0_104] : memref<2x9x16x4xbf16, #tpu.memory_space<vmem>>, vector<1x1x16x4xbf16>
    %161 = vector.shape_cast %160 : vector<1x1x16x4xbf16> to vector<16x4xbf16>
    %cst_105 = arith.constant dense<0.000000e+00> : vector<64x4xf32>
    %162 = tpu.matmul %159, %161, %cst_105 {dimension_numbers = #tpu.dot_dimension_numbers<[1], [0], [0], [1], [0, 0, 1, 1], [], []>} : vector<64x16xbf16>, vector<16x4xbf16>, vector<64x4xf32> -> vector<64x4xf32>
    %163 = arith.addf %158, %162 : vector<64x4xf32>
    %164 = arith.truncf %135 : vector<64x16xf32> to vector<64x16xbf16>
    %c0_106 = arith.constant 0 : index
    %c5_107 = arith.constant 5 : index
    %c0_108 = arith.constant 0 : index
    %c0_109 = arith.constant 0 : index
    %165 = vector.load %arg8[%c0_106, %c5_107, %c0_108, %c0_109] : memref<2x9x16x4xbf16, #tpu.memory_space<vmem>>, vector<1x1x16x4xbf16>
    %166 = vector.shape_cast %165 : vector<1x1x16x4xbf16> to vector<16x4xbf16>
    %cst_110 = arith.constant dense<0.000000e+00> : vector<64x4xf32>
    %167 = tpu.matmul %164, %166, %cst_110 {dimension_numbers = #tpu.dot_dimension_numbers<[1], [0], [0], [1], [0, 0, 1, 1], [], []>} : vector<64x16xbf16>, vector<16x4xbf16>, vector<64x4xf32> -> vector<64x4xf32>
    %168 = arith.addf %163, %167 : vector<64x4xf32>
    %169 = arith.addf %154, %168 : vector<64x4xf32>
    %c56_i32_111 = arith.constant 56 : i32
    %170 = tpu.dynamic_rotate %132 by %c56_i32_111 dim 0 : vector<64x16xf32>, i32 -> vector<64x16xf32>
    %171 = arith.truncf %170 : vector<64x16xf32> to vector<64x16xbf16>
    %c0_112 = arith.constant 0 : index
    %c6_113 = arith.constant 6 : index
    %c0_114 = arith.constant 0 : index
    %c0_115 = arith.constant 0 : index
    %172 = vector.load %arg8[%c0_112, %c6_113, %c0_114, %c0_115] : memref<2x9x16x4xbf16, #tpu.memory_space<vmem>>, vector<1x1x16x4xbf16>
    %173 = vector.shape_cast %172 : vector<1x1x16x4xbf16> to vector<16x4xbf16>
    %cst_116 = arith.constant dense<0.000000e+00> : vector<64x4xf32>
    %174 = tpu.matmul %171, %173, %cst_116 {dimension_numbers = #tpu.dot_dimension_numbers<[1], [0], [0], [1], [0, 0, 1, 1], [], []>} : vector<64x16xbf16>, vector<16x4xbf16>, vector<64x4xf32> -> vector<64x4xf32>
    %c56_i32_117 = arith.constant 56 : i32
    %175 = tpu.dynamic_rotate %127 by %c56_i32_117 dim 0 : vector<64x16xf32>, i32 -> vector<64x16xf32>
    %176 = arith.truncf %175 : vector<64x16xf32> to vector<64x16xbf16>
    %c0_118 = arith.constant 0 : index
    %c7_119 = arith.constant 7 : index
    %c0_120 = arith.constant 0 : index
    %c0_121 = arith.constant 0 : index
    %177 = vector.load %arg8[%c0_118, %c7_119, %c0_120, %c0_121] : memref<2x9x16x4xbf16, #tpu.memory_space<vmem>>, vector<1x1x16x4xbf16>
    %178 = vector.shape_cast %177 : vector<1x1x16x4xbf16> to vector<16x4xbf16>
    %cst_122 = arith.constant dense<0.000000e+00> : vector<64x4xf32>
    %179 = tpu.matmul %176, %178, %cst_122 {dimension_numbers = #tpu.dot_dimension_numbers<[1], [0], [0], [1], [0, 0, 1, 1], [], []>} : vector<64x16xbf16>, vector<16x4xbf16>, vector<64x4xf32> -> vector<64x4xf32>
    %180 = arith.addf %174, %179 : vector<64x4xf32>
    %c56_i32_123 = arith.constant 56 : i32
    %181 = tpu.dynamic_rotate %135 by %c56_i32_123 dim 0 : vector<64x16xf32>, i32 -> vector<64x16xf32>
    %182 = arith.truncf %181 : vector<64x16xf32> to vector<64x16xbf16>
    %c0_124 = arith.constant 0 : index
    %c8_125 = arith.constant 8 : index
    %c0_126 = arith.constant 0 : index
    %c0_127 = arith.constant 0 : index
    %183 = vector.load %arg8[%c0_124, %c8_125, %c0_126, %c0_127] : memref<2x9x16x4xbf16, #tpu.memory_space<vmem>>, vector<1x1x16x4xbf16>
    %184 = vector.shape_cast %183 : vector<1x1x16x4xbf16> to vector<16x4xbf16>
    %cst_128 = arith.constant dense<0.000000e+00> : vector<64x4xf32>
    %185 = tpu.matmul %182, %184, %cst_128 {dimension_numbers = #tpu.dot_dimension_numbers<[1], [0], [0], [1], [0, 0, 1, 1], [], []>} : vector<64x16xbf16>, vector<16x4xbf16>, vector<64x4xf32> -> vector<64x4xf32>
    %186 = arith.addf %180, %185 : vector<64x4xf32>
    %187 = vector.broadcast %32 : vector<64x1xf32> to vector<64x4xf32>
    %188 = arith.mulf %186, %187 : vector<64x4xf32>
    %189 = arith.addf %169, %188 : vector<64x4xf32>
    %190 = vector.broadcast %129 : vector<1x4xf32> to vector<64x4xf32>
    %191 = arith.addf %189, %190 : vector<64x4xf32>
    %192 = arith.truncf %191 : vector<64x4xf32> to vector<64x4xbf16>
    %cst_129 = arith.constant dense<0.000000e+00> : vector<64x4xf32>
    %193 = tpu.matmul %192, %40, %cst_129 {dimension_numbers = #tpu.dot_dimension_numbers<[1], [0], [0], [1], [0, 0, 1, 1], [], []>} : vector<64x4xbf16>, vector<4x4xbf16>, vector<64x4xf32> -> vector<64x4xf32>
    %cst_130 = arith.constant 2.000000e+00 : f32
    %194 = vector.broadcast %cst_130 : f32 to vector<64x4xf32>
    %195 = arith.addf %193, %194 : vector<64x4xf32>
    %cst_131 = arith.constant 0.000000e+00 : f32
    %196 = vector.broadcast %cst_131 : f32 to vector<64x4xf32>
    %197 = arith.minimumf %195, %196 : vector<64x4xf32>
    %198 = math.absf %195 : vector<64x4xf32>
    %cst_132 = arith.constant 0.000000e+00 : f32
    %199 = vector.broadcast %cst_132 : f32 to vector<64x4xf32>
    %200 = arith.subf %199, %198 : vector<64x4xf32>
    %201 = math.exp %200 : vector<64x4xf32>
    %cst_133 = arith.constant 1.000000e+00 : f32
    %202 = vector.broadcast %cst_133 : f32 to vector<64x4xf32>
    %203 = arith.addf %202, %201 : vector<64x4xf32>
    %204 = math.log %203 : vector<64x4xf32>
    %205 = arith.subf %197, %204 : vector<64x4xf32>
    %206 = math.exp %205 : vector<64x4xf32>
    %207 = vector.broadcast %39 : vector<1x4xf32> to vector<64x4xf32>
    %208 = arith.mulf %51, %207 : vector<64x4xf32>
    %209 = arith.addf %51, %191 : vector<64x4xf32>
    %210 = vector.broadcast %37 : vector<1x4xf32> to vector<64x4xf32>
    %211 = arith.mulf %209, %210 : vector<64x4xf32>
    %212 = arith.mulf %211, %206 : vector<64x4xf32>
    %213 = arith.addf %208, %212 : vector<64x4xf32>
    %214 = vector.broadcast %37 : vector<1x4xf32> to vector<64x4xf32>
    %215 = arith.mulf %205, %214 : vector<64x4xf32>
    %cst_134 = arith.constant dense<0.000000e+00> : vector<64xf32>
    %216 = vector.multi_reduction <add>, %215, %cst_134 [1] : vector<64x4xf32> to vector<64xf32>
    %217 = vector.shape_cast %216 : vector<64xf32> to vector<64x1xf32>
    %cst_135 = arith.constant dense<0.000000e+00> : vector<1xf32>
    %218 = vector.multi_reduction <add>, %217, %cst_135 [0] : vector<64x1xf32> to vector<1xf32>
    %219 = vector.shape_cast %218 : vector<1xf32> to vector<1x1xf32>
    %220 = arith.addf %43, %219 : vector<1x1xf32>
    %221 = arith.truncf %213 : vector<64x4xf32> to vector<64x4xbf16>
    %c1_136 = arith.constant 1 : index
    %c0_137 = arith.constant 0 : index
    %c0_138 = arith.constant 0 : index
    %222 = vector.load %arg2[%c1_136, %c0_137, %c0_138] : memref<2x4x4xbf16, #tpu.memory_space<vmem>>, vector<1x4x4xbf16>
    %223 = vector.shape_cast %222 : vector<1x4x4xbf16> to vector<4x4xbf16>
    %cst_139 = arith.constant dense<0.000000e+00> : vector<64x4xf32>
    %224 = tpu.matmul %221, %223, %cst_139 {dimension_numbers = #tpu.dot_dimension_numbers<[1], [0], [0], [1], [0, 0, 1, 1], [], []>} : vector<64x4xbf16>, vector<4x4xbf16>, vector<64x4xf32> -> vector<64x4xf32>
    %c1_140 = arith.constant 1 : index
    %c0_141 = arith.constant 0 : index
    %c0_142 = arith.constant 0 : index
    %225 = vector.load %arg3[%c1_140, %c0_141, %c0_142] : memref<2x1x4xf32, #tpu.memory_space<vmem>>, vector<1x1x4xf32>
    %226 = vector.shape_cast %225 : vector<1x1x4xf32> to vector<1x4xf32>
    %227 = vector.broadcast %226 : vector<1x4xf32> to vector<64x4xf32>
    %228 = arith.addf %224, %227 : vector<64x4xf32>
    %c1_143 = arith.constant 1 : index
    %c0_144 = arith.constant 0 : index
    %c0_145 = arith.constant 0 : index
    %229 = vector.load %arg5[%c1_143, %c0_144, %c0_145] : memref<2x1x16xf32, #tpu.memory_space<vmem>>, vector<1x1x16xf32>
    %230 = vector.shape_cast %229 : vector<1x1x16xf32> to vector<1x16xf32>
    %c1_i32_146 = arith.constant 1 : i32
    %231 = tpu.dynamic_rotate %228 by %c1_i32_146 dim 0 : vector<64x4xf32>, i32 -> vector<64x4xf32>
    %232 = vector.broadcast %20 : vector<64x1xf32> to vector<64x4xf32>
    %233 = arith.mulf %231, %232 : vector<64x4xf32>
    %c63_i32_147 = arith.constant 63 : i32
    %234 = tpu.dynamic_rotate %228 by %c63_i32_147 dim 0 : vector<64x4xf32>, i32 -> vector<64x4xf32>
    %235 = vector.broadcast %24 : vector<64x1xf32> to vector<64x4xf32>
    %236 = arith.mulf %234, %235 : vector<64x4xf32>
    %c8_i32_148 = arith.constant 8 : i32
    %237 = tpu.dynamic_rotate %233 by %c8_i32_148 dim 0 : vector<64x4xf32>, i32 -> vector<64x4xf32>
    %238 = arith.truncf %237 : vector<64x4xf32> to vector<64x4xbf16>
    %c1_149 = arith.constant 1 : index
    %c0_150 = arith.constant 0 : index
    %c0_151 = arith.constant 0 : index
    %c0_152 = arith.constant 0 : index
    %239 = vector.load %arg4[%c1_149, %c0_150, %c0_151, %c0_152] : memref<2x9x4x16xbf16, #tpu.memory_space<vmem>>, vector<1x1x4x16xbf16>
    %240 = vector.shape_cast %239 : vector<1x1x4x16xbf16> to vector<4x16xbf16>
    %cst_153 = arith.constant dense<0.000000e+00> : vector<64x16xf32>
    %241 = tpu.matmul %238, %240, %cst_153 {dimension_numbers = #tpu.dot_dimension_numbers<[1], [0], [0], [1], [0, 0, 1, 1], [], []>} : vector<64x4xbf16>, vector<4x16xbf16>, vector<64x16xf32> -> vector<64x16xf32>
    %c8_i32_154 = arith.constant 8 : i32
    %242 = tpu.dynamic_rotate %228 by %c8_i32_154 dim 0 : vector<64x4xf32>, i32 -> vector<64x4xf32>
    %243 = arith.truncf %242 : vector<64x4xf32> to vector<64x4xbf16>
    %c1_155 = arith.constant 1 : index
    %c1_156 = arith.constant 1 : index
    %c0_157 = arith.constant 0 : index
    %c0_158 = arith.constant 0 : index
    %244 = vector.load %arg4[%c1_155, %c1_156, %c0_157, %c0_158] : memref<2x9x4x16xbf16, #tpu.memory_space<vmem>>, vector<1x1x4x16xbf16>
    %245 = vector.shape_cast %244 : vector<1x1x4x16xbf16> to vector<4x16xbf16>
    %cst_159 = arith.constant dense<0.000000e+00> : vector<64x16xf32>
    %246 = tpu.matmul %243, %245, %cst_159 {dimension_numbers = #tpu.dot_dimension_numbers<[1], [0], [0], [1], [0, 0, 1, 1], [], []>} : vector<64x4xbf16>, vector<4x16xbf16>, vector<64x16xf32> -> vector<64x16xf32>
    %247 = arith.addf %241, %246 : vector<64x16xf32>
    %c8_i32_160 = arith.constant 8 : i32
    %248 = tpu.dynamic_rotate %236 by %c8_i32_160 dim 0 : vector<64x4xf32>, i32 -> vector<64x4xf32>
    %249 = arith.truncf %248 : vector<64x4xf32> to vector<64x4xbf16>
    %c1_161 = arith.constant 1 : index
    %c2_162 = arith.constant 2 : index
    %c0_163 = arith.constant 0 : index
    %c0_164 = arith.constant 0 : index
    %250 = vector.load %arg4[%c1_161, %c2_162, %c0_163, %c0_164] : memref<2x9x4x16xbf16, #tpu.memory_space<vmem>>, vector<1x1x4x16xbf16>
    %251 = vector.shape_cast %250 : vector<1x1x4x16xbf16> to vector<4x16xbf16>
    %cst_165 = arith.constant dense<0.000000e+00> : vector<64x16xf32>
    %252 = tpu.matmul %249, %251, %cst_165 {dimension_numbers = #tpu.dot_dimension_numbers<[1], [0], [0], [1], [0, 0, 1, 1], [], []>} : vector<64x4xbf16>, vector<4x16xbf16>, vector<64x16xf32> -> vector<64x16xf32>
    %253 = arith.addf %247, %252 : vector<64x16xf32>
    %254 = vector.broadcast %28 : vector<64x1xf32> to vector<64x16xf32>
    %255 = arith.mulf %253, %254 : vector<64x16xf32>
    %256 = arith.truncf %233 : vector<64x4xf32> to vector<64x4xbf16>
    %c1_166 = arith.constant 1 : index
    %c3_167 = arith.constant 3 : index
    %c0_168 = arith.constant 0 : index
    %c0_169 = arith.constant 0 : index
    %257 = vector.load %arg4[%c1_166, %c3_167, %c0_168, %c0_169] : memref<2x9x4x16xbf16, #tpu.memory_space<vmem>>, vector<1x1x4x16xbf16>
    %258 = vector.shape_cast %257 : vector<1x1x4x16xbf16> to vector<4x16xbf16>
    %cst_170 = arith.constant dense<0.000000e+00> : vector<64x16xf32>
    %259 = tpu.matmul %256, %258, %cst_170 {dimension_numbers = #tpu.dot_dimension_numbers<[1], [0], [0], [1], [0, 0, 1, 1], [], []>} : vector<64x4xbf16>, vector<4x16xbf16>, vector<64x16xf32> -> vector<64x16xf32>
    %260 = arith.truncf %228 : vector<64x4xf32> to vector<64x4xbf16>
    %c1_171 = arith.constant 1 : index
    %c4_172 = arith.constant 4 : index
    %c0_173 = arith.constant 0 : index
    %c0_174 = arith.constant 0 : index
    %261 = vector.load %arg4[%c1_171, %c4_172, %c0_173, %c0_174] : memref<2x9x4x16xbf16, #tpu.memory_space<vmem>>, vector<1x1x4x16xbf16>
    %262 = vector.shape_cast %261 : vector<1x1x4x16xbf16> to vector<4x16xbf16>
    %cst_175 = arith.constant dense<0.000000e+00> : vector<64x16xf32>
    %263 = tpu.matmul %260, %262, %cst_175 {dimension_numbers = #tpu.dot_dimension_numbers<[1], [0], [0], [1], [0, 0, 1, 1], [], []>} : vector<64x4xbf16>, vector<4x16xbf16>, vector<64x16xf32> -> vector<64x16xf32>
    %264 = arith.addf %259, %263 : vector<64x16xf32>
    %265 = arith.truncf %236 : vector<64x4xf32> to vector<64x4xbf16>
    %c1_176 = arith.constant 1 : index
    %c5_177 = arith.constant 5 : index
    %c0_178 = arith.constant 0 : index
    %c0_179 = arith.constant 0 : index
    %266 = vector.load %arg4[%c1_176, %c5_177, %c0_178, %c0_179] : memref<2x9x4x16xbf16, #tpu.memory_space<vmem>>, vector<1x1x4x16xbf16>
    %267 = vector.shape_cast %266 : vector<1x1x4x16xbf16> to vector<4x16xbf16>
    %cst_180 = arith.constant dense<0.000000e+00> : vector<64x16xf32>
    %268 = tpu.matmul %265, %267, %cst_180 {dimension_numbers = #tpu.dot_dimension_numbers<[1], [0], [0], [1], [0, 0, 1, 1], [], []>} : vector<64x4xbf16>, vector<4x16xbf16>, vector<64x16xf32> -> vector<64x16xf32>
    %269 = arith.addf %264, %268 : vector<64x16xf32>
    %270 = arith.addf %255, %269 : vector<64x16xf32>
    %c56_i32_181 = arith.constant 56 : i32
    %271 = tpu.dynamic_rotate %233 by %c56_i32_181 dim 0 : vector<64x4xf32>, i32 -> vector<64x4xf32>
    %272 = arith.truncf %271 : vector<64x4xf32> to vector<64x4xbf16>
    %c1_182 = arith.constant 1 : index
    %c6_183 = arith.constant 6 : index
    %c0_184 = arith.constant 0 : index
    %c0_185 = arith.constant 0 : index
    %273 = vector.load %arg4[%c1_182, %c6_183, %c0_184, %c0_185] : memref<2x9x4x16xbf16, #tpu.memory_space<vmem>>, vector<1x1x4x16xbf16>
    %274 = vector.shape_cast %273 : vector<1x1x4x16xbf16> to vector<4x16xbf16>
    %cst_186 = arith.constant dense<0.000000e+00> : vector<64x16xf32>
    %275 = tpu.matmul %272, %274, %cst_186 {dimension_numbers = #tpu.dot_dimension_numbers<[1], [0], [0], [1], [0, 0, 1, 1], [], []>} : vector<64x4xbf16>, vector<4x16xbf16>, vector<64x16xf32> -> vector<64x16xf32>
    %c56_i32_187 = arith.constant 56 : i32
    %276 = tpu.dynamic_rotate %228 by %c56_i32_187 dim 0 : vector<64x4xf32>, i32 -> vector<64x4xf32>
    %277 = arith.truncf %276 : vector<64x4xf32> to vector<64x4xbf16>
    %c1_188 = arith.constant 1 : index
    %c7_189 = arith.constant 7 : index
    %c0_190 = arith.constant 0 : index
    %c0_191 = arith.constant 0 : index
    %278 = vector.load %arg4[%c1_188, %c7_189, %c0_190, %c0_191] : memref<2x9x4x16xbf16, #tpu.memory_space<vmem>>, vector<1x1x4x16xbf16>
    %279 = vector.shape_cast %278 : vector<1x1x4x16xbf16> to vector<4x16xbf16>
    %cst_192 = arith.constant dense<0.000000e+00> : vector<64x16xf32>
    %280 = tpu.matmul %277, %279, %cst_192 {dimension_numbers = #tpu.dot_dimension_numbers<[1], [0], [0], [1], [0, 0, 1, 1], [], []>} : vector<64x4xbf16>, vector<4x16xbf16>, vector<64x16xf32> -> vector<64x16xf32>
    %281 = arith.addf %275, %280 : vector<64x16xf32>
    %c56_i32_193 = arith.constant 56 : i32
    %282 = tpu.dynamic_rotate %236 by %c56_i32_193 dim 0 : vector<64x4xf32>, i32 -> vector<64x4xf32>
    %283 = arith.truncf %282 : vector<64x4xf32> to vector<64x4xbf16>
    %c1_194 = arith.constant 1 : index
    %c8_195 = arith.constant 8 : index
    %c0_196 = arith.constant 0 : index
    %c0_197 = arith.constant 0 : index
    %284 = vector.load %arg4[%c1_194, %c8_195, %c0_196, %c0_197] : memref<2x9x4x16xbf16, #tpu.memory_space<vmem>>, vector<1x1x4x16xbf16>
    %285 = vector.shape_cast %284 : vector<1x1x4x16xbf16> to vector<4x16xbf16>
    %cst_198 = arith.constant dense<0.000000e+00> : vector<64x16xf32>
    %286 = tpu.matmul %283, %285, %cst_198 {dimension_numbers = #tpu.dot_dimension_numbers<[1], [0], [0], [1], [0, 0, 1, 1], [], []>} : vector<64x4xbf16>, vector<4x16xbf16>, vector<64x16xf32> -> vector<64x16xf32>
    %287 = arith.addf %281, %286 : vector<64x16xf32>
    %288 = vector.broadcast %32 : vector<64x1xf32> to vector<64x16xf32>
    %289 = arith.mulf %287, %288 : vector<64x16xf32>
    %290 = arith.addf %270, %289 : vector<64x16xf32>
    %291 = vector.broadcast %230 : vector<1x16xf32> to vector<64x16xf32>
    %292 = arith.addf %290, %291 : vector<64x16xf32>
    %cst_199 = arith.constant 0.000000e+00 : f32
    %293 = vector.broadcast %cst_199 : f32 to vector<64x16xf32>
    %294 = arith.maximumf %292, %293 : vector<64x16xf32>
    %295 = arith.truncf %294 : vector<64x16xf32> to vector<64x16xbf16>
    %c1_200 = arith.constant 1 : index
    %c0_201 = arith.constant 0 : index
    %c0_202 = arith.constant 0 : index
    %296 = vector.load %arg6[%c1_200, %c0_201, %c0_202] : memref<2x16x16xbf16, #tpu.memory_space<vmem>>, vector<1x16x16xbf16>
    %297 = vector.shape_cast %296 : vector<1x16x16xbf16> to vector<16x16xbf16>
    %cst_203 = arith.constant dense<0.000000e+00> : vector<64x16xf32>
    %298 = tpu.matmul %295, %297, %cst_203 {dimension_numbers = #tpu.dot_dimension_numbers<[1], [0], [0], [1], [0, 0, 1, 1], [], []>} : vector<64x16xbf16>, vector<16x16xbf16>, vector<64x16xf32> -> vector<64x16xf32>
    %c1_204 = arith.constant 1 : index
    %c0_205 = arith.constant 0 : index
    %c0_206 = arith.constant 0 : index
    %299 = vector.load %arg7[%c1_204, %c0_205, %c0_206] : memref<2x1x16xf32, #tpu.memory_space<vmem>>, vector<1x1x16xf32>
    %300 = vector.shape_cast %299 : vector<1x1x16xf32> to vector<1x16xf32>
    %301 = vector.broadcast %300 : vector<1x16xf32> to vector<64x16xf32>
    %302 = arith.addf %298, %301 : vector<64x16xf32>
    %cst_207 = arith.constant 0.000000e+00 : f32
    %303 = vector.broadcast %cst_207 : f32 to vector<64x16xf32>
    %304 = arith.maximumf %302, %303 : vector<64x16xf32>
    %c1_208 = arith.constant 1 : index
    %c0_209 = arith.constant 0 : index
    %c0_210 = arith.constant 0 : index
    %305 = vector.load %arg9[%c1_208, %c0_209, %c0_210] : memref<2x1x4xf32, #tpu.memory_space<vmem>>, vector<1x1x4xf32>
    %306 = vector.shape_cast %305 : vector<1x1x4xf32> to vector<1x4xf32>
    %c1_i32_211 = arith.constant 1 : i32
    %307 = tpu.dynamic_rotate %304 by %c1_i32_211 dim 0 : vector<64x16xf32>, i32 -> vector<64x16xf32>
    %308 = vector.broadcast %20 : vector<64x1xf32> to vector<64x16xf32>
    %309 = arith.mulf %307, %308 : vector<64x16xf32>
    %c63_i32_212 = arith.constant 63 : i32
    %310 = tpu.dynamic_rotate %304 by %c63_i32_212 dim 0 : vector<64x16xf32>, i32 -> vector<64x16xf32>
    %311 = vector.broadcast %24 : vector<64x1xf32> to vector<64x16xf32>
    %312 = arith.mulf %310, %311 : vector<64x16xf32>
    %c8_i32_213 = arith.constant 8 : i32
    %313 = tpu.dynamic_rotate %309 by %c8_i32_213 dim 0 : vector<64x16xf32>, i32 -> vector<64x16xf32>
    %314 = arith.truncf %313 : vector<64x16xf32> to vector<64x16xbf16>
    %c1_214 = arith.constant 1 : index
    %c0_215 = arith.constant 0 : index
    %c0_216 = arith.constant 0 : index
    %c0_217 = arith.constant 0 : index
    %315 = vector.load %arg8[%c1_214, %c0_215, %c0_216, %c0_217] : memref<2x9x16x4xbf16, #tpu.memory_space<vmem>>, vector<1x1x16x4xbf16>
    %316 = vector.shape_cast %315 : vector<1x1x16x4xbf16> to vector<16x4xbf16>
    %cst_218 = arith.constant dense<0.000000e+00> : vector<64x4xf32>
    %317 = tpu.matmul %314, %316, %cst_218 {dimension_numbers = #tpu.dot_dimension_numbers<[1], [0], [0], [1], [0, 0, 1, 1], [], []>} : vector<64x16xbf16>, vector<16x4xbf16>, vector<64x4xf32> -> vector<64x4xf32>
    %c8_i32_219 = arith.constant 8 : i32
    %318 = tpu.dynamic_rotate %304 by %c8_i32_219 dim 0 : vector<64x16xf32>, i32 -> vector<64x16xf32>
    %319 = arith.truncf %318 : vector<64x16xf32> to vector<64x16xbf16>
    %c1_220 = arith.constant 1 : index
    %c1_221 = arith.constant 1 : index
    %c0_222 = arith.constant 0 : index
    %c0_223 = arith.constant 0 : index
    %320 = vector.load %arg8[%c1_220, %c1_221, %c0_222, %c0_223] : memref<2x9x16x4xbf16, #tpu.memory_space<vmem>>, vector<1x1x16x4xbf16>
    %321 = vector.shape_cast %320 : vector<1x1x16x4xbf16> to vector<16x4xbf16>
    %cst_224 = arith.constant dense<0.000000e+00> : vector<64x4xf32>
    %322 = tpu.matmul %319, %321, %cst_224 {dimension_numbers = #tpu.dot_dimension_numbers<[1], [0], [0], [1], [0, 0, 1, 1], [], []>} : vector<64x16xbf16>, vector<16x4xbf16>, vector<64x4xf32> -> vector<64x4xf32>
    %323 = arith.addf %317, %322 : vector<64x4xf32>
    %c8_i32_225 = arith.constant 8 : i32
    %324 = tpu.dynamic_rotate %312 by %c8_i32_225 dim 0 : vector<64x16xf32>, i32 -> vector<64x16xf32>
    %325 = arith.truncf %324 : vector<64x16xf32> to vector<64x16xbf16>
    %c1_226 = arith.constant 1 : index
    %c2_227 = arith.constant 2 : index
    %c0_228 = arith.constant 0 : index
    %c0_229 = arith.constant 0 : index
    %326 = vector.load %arg8[%c1_226, %c2_227, %c0_228, %c0_229] : memref<2x9x16x4xbf16, #tpu.memory_space<vmem>>, vector<1x1x16x4xbf16>
    %327 = vector.shape_cast %326 : vector<1x1x16x4xbf16> to vector<16x4xbf16>
    %cst_230 = arith.constant dense<0.000000e+00> : vector<64x4xf32>
    %328 = tpu.matmul %325, %327, %cst_230 {dimension_numbers = #tpu.dot_dimension_numbers<[1], [0], [0], [1], [0, 0, 1, 1], [], []>} : vector<64x16xbf16>, vector<16x4xbf16>, vector<64x4xf32> -> vector<64x4xf32>
    %329 = arith.addf %323, %328 : vector<64x4xf32>
    %330 = vector.broadcast %28 : vector<64x1xf32> to vector<64x4xf32>
    %331 = arith.mulf %329, %330 : vector<64x4xf32>
    %332 = arith.truncf %309 : vector<64x16xf32> to vector<64x16xbf16>
    %c1_231 = arith.constant 1 : index
    %c3_232 = arith.constant 3 : index
    %c0_233 = arith.constant 0 : index
    %c0_234 = arith.constant 0 : index
    %333 = vector.load %arg8[%c1_231, %c3_232, %c0_233, %c0_234] : memref<2x9x16x4xbf16, #tpu.memory_space<vmem>>, vector<1x1x16x4xbf16>
    %334 = vector.shape_cast %333 : vector<1x1x16x4xbf16> to vector<16x4xbf16>
    %cst_235 = arith.constant dense<0.000000e+00> : vector<64x4xf32>
    %335 = tpu.matmul %332, %334, %cst_235 {dimension_numbers = #tpu.dot_dimension_numbers<[1], [0], [0], [1], [0, 0, 1, 1], [], []>} : vector<64x16xbf16>, vector<16x4xbf16>, vector<64x4xf32> -> vector<64x4xf32>
    %336 = arith.truncf %304 : vector<64x16xf32> to vector<64x16xbf16>
    %c1_236 = arith.constant 1 : index
    %c4_237 = arith.constant 4 : index
    %c0_238 = arith.constant 0 : index
    %c0_239 = arith.constant 0 : index
    %337 = vector.load %arg8[%c1_236, %c4_237, %c0_238, %c0_239] : memref<2x9x16x4xbf16, #tpu.memory_space<vmem>>, vector<1x1x16x4xbf16>
    %338 = vector.shape_cast %337 : vector<1x1x16x4xbf16> to vector<16x4xbf16>
    %cst_240 = arith.constant dense<0.000000e+00> : vector<64x4xf32>
    %339 = tpu.matmul %336, %338, %cst_240 {dimension_numbers = #tpu.dot_dimension_numbers<[1], [0], [0], [1], [0, 0, 1, 1], [], []>} : vector<64x16xbf16>, vector<16x4xbf16>, vector<64x4xf32> -> vector<64x4xf32>
    %340 = arith.addf %335, %339 : vector<64x4xf32>
    %341 = arith.truncf %312 : vector<64x16xf32> to vector<64x16xbf16>
    %c1_241 = arith.constant 1 : index
    %c5_242 = arith.constant 5 : index
    %c0_243 = arith.constant 0 : index
    %c0_244 = arith.constant 0 : index
    %342 = vector.load %arg8[%c1_241, %c5_242, %c0_243, %c0_244] : memref<2x9x16x4xbf16, #tpu.memory_space<vmem>>, vector<1x1x16x4xbf16>
    %343 = vector.shape_cast %342 : vector<1x1x16x4xbf16> to vector<16x4xbf16>
    %cst_245 = arith.constant dense<0.000000e+00> : vector<64x4xf32>
    %344 = tpu.matmul %341, %343, %cst_245 {dimension_numbers = #tpu.dot_dimension_numbers<[1], [0], [0], [1], [0, 0, 1, 1], [], []>} : vector<64x16xbf16>, vector<16x4xbf16>, vector<64x4xf32> -> vector<64x4xf32>
    %345 = arith.addf %340, %344 : vector<64x4xf32>
    %346 = arith.addf %331, %345 : vector<64x4xf32>
    %c56_i32_246 = arith.constant 56 : i32
    %347 = tpu.dynamic_rotate %309 by %c56_i32_246 dim 0 : vector<64x16xf32>, i32 -> vector<64x16xf32>
    %348 = arith.truncf %347 : vector<64x16xf32> to vector<64x16xbf16>
    %c1_247 = arith.constant 1 : index
    %c6_248 = arith.constant 6 : index
    %c0_249 = arith.constant 0 : index
    %c0_250 = arith.constant 0 : index
    %349 = vector.load %arg8[%c1_247, %c6_248, %c0_249, %c0_250] : memref<2x9x16x4xbf16, #tpu.memory_space<vmem>>, vector<1x1x16x4xbf16>
    %350 = vector.shape_cast %349 : vector<1x1x16x4xbf16> to vector<16x4xbf16>
    %cst_251 = arith.constant dense<0.000000e+00> : vector<64x4xf32>
    %351 = tpu.matmul %348, %350, %cst_251 {dimension_numbers = #tpu.dot_dimension_numbers<[1], [0], [0], [1], [0, 0, 1, 1], [], []>} : vector<64x16xbf16>, vector<16x4xbf16>, vector<64x4xf32> -> vector<64x4xf32>
    %c56_i32_252 = arith.constant 56 : i32
    %352 = tpu.dynamic_rotate %304 by %c56_i32_252 dim 0 : vector<64x16xf32>, i32 -> vector<64x16xf32>
    %353 = arith.truncf %352 : vector<64x16xf32> to vector<64x16xbf16>
    %c1_253 = arith.constant 1 : index
    %c7_254 = arith.constant 7 : index
    %c0_255 = arith.constant 0 : index
    %c0_256 = arith.constant 0 : index
    %354 = vector.load %arg8[%c1_253, %c7_254, %c0_255, %c0_256] : memref<2x9x16x4xbf16, #tpu.memory_space<vmem>>, vector<1x1x16x4xbf16>
    %355 = vector.shape_cast %354 : vector<1x1x16x4xbf16> to vector<16x4xbf16>
    %cst_257 = arith.constant dense<0.000000e+00> : vector<64x4xf32>
    %356 = tpu.matmul %353, %355, %cst_257 {dimension_numbers = #tpu.dot_dimension_numbers<[1], [0], [0], [1], [0, 0, 1, 1], [], []>} : vector<64x16xbf16>, vector<16x4xbf16>, vector<64x4xf32> -> vector<64x4xf32>
    %357 = arith.addf %351, %356 : vector<64x4xf32>
    %c56_i32_258 = arith.constant 56 : i32
    %358 = tpu.dynamic_rotate %312 by %c56_i32_258 dim 0 : vector<64x16xf32>, i32 -> vector<64x16xf32>
    %359 = arith.truncf %358 : vector<64x16xf32> to vector<64x16xbf16>
    %c1_259 = arith.constant 1 : index
    %c8_260 = arith.constant 8 : index
    %c0_261 = arith.constant 0 : index
    %c0_262 = arith.constant 0 : index
    %360 = vector.load %arg8[%c1_259, %c8_260, %c0_261, %c0_262] : memref<2x9x16x4xbf16, #tpu.memory_space<vmem>>, vector<1x1x16x4xbf16>
    %361 = vector.shape_cast %360 : vector<1x1x16x4xbf16> to vector<16x4xbf16>
    %cst_263 = arith.constant dense<0.000000e+00> : vector<64x4xf32>
    %362 = tpu.matmul %359, %361, %cst_263 {dimension_numbers = #tpu.dot_dimension_numbers<[1], [0], [0], [1], [0, 0, 1, 1], [], []>} : vector<64x16xbf16>, vector<16x4xbf16>, vector<64x4xf32> -> vector<64x4xf32>
    %363 = arith.addf %357, %362 : vector<64x4xf32>
    %364 = vector.broadcast %32 : vector<64x1xf32> to vector<64x4xf32>
    %365 = arith.mulf %363, %364 : vector<64x4xf32>
    %366 = arith.addf %346, %365 : vector<64x4xf32>
    %367 = vector.broadcast %306 : vector<1x4xf32> to vector<64x4xf32>
    %368 = arith.addf %366, %367 : vector<64x4xf32>
    %369 = arith.truncf %368 : vector<64x4xf32> to vector<64x4xbf16>
    %cst_264 = arith.constant dense<0.000000e+00> : vector<64x4xf32>
    %370 = tpu.matmul %369, %40, %cst_264 {dimension_numbers = #tpu.dot_dimension_numbers<[1], [0], [0], [1], [0, 0, 1, 1], [], []>} : vector<64x4xbf16>, vector<4x4xbf16>, vector<64x4xf32> -> vector<64x4xf32>
    %cst_265 = arith.constant 2.000000e+00 : f32
    %371 = vector.broadcast %cst_265 : f32 to vector<64x4xf32>
    %372 = arith.addf %370, %371 : vector<64x4xf32>
    %cst_266 = arith.constant 0.000000e+00 : f32
    %373 = vector.broadcast %cst_266 : f32 to vector<64x4xf32>
    %374 = arith.minimumf %372, %373 : vector<64x4xf32>
    %375 = math.absf %372 : vector<64x4xf32>
    %cst_267 = arith.constant 0.000000e+00 : f32
    %376 = vector.broadcast %cst_267 : f32 to vector<64x4xf32>
    %377 = arith.subf %376, %375 : vector<64x4xf32>
    %378 = math.exp %377 : vector<64x4xf32>
    %cst_268 = arith.constant 1.000000e+00 : f32
    %379 = vector.broadcast %cst_268 : f32 to vector<64x4xf32>
    %380 = arith.addf %379, %378 : vector<64x4xf32>
    %381 = math.log %380 : vector<64x4xf32>
    %382 = arith.subf %374, %381 : vector<64x4xf32>
    %383 = math.exp %382 : vector<64x4xf32>
    %384 = vector.broadcast %39 : vector<1x4xf32> to vector<64x4xf32>
    %385 = arith.mulf %228, %384 : vector<64x4xf32>
    %386 = arith.addf %228, %368 : vector<64x4xf32>
    %387 = vector.broadcast %37 : vector<1x4xf32> to vector<64x4xf32>
    %388 = arith.mulf %386, %387 : vector<64x4xf32>
    %389 = arith.mulf %388, %383 : vector<64x4xf32>
    %390 = arith.addf %385, %389 : vector<64x4xf32>
    %391 = vector.broadcast %37 : vector<1x4xf32> to vector<64x4xf32>
    %392 = arith.mulf %382, %391 : vector<64x4xf32>
    %cst_269 = arith.constant dense<0.000000e+00> : vector<64xf32>
    %393 = vector.multi_reduction <add>, %392, %cst_269 [1] : vector<64x4xf32> to vector<64xf32>
    %394 = vector.shape_cast %393 : vector<64xf32> to vector<64x1xf32>
    %cst_270 = arith.constant dense<0.000000e+00> : vector<1xf32>
    %395 = vector.multi_reduction <add>, %394, %cst_270 [0] : vector<64x1xf32> to vector<1xf32>
    %396 = vector.shape_cast %395 : vector<1xf32> to vector<1x1xf32>
    %397 = arith.addf %220, %396 : vector<1x1xf32>
    %c0_271 = arith.constant 0 : index
    %c0_272 = arith.constant 0 : index
    %c0_273 = arith.constant 0 : index
    %398 = vector.load %arg11[%c0_271, %c0_272, %c0_273] : memref<1x64x4xf32, #tpu.memory_space<vmem>>, vector<1x64x4xf32>
    %399 = vector.shape_cast %398 : vector<1x64x4xf32> to vector<64x4xf32>
    %400 = vector.shape_cast %390 : vector<64x4xf32> to vector<1x64x4xf32>
    tpu.vector_store %arg11[%c0_271, %c0_272, %c0_273], %400 {strides = array<i32>} : memref<1x64x4xf32, #tpu.memory_space<vmem>>, vector<1x64x4xf32>,
    %cst_274 = arith.constant 0.000000e+00 : f32
    %401 = vector.broadcast %cst_274 : f32 to vector<1x1x128xf32>
    %402 = vector.extract %397[0, 0] : f32 from vector<1x1xf32>
    %403 = vector.broadcast %402 : f32 to vector<1x1x128xf32>
    %404 = arith.addf %401, %403 : vector<1x1x128xf32>
    %c0_275 = arith.constant 0 : index
    %c0_276 = arith.constant 0 : index
    %c0_277 = arith.constant 0 : index
    %405 = vector.load %arg12[%c0_275, %c0_276, %c0_277] : memref<1x1x128xf32, #tpu.memory_space<vmem>>, vector<1x1x128xf32>
    tpu.vector_store %arg12[%c0_275, %c0_276, %c0_277], %404 {strides = array<i32>} : memref<1x1x128xf32, #tpu.memory_space<vmem>>, vector<1x1x128xf32>,
    return
  }
  func.func @transform_0(%arg0: i32) -> (i32, i32, i32) {
    %c0_i32 = arith.constant 0 : i32
    %c0_i32_0 = arith.constant 0 : i32
    %c0_i32_1 = arith.constant 0 : i32
    return %arg0, %c0_i32, %c0_i32_0 : i32, i32, i32
  }
  func.func @transform_1(%arg0: i32) -> (i32, i32, i32) {
    %c0_i32 = arith.constant 0 : i32
    %c0_i32_0 = arith.constant 0 : i32
    %c0_i32_1 = arith.constant 0 : i32
    %c0_i32_2 = arith.constant 0 : i32
    return %c0_i32, %c0_i32_0, %c0_i32_1 : i32, i32, i32
  }
  func.func @transform_2(%arg0: i32) -> (i32, i32, i32) {
    %c0_i32 = arith.constant 0 : i32
    %c0_i32_0 = arith.constant 0 : i32
    %c0_i32_1 = arith.constant 0 : i32
    %c0_i32_2 = arith.constant 0 : i32
    return %c0_i32, %c0_i32_0, %c0_i32_1 : i32, i32, i32
  }
  func.func @transform_3(%arg0: i32) -> (i32, i32, i32, i32) {
    %c0_i32 = arith.constant 0 : i32
    %c0_i32_0 = arith.constant 0 : i32
    %c0_i32_1 = arith.constant 0 : i32
    %c0_i32_2 = arith.constant 0 : i32
    %c0_i32_3 = arith.constant 0 : i32
    return %c0_i32, %c0_i32_0, %c0_i32_1, %c0_i32_2 : i32, i32, i32, i32
  }
  func.func @transform_4(%arg0: i32) -> (i32, i32, i32) {
    %c0_i32 = arith.constant 0 : i32
    %c0_i32_0 = arith.constant 0 : i32
    %c0_i32_1 = arith.constant 0 : i32
    %c0_i32_2 = arith.constant 0 : i32
    return %c0_i32, %c0_i32_0, %c0_i32_1 : i32, i32, i32
  }
  func.func @transform_5(%arg0: i32) -> (i32, i32, i32) {
    %c0_i32 = arith.constant 0 : i32
    %c0_i32_0 = arith.constant 0 : i32
    %c0_i32_1 = arith.constant 0 : i32
    %c0_i32_2 = arith.constant 0 : i32
    return %c0_i32, %c0_i32_0, %c0_i32_1 : i32, i32, i32
  }
  func.func @transform_6(%arg0: i32) -> (i32, i32, i32) {
    %c0_i32 = arith.constant 0 : i32
    %c0_i32_0 = arith.constant 0 : i32
    %c0_i32_1 = arith.constant 0 : i32
    %c0_i32_2 = arith.constant 0 : i32
    return %c0_i32, %c0_i32_0, %c0_i32_1 : i32, i32, i32
  }
  func.func @transform_7(%arg0: i32) -> (i32, i32, i32, i32) {
    %c0_i32 = arith.constant 0 : i32
    %c0_i32_0 = arith.constant 0 : i32
    %c0_i32_1 = arith.constant 0 : i32
    %c0_i32_2 = arith.constant 0 : i32
    %c0_i32_3 = arith.constant 0 : i32
    return %c0_i32, %c0_i32_0, %c0_i32_1, %c0_i32_2 : i32, i32, i32, i32
  }
  func.func @transform_8(%arg0: i32) -> (i32, i32, i32) {
    %c0_i32 = arith.constant 0 : i32
    %c0_i32_0 = arith.constant 0 : i32
    %c0_i32_1 = arith.constant 0 : i32
    %c0_i32_2 = arith.constant 0 : i32
    return %c0_i32, %c0_i32_0, %c0_i32_1 : i32, i32, i32
  }
  func.func @transform_9(%arg0: i32) -> (i32, i32) {
    %c0_i32 = arith.constant 0 : i32
    %c0_i32_0 = arith.constant 0 : i32
    %c0_i32_1 = arith.constant 0 : i32
    return %c0_i32, %c0_i32_0 : i32, i32
  }
  func.func @transform_10(%arg0: i32) -> (i32, i32, i32) {
    %c0_i32 = arith.constant 0 : i32
    %c0_i32_0 = arith.constant 0 : i32
    %c0_i32_1 = arith.constant 0 : i32
    return %arg0, %c0_i32, %c0_i32_0 : i32, i32, i32
  }
  func.func @transform_11(%arg0: i32) -> (i32, i32, i32) {
    %c0_i32 = arith.constant 0 : i32
    %c0_i32_0 = arith.constant 0 : i32
    %c0_i32_1 = arith.constant 0 : i32
    return %arg0, %c0_i32, %c0_i32_0 : i32, i32, i32
  }
}

module attributes {stable_mosaic.version = 11 : i64} {
  func.func @_level_kernel(%arg0: i32, %arg1: memref<1x16x16xf32, #tpu.memory_space<vmem>>, %arg2: memref<2x16x16xbf16, #tpu.memory_space<vmem>>, %arg3: memref<2x1x16xf32, #tpu.memory_space<vmem>>, %arg4: memref<2x9x16x16xbf16, #tpu.memory_space<vmem>>, %arg5: memref<2x1x16xf32, #tpu.memory_space<vmem>>, %arg6: memref<2x16x16xbf16, #tpu.memory_space<vmem>>, %arg7: memref<2x1x16xf32, #tpu.memory_space<vmem>>, %arg8: memref<2x9x16x16xbf16, #tpu.memory_space<vmem>>, %arg9: memref<2x1x16xf32, #tpu.memory_space<vmem>>, %arg10: memref<16x16xbf16, #tpu.memory_space<vmem>>, %arg11: memref<1x16x16xf32, #tpu.memory_space<vmem>>, %arg12: memref<1x1x128xf32, #tpu.memory_space<vmem>>) attributes {dimension_semantics = [#tpu.dimension_semantics<parallel>], iteration_bounds = array<i64: 2>, scalar_prefetch = 0 : i64, scratch_operands = 0 : i64, tpu.core_type = #tpu.core_type<tc>, window_params = [{transform_indices = @transform_0, window_bounds = array<i64: 1, 16, 16>}, {pipeline_mode = #tpu.pipeline_mode<synchronous>, transform_indices = @transform_1, window_bounds = array<i64: 2, 16, 16>}, {pipeline_mode = #tpu.pipeline_mode<synchronous>, transform_indices = @transform_2, window_bounds = array<i64: 2, 1, 16>}, {pipeline_mode = #tpu.pipeline_mode<synchronous>, transform_indices = @transform_3, window_bounds = array<i64: 2, 9, 16, 16>}, {pipeline_mode = #tpu.pipeline_mode<synchronous>, transform_indices = @transform_4, window_bounds = array<i64: 2, 1, 16>}, {pipeline_mode = #tpu.pipeline_mode<synchronous>, transform_indices = @transform_5, window_bounds = array<i64: 2, 16, 16>}, {pipeline_mode = #tpu.pipeline_mode<synchronous>, transform_indices = @transform_6, window_bounds = array<i64: 2, 1, 16>}, {pipeline_mode = #tpu.pipeline_mode<synchronous>, transform_indices = @transform_7, window_bounds = array<i64: 2, 9, 16, 16>}, {pipeline_mode = #tpu.pipeline_mode<synchronous>, transform_indices = @transform_8, window_bounds = array<i64: 2, 1, 16>}, {pipeline_mode = #tpu.pipeline_mode<synchronous>, transform_indices = @transform_9, window_bounds = array<i64: 16, 16>}, {transform_indices = @transform_10, window_bounds = array<i64: 1, 16, 16>}, {transform_indices = @transform_11, window_bounds = array<i64: 1, 1, 128>}]} {
    %0 = tpu.iota {dimensions = array<i32: 0>} : vector<16x1xi32>
    %c4_i32 = arith.constant 4 : i32
    %c0_i32 = arith.constant 0 : i32
    %1 = arith.cmpi eq, %c4_i32, %c0_i32 : i32
    %c1_i32 = arith.constant 1 : i32
    %2 = arith.select %1, %c1_i32, %c4_i32 : i32
    %3 = vector.broadcast %2 : i32 to vector<16x1xi32>
    %4 = arith.remsi %0, %3 : vector<16x1xi32>
    %c0_i32_0 = arith.constant 0 : i32
    %5 = vector.broadcast %c0_i32_0 : i32 to vector<16x1xi32>
    %6 = arith.cmpi ne, %4, %5 : vector<16x1xi32>
    %c0_i32_1 = arith.constant 0 : i32
    %7 = vector.broadcast %c0_i32_1 : i32 to vector<16x1xi32>
    %8 = arith.cmpi slt, %4, %7 : vector<16x1xi32>
    %c0_i32_2 = arith.constant 0 : i32
    %9 = arith.cmpi slt, %2, %c0_i32_2 : i32
    %10 = vector.broadcast %9 : i1 to vector<16x1xi1>
    %11 = vector.broadcast %10 : vector<16x1xi1> to vector<16x1xi1>
    %12 = arith.xori %8, %11 : vector<16x1xi1>
    %13 = arith.andi %12, %6 : vector<16x1xi1>
    %14 = vector.broadcast %2 : i32 to vector<16x1xi32>
    %15 = arith.addi %4, %14 : vector<16x1xi32>
    %16 = arith.select %13, %15, %4 : vector<16x1xi1>, vector<16x1xi32>
    %c0_i32_3 = arith.constant 0 : i32
    %17 = vector.broadcast %c0_i32_3 : i32 to vector<16x1xi32>
    %18 = arith.cmpi ne, %16, %17 : vector<16x1xi32>
    %19 = arith.extui %18 : vector<16x1xi1> to vector<16x1xi32>
    %20 = arith.sitofp %19 : vector<16x1xi32> to vector<16x1xf32>
    %c3_i32 = arith.constant 3 : i32
    %21 = vector.broadcast %c3_i32 : i32 to vector<16x1xi32>
    %22 = arith.cmpi ne, %16, %21 : vector<16x1xi32>
    %23 = arith.extui %22 : vector<16x1xi1> to vector<16x1xi32>
    %24 = arith.sitofp %23 : vector<16x1xi32> to vector<16x1xf32>
    %c4_i32_4 = arith.constant 4 : i32
    %25 = vector.broadcast %c4_i32_4 : i32 to vector<16x1xi32>
    %26 = arith.cmpi sge, %0, %25 : vector<16x1xi32>
    %27 = arith.extui %26 : vector<16x1xi1> to vector<16x1xi32>
    %28 = arith.sitofp %27 : vector<16x1xi32> to vector<16x1xf32>
    %c12_i32 = arith.constant 12 : i32
    %29 = vector.broadcast %c12_i32 : i32 to vector<16x1xi32>
    %30 = arith.cmpi slt, %0, %29 : vector<16x1xi32>
    %31 = arith.extui %30 : vector<16x1xi1> to vector<16x1xi32>
    %32 = arith.sitofp %31 : vector<16x1xi32> to vector<16x1xf32>
    %33 = tpu.iota {dimensions = array<i32: 1>} : vector<1x16xi32>
    %c8_i32 = arith.constant 8 : i32
    %34 = vector.broadcast %c8_i32 : i32 to vector<1x16xi32>
    %35 = arith.cmpi sge, %33, %34 : vector<1x16xi32>
    %36 = arith.extui %35 : vector<1x16xi1> to vector<1x16xi32>
    %37 = arith.sitofp %36 : vector<1x16xi32> to vector<1x16xf32>
    %cst = arith.constant 1.000000e+00 : f32
    %38 = vector.broadcast %cst : f32 to vector<1x16xf32>
    %39 = arith.subf %38, %37 : vector<1x16xf32>
    %c0 = arith.constant 0 : index
    %c0_5 = arith.constant 0 : index
    %40 = vector.load %arg10[%c0, %c0_5] : memref<16x16xbf16, #tpu.memory_space<vmem>>, vector<16x16xbf16>
    %c0_6 = arith.constant 0 : index
    %c0_7 = arith.constant 0 : index
    %c0_8 = arith.constant 0 : index
    %41 = vector.load %arg1[%c0_6, %c0_7, %c0_8] : memref<1x16x16xf32, #tpu.memory_space<vmem>>, vector<1x16x16xf32>
    %42 = vector.shape_cast %41 : vector<1x16x16xf32> to vector<16x16xf32>
    %cst_9 = arith.constant 0.000000e+00 : f32
    %43 = vector.broadcast %cst_9 : f32 to vector<1x1xf32>
    %44 = arith.truncf %42 : vector<16x16xf32> to vector<16x16xbf16>
    %c0_10 = arith.constant 0 : index
    %c0_11 = arith.constant 0 : index
    %c0_12 = arith.constant 0 : index
    %45 = vector.load %arg2[%c0_10, %c0_11, %c0_12] : memref<2x16x16xbf16, #tpu.memory_space<vmem>>, vector<1x16x16xbf16>
    %46 = vector.shape_cast %45 : vector<1x16x16xbf16> to vector<16x16xbf16>
    %cst_13 = arith.constant dense<0.000000e+00> : vector<16x16xf32>
    %47 = tpu.matmul %44, %46, %cst_13 {dimension_numbers = #tpu.dot_dimension_numbers<[1], [0], [0], [1], [0, 0, 1, 1], [], []>} : vector<16x16xbf16>, vector<16x16xbf16>, vector<16x16xf32> -> vector<16x16xf32>
    %c0_14 = arith.constant 0 : index
    %c0_15 = arith.constant 0 : index
    %c0_16 = arith.constant 0 : index
    %48 = vector.load %arg3[%c0_14, %c0_15, %c0_16] : memref<2x1x16xf32, #tpu.memory_space<vmem>>, vector<1x1x16xf32>
    %49 = vector.shape_cast %48 : vector<1x1x16xf32> to vector<1x16xf32>
    %50 = vector.broadcast %49 : vector<1x16xf32> to vector<16x16xf32>
    %51 = arith.addf %47, %50 : vector<16x16xf32>
    %c0_17 = arith.constant 0 : index
    %c0_18 = arith.constant 0 : index
    %c0_19 = arith.constant 0 : index
    %52 = vector.load %arg5[%c0_17, %c0_18, %c0_19] : memref<2x1x16xf32, #tpu.memory_space<vmem>>, vector<1x1x16xf32>
    %53 = vector.shape_cast %52 : vector<1x1x16xf32> to vector<1x16xf32>
    %c1_i32_20 = arith.constant 1 : i32
    %54 = tpu.dynamic_rotate %51 by %c1_i32_20 dim 0 : vector<16x16xf32>, i32 -> vector<16x16xf32>
    %55 = vector.broadcast %20 : vector<16x1xf32> to vector<16x16xf32>
    %56 = arith.mulf %54, %55 : vector<16x16xf32>
    %c15_i32 = arith.constant 15 : i32
    %57 = tpu.dynamic_rotate %51 by %c15_i32 dim 0 : vector<16x16xf32>, i32 -> vector<16x16xf32>
    %58 = vector.broadcast %24 : vector<16x1xf32> to vector<16x16xf32>
    %59 = arith.mulf %57, %58 : vector<16x16xf32>
    %c4_i32_21 = arith.constant 4 : i32
    %60 = tpu.dynamic_rotate %56 by %c4_i32_21 dim 0 : vector<16x16xf32>, i32 -> vector<16x16xf32>
    %61 = arith.truncf %60 : vector<16x16xf32> to vector<16x16xbf16>
    %c0_22 = arith.constant 0 : index
    %c0_23 = arith.constant 0 : index
    %c0_24 = arith.constant 0 : index
    %c0_25 = arith.constant 0 : index
    %62 = vector.load %arg4[%c0_22, %c0_23, %c0_24, %c0_25] : memref<2x9x16x16xbf16, #tpu.memory_space<vmem>>, vector<1x1x16x16xbf16>
    %63 = vector.shape_cast %62 : vector<1x1x16x16xbf16> to vector<16x16xbf16>
    %cst_26 = arith.constant dense<0.000000e+00> : vector<16x16xf32>
    %64 = tpu.matmul %61, %63, %cst_26 {dimension_numbers = #tpu.dot_dimension_numbers<[1], [0], [0], [1], [0, 0, 1, 1], [], []>} : vector<16x16xbf16>, vector<16x16xbf16>, vector<16x16xf32> -> vector<16x16xf32>
    %c4_i32_27 = arith.constant 4 : i32
    %65 = tpu.dynamic_rotate %51 by %c4_i32_27 dim 0 : vector<16x16xf32>, i32 -> vector<16x16xf32>
    %66 = arith.truncf %65 : vector<16x16xf32> to vector<16x16xbf16>
    %c0_28 = arith.constant 0 : index
    %c1 = arith.constant 1 : index
    %c0_29 = arith.constant 0 : index
    %c0_30 = arith.constant 0 : index
    %67 = vector.load %arg4[%c0_28, %c1, %c0_29, %c0_30] : memref<2x9x16x16xbf16, #tpu.memory_space<vmem>>, vector<1x1x16x16xbf16>
    %68 = vector.shape_cast %67 : vector<1x1x16x16xbf16> to vector<16x16xbf16>
    %cst_31 = arith.constant dense<0.000000e+00> : vector<16x16xf32>
    %69 = tpu.matmul %66, %68, %cst_31 {dimension_numbers = #tpu.dot_dimension_numbers<[1], [0], [0], [1], [0, 0, 1, 1], [], []>} : vector<16x16xbf16>, vector<16x16xbf16>, vector<16x16xf32> -> vector<16x16xf32>
    %70 = arith.addf %64, %69 : vector<16x16xf32>
    %c4_i32_32 = arith.constant 4 : i32
    %71 = tpu.dynamic_rotate %59 by %c4_i32_32 dim 0 : vector<16x16xf32>, i32 -> vector<16x16xf32>
    %72 = arith.truncf %71 : vector<16x16xf32> to vector<16x16xbf16>
    %c0_33 = arith.constant 0 : index
    %c2 = arith.constant 2 : index
    %c0_34 = arith.constant 0 : index
    %c0_35 = arith.constant 0 : index
    %73 = vector.load %arg4[%c0_33, %c2, %c0_34, %c0_35] : memref<2x9x16x16xbf16, #tpu.memory_space<vmem>>, vector<1x1x16x16xbf16>
    %74 = vector.shape_cast %73 : vector<1x1x16x16xbf16> to vector<16x16xbf16>
    %cst_36 = arith.constant dense<0.000000e+00> : vector<16x16xf32>
    %75 = tpu.matmul %72, %74, %cst_36 {dimension_numbers = #tpu.dot_dimension_numbers<[1], [0], [0], [1], [0, 0, 1, 1], [], []>} : vector<16x16xbf16>, vector<16x16xbf16>, vector<16x16xf32> -> vector<16x16xf32>
    %76 = arith.addf %70, %75 : vector<16x16xf32>
    %77 = vector.broadcast %28 : vector<16x1xf32> to vector<16x16xf32>
    %78 = arith.mulf %76, %77 : vector<16x16xf32>
    %79 = arith.truncf %56 : vector<16x16xf32> to vector<16x16xbf16>
    %c0_37 = arith.constant 0 : index
    %c3 = arith.constant 3 : index
    %c0_38 = arith.constant 0 : index
    %c0_39 = arith.constant 0 : index
    %80 = vector.load %arg4[%c0_37, %c3, %c0_38, %c0_39] : memref<2x9x16x16xbf16, #tpu.memory_space<vmem>>, vector<1x1x16x16xbf16>
    %81 = vector.shape_cast %80 : vector<1x1x16x16xbf16> to vector<16x16xbf16>
    %cst_40 = arith.constant dense<0.000000e+00> : vector<16x16xf32>
    %82 = tpu.matmul %79, %81, %cst_40 {dimension_numbers = #tpu.dot_dimension_numbers<[1], [0], [0], [1], [0, 0, 1, 1], [], []>} : vector<16x16xbf16>, vector<16x16xbf16>, vector<16x16xf32> -> vector<16x16xf32>
    %83 = arith.truncf %51 : vector<16x16xf32> to vector<16x16xbf16>
    %c0_41 = arith.constant 0 : index
    %c4 = arith.constant 4 : index
    %c0_42 = arith.constant 0 : index
    %c0_43 = arith.constant 0 : index
    %84 = vector.load %arg4[%c0_41, %c4, %c0_42, %c0_43] : memref<2x9x16x16xbf16, #tpu.memory_space<vmem>>, vector<1x1x16x16xbf16>
    %85 = vector.shape_cast %84 : vector<1x1x16x16xbf16> to vector<16x16xbf16>
    %cst_44 = arith.constant dense<0.000000e+00> : vector<16x16xf32>
    %86 = tpu.matmul %83, %85, %cst_44 {dimension_numbers = #tpu.dot_dimension_numbers<[1], [0], [0], [1], [0, 0, 1, 1], [], []>} : vector<16x16xbf16>, vector<16x16xbf16>, vector<16x16xf32> -> vector<16x16xf32>
    %87 = arith.addf %82, %86 : vector<16x16xf32>
    %88 = arith.truncf %59 : vector<16x16xf32> to vector<16x16xbf16>
    %c0_45 = arith.constant 0 : index
    %c5 = arith.constant 5 : index
    %c0_46 = arith.constant 0 : index
    %c0_47 = arith.constant 0 : index
    %89 = vector.load %arg4[%c0_45, %c5, %c0_46, %c0_47] : memref<2x9x16x16xbf16, #tpu.memory_space<vmem>>, vector<1x1x16x16xbf16>
    %90 = vector.shape_cast %89 : vector<1x1x16x16xbf16> to vector<16x16xbf16>
    %cst_48 = arith.constant dense<0.000000e+00> : vector<16x16xf32>
    %91 = tpu.matmul %88, %90, %cst_48 {dimension_numbers = #tpu.dot_dimension_numbers<[1], [0], [0], [1], [0, 0, 1, 1], [], []>} : vector<16x16xbf16>, vector<16x16xbf16>, vector<16x16xf32> -> vector<16x16xf32>
    %92 = arith.addf %87, %91 : vector<16x16xf32>
    %93 = arith.addf %78, %92 : vector<16x16xf32>
    %c12_i32_49 = arith.constant 12 : i32
    %94 = tpu.dynamic_rotate %56 by %c12_i32_49 dim 0 : vector<16x16xf32>, i32 -> vector<16x16xf32>
    %95 = arith.truncf %94 : vector<16x16xf32> to vector<16x16xbf16>
    %c0_50 = arith.constant 0 : index
    %c6 = arith.constant 6 : index
    %c0_51 = arith.constant 0 : index
    %c0_52 = arith.constant 0 : index
    %96 = vector.load %arg4[%c0_50, %c6, %c0_51, %c0_52] : memref<2x9x16x16xbf16, #tpu.memory_space<vmem>>, vector<1x1x16x16xbf16>
    %97 = vector.shape_cast %96 : vector<1x1x16x16xbf16> to vector<16x16xbf16>
    %cst_53 = arith.constant dense<0.000000e+00> : vector<16x16xf32>
    %98 = tpu.matmul %95, %97, %cst_53 {dimension_numbers = #tpu.dot_dimension_numbers<[1], [0], [0], [1], [0, 0, 1, 1], [], []>} : vector<16x16xbf16>, vector<16x16xbf16>, vector<16x16xf32> -> vector<16x16xf32>
    %c12_i32_54 = arith.constant 12 : i32
    %99 = tpu.dynamic_rotate %51 by %c12_i32_54 dim 0 : vector<16x16xf32>, i32 -> vector<16x16xf32>
    %100 = arith.truncf %99 : vector<16x16xf32> to vector<16x16xbf16>
    %c0_55 = arith.constant 0 : index
    %c7 = arith.constant 7 : index
    %c0_56 = arith.constant 0 : index
    %c0_57 = arith.constant 0 : index
    %101 = vector.load %arg4[%c0_55, %c7, %c0_56, %c0_57] : memref<2x9x16x16xbf16, #tpu.memory_space<vmem>>, vector<1x1x16x16xbf16>
    %102 = vector.shape_cast %101 : vector<1x1x16x16xbf16> to vector<16x16xbf16>
    %cst_58 = arith.constant dense<0.000000e+00> : vector<16x16xf32>
    %103 = tpu.matmul %100, %102, %cst_58 {dimension_numbers = #tpu.dot_dimension_numbers<[1], [0], [0], [1], [0, 0, 1, 1], [], []>} : vector<16x16xbf16>, vector<16x16xbf16>, vector<16x16xf32> -> vector<16x16xf32>
    %104 = arith.addf %98, %103 : vector<16x16xf32>
    %c12_i32_59 = arith.constant 12 : i32
    %105 = tpu.dynamic_rotate %59 by %c12_i32_59 dim 0 : vector<16x16xf32>, i32 -> vector<16x16xf32>
    %106 = arith.truncf %105 : vector<16x16xf32> to vector<16x16xbf16>
    %c0_60 = arith.constant 0 : index
    %c8 = arith.constant 8 : index
    %c0_61 = arith.constant 0 : index
    %c0_62 = arith.constant 0 : index
    %107 = vector.load %arg4[%c0_60, %c8, %c0_61, %c0_62] : memref<2x9x16x16xbf16, #tpu.memory_space<vmem>>, vector<1x1x16x16xbf16>
    %108 = vector.shape_cast %107 : vector<1x1x16x16xbf16> to vector<16x16xbf16>
    %cst_63 = arith.constant dense<0.000000e+00> : vector<16x16xf32>
    %109 = tpu.matmul %106, %108, %cst_63 {dimension_numbers = #tpu.dot_dimension_numbers<[1], [0], [0], [1], [0, 0, 1, 1], [], []>} : vector<16x16xbf16>, vector<16x16xbf16>, vector<16x16xf32> -> vector<16x16xf32>
    %110 = arith.addf %104, %109 : vector<16x16xf32>
    %111 = vector.broadcast %32 : vector<16x1xf32> to vector<16x16xf32>
    %112 = arith.mulf %110, %111 : vector<16x16xf32>
    %113 = arith.addf %93, %112 : vector<16x16xf32>
    %114 = vector.broadcast %53 : vector<1x16xf32> to vector<16x16xf32>
    %115 = arith.addf %113, %114 : vector<16x16xf32>
    %cst_64 = arith.constant 0.000000e+00 : f32
    %116 = vector.broadcast %cst_64 : f32 to vector<16x16xf32>
    %117 = arith.maximumf %115, %116 : vector<16x16xf32>
    %118 = arith.truncf %117 : vector<16x16xf32> to vector<16x16xbf16>
    %c0_65 = arith.constant 0 : index
    %c0_66 = arith.constant 0 : index
    %c0_67 = arith.constant 0 : index
    %119 = vector.load %arg6[%c0_65, %c0_66, %c0_67] : memref<2x16x16xbf16, #tpu.memory_space<vmem>>, vector<1x16x16xbf16>
    %120 = vector.shape_cast %119 : vector<1x16x16xbf16> to vector<16x16xbf16>
    %cst_68 = arith.constant dense<0.000000e+00> : vector<16x16xf32>
    %121 = tpu.matmul %118, %120, %cst_68 {dimension_numbers = #tpu.dot_dimension_numbers<[1], [0], [0], [1], [0, 0, 1, 1], [], []>} : vector<16x16xbf16>, vector<16x16xbf16>, vector<16x16xf32> -> vector<16x16xf32>
    %c0_69 = arith.constant 0 : index
    %c0_70 = arith.constant 0 : index
    %c0_71 = arith.constant 0 : index
    %122 = vector.load %arg7[%c0_69, %c0_70, %c0_71] : memref<2x1x16xf32, #tpu.memory_space<vmem>>, vector<1x1x16xf32>
    %123 = vector.shape_cast %122 : vector<1x1x16xf32> to vector<1x16xf32>
    %124 = vector.broadcast %123 : vector<1x16xf32> to vector<16x16xf32>
    %125 = arith.addf %121, %124 : vector<16x16xf32>
    %cst_72 = arith.constant 0.000000e+00 : f32
    %126 = vector.broadcast %cst_72 : f32 to vector<16x16xf32>
    %127 = arith.maximumf %125, %126 : vector<16x16xf32>
    %c0_73 = arith.constant 0 : index
    %c0_74 = arith.constant 0 : index
    %c0_75 = arith.constant 0 : index
    %128 = vector.load %arg9[%c0_73, %c0_74, %c0_75] : memref<2x1x16xf32, #tpu.memory_space<vmem>>, vector<1x1x16xf32>
    %129 = vector.shape_cast %128 : vector<1x1x16xf32> to vector<1x16xf32>
    %c1_i32_76 = arith.constant 1 : i32
    %130 = tpu.dynamic_rotate %127 by %c1_i32_76 dim 0 : vector<16x16xf32>, i32 -> vector<16x16xf32>
    %131 = vector.broadcast %20 : vector<16x1xf32> to vector<16x16xf32>
    %132 = arith.mulf %130, %131 : vector<16x16xf32>
    %c15_i32_77 = arith.constant 15 : i32
    %133 = tpu.dynamic_rotate %127 by %c15_i32_77 dim 0 : vector<16x16xf32>, i32 -> vector<16x16xf32>
    %134 = vector.broadcast %24 : vector<16x1xf32> to vector<16x16xf32>
    %135 = arith.mulf %133, %134 : vector<16x16xf32>
    %c4_i32_78 = arith.constant 4 : i32
    %136 = tpu.dynamic_rotate %132 by %c4_i32_78 dim 0 : vector<16x16xf32>, i32 -> vector<16x16xf32>
    %137 = arith.truncf %136 : vector<16x16xf32> to vector<16x16xbf16>
    %c0_79 = arith.constant 0 : index
    %c0_80 = arith.constant 0 : index
    %c0_81 = arith.constant 0 : index
    %c0_82 = arith.constant 0 : index
    %138 = vector.load %arg8[%c0_79, %c0_80, %c0_81, %c0_82] : memref<2x9x16x16xbf16, #tpu.memory_space<vmem>>, vector<1x1x16x16xbf16>
    %139 = vector.shape_cast %138 : vector<1x1x16x16xbf16> to vector<16x16xbf16>
    %cst_83 = arith.constant dense<0.000000e+00> : vector<16x16xf32>
    %140 = tpu.matmul %137, %139, %cst_83 {dimension_numbers = #tpu.dot_dimension_numbers<[1], [0], [0], [1], [0, 0, 1, 1], [], []>} : vector<16x16xbf16>, vector<16x16xbf16>, vector<16x16xf32> -> vector<16x16xf32>
    %c4_i32_84 = arith.constant 4 : i32
    %141 = tpu.dynamic_rotate %127 by %c4_i32_84 dim 0 : vector<16x16xf32>, i32 -> vector<16x16xf32>
    %142 = arith.truncf %141 : vector<16x16xf32> to vector<16x16xbf16>
    %c0_85 = arith.constant 0 : index
    %c1_86 = arith.constant 1 : index
    %c0_87 = arith.constant 0 : index
    %c0_88 = arith.constant 0 : index
    %143 = vector.load %arg8[%c0_85, %c1_86, %c0_87, %c0_88] : memref<2x9x16x16xbf16, #tpu.memory_space<vmem>>, vector<1x1x16x16xbf16>
    %144 = vector.shape_cast %143 : vector<1x1x16x16xbf16> to vector<16x16xbf16>
    %cst_89 = arith.constant dense<0.000000e+00> : vector<16x16xf32>
    %145 = tpu.matmul %142, %144, %cst_89 {dimension_numbers = #tpu.dot_dimension_numbers<[1], [0], [0], [1], [0, 0, 1, 1], [], []>} : vector<16x16xbf16>, vector<16x16xbf16>, vector<16x16xf32> -> vector<16x16xf32>
    %146 = arith.addf %140, %145 : vector<16x16xf32>
    %c4_i32_90 = arith.constant 4 : i32
    %147 = tpu.dynamic_rotate %135 by %c4_i32_90 dim 0 : vector<16x16xf32>, i32 -> vector<16x16xf32>
    %148 = arith.truncf %147 : vector<16x16xf32> to vector<16x16xbf16>
    %c0_91 = arith.constant 0 : index
    %c2_92 = arith.constant 2 : index
    %c0_93 = arith.constant 0 : index
    %c0_94 = arith.constant 0 : index
    %149 = vector.load %arg8[%c0_91, %c2_92, %c0_93, %c0_94] : memref<2x9x16x16xbf16, #tpu.memory_space<vmem>>, vector<1x1x16x16xbf16>
    %150 = vector.shape_cast %149 : vector<1x1x16x16xbf16> to vector<16x16xbf16>
    %cst_95 = arith.constant dense<0.000000e+00> : vector<16x16xf32>
    %151 = tpu.matmul %148, %150, %cst_95 {dimension_numbers = #tpu.dot_dimension_numbers<[1], [0], [0], [1], [0, 0, 1, 1], [], []>} : vector<16x16xbf16>, vector<16x16xbf16>, vector<16x16xf32> -> vector<16x16xf32>
    %152 = arith.addf %146, %151 : vector<16x16xf32>
    %153 = vector.broadcast %28 : vector<16x1xf32> to vector<16x16xf32>
    %154 = arith.mulf %152, %153 : vector<16x16xf32>
    %155 = arith.truncf %132 : vector<16x16xf32> to vector<16x16xbf16>
    %c0_96 = arith.constant 0 : index
    %c3_97 = arith.constant 3 : index
    %c0_98 = arith.constant 0 : index
    %c0_99 = arith.constant 0 : index
    %156 = vector.load %arg8[%c0_96, %c3_97, %c0_98, %c0_99] : memref<2x9x16x16xbf16, #tpu.memory_space<vmem>>, vector<1x1x16x16xbf16>
    %157 = vector.shape_cast %156 : vector<1x1x16x16xbf16> to vector<16x16xbf16>
    %cst_100 = arith.constant dense<0.000000e+00> : vector<16x16xf32>
    %158 = tpu.matmul %155, %157, %cst_100 {dimension_numbers = #tpu.dot_dimension_numbers<[1], [0], [0], [1], [0, 0, 1, 1], [], []>} : vector<16x16xbf16>, vector<16x16xbf16>, vector<16x16xf32> -> vector<16x16xf32>
    %159 = arith.truncf %127 : vector<16x16xf32> to vector<16x16xbf16>
    %c0_101 = arith.constant 0 : index
    %c4_102 = arith.constant 4 : index
    %c0_103 = arith.constant 0 : index
    %c0_104 = arith.constant 0 : index
    %160 = vector.load %arg8[%c0_101, %c4_102, %c0_103, %c0_104] : memref<2x9x16x16xbf16, #tpu.memory_space<vmem>>, vector<1x1x16x16xbf16>
    %161 = vector.shape_cast %160 : vector<1x1x16x16xbf16> to vector<16x16xbf16>
    %cst_105 = arith.constant dense<0.000000e+00> : vector<16x16xf32>
    %162 = tpu.matmul %159, %161, %cst_105 {dimension_numbers = #tpu.dot_dimension_numbers<[1], [0], [0], [1], [0, 0, 1, 1], [], []>} : vector<16x16xbf16>, vector<16x16xbf16>, vector<16x16xf32> -> vector<16x16xf32>
    %163 = arith.addf %158, %162 : vector<16x16xf32>
    %164 = arith.truncf %135 : vector<16x16xf32> to vector<16x16xbf16>
    %c0_106 = arith.constant 0 : index
    %c5_107 = arith.constant 5 : index
    %c0_108 = arith.constant 0 : index
    %c0_109 = arith.constant 0 : index
    %165 = vector.load %arg8[%c0_106, %c5_107, %c0_108, %c0_109] : memref<2x9x16x16xbf16, #tpu.memory_space<vmem>>, vector<1x1x16x16xbf16>
    %166 = vector.shape_cast %165 : vector<1x1x16x16xbf16> to vector<16x16xbf16>
    %cst_110 = arith.constant dense<0.000000e+00> : vector<16x16xf32>
    %167 = tpu.matmul %164, %166, %cst_110 {dimension_numbers = #tpu.dot_dimension_numbers<[1], [0], [0], [1], [0, 0, 1, 1], [], []>} : vector<16x16xbf16>, vector<16x16xbf16>, vector<16x16xf32> -> vector<16x16xf32>
    %168 = arith.addf %163, %167 : vector<16x16xf32>
    %169 = arith.addf %154, %168 : vector<16x16xf32>
    %c12_i32_111 = arith.constant 12 : i32
    %170 = tpu.dynamic_rotate %132 by %c12_i32_111 dim 0 : vector<16x16xf32>, i32 -> vector<16x16xf32>
    %171 = arith.truncf %170 : vector<16x16xf32> to vector<16x16xbf16>
    %c0_112 = arith.constant 0 : index
    %c6_113 = arith.constant 6 : index
    %c0_114 = arith.constant 0 : index
    %c0_115 = arith.constant 0 : index
    %172 = vector.load %arg8[%c0_112, %c6_113, %c0_114, %c0_115] : memref<2x9x16x16xbf16, #tpu.memory_space<vmem>>, vector<1x1x16x16xbf16>
    %173 = vector.shape_cast %172 : vector<1x1x16x16xbf16> to vector<16x16xbf16>
    %cst_116 = arith.constant dense<0.000000e+00> : vector<16x16xf32>
    %174 = tpu.matmul %171, %173, %cst_116 {dimension_numbers = #tpu.dot_dimension_numbers<[1], [0], [0], [1], [0, 0, 1, 1], [], []>} : vector<16x16xbf16>, vector<16x16xbf16>, vector<16x16xf32> -> vector<16x16xf32>
    %c12_i32_117 = arith.constant 12 : i32
    %175 = tpu.dynamic_rotate %127 by %c12_i32_117 dim 0 : vector<16x16xf32>, i32 -> vector<16x16xf32>
    %176 = arith.truncf %175 : vector<16x16xf32> to vector<16x16xbf16>
    %c0_118 = arith.constant 0 : index
    %c7_119 = arith.constant 7 : index
    %c0_120 = arith.constant 0 : index
    %c0_121 = arith.constant 0 : index
    %177 = vector.load %arg8[%c0_118, %c7_119, %c0_120, %c0_121] : memref<2x9x16x16xbf16, #tpu.memory_space<vmem>>, vector<1x1x16x16xbf16>
    %178 = vector.shape_cast %177 : vector<1x1x16x16xbf16> to vector<16x16xbf16>
    %cst_122 = arith.constant dense<0.000000e+00> : vector<16x16xf32>
    %179 = tpu.matmul %176, %178, %cst_122 {dimension_numbers = #tpu.dot_dimension_numbers<[1], [0], [0], [1], [0, 0, 1, 1], [], []>} : vector<16x16xbf16>, vector<16x16xbf16>, vector<16x16xf32> -> vector<16x16xf32>
    %180 = arith.addf %174, %179 : vector<16x16xf32>
    %c12_i32_123 = arith.constant 12 : i32
    %181 = tpu.dynamic_rotate %135 by %c12_i32_123 dim 0 : vector<16x16xf32>, i32 -> vector<16x16xf32>
    %182 = arith.truncf %181 : vector<16x16xf32> to vector<16x16xbf16>
    %c0_124 = arith.constant 0 : index
    %c8_125 = arith.constant 8 : index
    %c0_126 = arith.constant 0 : index
    %c0_127 = arith.constant 0 : index
    %183 = vector.load %arg8[%c0_124, %c8_125, %c0_126, %c0_127] : memref<2x9x16x16xbf16, #tpu.memory_space<vmem>>, vector<1x1x16x16xbf16>
    %184 = vector.shape_cast %183 : vector<1x1x16x16xbf16> to vector<16x16xbf16>
    %cst_128 = arith.constant dense<0.000000e+00> : vector<16x16xf32>
    %185 = tpu.matmul %182, %184, %cst_128 {dimension_numbers = #tpu.dot_dimension_numbers<[1], [0], [0], [1], [0, 0, 1, 1], [], []>} : vector<16x16xbf16>, vector<16x16xbf16>, vector<16x16xf32> -> vector<16x16xf32>
    %186 = arith.addf %180, %185 : vector<16x16xf32>
    %187 = vector.broadcast %32 : vector<16x1xf32> to vector<16x16xf32>
    %188 = arith.mulf %186, %187 : vector<16x16xf32>
    %189 = arith.addf %169, %188 : vector<16x16xf32>
    %190 = vector.broadcast %129 : vector<1x16xf32> to vector<16x16xf32>
    %191 = arith.addf %189, %190 : vector<16x16xf32>
    %192 = arith.truncf %191 : vector<16x16xf32> to vector<16x16xbf16>
    %cst_129 = arith.constant dense<0.000000e+00> : vector<16x16xf32>
    %193 = tpu.matmul %192, %40, %cst_129 {dimension_numbers = #tpu.dot_dimension_numbers<[1], [0], [0], [1], [0, 0, 1, 1], [], []>} : vector<16x16xbf16>, vector<16x16xbf16>, vector<16x16xf32> -> vector<16x16xf32>
    %cst_130 = arith.constant 2.000000e+00 : f32
    %194 = vector.broadcast %cst_130 : f32 to vector<16x16xf32>
    %195 = arith.addf %193, %194 : vector<16x16xf32>
    %cst_131 = arith.constant 0.000000e+00 : f32
    %196 = vector.broadcast %cst_131 : f32 to vector<16x16xf32>
    %197 = arith.minimumf %195, %196 : vector<16x16xf32>
    %198 = math.absf %195 : vector<16x16xf32>
    %cst_132 = arith.constant 0.000000e+00 : f32
    %199 = vector.broadcast %cst_132 : f32 to vector<16x16xf32>
    %200 = arith.subf %199, %198 : vector<16x16xf32>
    %201 = math.exp %200 : vector<16x16xf32>
    %cst_133 = arith.constant 1.000000e+00 : f32
    %202 = vector.broadcast %cst_133 : f32 to vector<16x16xf32>
    %203 = arith.addf %202, %201 : vector<16x16xf32>
    %204 = math.log %203 : vector<16x16xf32>
    %205 = arith.subf %197, %204 : vector<16x16xf32>
    %206 = math.exp %205 : vector<16x16xf32>
    %207 = vector.broadcast %39 : vector<1x16xf32> to vector<16x16xf32>
    %208 = arith.mulf %51, %207 : vector<16x16xf32>
    %209 = arith.addf %51, %191 : vector<16x16xf32>
    %210 = vector.broadcast %37 : vector<1x16xf32> to vector<16x16xf32>
    %211 = arith.mulf %209, %210 : vector<16x16xf32>
    %212 = arith.mulf %211, %206 : vector<16x16xf32>
    %213 = arith.addf %208, %212 : vector<16x16xf32>
    %214 = vector.broadcast %37 : vector<1x16xf32> to vector<16x16xf32>
    %215 = arith.mulf %205, %214 : vector<16x16xf32>
    %cst_134 = arith.constant dense<0.000000e+00> : vector<16xf32>
    %216 = vector.multi_reduction <add>, %215, %cst_134 [1] : vector<16x16xf32> to vector<16xf32>
    %217 = vector.shape_cast %216 : vector<16xf32> to vector<16x1xf32>
    %cst_135 = arith.constant dense<0.000000e+00> : vector<1xf32>
    %218 = vector.multi_reduction <add>, %217, %cst_135 [0] : vector<16x1xf32> to vector<1xf32>
    %219 = vector.shape_cast %218 : vector<1xf32> to vector<1x1xf32>
    %220 = arith.addf %43, %219 : vector<1x1xf32>
    %221 = arith.truncf %213 : vector<16x16xf32> to vector<16x16xbf16>
    %c1_136 = arith.constant 1 : index
    %c0_137 = arith.constant 0 : index
    %c0_138 = arith.constant 0 : index
    %222 = vector.load %arg2[%c1_136, %c0_137, %c0_138] : memref<2x16x16xbf16, #tpu.memory_space<vmem>>, vector<1x16x16xbf16>
    %223 = vector.shape_cast %222 : vector<1x16x16xbf16> to vector<16x16xbf16>
    %cst_139 = arith.constant dense<0.000000e+00> : vector<16x16xf32>
    %224 = tpu.matmul %221, %223, %cst_139 {dimension_numbers = #tpu.dot_dimension_numbers<[1], [0], [0], [1], [0, 0, 1, 1], [], []>} : vector<16x16xbf16>, vector<16x16xbf16>, vector<16x16xf32> -> vector<16x16xf32>
    %c1_140 = arith.constant 1 : index
    %c0_141 = arith.constant 0 : index
    %c0_142 = arith.constant 0 : index
    %225 = vector.load %arg3[%c1_140, %c0_141, %c0_142] : memref<2x1x16xf32, #tpu.memory_space<vmem>>, vector<1x1x16xf32>
    %226 = vector.shape_cast %225 : vector<1x1x16xf32> to vector<1x16xf32>
    %227 = vector.broadcast %226 : vector<1x16xf32> to vector<16x16xf32>
    %228 = arith.addf %224, %227 : vector<16x16xf32>
    %c1_143 = arith.constant 1 : index
    %c0_144 = arith.constant 0 : index
    %c0_145 = arith.constant 0 : index
    %229 = vector.load %arg5[%c1_143, %c0_144, %c0_145] : memref<2x1x16xf32, #tpu.memory_space<vmem>>, vector<1x1x16xf32>
    %230 = vector.shape_cast %229 : vector<1x1x16xf32> to vector<1x16xf32>
    %c1_i32_146 = arith.constant 1 : i32
    %231 = tpu.dynamic_rotate %228 by %c1_i32_146 dim 0 : vector<16x16xf32>, i32 -> vector<16x16xf32>
    %232 = vector.broadcast %20 : vector<16x1xf32> to vector<16x16xf32>
    %233 = arith.mulf %231, %232 : vector<16x16xf32>
    %c15_i32_147 = arith.constant 15 : i32
    %234 = tpu.dynamic_rotate %228 by %c15_i32_147 dim 0 : vector<16x16xf32>, i32 -> vector<16x16xf32>
    %235 = vector.broadcast %24 : vector<16x1xf32> to vector<16x16xf32>
    %236 = arith.mulf %234, %235 : vector<16x16xf32>
    %c4_i32_148 = arith.constant 4 : i32
    %237 = tpu.dynamic_rotate %233 by %c4_i32_148 dim 0 : vector<16x16xf32>, i32 -> vector<16x16xf32>
    %238 = arith.truncf %237 : vector<16x16xf32> to vector<16x16xbf16>
    %c1_149 = arith.constant 1 : index
    %c0_150 = arith.constant 0 : index
    %c0_151 = arith.constant 0 : index
    %c0_152 = arith.constant 0 : index
    %239 = vector.load %arg4[%c1_149, %c0_150, %c0_151, %c0_152] : memref<2x9x16x16xbf16, #tpu.memory_space<vmem>>, vector<1x1x16x16xbf16>
    %240 = vector.shape_cast %239 : vector<1x1x16x16xbf16> to vector<16x16xbf16>
    %cst_153 = arith.constant dense<0.000000e+00> : vector<16x16xf32>
    %241 = tpu.matmul %238, %240, %cst_153 {dimension_numbers = #tpu.dot_dimension_numbers<[1], [0], [0], [1], [0, 0, 1, 1], [], []>} : vector<16x16xbf16>, vector<16x16xbf16>, vector<16x16xf32> -> vector<16x16xf32>
    %c4_i32_154 = arith.constant 4 : i32
    %242 = tpu.dynamic_rotate %228 by %c4_i32_154 dim 0 : vector<16x16xf32>, i32 -> vector<16x16xf32>
    %243 = arith.truncf %242 : vector<16x16xf32> to vector<16x16xbf16>
    %c1_155 = arith.constant 1 : index
    %c1_156 = arith.constant 1 : index
    %c0_157 = arith.constant 0 : index
    %c0_158 = arith.constant 0 : index
    %244 = vector.load %arg4[%c1_155, %c1_156, %c0_157, %c0_158] : memref<2x9x16x16xbf16, #tpu.memory_space<vmem>>, vector<1x1x16x16xbf16>
    %245 = vector.shape_cast %244 : vector<1x1x16x16xbf16> to vector<16x16xbf16>
    %cst_159 = arith.constant dense<0.000000e+00> : vector<16x16xf32>
    %246 = tpu.matmul %243, %245, %cst_159 {dimension_numbers = #tpu.dot_dimension_numbers<[1], [0], [0], [1], [0, 0, 1, 1], [], []>} : vector<16x16xbf16>, vector<16x16xbf16>, vector<16x16xf32> -> vector<16x16xf32>
    %247 = arith.addf %241, %246 : vector<16x16xf32>
    %c4_i32_160 = arith.constant 4 : i32
    %248 = tpu.dynamic_rotate %236 by %c4_i32_160 dim 0 : vector<16x16xf32>, i32 -> vector<16x16xf32>
    %249 = arith.truncf %248 : vector<16x16xf32> to vector<16x16xbf16>
    %c1_161 = arith.constant 1 : index
    %c2_162 = arith.constant 2 : index
    %c0_163 = arith.constant 0 : index
    %c0_164 = arith.constant 0 : index
    %250 = vector.load %arg4[%c1_161, %c2_162, %c0_163, %c0_164] : memref<2x9x16x16xbf16, #tpu.memory_space<vmem>>, vector<1x1x16x16xbf16>
    %251 = vector.shape_cast %250 : vector<1x1x16x16xbf16> to vector<16x16xbf16>
    %cst_165 = arith.constant dense<0.000000e+00> : vector<16x16xf32>
    %252 = tpu.matmul %249, %251, %cst_165 {dimension_numbers = #tpu.dot_dimension_numbers<[1], [0], [0], [1], [0, 0, 1, 1], [], []>} : vector<16x16xbf16>, vector<16x16xbf16>, vector<16x16xf32> -> vector<16x16xf32>
    %253 = arith.addf %247, %252 : vector<16x16xf32>
    %254 = vector.broadcast %28 : vector<16x1xf32> to vector<16x16xf32>
    %255 = arith.mulf %253, %254 : vector<16x16xf32>
    %256 = arith.truncf %233 : vector<16x16xf32> to vector<16x16xbf16>
    %c1_166 = arith.constant 1 : index
    %c3_167 = arith.constant 3 : index
    %c0_168 = arith.constant 0 : index
    %c0_169 = arith.constant 0 : index
    %257 = vector.load %arg4[%c1_166, %c3_167, %c0_168, %c0_169] : memref<2x9x16x16xbf16, #tpu.memory_space<vmem>>, vector<1x1x16x16xbf16>
    %258 = vector.shape_cast %257 : vector<1x1x16x16xbf16> to vector<16x16xbf16>
    %cst_170 = arith.constant dense<0.000000e+00> : vector<16x16xf32>
    %259 = tpu.matmul %256, %258, %cst_170 {dimension_numbers = #tpu.dot_dimension_numbers<[1], [0], [0], [1], [0, 0, 1, 1], [], []>} : vector<16x16xbf16>, vector<16x16xbf16>, vector<16x16xf32> -> vector<16x16xf32>
    %260 = arith.truncf %228 : vector<16x16xf32> to vector<16x16xbf16>
    %c1_171 = arith.constant 1 : index
    %c4_172 = arith.constant 4 : index
    %c0_173 = arith.constant 0 : index
    %c0_174 = arith.constant 0 : index
    %261 = vector.load %arg4[%c1_171, %c4_172, %c0_173, %c0_174] : memref<2x9x16x16xbf16, #tpu.memory_space<vmem>>, vector<1x1x16x16xbf16>
    %262 = vector.shape_cast %261 : vector<1x1x16x16xbf16> to vector<16x16xbf16>
    %cst_175 = arith.constant dense<0.000000e+00> : vector<16x16xf32>
    %263 = tpu.matmul %260, %262, %cst_175 {dimension_numbers = #tpu.dot_dimension_numbers<[1], [0], [0], [1], [0, 0, 1, 1], [], []>} : vector<16x16xbf16>, vector<16x16xbf16>, vector<16x16xf32> -> vector<16x16xf32>
    %264 = arith.addf %259, %263 : vector<16x16xf32>
    %265 = arith.truncf %236 : vector<16x16xf32> to vector<16x16xbf16>
    %c1_176 = arith.constant 1 : index
    %c5_177 = arith.constant 5 : index
    %c0_178 = arith.constant 0 : index
    %c0_179 = arith.constant 0 : index
    %266 = vector.load %arg4[%c1_176, %c5_177, %c0_178, %c0_179] : memref<2x9x16x16xbf16, #tpu.memory_space<vmem>>, vector<1x1x16x16xbf16>
    %267 = vector.shape_cast %266 : vector<1x1x16x16xbf16> to vector<16x16xbf16>
    %cst_180 = arith.constant dense<0.000000e+00> : vector<16x16xf32>
    %268 = tpu.matmul %265, %267, %cst_180 {dimension_numbers = #tpu.dot_dimension_numbers<[1], [0], [0], [1], [0, 0, 1, 1], [], []>} : vector<16x16xbf16>, vector<16x16xbf16>, vector<16x16xf32> -> vector<16x16xf32>
    %269 = arith.addf %264, %268 : vector<16x16xf32>
    %270 = arith.addf %255, %269 : vector<16x16xf32>
    %c12_i32_181 = arith.constant 12 : i32
    %271 = tpu.dynamic_rotate %233 by %c12_i32_181 dim 0 : vector<16x16xf32>, i32 -> vector<16x16xf32>
    %272 = arith.truncf %271 : vector<16x16xf32> to vector<16x16xbf16>
    %c1_182 = arith.constant 1 : index
    %c6_183 = arith.constant 6 : index
    %c0_184 = arith.constant 0 : index
    %c0_185 = arith.constant 0 : index
    %273 = vector.load %arg4[%c1_182, %c6_183, %c0_184, %c0_185] : memref<2x9x16x16xbf16, #tpu.memory_space<vmem>>, vector<1x1x16x16xbf16>
    %274 = vector.shape_cast %273 : vector<1x1x16x16xbf16> to vector<16x16xbf16>
    %cst_186 = arith.constant dense<0.000000e+00> : vector<16x16xf32>
    %275 = tpu.matmul %272, %274, %cst_186 {dimension_numbers = #tpu.dot_dimension_numbers<[1], [0], [0], [1], [0, 0, 1, 1], [], []>} : vector<16x16xbf16>, vector<16x16xbf16>, vector<16x16xf32> -> vector<16x16xf32>
    %c12_i32_187 = arith.constant 12 : i32
    %276 = tpu.dynamic_rotate %228 by %c12_i32_187 dim 0 : vector<16x16xf32>, i32 -> vector<16x16xf32>
    %277 = arith.truncf %276 : vector<16x16xf32> to vector<16x16xbf16>
    %c1_188 = arith.constant 1 : index
    %c7_189 = arith.constant 7 : index
    %c0_190 = arith.constant 0 : index
    %c0_191 = arith.constant 0 : index
    %278 = vector.load %arg4[%c1_188, %c7_189, %c0_190, %c0_191] : memref<2x9x16x16xbf16, #tpu.memory_space<vmem>>, vector<1x1x16x16xbf16>
    %279 = vector.shape_cast %278 : vector<1x1x16x16xbf16> to vector<16x16xbf16>
    %cst_192 = arith.constant dense<0.000000e+00> : vector<16x16xf32>
    %280 = tpu.matmul %277, %279, %cst_192 {dimension_numbers = #tpu.dot_dimension_numbers<[1], [0], [0], [1], [0, 0, 1, 1], [], []>} : vector<16x16xbf16>, vector<16x16xbf16>, vector<16x16xf32> -> vector<16x16xf32>
    %281 = arith.addf %275, %280 : vector<16x16xf32>
    %c12_i32_193 = arith.constant 12 : i32
    %282 = tpu.dynamic_rotate %236 by %c12_i32_193 dim 0 : vector<16x16xf32>, i32 -> vector<16x16xf32>
    %283 = arith.truncf %282 : vector<16x16xf32> to vector<16x16xbf16>
    %c1_194 = arith.constant 1 : index
    %c8_195 = arith.constant 8 : index
    %c0_196 = arith.constant 0 : index
    %c0_197 = arith.constant 0 : index
    %284 = vector.load %arg4[%c1_194, %c8_195, %c0_196, %c0_197] : memref<2x9x16x16xbf16, #tpu.memory_space<vmem>>, vector<1x1x16x16xbf16>
    %285 = vector.shape_cast %284 : vector<1x1x16x16xbf16> to vector<16x16xbf16>
    %cst_198 = arith.constant dense<0.000000e+00> : vector<16x16xf32>
    %286 = tpu.matmul %283, %285, %cst_198 {dimension_numbers = #tpu.dot_dimension_numbers<[1], [0], [0], [1], [0, 0, 1, 1], [], []>} : vector<16x16xbf16>, vector<16x16xbf16>, vector<16x16xf32> -> vector<16x16xf32>
    %287 = arith.addf %281, %286 : vector<16x16xf32>
    %288 = vector.broadcast %32 : vector<16x1xf32> to vector<16x16xf32>
    %289 = arith.mulf %287, %288 : vector<16x16xf32>
    %290 = arith.addf %270, %289 : vector<16x16xf32>
    %291 = vector.broadcast %230 : vector<1x16xf32> to vector<16x16xf32>
    %292 = arith.addf %290, %291 : vector<16x16xf32>
    %cst_199 = arith.constant 0.000000e+00 : f32
    %293 = vector.broadcast %cst_199 : f32 to vector<16x16xf32>
    %294 = arith.maximumf %292, %293 : vector<16x16xf32>
    %295 = arith.truncf %294 : vector<16x16xf32> to vector<16x16xbf16>
    %c1_200 = arith.constant 1 : index
    %c0_201 = arith.constant 0 : index
    %c0_202 = arith.constant 0 : index
    %296 = vector.load %arg6[%c1_200, %c0_201, %c0_202] : memref<2x16x16xbf16, #tpu.memory_space<vmem>>, vector<1x16x16xbf16>
    %297 = vector.shape_cast %296 : vector<1x16x16xbf16> to vector<16x16xbf16>
    %cst_203 = arith.constant dense<0.000000e+00> : vector<16x16xf32>
    %298 = tpu.matmul %295, %297, %cst_203 {dimension_numbers = #tpu.dot_dimension_numbers<[1], [0], [0], [1], [0, 0, 1, 1], [], []>} : vector<16x16xbf16>, vector<16x16xbf16>, vector<16x16xf32> -> vector<16x16xf32>
    %c1_204 = arith.constant 1 : index
    %c0_205 = arith.constant 0 : index
    %c0_206 = arith.constant 0 : index
    %299 = vector.load %arg7[%c1_204, %c0_205, %c0_206] : memref<2x1x16xf32, #tpu.memory_space<vmem>>, vector<1x1x16xf32>
    %300 = vector.shape_cast %299 : vector<1x1x16xf32> to vector<1x16xf32>
    %301 = vector.broadcast %300 : vector<1x16xf32> to vector<16x16xf32>
    %302 = arith.addf %298, %301 : vector<16x16xf32>
    %cst_207 = arith.constant 0.000000e+00 : f32
    %303 = vector.broadcast %cst_207 : f32 to vector<16x16xf32>
    %304 = arith.maximumf %302, %303 : vector<16x16xf32>
    %c1_208 = arith.constant 1 : index
    %c0_209 = arith.constant 0 : index
    %c0_210 = arith.constant 0 : index
    %305 = vector.load %arg9[%c1_208, %c0_209, %c0_210] : memref<2x1x16xf32, #tpu.memory_space<vmem>>, vector<1x1x16xf32>
    %306 = vector.shape_cast %305 : vector<1x1x16xf32> to vector<1x16xf32>
    %c1_i32_211 = arith.constant 1 : i32
    %307 = tpu.dynamic_rotate %304 by %c1_i32_211 dim 0 : vector<16x16xf32>, i32 -> vector<16x16xf32>
    %308 = vector.broadcast %20 : vector<16x1xf32> to vector<16x16xf32>
    %309 = arith.mulf %307, %308 : vector<16x16xf32>
    %c15_i32_212 = arith.constant 15 : i32
    %310 = tpu.dynamic_rotate %304 by %c15_i32_212 dim 0 : vector<16x16xf32>, i32 -> vector<16x16xf32>
    %311 = vector.broadcast %24 : vector<16x1xf32> to vector<16x16xf32>
    %312 = arith.mulf %310, %311 : vector<16x16xf32>
    %c4_i32_213 = arith.constant 4 : i32
    %313 = tpu.dynamic_rotate %309 by %c4_i32_213 dim 0 : vector<16x16xf32>, i32 -> vector<16x16xf32>
    %314 = arith.truncf %313 : vector<16x16xf32> to vector<16x16xbf16>
    %c1_214 = arith.constant 1 : index
    %c0_215 = arith.constant 0 : index
    %c0_216 = arith.constant 0 : index
    %c0_217 = arith.constant 0 : index
    %315 = vector.load %arg8[%c1_214, %c0_215, %c0_216, %c0_217] : memref<2x9x16x16xbf16, #tpu.memory_space<vmem>>, vector<1x1x16x16xbf16>
    %316 = vector.shape_cast %315 : vector<1x1x16x16xbf16> to vector<16x16xbf16>
    %cst_218 = arith.constant dense<0.000000e+00> : vector<16x16xf32>
    %317 = tpu.matmul %314, %316, %cst_218 {dimension_numbers = #tpu.dot_dimension_numbers<[1], [0], [0], [1], [0, 0, 1, 1], [], []>} : vector<16x16xbf16>, vector<16x16xbf16>, vector<16x16xf32> -> vector<16x16xf32>
    %c4_i32_219 = arith.constant 4 : i32
    %318 = tpu.dynamic_rotate %304 by %c4_i32_219 dim 0 : vector<16x16xf32>, i32 -> vector<16x16xf32>
    %319 = arith.truncf %318 : vector<16x16xf32> to vector<16x16xbf16>
    %c1_220 = arith.constant 1 : index
    %c1_221 = arith.constant 1 : index
    %c0_222 = arith.constant 0 : index
    %c0_223 = arith.constant 0 : index
    %320 = vector.load %arg8[%c1_220, %c1_221, %c0_222, %c0_223] : memref<2x9x16x16xbf16, #tpu.memory_space<vmem>>, vector<1x1x16x16xbf16>
    %321 = vector.shape_cast %320 : vector<1x1x16x16xbf16> to vector<16x16xbf16>
    %cst_224 = arith.constant dense<0.000000e+00> : vector<16x16xf32>
    %322 = tpu.matmul %319, %321, %cst_224 {dimension_numbers = #tpu.dot_dimension_numbers<[1], [0], [0], [1], [0, 0, 1, 1], [], []>} : vector<16x16xbf16>, vector<16x16xbf16>, vector<16x16xf32> -> vector<16x16xf32>
    %323 = arith.addf %317, %322 : vector<16x16xf32>
    %c4_i32_225 = arith.constant 4 : i32
    %324 = tpu.dynamic_rotate %312 by %c4_i32_225 dim 0 : vector<16x16xf32>, i32 -> vector<16x16xf32>
    %325 = arith.truncf %324 : vector<16x16xf32> to vector<16x16xbf16>
    %c1_226 = arith.constant 1 : index
    %c2_227 = arith.constant 2 : index
    %c0_228 = arith.constant 0 : index
    %c0_229 = arith.constant 0 : index
    %326 = vector.load %arg8[%c1_226, %c2_227, %c0_228, %c0_229] : memref<2x9x16x16xbf16, #tpu.memory_space<vmem>>, vector<1x1x16x16xbf16>
    %327 = vector.shape_cast %326 : vector<1x1x16x16xbf16> to vector<16x16xbf16>
    %cst_230 = arith.constant dense<0.000000e+00> : vector<16x16xf32>
    %328 = tpu.matmul %325, %327, %cst_230 {dimension_numbers = #tpu.dot_dimension_numbers<[1], [0], [0], [1], [0, 0, 1, 1], [], []>} : vector<16x16xbf16>, vector<16x16xbf16>, vector<16x16xf32> -> vector<16x16xf32>
    %329 = arith.addf %323, %328 : vector<16x16xf32>
    %330 = vector.broadcast %28 : vector<16x1xf32> to vector<16x16xf32>
    %331 = arith.mulf %329, %330 : vector<16x16xf32>
    %332 = arith.truncf %309 : vector<16x16xf32> to vector<16x16xbf16>
    %c1_231 = arith.constant 1 : index
    %c3_232 = arith.constant 3 : index
    %c0_233 = arith.constant 0 : index
    %c0_234 = arith.constant 0 : index
    %333 = vector.load %arg8[%c1_231, %c3_232, %c0_233, %c0_234] : memref<2x9x16x16xbf16, #tpu.memory_space<vmem>>, vector<1x1x16x16xbf16>
    %334 = vector.shape_cast %333 : vector<1x1x16x16xbf16> to vector<16x16xbf16>
    %cst_235 = arith.constant dense<0.000000e+00> : vector<16x16xf32>
    %335 = tpu.matmul %332, %334, %cst_235 {dimension_numbers = #tpu.dot_dimension_numbers<[1], [0], [0], [1], [0, 0, 1, 1], [], []>} : vector<16x16xbf16>, vector<16x16xbf16>, vector<16x16xf32> -> vector<16x16xf32>
    %336 = arith.truncf %304 : vector<16x16xf32> to vector<16x16xbf16>
    %c1_236 = arith.constant 1 : index
    %c4_237 = arith.constant 4 : index
    %c0_238 = arith.constant 0 : index
    %c0_239 = arith.constant 0 : index
    %337 = vector.load %arg8[%c1_236, %c4_237, %c0_238, %c0_239] : memref<2x9x16x16xbf16, #tpu.memory_space<vmem>>, vector<1x1x16x16xbf16>
    %338 = vector.shape_cast %337 : vector<1x1x16x16xbf16> to vector<16x16xbf16>
    %cst_240 = arith.constant dense<0.000000e+00> : vector<16x16xf32>
    %339 = tpu.matmul %336, %338, %cst_240 {dimension_numbers = #tpu.dot_dimension_numbers<[1], [0], [0], [1], [0, 0, 1, 1], [], []>} : vector<16x16xbf16>, vector<16x16xbf16>, vector<16x16xf32> -> vector<16x16xf32>
    %340 = arith.addf %335, %339 : vector<16x16xf32>
    %341 = arith.truncf %312 : vector<16x16xf32> to vector<16x16xbf16>
    %c1_241 = arith.constant 1 : index
    %c5_242 = arith.constant 5 : index
    %c0_243 = arith.constant 0 : index
    %c0_244 = arith.constant 0 : index
    %342 = vector.load %arg8[%c1_241, %c5_242, %c0_243, %c0_244] : memref<2x9x16x16xbf16, #tpu.memory_space<vmem>>, vector<1x1x16x16xbf16>
    %343 = vector.shape_cast %342 : vector<1x1x16x16xbf16> to vector<16x16xbf16>
    %cst_245 = arith.constant dense<0.000000e+00> : vector<16x16xf32>
    %344 = tpu.matmul %341, %343, %cst_245 {dimension_numbers = #tpu.dot_dimension_numbers<[1], [0], [0], [1], [0, 0, 1, 1], [], []>} : vector<16x16xbf16>, vector<16x16xbf16>, vector<16x16xf32> -> vector<16x16xf32>
    %345 = arith.addf %340, %344 : vector<16x16xf32>
    %346 = arith.addf %331, %345 : vector<16x16xf32>
    %c12_i32_246 = arith.constant 12 : i32
    %347 = tpu.dynamic_rotate %309 by %c12_i32_246 dim 0 : vector<16x16xf32>, i32 -> vector<16x16xf32>
    %348 = arith.truncf %347 : vector<16x16xf32> to vector<16x16xbf16>
    %c1_247 = arith.constant 1 : index
    %c6_248 = arith.constant 6 : index
    %c0_249 = arith.constant 0 : index
    %c0_250 = arith.constant 0 : index
    %349 = vector.load %arg8[%c1_247, %c6_248, %c0_249, %c0_250] : memref<2x9x16x16xbf16, #tpu.memory_space<vmem>>, vector<1x1x16x16xbf16>
    %350 = vector.shape_cast %349 : vector<1x1x16x16xbf16> to vector<16x16xbf16>
    %cst_251 = arith.constant dense<0.000000e+00> : vector<16x16xf32>
    %351 = tpu.matmul %348, %350, %cst_251 {dimension_numbers = #tpu.dot_dimension_numbers<[1], [0], [0], [1], [0, 0, 1, 1], [], []>} : vector<16x16xbf16>, vector<16x16xbf16>, vector<16x16xf32> -> vector<16x16xf32>
    %c12_i32_252 = arith.constant 12 : i32
    %352 = tpu.dynamic_rotate %304 by %c12_i32_252 dim 0 : vector<16x16xf32>, i32 -> vector<16x16xf32>
    %353 = arith.truncf %352 : vector<16x16xf32> to vector<16x16xbf16>
    %c1_253 = arith.constant 1 : index
    %c7_254 = arith.constant 7 : index
    %c0_255 = arith.constant 0 : index
    %c0_256 = arith.constant 0 : index
    %354 = vector.load %arg8[%c1_253, %c7_254, %c0_255, %c0_256] : memref<2x9x16x16xbf16, #tpu.memory_space<vmem>>, vector<1x1x16x16xbf16>
    %355 = vector.shape_cast %354 : vector<1x1x16x16xbf16> to vector<16x16xbf16>
    %cst_257 = arith.constant dense<0.000000e+00> : vector<16x16xf32>
    %356 = tpu.matmul %353, %355, %cst_257 {dimension_numbers = #tpu.dot_dimension_numbers<[1], [0], [0], [1], [0, 0, 1, 1], [], []>} : vector<16x16xbf16>, vector<16x16xbf16>, vector<16x16xf32> -> vector<16x16xf32>
    %357 = arith.addf %351, %356 : vector<16x16xf32>
    %c12_i32_258 = arith.constant 12 : i32
    %358 = tpu.dynamic_rotate %312 by %c12_i32_258 dim 0 : vector<16x16xf32>, i32 -> vector<16x16xf32>
    %359 = arith.truncf %358 : vector<16x16xf32> to vector<16x16xbf16>
    %c1_259 = arith.constant 1 : index
    %c8_260 = arith.constant 8 : index
    %c0_261 = arith.constant 0 : index
    %c0_262 = arith.constant 0 : index
    %360 = vector.load %arg8[%c1_259, %c8_260, %c0_261, %c0_262] : memref<2x9x16x16xbf16, #tpu.memory_space<vmem>>, vector<1x1x16x16xbf16>
    %361 = vector.shape_cast %360 : vector<1x1x16x16xbf16> to vector<16x16xbf16>
    %cst_263 = arith.constant dense<0.000000e+00> : vector<16x16xf32>
    %362 = tpu.matmul %359, %361, %cst_263 {dimension_numbers = #tpu.dot_dimension_numbers<[1], [0], [0], [1], [0, 0, 1, 1], [], []>} : vector<16x16xbf16>, vector<16x16xbf16>, vector<16x16xf32> -> vector<16x16xf32>
    %363 = arith.addf %357, %362 : vector<16x16xf32>
    %364 = vector.broadcast %32 : vector<16x1xf32> to vector<16x16xf32>
    %365 = arith.mulf %363, %364 : vector<16x16xf32>
    %366 = arith.addf %346, %365 : vector<16x16xf32>
    %367 = vector.broadcast %306 : vector<1x16xf32> to vector<16x16xf32>
    %368 = arith.addf %366, %367 : vector<16x16xf32>
    %369 = arith.truncf %368 : vector<16x16xf32> to vector<16x16xbf16>
    %cst_264 = arith.constant dense<0.000000e+00> : vector<16x16xf32>
    %370 = tpu.matmul %369, %40, %cst_264 {dimension_numbers = #tpu.dot_dimension_numbers<[1], [0], [0], [1], [0, 0, 1, 1], [], []>} : vector<16x16xbf16>, vector<16x16xbf16>, vector<16x16xf32> -> vector<16x16xf32>
    %cst_265 = arith.constant 2.000000e+00 : f32
    %371 = vector.broadcast %cst_265 : f32 to vector<16x16xf32>
    %372 = arith.addf %370, %371 : vector<16x16xf32>
    %cst_266 = arith.constant 0.000000e+00 : f32
    %373 = vector.broadcast %cst_266 : f32 to vector<16x16xf32>
    %374 = arith.minimumf %372, %373 : vector<16x16xf32>
    %375 = math.absf %372 : vector<16x16xf32>
    %cst_267 = arith.constant 0.000000e+00 : f32
    %376 = vector.broadcast %cst_267 : f32 to vector<16x16xf32>
    %377 = arith.subf %376, %375 : vector<16x16xf32>
    %378 = math.exp %377 : vector<16x16xf32>
    %cst_268 = arith.constant 1.000000e+00 : f32
    %379 = vector.broadcast %cst_268 : f32 to vector<16x16xf32>
    %380 = arith.addf %379, %378 : vector<16x16xf32>
    %381 = math.log %380 : vector<16x16xf32>
    %382 = arith.subf %374, %381 : vector<16x16xf32>
    %383 = math.exp %382 : vector<16x16xf32>
    %384 = vector.broadcast %39 : vector<1x16xf32> to vector<16x16xf32>
    %385 = arith.mulf %228, %384 : vector<16x16xf32>
    %386 = arith.addf %228, %368 : vector<16x16xf32>
    %387 = vector.broadcast %37 : vector<1x16xf32> to vector<16x16xf32>
    %388 = arith.mulf %386, %387 : vector<16x16xf32>
    %389 = arith.mulf %388, %383 : vector<16x16xf32>
    %390 = arith.addf %385, %389 : vector<16x16xf32>
    %391 = vector.broadcast %37 : vector<1x16xf32> to vector<16x16xf32>
    %392 = arith.mulf %382, %391 : vector<16x16xf32>
    %cst_269 = arith.constant dense<0.000000e+00> : vector<16xf32>
    %393 = vector.multi_reduction <add>, %392, %cst_269 [1] : vector<16x16xf32> to vector<16xf32>
    %394 = vector.shape_cast %393 : vector<16xf32> to vector<16x1xf32>
    %cst_270 = arith.constant dense<0.000000e+00> : vector<1xf32>
    %395 = vector.multi_reduction <add>, %394, %cst_270 [0] : vector<16x1xf32> to vector<1xf32>
    %396 = vector.shape_cast %395 : vector<1xf32> to vector<1x1xf32>
    %397 = arith.addf %220, %396 : vector<1x1xf32>
    %c0_271 = arith.constant 0 : index
    %c0_272 = arith.constant 0 : index
    %c0_273 = arith.constant 0 : index
    %398 = vector.load %arg11[%c0_271, %c0_272, %c0_273] : memref<1x16x16xf32, #tpu.memory_space<vmem>>, vector<1x16x16xf32>
    %399 = vector.shape_cast %398 : vector<1x16x16xf32> to vector<16x16xf32>
    %400 = vector.shape_cast %390 : vector<16x16xf32> to vector<1x16x16xf32>
    tpu.vector_store %arg11[%c0_271, %c0_272, %c0_273], %400 {strides = array<i32>} : memref<1x16x16xf32, #tpu.memory_space<vmem>>, vector<1x16x16xf32>,
    %cst_274 = arith.constant 0.000000e+00 : f32
    %401 = vector.broadcast %cst_274 : f32 to vector<1x1x128xf32>
    %402 = vector.extract %397[0, 0] : f32 from vector<1x1xf32>
    %403 = vector.broadcast %402 : f32 to vector<1x1x128xf32>
    %404 = arith.addf %401, %403 : vector<1x1x128xf32>
    %c0_275 = arith.constant 0 : index
    %c0_276 = arith.constant 0 : index
    %c0_277 = arith.constant 0 : index
    %405 = vector.load %arg12[%c0_275, %c0_276, %c0_277] : memref<1x1x128xf32, #tpu.memory_space<vmem>>, vector<1x1x128xf32>
    tpu.vector_store %arg12[%c0_275, %c0_276, %c0_277], %404 {strides = array<i32>} : memref<1x1x128xf32, #tpu.memory_space<vmem>>, vector<1x1x128xf32>,
    return
  }
  func.func @transform_0(%arg0: i32) -> (i32, i32, i32) {
    %c0_i32 = arith.constant 0 : i32
    %c0_i32_0 = arith.constant 0 : i32
    %c0_i32_1 = arith.constant 0 : i32
    return %arg0, %c0_i32, %c0_i32_0 : i32, i32, i32
  }
  func.func @transform_1(%arg0: i32) -> (i32, i32, i32) {
    %c0_i32 = arith.constant 0 : i32
    %c0_i32_0 = arith.constant 0 : i32
    %c0_i32_1 = arith.constant 0 : i32
    %c0_i32_2 = arith.constant 0 : i32
    return %c0_i32, %c0_i32_0, %c0_i32_1 : i32, i32, i32
  }
  func.func @transform_2(%arg0: i32) -> (i32, i32, i32) {
    %c0_i32 = arith.constant 0 : i32
    %c0_i32_0 = arith.constant 0 : i32
    %c0_i32_1 = arith.constant 0 : i32
    %c0_i32_2 = arith.constant 0 : i32
    return %c0_i32, %c0_i32_0, %c0_i32_1 : i32, i32, i32
  }
  func.func @transform_3(%arg0: i32) -> (i32, i32, i32, i32) {
    %c0_i32 = arith.constant 0 : i32
    %c0_i32_0 = arith.constant 0 : i32
    %c0_i32_1 = arith.constant 0 : i32
    %c0_i32_2 = arith.constant 0 : i32
    %c0_i32_3 = arith.constant 0 : i32
    return %c0_i32, %c0_i32_0, %c0_i32_1, %c0_i32_2 : i32, i32, i32, i32
  }
  func.func @transform_4(%arg0: i32) -> (i32, i32, i32) {
    %c0_i32 = arith.constant 0 : i32
    %c0_i32_0 = arith.constant 0 : i32
    %c0_i32_1 = arith.constant 0 : i32
    %c0_i32_2 = arith.constant 0 : i32
    return %c0_i32, %c0_i32_0, %c0_i32_1 : i32, i32, i32
  }
  func.func @transform_5(%arg0: i32) -> (i32, i32, i32) {
    %c0_i32 = arith.constant 0 : i32
    %c0_i32_0 = arith.constant 0 : i32
    %c0_i32_1 = arith.constant 0 : i32
    %c0_i32_2 = arith.constant 0 : i32
    return %c0_i32, %c0_i32_0, %c0_i32_1 : i32, i32, i32
  }
  func.func @transform_6(%arg0: i32) -> (i32, i32, i32) {
    %c0_i32 = arith.constant 0 : i32
    %c0_i32_0 = arith.constant 0 : i32
    %c0_i32_1 = arith.constant 0 : i32
    %c0_i32_2 = arith.constant 0 : i32
    return %c0_i32, %c0_i32_0, %c0_i32_1 : i32, i32, i32
  }
  func.func @transform_7(%arg0: i32) -> (i32, i32, i32, i32) {
    %c0_i32 = arith.constant 0 : i32
    %c0_i32_0 = arith.constant 0 : i32
    %c0_i32_1 = arith.constant 0 : i32
    %c0_i32_2 = arith.constant 0 : i32
    %c0_i32_3 = arith.constant 0 : i32
    return %c0_i32, %c0_i32_0, %c0_i32_1, %c0_i32_2 : i32, i32, i32, i32
  }
  func.func @transform_8(%arg0: i32) -> (i32, i32, i32) {
    %c0_i32 = arith.constant 0 : i32
    %c0_i32_0 = arith.constant 0 : i32
    %c0_i32_1 = arith.constant 0 : i32
    %c0_i32_2 = arith.constant 0 : i32
    return %c0_i32, %c0_i32_0, %c0_i32_1 : i32, i32, i32
  }
  func.func @transform_9(%arg0: i32) -> (i32, i32) {
    %c0_i32 = arith.constant 0 : i32
    %c0_i32_0 = arith.constant 0 : i32
    %c0_i32_1 = arith.constant 0 : i32
    return %c0_i32, %c0_i32_0 : i32, i32
  }
  func.func @transform_10(%arg0: i32) -> (i32, i32, i32) {
    %c0_i32 = arith.constant 0 : i32
    %c0_i32_0 = arith.constant 0 : i32
    %c0_i32_1 = arith.constant 0 : i32
    return %arg0, %c0_i32, %c0_i32_0 : i32, i32, i32
  }
  func.func @transform_11(%arg0: i32) -> (i32, i32, i32) {
    %c0_i32 = arith.constant 0 : i32
    %c0_i32_0 = arith.constant 0 : i32
    %c0_i32_1 = arith.constant 0 : i32
    return %arg0, %c0_i32, %c0_i32_0 : i32, i32, i32
  }
}

</mosaic_0001>

<llo_original>
// kernel: _lambda_.3
$region0: #{_lambda_.3}
  #allocation0 [shape = 'u32[]', space=smem, size = 0x4, offset = 0x4, fixed_abs, tag = 'smem constant byte address 0x4 - core index']
  #allocation1 [shape = 'u32[144,128]{1,0:T(1,128)}', space=vmem, size = 0x12000, scoped, tag = 'internal scratch']
  %s0 = inlined_call_operand.vmem [shape: f32[2,16,16], index: 0, kind: input, shape index: {}]
  %s1 = inlined_call_operand.vmem [shape: bf16[2,16,16], index: 1, kind: input, shape index: {}]
  %s2 = inlined_call_operand.vmem [shape: f32[2,1,16], index: 2, kind: input, shape index: {}]
  %s3 = inlined_call_operand.vmem [shape: bf16[2,9,16,16], index: 3, kind: input, shape index: {}]
  %s4 = inlined_call_operand.vmem [shape: f32[2,1,16], index: 4, kind: input, shape index: {}]
  %s5 = inlined_call_operand.vmem [shape: bf16[2,16,16], index: 5, kind: input, shape index: {}]
  %s6 = inlined_call_operand.vmem [shape: f32[2,1,16], index: 6, kind: input, shape index: {}]
  %s7 = inlined_call_operand.vmem [shape: bf16[2,9,16,16], index: 7, kind: input, shape index: {}]
  %s8 = inlined_call_operand.vmem [shape: f32[2,1,16], index: 8, kind: input, shape index: {}]
  %s9 = inlined_call_operand.vmem [shape: bf16[16,16], index: 9, kind: input, shape index: {}]
  %s10 = inlined_call_operand.vmem [shape: f32[2,16,16], index: 10, kind: output, shape index: {0}]
  %s11 = inlined_call_operand.vmem [shape: f32[2,1,128], index: 11, kind: output, shape index: {1}]
  %12 = xla_tuple %s10, %s11
  %s13 = sld [smem:[#allocation0]]
  $region81: #{_lambda_.3} parent=0
    _
  %s15 = ssub.s32 1, %s13
  %s16 = scalar_select 0, %s15, %s13
  loop: start=0, step=1, limit=4
  $region2: #{_lambda_.3} parent=0 // loop_pre_header
    _
  $region3: #{_lambda_.3} parent=0 // loop_header
    %s18 = sphi 0, %s22
    %p19 = scmp.ge.s32.totalorder %s18, 4
    %s28 = sphi 0, %s30
    %s31 = sphi 0, %s28
    %s32 = sphi 0, %s31
    %s48 = sphi 0, %s32
    %s52 = sphi 0, %s52
    %s54 = sphi 0, %s52
    %s55 = sphi 0, %s54
    %s69 = sphi 0, %s55
    %s73 = sphi 0, %s73
    %s75 = sphi 0, %s73
    %s76 = sphi 0, %s75
    %s90 = sphi 0, %s76
    %s94 = sphi 0, %s94
    %s96 = sphi 0, %s94
    %s97 = sphi 0, %s96
    %s111 = sphi 0, %s97
    %s115 = sphi 0, %s115
    %s117 = sphi 0, %s115
    %s118 = sphi 0, %s117
    %s132 = sphi 0, %s118
    %s136 = sphi 0, %s136
    %s138 = sphi 0, %s136
    %s139 = sphi 0, %s138
    %s153 = sphi 0, %s139
    %s157 = sphi 0, %s157
    %s159 = sphi 0, %s157
    %s160 = sphi 0, %s159
    %s174 = sphi 0, %s160
    %s178 = sphi 0, %s178
    %s180 = sphi 0, %s178
    %s181 = sphi 0, %s180
    %s195 = sphi 0, %s181
    %s199 = sphi 0, %s199
    %s201 = sphi 0, %s199
    %s202 = sphi 0, %s201
    %s216 = sphi 0, %s202
    %s220 = sphi 0, %s220
    %s222 = sphi 0, %s220
    %s223 = sphi 0, %s222
    %s237 = sphi 0, %s223
    %s243 = sphi 0, %s245
    %s246 = sphi 0, %s243
    %s247 = sphi 0, %s246
    %s263 = sphi 0, %s247
    %s269 = sphi 0, %s271
    %s272 = sphi 0, %s269
    %s273 = sphi 0, %s272
    %s289 = sphi 0, %s273
  $region4: #{_lambda_.3} parent=0 // loop_header_branch
    %21 = sbr.rel (%p19) target = $region8
  $region5: #{_lambda_.3} parent=0 // loop_body
    %s23 = ssub.s32 %s18, 1
    %s24 = ssub.s32 %s18, 2
    %s25 = sadd.s32 %s18, 1
    %s26 = ssub.s32 %s18, %s25
    %p27 = scmp.eq.s32.totalorder %s26, 0
    %s29 = sadd.s32 %s28, 1
    %s30 = scalar_select %p27, %s28, %s29
    %p33 = pneg %p27
    %p34 = scmp.eq.s32.totalorder %s18, 1
    %p35 = por %p33, %p34
    %p36 = scmp.ne.s32.totalorder %s28, %s31
    %p37 = scmp.eq.s32.totalorder %s18, 0
    %p38 = por %p36, %p37
    %p39 = scmp.ne.s32.totalorder %s28, %s31
    %p40 = scmp.eq.s32.totalorder %s23, 1
    %p41 = por %p39, %p40
    %p42 = scmp.ne.s32.totalorder %s31, %s32
    %p43 = scmp.eq.s32.totalorder %s23, 0
    %p44 = por %p42, %p43
    %p45 = scmp.ne.s32.totalorder %s31, %s32
    %p46 = scmp.eq.s32.totalorder %s24, 1
    %p47 = por %p45, %p46
    %p49 = scmp.ne.s32.totalorder %s32, %s48
    %p50 = scmp.eq.s32.totalorder %s24, 0
    %p51 = por %p49, %p50
    %s53 = sadd.s32 %s52, 1
    %p56 = scmp.eq.s32.totalorder %s18, 1
    %p57 = scmp.ne.s32.totalorder %s52, %s54
    %p58 = scmp.eq.s32.totalorder %s18, 0
    %p59 = por %p57, %p58
    %p60 = scmp.ne.s32.totalorder %s52, %s54
    %p61 = scmp.eq.s32.totalorder %s23, 1
    %p62 = por %p60, %p61
    %p63 = scmp.ne.s32.totalorder %s54, %s55
    %p64 = scmp.eq.s32.totalorder %s23, 0
    %p65 = por %p63, %p64
    %p66 = scmp.ne.s32.totalorder %s54, %s55
    %p67 = scmp.eq.s32.totalorder %s24, 1
    %p68 = por %p66, %p67
    %p70 = scmp.ne.s32.totalorder %s55, %s69
    %p71 = scmp.eq.s32.totalorder %s24, 0
    %p72 = por %p70, %p71
    %s74 = sadd.s32 %s73, 1
    %p77 = scmp.eq.s32.totalorder %s18, 1
    %p78 = scmp.ne.s32.totalorder %s73, %s75
    %p79 = scmp.eq.s32.totalorder %s18, 0
    %p80 = por %p78, %p79
    %p81 = scmp.ne.s32.totalorder %s73, %s75
    %p82 = scmp.eq.s32.totalorder %s23, 1
    %p83 = por %p81, %p82
    %p84 = scmp.ne.s32.totalorder %s75, %s76
    %p85 = scmp.eq.s32.totalorder %s23, 0
    %p86 = por %p84, %p85
    %p87 = scmp.ne.s32.totalorder %s75, %s76
    %p88 = scmp.eq.s32.totalorder %s24, 1
    %p89 = por %p87, %p88
    %p91 = scmp.ne.s32.totalorder %s76, %s90
    %p92 = scmp.eq.s32.totalorder %s24, 0
    %p93 = por %p91, %p92
    %s95 = sadd.s32 %s94, 1
    %p98 = scmp.eq.s32.totalorder %s18, 1
    %p99 = scmp.ne.s32.totalorder %s94, %s96
    %p100 = scmp.eq.s32.totalorder %s18, 0
    %p101 = por %p99, %p100
    %p102 = scmp.ne.s32.totalorder %s94, %s96
    %p103 = scmp.eq.s32.totalorder %s23, 1
    %p104 = por %p102, %p103
    %p105 = scmp.ne.s32.totalorder %s96, %s97
    %p106 = scmp.eq.s32.totalorder %s23, 0
    %p107 = por %p105, %p106
    %p108 = scmp.ne.s32.totalorder %s96, %s97
    %p109 = scmp.eq.s32.totalorder %s24, 1
    %p110 = por %p108, %p109
    %p112 = scmp.ne.s32.totalorder %s97, %s111
    %p113 = scmp.eq.s32.totalorder %s24, 0
    %p114 = por %p112, %p113
    %s116 = sadd.s32 %s115, 1
    %p119 = scmp.eq.s32.totalorder %s18, 1
    %p120 = scmp.ne.s32.totalorder %s115, %s117
    %p121 = scmp.eq.s32.totalorder %s18, 0
    %p122 = por %p120, %p121
    %p123 = scmp.ne.s32.totalorder %s115, %s117
    %p124 = scmp.eq.s32.totalorder %s23, 1
    %p125 = por %p123, %p124
    %p126 = scmp.ne.s32.totalorder %s117, %s118
    %p127 = scmp.eq.s32.totalorder %s23, 0
    %p128 = por %p126, %p127
    %p129 = scmp.ne.s32.totalorder %s117, %s118
    %p130 = scmp.eq.s32.totalorder %s24, 1
    %p131 = por %p129, %p130
    %p133 = scmp.ne.s32.totalorder %s118, %s132
    %p134 = scmp.eq.s32.totalorder %s24, 0
    %p135 = por %p133, %p134
    %s137 = sadd.s32 %s136, 1
    %p140 = scmp.eq.s32.totalorder %s18, 1
    %p141 = scmp.ne.s32.totalorder %s136, %s138
    %p142 = scmp.eq.s32.totalorder %s18, 0
    %p143 = por %p141, %p142
    %p144 = scmp.ne.s32.totalorder %s136, %s138
    %p145 = scmp.eq.s32.totalorder %s23, 1
    %p146 = por %p144, %p145
    %p147 = scmp.ne.s32.totalorder %s138, %s139
    %p148 = scmp.eq.s32.totalorder %s23, 0
    %p149 = por %p147, %p148
    %p150 = scmp.ne.s32.totalorder %s138, %s139
    %p151 = scmp.eq.s32.totalorder %s24, 1
    %p152 = por %p150, %p151
    %p154 = scmp.ne.s32.totalorder %s139, %s153
    %p155 = scmp.eq.s32.totalorder %s24, 0
    %p156 = por %p154, %p155
    %s158 = sadd.s32 %s157, 1
    %p161 = scmp.eq.s32.totalorder %s18, 1
    %p162 = scmp.ne.s32.totalorder %s157, %s159
    %p163 = scmp.eq.s32.totalorder %s18, 0
    %p164 = por %p162, %p163
    %p165 = scmp.ne.s32.totalorder %s157, %s159
    %p166 = scmp.eq.s32.totalorder %s23, 1
    %p167 = por %p165, %p166
    %p168 = scmp.ne.s32.totalorder %s159, %s160
    %p169 = scmp.eq.s32.totalorder %s23, 0
    %p170 = por %p168, %p169
    %p171 = scmp.ne.s32.totalorder %s159, %s160
    %p172 = scmp.eq.s32.totalorder %s24, 1
    %p173 = por %p171, %p172
    %p175 = scmp.ne.s32.totalorder %s160, %s174
    %p176 = scmp.eq.s32.totalorder %s24, 0
    %p177 = por %p175, %p176
    %s179 = sadd.s32 %s178, 1
    %p182 = scmp.eq.s32.totalorder %s18, 1
    %p183 = scmp.ne.s32.totalorder %s178, %s180
    %p184 = scmp.eq.s32.totalorder %s18, 0
    %p185 = por %p183, %p184
    %p186 = scmp.ne.s32.totalorder %s178, %s180
    %p187 = scmp.eq.s32.totalorder %s23, 1
    %p188 = por %p186, %p187
    %p189 = scmp.ne.s32.totalorder %s180, %s181
    %p190 = scmp.eq.s32.totalorder %s23, 0
    %p191 = por %p189, %p190
    %p192 = scmp.ne.s32.totalorder %s180, %s181
    %p193 = scmp.eq.s32.totalorder %s24, 1
    %p194 = por %p192, %p193
    %p196 = scmp.ne.s32.totalorder %s181, %s195
    %p197 = scmp.eq.s32.totalorder %s24, 0
    %p198 = por %p196, %p197
    %s200 = sadd.s32 %s199, 1
    %p203 = scmp.eq.s32.totalorder %s18, 1
    %p204 = scmp.ne.s32.totalorder %s199, %s201
    %p205 = scmp.eq.s32.totalorder %s18, 0
    %p206 = por %p204, %p205
    %p207 = scmp.ne.s32.totalorder %s199, %s201
    %p208 = scmp.eq.s32.totalorder %s23, 1
    %p209 = por %p207, %p208
    %p210 = scmp.ne.s32.totalorder %s201, %s202
    %p211 = scmp.eq.s32.totalorder %s23, 0
    %p212 = por %p210, %p211
    %p213 = scmp.ne.s32.totalorder %s201, %s202
    %p214 = scmp.eq.s32.totalorder %s24, 1
    %p215 = por %p213, %p214
    %p217 = scmp.ne.s32.totalorder %s202, %s216
    %p218 = scmp.eq.s32.totalorder %s24, 0
    %p219 = por %p217, %p218
    %s221 = sadd.s32 %s220, 1
    %p224 = scmp.eq.s32.totalorder %s18, 1
    %p225 = scmp.ne.s32.totalorder %s220, %s222
    %p226 = scmp.eq.s32.totalorder %s18, 0
    %p227 = por %p225, %p226
    %p228 = scmp.ne.s32.totalorder %s220, %s222
    %p229 = scmp.eq.s32.totalorder %s23, 1
    %p230 = por %p228, %p229
    %p231 = scmp.ne.s32.totalorder %s222, %s223
    %p232 = scmp.eq.s32.totalorder %s23, 0
    %p233 = por %p231, %p232
    %p234 = scmp.ne.s32.totalorder %s222, %s223
    %p235 = scmp.eq.s32.totalorder %s24, 1
    %p236 = por %p234, %p235
    %p238 = scmp.ne.s32.totalorder %s223, %s237
    %p239 = scmp.eq.s32.totalorder %s24, 0
    %p240 = por %p238, %p239
    %s241 = ssub.s32 %s18, %s25
    %p242 = scmp.eq.s32.totalorder %s241, 0
    %s244 = sadd.s32 %s243, 1
    %s245 = scalar_select %p242, %s243, %s244
    %p248 = pneg %p242
    %p249 = scmp.eq.s32.totalorder %s18, 1
    %p250 = por %p248, %p249
    %p251 = scmp.ne.s32.totalorder %s243, %s246
    %p252 = scmp.eq.s32.totalorder %s18, 0
    %p253 = por %p251, %p252
    %p254 = scmp.ne.s32.totalorder %s243, %s246
    %p255 = scmp.eq.s32.totalorder %s23, 1
    %p256 = por %p254, %p255
    %p257 = scmp.ne.s32.totalorder %s246, %s247
    %p258 = scmp.eq.s32.totalorder %s23, 0
    %p259 = por %p257, %p258
    %p260 = scmp.ne.s32.totalorder %s246, %s247
    %p261 = scmp.eq.s32.totalorder %s24, 1
    %p262 = por %p260, %p261
    %p264 = scmp.ne.s32.totalorder %s247, %s263
    %p265 = scmp.eq.s32.totalorder %s24, 0
    %p266 = por %p264, %p265
    %s267 = ssub.s32 %s18, %s25
    %p268 = scmp.eq.s32.totalorder %s267, 0
    %s270 = sadd.s32 %s269, 1
    %s271 = scalar_select %p268, %s269, %s270
    %p274 = pneg %p268
    %p275 = scmp.eq.s32.totalorder %s18, 1
    %p276 = por %p274, %p275
    %p277 = scmp.ne.s32.totalorder %s269, %s272
    %p278 = scmp.eq.s32.totalorder %s18, 0
    %p279 = por %p277, %p278
    %p280 = scmp.ne.s32.totalorder %s269, %s272
    %p281 = scmp.eq.s32.totalorder %s23, 1
    %p282 = por %p280, %p281
    %p283 = scmp.ne.s32.totalorder %s272, %s273
    %p284 = scmp.eq.s32.totalorder %s23, 0
    %p285 = por %p283, %p284
    %p286 = scmp.ne.s32.totalorder %s272, %s273
    %p287 = scmp.eq.s32.totalorder %s24, 1
    %p288 = por %p286, %p287
    %p290 = scmp.ne.s32.totalorder %s273, %s289
    %p291 = scmp.eq.s32.totalorder %s24, 0
    %p292 = por %p290, %p291
    %p293 = scmp.le.s32.totalorder 1, %s18
    %p294 = scmp.lt.s32.totalorder %s18, 3
    %p295 = pnand %p293, %p294
    %p296 = pneg %p295
    // Predicated region
    $region9: #{_lambda_.3} parent=5 // pred_check
      _
    $region10: #{_lambda_.3} parent=5 // pred_check_branch
      %298 = sbr.rel (%p295) target = $region12
    $region11: #{_lambda_.3} parent=5 // pred_region
      %s299 = ssub.s32 %s18, 1
      // Predicated region
      $region13: #{_lambda_.3} parent=11 // pred_check
        %p300 = pneg %p65
      $region14: #{_lambda_.3} parent=11 // pred_check_branch
        %302 = sbr.rel (%p300) target = $region16
      $region15: #{_lambda_.3} parent=11 // pred_region
        _
      $region16: #{_lambda_.3} parent=11 // pred_fallthru
        _
      // Predicated region
      $region17: #{_lambda_.3} parent=11 // pred_check
        %p303 = pneg %p86
      $region18: #{_lambda_.3} parent=11 // pred_check_branch
        %305 = sbr.rel (%p303) target = $region20
      $region19: #{_lambda_.3} parent=11 // pred_region
        _
      $region20: #{_lambda_.3} parent=11 // pred_fallthru
        _
      // Predicated region
      $region21: #{_lambda_.3} parent=11 // pred_check
        %p306 = pneg %p107
      $region22: #{_lambda_.3} parent=11 // pred_check_branch
        %308 = sbr.rel (%p306) target = $region24
      $region23: #{_lambda_.3} parent=11 // pred_region
        _
      $region24: #{_lambda_.3} parent=11 // pred_fallthru
        _
      // Predicated region
      $region25: #{_lambda_.3} parent=11 // pred_check
        %p309 = pneg %p128
      $region26: #{_lambda_.3} parent=11 // pred_check_branch
        %311 = sbr.rel (%p309) target = $region28
      $region27: #{_lambda_.3} parent=11 // pred_region
        _
      $region28: #{_lambda_.3} parent=11 // pred_fallthru
        _
      // Predicated region
      $region29: #{_lambda_.3} parent=11 // pred_check
        %p312 = pneg %p149
      $region30: #{_lambda_.3} parent=11 // pred_check_branch
        %314 = sbr.rel (%p312) target = $region32
      $region31: #{_lambda_.3} parent=11 // pred_region
        _
      $region32: #{_lambda_.3} parent=11 // pred_fallthru
        _
      // Predicated region
      $region33: #{_lambda_.3} parent=11 // pred_check
        %p315 = pneg %p170
      $region34: #{_lambda_.3} parent=11 // pred_check_branch
        %317 = sbr.rel (%p315) target = $region36
      $region35: #{_lambda_.3} parent=11 // pred_region
        _
      $region36: #{_lambda_.3} parent=11 // pred_fallthru
        _
      // Predicated region
      $region37: #{_lambda_.3} parent=11 // pred_check
        %p318 = pneg %p191
      $region38: #{_lambda_.3} parent=11 // pred_check_branch
        %320 = sbr.rel (%p318) target = $region40
      $region39: #{_lambda_.3} parent=11 // pred_region
        _
      $region40: #{_lambda_.3} parent=11 // pred_fallthru
        _
      // Predicated region
      $region41: #{_lambda_.3} parent=11 // pred_check
        %p321 = pneg %p212
      $region42: #{_lambda_.3} parent=11 // pred_check_branch
        %323 = sbr.rel (%p321) target = $region44
      $region43: #{_lambda_.3} parent=11 // pred_region
        _
      $region44: #{_lambda_.3} parent=11 // pred_fallthru
        _
      // Predicated region
      $region45: #{_lambda_.3} parent=11 // pred_check
        %p324 = pneg %p233
      $region46: #{_lambda_.3} parent=11 // pred_check_branch
        %326 = sbr.rel (%p324) target = $region48
      $region47: #{_lambda_.3} parent=11 // pred_region
        _
      $region48: #{_lambda_.3} parent=11 // pred_fallthru
        _
    $region12: #{_lambda_.3} parent=5 // pred_fallthru
      _
    %p327 = scmp.lt.s32.totalorder %s18, 2
    // Predicated region
    $region49: #{_lambda_.3} parent=5 // pred_check
      %p328 = pneg %p327
    $region50: #{_lambda_.3} parent=5 // pred_check_branch
      %330 = sbr.rel (%p328) target = $region52
    $region51: #{_lambda_.3} parent=5 // pred_region
      // Predicated region
      $region53: #{_lambda_.3} parent=51 // pred_check
        %p331 = pneg %p38
      $region54: #{_lambda_.3} parent=51 // pred_check_branch
        %333 = sbr.rel (%p331) target = $region56
      $region55: #{_lambda_.3} parent=51 // pred_region
        %p334 = scmp.lt.s32.totalorder %s18, 1
        %s335 = scalar_select %p334, %s18, 1
        %s336 = smul.addr %s335, 2
        %s337 = smul.addr %s336, 8
        %s338 = scalar_lea.vmem %s0, %s337
      $region56: #{_lambda_.3} parent=51 // pred_fallthru
        _
    $region52: #{_lambda_.3} parent=5 // pred_fallthru
      _
    %p339 = scmp.le.s32.totalorder 1, %s18
    %p340 = scmp.lt.s32.totalorder %s18, 3
    %p341 = pnand %p339, %p340
    %p342 = pneg %p341
    // Predicated region
    $region57: #{_lambda_.3} parent=5 // pred_check
      _
    $region58: #{_lambda_.3} parent=5 // pred_check_branch
      %344 = sbr.rel (%p341) target = $region60
    $region59: #{_lambda_.3} parent=5 // pred_region
      %s345 = ssub.s32 %s18, 1
      %p346 = scmp.lt.s32.totalorder %s23, 1
      %s347 = scalar_select %p346, %s23, 1
      %s348 = smul.addr %s347, 2
      %s349 = smul.addr %s348, 8
      %s350 = scalar_lea.vmem %s0, %s349
      %p351 = pneg %p44
      %p352 = pneg %p41
      %p353 = pneg %p65
      %p354 = pneg %p62
      %p355 = pneg %p86
      %p356 = pneg %p83
      %p357 = pneg %p107
      %p358 = pneg %p104
      %p359 = pneg %p128
      %p360 = pneg %p125
      %p361 = pneg %p149
      %p362 = pneg %p146
      %p363 = pneg %p170
      %p364 = pneg %p167
      %p365 = pneg %p191
      %p366 = pneg %p188
      %p367 = pneg %p212
      %p368 = pneg %p209
      %p369 = pneg %p233
      %p370 = pneg %p230
      %p371 = pneg %p259
      %p372 = pneg %p256
      %p373 = scmp.lt.s32.totalorder %s23, 1
      %s374 = scalar_select %p373, %s23, 1
      %s375 = smul.addr %s374, 2
      %s376 = smul.addr %s375, 8
      %s377 = scalar_lea.vmem %s10, %s376
      %p378 = pneg %p285
      %p379 = pneg %p282
      %p380 = scmp.lt.s32.totalorder %s23, 1
      %s381 = scalar_select %p380, %s23, 1
      %s382 = scalar_lea.vmem %s11, %s381
      %p383 = scmp.lt.s32.totalorder %s23, 1
      %s384 = scalar_select %p383, %s23, 1
      %s385 = smul.addr %s384, 2
      %s386 = smul.addr %s385, 8
      %s387 = scalar_lea.vmem %s0, %s386
      %p388 = scmp.lt.s32.totalorder %s23, 1
      %s389 = scalar_select %p388, %s23, 1
      %s390 = smul.addr %s389, 2
      %s391 = smul.addr %s390, 8
      %s392 = scalar_lea.vmem %s10, %s391
      %p393 = scmp.lt.s32.totalorder %s23, 1
      %s394 = scalar_select %p393, %s23, 1
      %s395 = scalar_lea.vmem %s11, %s394
      %v397 = vlaneseq
      %v398 = vshrl.u32 %v397, 7
      %v399 = vadd.s32 %v398, 8
      %vm400 = vcmp.lt.s32.totalorder %v398, 0
      %v401 = vsub.s32 0, %v398
      %v402 = vsel %vm400, %v401, %v398
      %v403 = vshrl.u32 %v402, 2
      %v404 = vand.u32 %v402, 3
      %v405 = vsub.s32 0, %v404
      %v406 = vsel %vm400, %v405, %v404
      %vm407 = vcmp.lt.s32.totalorder %v399, 0
      %v408 = vsub.s32 0, %v399
      %v409 = vsel %vm407, %v408, %v399
      %v410 = vshrl.u32 %v409, 2
      %v411 = vand.u32 %v409, 3
      %v412 = vsub.s32 0, %v411
      %v413 = vsel %vm407, %v412, %v411
      %vm414 = vcmp.ne.s32.totalorder %v406, 0
      %vm415 = vcmp.ne.s32.totalorder %v413, 0
      %vm416 = vcmp.lt.s32.totalorder %v406, 0
      %vm417 = vcmp.lt.s32.totalorder %v413, 0
      %vm418 = vmand %vm416, %vm414
      %vm419 = vmand %vm417, %vm415
      %v420 = vadd.s32 %v406, 4
      %v421 = vadd.s32 %v413, 4
      %v422 = vsel %vm418, %v420, %v406
      %v423 = vsel %vm419, %v421, %v413
      %vm424 = vcmp.ne.s32.totalorder %v422, 0
      %vm425 = vcmp.ne.s32.totalorder %v423, 0
      %v426 = vsel %vm424, 1, 0
      %v427 = vsel %vm425, 1, 0
      %v428 = vcvt.s32.f32 %v426
      %v429 = vcvt.s32.f32 %v427
      %vm430 = vcmp.ne.s32.totalorder %v422, 3
      %vm431 = vcmp.ne.s32.totalorder %v423, 3
      %v432 = vsel %vm430, 1, 0
      %v433 = vsel %vm431, 1, 0
      %v434 = vcvt.s32.f32 %v432
      %v435 = vcvt.s32.f32 %v433
      %vm436 = vcmp.ge.s32.totalorder %v398, 4
      %vm437 = vcmp.ge.s32.totalorder %v399, 4
      %v438 = vsel %vm436, 1, 0
      %v439 = vsel %vm437, 1, 0
      %v440 = vcvt.s32.f32 %v438
      %v441 = vcvt.s32.f32 %v439
      %vm442 = vcmp.lt.s32.totalorder %v398, 12
      %vm443 = vcmp.lt.s32.totalorder %v399, 12
      %v444 = vsel %vm442, 1, 0
      %v445 = vsel %vm443, 1, 0
      %v446 = vcvt.s32.f32 %v444
      %v447 = vcvt.s32.f32 %v445
      %v448 = vlaneseq
      %v449 = vand.u32 %v448, 127
      %vm450 = vcmp.ge.s32.totalorder %v449, 8
      %v451 = vsel %vm450, 1, 0
      %v452 = vcvt.s32.f32 %v451
      %v453 = vsub.f32 1.0, %v452
      %v454 = vld [vmem:[%s9] sm:$0xf]
      %v455 = vld [vmem:[%s9 + $0x4] sm:$0xf]
      %v456 = vld [vmem:[%s387] sm:$0xff]
      %v457 = vld [vmem:[%s387 + $0x8] sm:$0xff]
      %v458 = vpack.c.bf16 %v457, %v456
      %v459 = vld [vmem:[%s1] sm:$0xf]
      %v460 = vld [vmem:[%s1 + $0x4] sm:$0xf]
      %v461 = vld [vmem:[%s2] sm:$0x1]
      %v463 = vlaneseq
      %v464 = vshrl.u32 %v463, 7
      %v465 = vsub.s32 0, %v464
      %v466 = vrot.slane %v461, %v465
      %v470 = vunpack.c.l.b16 %v459
      %v471 = vunpack.c.l.b16 %v460
      %v472 = vpack.c.b16 %v471, %v470
      %vm474 = vcmask 130048
      %v476 = vsel %vm474, %v458, 0
      %478 = vmatprep.subr.bf16.mxu0 0
      %479 = vmatpush1.bf16.msra.mxu0 0
      %480 = vmatprep.subr.bf16.mxu0 0
      %481 = vmatpush1.bf16.msra.mxu0 0
      %482 = vmatprep.subr.bf16.mxu0 0
      %483 = vmatpush1.bf16.msra.mxu0 0
      %484 = vmatprep.subr.bf16.mxu0 0
      %485 = vmatpush1.bf16.msra.mxu0 0
      %486 = vmatprep.subr.bf16.mxu0 0
      %487 = vmatpush1.bf16.msra.mxu0 0
      %488 = vmatprep.subr.bf16.mxu0 0
      %489 = vmatpush1.bf16.msra.mxu0 0
      %490 = vmatprep.subr.bf16.mxu0 0
      %491 = vmatpush1.bf16.msra.mxu0 0
      %492 = vmatprep.subr.bf16.mxu0 0
      %493 = vmatpush1.bf16.msra.mxu0 %v472
      %494 = vmatprep.subr.bf16.mxu0 0
      %495 = vmatpush2.bf16.msra.mxu0 0
      %496 = vmatprep.subr.bf16.mxu0 0
      %497 = vmatpush2.bf16.msra.mxu0 0
      %498 = vmatprep.subr.bf16.mxu0 0
      %499 = vmatpush2.bf16.msra.mxu0 0
      %500 = vmatprep.subr.bf16.mxu0 0
      %501 = vmatpush2.bf16.msra.mxu0 0
      %502 = vmatprep.subr.bf16.mxu0 0
      %503 = vmatpush2.bf16.msra.mxu0 0
      %504 = vmatprep.subr.bf16.mxu0 0
      %505 = vmatpush2.bf16.msra.mxu0 0
      %506 = vmatprep.subr.bf16.mxu0 0
      %507 = vmatpush2.bf16.msra.mxu0 0
      %508 = vmatprep.subr.bf16.mxu0 0
      %509 = vmatpush2.bf16.msra.mxu0 0
      %510 = vmatprep.mubr.bf16.mxu0 0
      %511 = vmatmul.mubr.bf16.gmra.mxu0 %v476
      %v512 = vpop.f32.mrf.mxu0
      %v513 = vadd.f32 %v466, %v512
      %v514 = vpop.f32.mrf.mxu0
      %v515 = vpop.f32.mrf.mxu0
      %v516 = vadd.f32 %v466, %v515
      %v517 = vpop.f32.mrf.mxu0
      %518 = vdwg.mxu0
      %v519 = vld [vmem:[%s4] sm:$0x1]
      %v520 = vrot.slane %v513, 7
      %v521 = vrot.slane %v516, 7
      %vm522 = vcmp.lt.s32.totalorder %v398, 1
      %v523 = vsel %vm522, %v520, %v521
      %v524 = vsel %vm522, %v521, %v520
      %v525 = vmul.f32 %v524, %v428
      %v526 = vmul.f32 %v523, %v429
      %v527 = vrot.slane %v513, 1
      %v528 = vrot.slane %v516, 1
      %vm529 = vcmp.lt.s32.totalorder %v398, 7
      %v530 = vsel %vm529, %v527, %v528
      %v531 = vsel %vm529, %v528, %v527
      %v532 = vmul.f32 %v530, %v434
      %v533 = vmul.f32 %v531, %v435
      %v534 = vrot.slane %v525, 4
      %v535 = vrot.slane %v526, 4
      %vm536 = vcmp.lt.s32.totalorder %v398, 4
      %v537 = vsel %vm536, %v534, %v535
      %v538 = vsel %vm536, %v535, %v534
      %v539 = vpack.c.bf16 %v537, %v538
      %v540 = vld [vmem:[%s3] sm:$0xf]
      %v541 = vld [vmem:[%s3 + $0x4] sm:$0xf]
      %v542 = vrot.slane %v513, 4
      %v543 = vrot.slane %v516, 4
      %v544 = vsel %vm536, %v542, %v543
      %v545 = vsel %vm536, %v543, %v542
      %v546 = vpack.c.bf16 %v544, %v545
      %s547 = scalar_lea.vmem %s3, 8
      %v548 = vld [vmem:[%s547] sm:$0xf]
      %v549 = vld [vmem:[%s547 + $0x4] sm:$0xf]
      %v552 = vunpack.c.l.b16 %v548
      %v553 = vunpack.c.l.b16 %v549
      %v554 = vpack.c.b16 %v553, %v552
      %v557 = vsel %vm474, %v546, 0
      %559 = vmatprep.subr.bf16.mxu0 0
      %560 = vmatpush1.bf16.msra.mxu0 0
      %561 = vmatprep.subr.bf16.mxu0 0
      %562 = vmatpush1.bf16.msra.mxu0 0
      %563 = vmatprep.subr.bf16.mxu0 0
      %564 = vmatpush1.bf16.msra.mxu0 0
      %565 = vmatprep.subr.bf16.mxu0 0
      %566 = vmatpush1.bf16.msra.mxu0 0
      %567 = vmatprep.subr.bf16.mxu0 0
      %568 = vmatpush1.bf16.msra.mxu0 0
      %569 = vmatprep.subr.bf16.mxu0 0
      %570 = vmatpush1.bf16.msra.mxu0 0
      %571 = vmatprep.subr.bf16.mxu0 0
      %572 = vmatpush1.bf16.msra.mxu0 0
      %573 = vmatprep.subr.bf16.mxu0 0
      %574 = vmatpush1.bf16.msra.mxu0 %v554
      %575 = vmatprep.subr.bf16.mxu0 0
      %576 = vmatpush2.bf16.msra.mxu0 0
      %577 = vmatprep.subr.bf16.mxu0 0
      %578 = vmatpush2.bf16.msra.mxu0 0
      %579 = vmatprep.subr.bf16.mxu0 0
      %580 = vmatpush2.bf16.msra.mxu0 0
      %581 = vmatprep.subr.bf16.mxu0 0
      %582 = vmatpush2.bf16.msra.mxu0 0
      %583 = vmatprep.subr.bf16.mxu0 0
      %584 = vmatpush2.bf16.msra.mxu0 0
      %585 = vmatprep.subr.bf16.mxu0 0
      %586 = vmatpush2.bf16.msra.mxu0 0
      %587 = vmatprep.subr.bf16.mxu0 0
      %588 = vmatpush2.bf16.msra.mxu0 0
      %589 = vmatprep.subr.bf16.mxu0 0
      %590 = vmatpush2.bf16.msra.mxu0 0
      %591 = vmatprep.mubr.bf16.mxu0 0
      %592 = vmatmul.mubr.bf16.gmra.mxu0 %v557
      %v593 = vpop.f32.mrf.mxu0
      %v594 = vadd.f32 0.0, %v593
      %v595 = vpop.f32.mrf.mxu0
      %v596 = vpop.f32.mrf.mxu0
      %v597 = vadd.f32 0.0, %v596
      %v598 = vpop.f32.mrf.mxu0
      %599 = vdwg.mxu0
      %v602 = vunpack.c.l.b16 %v540
      %v603 = vunpack.c.l.b16 %v541
      %v604 = vpack.c.b16 %v603, %v602
      %v607 = vsel %vm474, %v539, 0
      %609 = vmatprep.subr.bf16.mxu0 0
      %610 = vmatpush1.bf16.msra.mxu0 0
      %611 = vmatprep.subr.bf16.mxu0 0
      %612 = vmatpush1.bf16.msra.mxu0 0
      %613 = vmatprep.subr.bf16.mxu0 0
      %614 = vmatpush1.bf16.msra.mxu0 0
      %615 = vmatprep.subr.bf16.mxu0 0
      %616 = vmatpush1.bf16.msra.mxu0 0
      %617 = vmatprep.subr.bf16.mxu0 0
      %618 = vmatpush1.bf16.msra.mxu0 0
      %619 = vmatprep.subr.bf16.mxu0 0
      %620 = vmatpush1.bf16.msra.mxu0 0
      %621 = vmatprep.subr.bf16.mxu0 0
      %622 = vmatpush1.bf16.msra.mxu0 0
      %623 = vmatprep.subr.bf16.mxu0 0
      %624 = vmatpush1.bf16.msra.mxu0 %v604
      %625 = vmatprep.subr.bf16.mxu0 0
      %626 = vmatpush2.bf16.msra.mxu0 0
      %627 = vmatprep.subr.bf16.mxu0 0
      %628 = vmatpush2.bf16.msra.mxu0 0
      %629 = vmatprep.subr.bf16.mxu0 0
      %630 = vmatpush2.bf16.msra.mxu0 0
      %631 = vmatprep.subr.bf16.mxu0 0
      %632 = vmatpush2.bf16.msra.mxu0 0
      %633 = vmatprep.subr.bf16.mxu0 0
      %634 = vmatpush2.bf16.msra.mxu0 0
      %635 = vmatprep.subr.bf16.mxu0 0
      %636 = vmatpush2.bf16.msra.mxu0 0
      %637 = vmatprep.subr.bf16.mxu0 0
      %638 = vmatpush2.bf16.msra.mxu0 0
      %639 = vmatprep.subr.bf16.mxu0 0
      %640 = vmatpush2.bf16.msra.mxu0 0
      %641 = vmatprep.mubr.bf16.mxu0 0
      %642 = vmatmul.mubr.bf16.gmra.mxu0 %v607
      %v643 = vpop.f32.mrf.mxu0
      %v644 = vadd.f32 %v594, %v643
      %v645 = vpop.f32.mrf.mxu0
      %v646 = vpop.f32.mrf.mxu0
      %v647 = vadd.f32 %v597, %v646
      %v648 = vpop.f32.mrf.mxu0
      %649 = vdwg.mxu0
      %v650 = vrot.slane %v532, 4
      %v651 = vrot.slane %v533, 4
      %v652 = vsel %vm536, %v650, %v651
      %v653 = vsel %vm536, %v651, %v650
      %v654 = vpack.c.bf16 %v652, %v653
      %s655 = scalar_lea.vmem %s3, 16
      %v656 = vld [vmem:[%s655] sm:$0xf]
      %v657 = vld [vmem:[%s655 + $0x4] sm:$0xf]
      %v660 = vunpack.c.l.b16 %v656
      %v661 = vunpack.c.l.b16 %v657
      %v662 = vpack.c.b16 %v661, %v660
      %v665 = vsel %vm474, %v654, 0
      %667 = vmatprep.subr.bf16.mxu0 0
      %668 = vmatpush1.bf16.msra.mxu0 0
      %669 = vmatprep.subr.bf16.mxu0 0
      %670 = vmatpush1.bf16.msra.mxu0 0
      %671 = vmatprep.subr.bf16.mxu0 0
      %672 = vmatpush1.bf16.msra.mxu0 0
      %673 = vmatprep.subr.bf16.mxu0 0
      %674 = vmatpush1.bf16.msra.mxu0 0
      %675 = vmatprep.subr.bf16.mxu0 0
      %676 = vmatpush1.bf16.msra.mxu0 0
      %677 = vmatprep.subr.bf16.mxu0 0
      %678 = vmatpush1.bf16.msra.mxu0 0
      %679 = vmatprep.subr.bf16.mxu0 0
      %680 = vmatpush1.bf16.msra.mxu0 0
      %681 = vmatprep.subr.bf16.mxu0 0
      %682 = vmatpush1.bf16.msra.mxu0 %v662
      %683 = vmatprep.subr.bf16.mxu0 0
      %684 = vmatpush2.bf16.msra.mxu0 0
      %685 = vmatprep.subr.bf16.mxu0 0
      %686 = vmatpush2.bf16.msra.mxu0 0
      %687 = vmatprep.subr.bf16.mxu0 0
      %688 = vmatpush2.bf16.msra.mxu0 0
      %689 = vmatprep.subr.bf16.mxu0 0
      %690 = vmatpush2.bf16.msra.mxu0 0
      %691 = vmatprep.subr.bf16.mxu0 0
      %692 = vmatpush2.bf16.msra.mxu0 0
      %693 = vmatprep.subr.bf16.mxu0 0
      %694 = vmatpush2.bf16.msra.mxu0 0
      %695 = vmatprep.subr.bf16.mxu0 0
      %696 = vmatpush2.bf16.msra.mxu0 0
      %697 = vmatprep.subr.bf16.mxu0 0
      %698 = vmatpush2.bf16.msra.mxu0 0
      %699 = vmatprep.mubr.bf16.mxu0 0
      %700 = vmatmul.mubr.bf16.gmra.mxu0 %v665
      %v701 = vpop.f32.mrf.mxu0
      %v702 = vadd.f32 0.0, %v701
      %v703 = vpop.f32.mrf.mxu0
      %v704 = vpop.f32.mrf.mxu0
      %v705 = vadd.f32 0.0, %v704
      %v706 = vpop.f32.mrf.mxu0
      %707 = vdwg.mxu0
      %v708 = vadd.f32 %v644, %v702
      %v709 = vadd.f32 %v647, %v705
      %v710 = vmul.f32 %v708, %v440
      %v711 = vmul.f32 %v709, %v441
      %v712 = vpack.c.bf16 %v526, %v525
      %s713 = scalar_lea.vmem %s3, 24
      %v714 = vld [vmem:[%s713] sm:$0xf]
      %v715 = vld [vmem:[%s713 + $0x4] sm:$0xf]
      %v716 = vpack.c.bf16 %v516, %v513
      %s717 = scalar_lea.vmem %s3, 32
      %v718 = vld [vmem:[%s717] sm:$0xf]
      %v719 = vld [vmem:[%s717 + $0x4] sm:$0xf]
      %v722 = vunpack.c.l.b16 %v718
      %v723 = vunpack.c.l.b16 %v719
      %v724 = vpack.c.b16 %v723, %v722
      %v727 = vsel %vm474, %v716, 0
      %729 = vmatprep.subr.bf16.mxu0 0
      %730 = vmatpush1.bf16.msra.mxu0 0
      %731 = vmatprep.subr.bf16.mxu0 0
      %732 = vmatpush1.bf16.msra.mxu0 0
      %733 = vmatprep.subr.bf16.mxu0 0
      %734 = vmatpush1.bf16.msra.mxu0 0
      %735 = vmatprep.subr.bf16.mxu0 0
      %736 = vmatpush1.bf16.msra.mxu0 0
      %737 = vmatprep.subr.bf16.mxu0 0
      %738 = vmatpush1.bf16.msra.mxu0 0
      %739 = vmatprep.subr.bf16.mxu0 0
      %740 = vmatpush1.bf16.msra.mxu0 0
      %741 = vmatprep.subr.bf16.mxu0 0
      %742 = vmatpush1.bf16.msra.mxu0 0
      %743 = vmatprep.subr.bf16.mxu0 0
      %744 = vmatpush1.bf16.msra.mxu0 %v724
      %745 = vmatprep.subr.bf16.mxu0 0
      %746 = vmatpush2.bf16.msra.mxu0 0
      %747 = vmatprep.subr.bf16.mxu0 0
      %748 = vmatpush2.bf16.msra.mxu0 0
      %749 = vmatprep.subr.bf16.mxu0 0
      %750 = vmatpush2.bf16.msra.mxu0 0
      %751 = vmatprep.subr.bf16.mxu0 0
      %752 = vmatpush2.bf16.msra.mxu0 0
      %753 = vmatprep.subr.bf16.mxu0 0
      %754 = vmatpush2.bf16.msra.mxu0 0
      %755 = vmatprep.subr.bf16.mxu0 0
      %756 = vmatpush2.bf16.msra.mxu0 0
      %757 = vmatprep.subr.bf16.mxu0 0
      %758 = vmatpush2.bf16.msra.mxu0 0
      %759 = vmatprep.subr.bf16.mxu0 0
      %760 = vmatpush2.bf16.msra.mxu0 0
      %761 = vmatprep.mubr.bf16.mxu0 0
      %762 = vmatmul.mubr.bf16.gmra.mxu0 %v727
      %v763 = vpop.f32.mrf.mxu0
      %v764 = vadd.f32 0.0, %v763
      %v765 = vpop.f32.mrf.mxu0
      %v766 = vpop.f32.mrf.mxu0
      %v767 = vadd.f32 0.0, %v766
      %v768 = vpop.f32.mrf.mxu0
      %769 = vdwg.mxu0
      %v772 = vunpack.c.l.b16 %v714
      %v773 = vunpack.c.l.b16 %v715
      %v774 = vpack.c.b16 %v773, %v772
      %v777 = vsel %vm474, %v712, 0
      %779 = vmatprep.subr.bf16.mxu0 0
      %780 = vmatpush1.bf16.msra.mxu0 0
      %781 = vmatprep.subr.bf16.mxu0 0
      %782 = vmatpush1.bf16.msra.mxu0 0
      %783 = vmatprep.subr.bf16.mxu0 0
      %784 = vmatpush1.bf16.msra.mxu0 0
      %785 = vmatprep.subr.bf16.mxu0 0
      %786 = vmatpush1.bf16.msra.mxu0 0
      %787 = vmatprep.subr.bf16.mxu0 0
      %788 = vmatpush1.bf16.msra.mxu0 0
      %789 = vmatprep.subr.bf16.mxu0 0
      %790 = vmatpush1.bf16.msra.mxu0 0
      %791 = vmatprep.subr.bf16.mxu0 0
      %792 = vmatpush1.bf16.msra.mxu0 0
      %793 = vmatprep.subr.bf16.mxu0 0
      %794 = vmatpush1.bf16.msra.mxu0 %v774
      %795 = vmatprep.subr.bf16.mxu0 0
      %796 = vmatpush2.bf16.msra.mxu0 0
      %797 = vmatprep.subr.bf16.mxu0 0
      %798 = vmatpush2.bf16.msra.mxu0 0
      %799 = vmatprep.subr.bf16.mxu0 0
      %800 = vmatpush2.bf16.msra.mxu0 0
      %801 = vmatprep.subr.bf16.mxu0 0
      %802 = vmatpush2.bf16.msra.mxu0 0
      %803 = vmatprep.subr.bf16.mxu0 0
      %804 = vmatpush2.bf16.msra.mxu0 0
      %805 = vmatprep.subr.bf16.mxu0 0
      %806 = vmatpush2.bf16.msra.mxu0 0
      %807 = vmatprep.subr.bf16.mxu0 0
      %808 = vmatpush2.bf16.msra.mxu0 0
      %809 = vmatprep.subr.bf16.mxu0 0
      %810 = vmatpush2.bf16.msra.mxu0 0
      %811 = vmatprep.mubr.bf16.mxu0 0
      %812 = vmatmul.mubr.bf16.gmra.mxu0 %v777
      %v813 = vpop.f32.mrf.mxu0
      %v814 = vadd.f32 %v764, %v813
      %v815 = vpop.f32.mrf.mxu0
      %v816 = vpop.f32.mrf.mxu0
      %v817 = vadd.f32 %v767, %v816
      %v818 = vpop.f32.mrf.mxu0
      %819 = vdwg.mxu0
      %v820 = vpack.c.bf16 %v533, %v532
      %s821 = scalar_lea.vmem %s3, 40
      %v822 = vld [vmem:[%s821] sm:$0xf]
      %v823 = vld [vmem:[%s821 + $0x4] sm:$0xf]
      %v826 = vunpack.c.l.b16 %v822
      %v827 = vunpack.c.l.b16 %v823
      %v828 = vpack.c.b16 %v827, %v826
      %v831 = vsel %vm474, %v820, 0
      %833 = vmatprep.subr.bf16.mxu0 0
      %834 = vmatpush1.bf16.msra.mxu0 0
      %835 = vmatprep.subr.bf16.mxu0 0
      %836 = vmatpush1.bf16.msra.mxu0 0
      %837 = vmatprep.subr.bf16.mxu0 0
      %838 = vmatpush1.bf16.msra.mxu0 0
      %839 = vmatprep.subr.bf16.mxu0 0
      %840 = vmatpush1.bf16.msra.mxu0 0
      %841 = vmatprep.subr.bf16.mxu0 0
      %842 = vmatpush1.bf16.msra.mxu0 0
      %843 = vmatprep.subr.bf16.mxu0 0
      %844 = vmatpush1.bf16.msra.mxu0 0
      %845 = vmatprep.subr.bf16.mxu0 0
      %846 = vmatpush1.bf16.msra.mxu0 0
      %847 = vmatprep.subr.bf16.mxu0 0
      %848 = vmatpush1.bf16.msra.mxu0 %v828
      %849 = vmatprep.subr.bf16.mxu0 0
      %850 = vmatpush2.bf16.msra.mxu0 0
      %851 = vmatprep.subr.bf16.mxu0 0
      %852 = vmatpush2.bf16.msra.mxu0 0
      %853 = vmatprep.subr.bf16.mxu0 0
      %854 = vmatpush2.bf16.msra.mxu0 0
      %855 = vmatprep.subr.bf16.mxu0 0
      %856 = vmatpush2.bf16.msra.mxu0 0
      %857 = vmatprep.subr.bf16.mxu0 0
      %858 = vmatpush2.bf16.msra.mxu0 0
      %859 = vmatprep.subr.bf16.mxu0 0
      %860 = vmatpush2.bf16.msra.mxu0 0
      %861 = vmatprep.subr.bf16.mxu0 0
      %862 = vmatpush2.bf16.msra.mxu0 0
      %863 = vmatprep.subr.bf16.mxu0 0
      %864 = vmatpush2.bf16.msra.mxu0 0
      %865 = vmatprep.mubr.bf16.mxu0 0
      %866 = vmatmul.mubr.bf16.gmra.mxu0 %v831
      %v867 = vpop.f32.mrf.mxu0
      %v868 = vadd.f32 0.0, %v867
      %v869 = vpop.f32.mrf.mxu0
      %v870 = vpop.f32.mrf.mxu0
      %v871 = vadd.f32 0.0, %v870
      %v872 = vpop.f32.mrf.mxu0
      %873 = vdwg.mxu0
      %v874 = vadd.f32 %v814, %v868
      %v875 = vadd.f32 %v817, %v871
      %v876 = vadd.f32 %v710, %v874
      %v877 = vadd.f32 %v711, %v875
      %v878 = vpack.c.bf16 %v538, %v537
      %s879 = scalar_lea.vmem %s3, 48
      %v880 = vld [vmem:[%s879] sm:$0xf]
      %v881 = vld [vmem:[%s879 + $0x4] sm:$0xf]
      %v882 = vpack.c.bf16 %v545, %v544
      %s883 = scalar_lea.vmem %s3, 56
      %v884 = vld [vmem:[%s883] sm:$0xf]
      %v885 = vld [vmem:[%s883 + $0x4] sm:$0xf]
      %v888 = vunpack.c.l.b16 %v884
      %v889 = vunpack.c.l.b16 %v885
      %v890 = vpack.c.b16 %v889, %v888
      %v893 = vsel %vm474, %v882, 0
      %895 = vmatprep.subr.bf16.mxu0 0
      %896 = vmatpush1.bf16.msra.mxu0 0
      %897 = vmatprep.subr.bf16.mxu0 0
      %898 = vmatpush1.bf16.msra.mxu0 0
      %899 = vmatprep.subr.bf16.mxu0 0
      %900 = vmatpush1.bf16.msra.mxu0 0
      %901 = vmatprep.subr.bf16.mxu0 0
      %902 = vmatpush1.bf16.msra.mxu0 0
      %903 = vmatprep.subr.bf16.mxu0 0
      %904 = vmatpush1.bf16.msra.mxu0 0
      %905 = vmatprep.subr.bf16.mxu0 0
      %906 = vmatpush1.bf16.msra.mxu0 0
      %907 = vmatprep.subr.bf16.mxu0 0
      %908 = vmatpush1.bf16.msra.mxu0 0
      %909 = vmatprep.subr.bf16.mxu0 0
      %910 = vmatpush1.bf16.msra.mxu0 %v890
      %911 = vmatprep.subr.bf16.mxu0 0
      %912 = vmatpush2.bf16.msra.mxu0 0
      %913 = vmatprep.subr.bf16.mxu0 0
      %914 = vmatpush2.bf16.msra.mxu0 0
      %915 = vmatprep.subr.bf16.mxu0 0
      %916 = vmatpush2.bf16.msra.mxu0 0
      %917 = vmatprep.subr.bf16.mxu0 0
      %918 = vmatpush2.bf16.msra.mxu0 0
      %919 = vmatprep.subr.bf16.mxu0 0
      %920 = vmatpush2.bf16.msra.mxu0 0
      %921 = vmatprep.subr.bf16.mxu0 0
      %922 = vmatpush2.bf16.msra.mxu0 0
      %923 = vmatprep.subr.bf16.mxu0 0
      %924 = vmatpush2.bf16.msra.mxu0 0
      %925 = vmatprep.subr.bf16.mxu0 0
      %926 = vmatpush2.bf16.msra.mxu0 0
      %927 = vmatprep.mubr.bf16.mxu0 0
      %928 = vmatmul.mubr.bf16.gmra.mxu0 %v893
      %v929 = vpop.f32.mrf.mxu0
      %v930 = vadd.f32 0.0, %v929
      %v931 = vpop.f32.mrf.mxu0
      %v932 = vpop.f32.mrf.mxu0
      %v933 = vadd.f32 0.0, %v932
      %v934 = vpop.f32.mrf.mxu0
      %935 = vdwg.mxu0
      %v938 = vunpack.c.l.b16 %v880
      %v939 = vunpack.c.l.b16 %v881
      %v940 = vpack.c.b16 %v939, %v938
      %v943 = vsel %vm474, %v878, 0
      %945 = vmatprep.subr.bf16.mxu0 0
      %946 = vmatpush1.bf16.msra.mxu0 0
      %947 = vmatprep.subr.bf16.mxu0 0
      %948 = vmatpush1.bf16.msra.mxu0 0
      %949 = vmatprep.subr.bf16.mxu0 0
      %950 = vmatpush1.bf16.msra.mxu0 0
      %951 = vmatprep.subr.bf16.mxu0 0
      %952 = vmatpush1.bf16.msra.mxu0 0
      %953 = vmatprep.subr.bf16.mxu0 0
      %954 = vmatpush1.bf16.msra.mxu0 0
      %955 = vmatprep.subr.bf16.mxu0 0
      %956 = vmatpush1.bf16.msra.mxu0 0
      %957 = vmatprep.subr.bf16.mxu0 0
      %958 = vmatpush1.bf16.msra.mxu0 0
      %959 = vmatprep.subr.bf16.mxu0 0
      %960 = vmatpush1.bf16.msra.mxu0 %v940
      %961 = vmatprep.subr.bf16.mxu0 0
      %962 = vmatpush2.bf16.msra.mxu0 0
      %963 = vmatprep.subr.bf16.mxu0 0
      %964 = vmatpush2.bf16.msra.mxu0 0
      %965 = vmatprep.subr.bf16.mxu0 0
      %966 = vmatpush2.bf16.msra.mxu0 0
      %967 = vmatprep.subr.bf16.mxu0 0
      %968 = vmatpush2.bf16.msra.mxu0 0
      %969 = vmatprep.subr.bf16.mxu0 0
      %970 = vmatpush2.bf16.msra.mxu0 0
      %971 = vmatprep.subr.bf16.mxu0 0
      %972 = vmatpush2.bf16.msra.mxu0 0
      %973 = vmatprep.subr.bf16.mxu0 0
      %974 = vmatpush2.bf16.msra.mxu0 0
      %975 = vmatprep.subr.bf16.mxu0 0
      %976 = vmatpush2.bf16.msra.mxu0 0
      %977 = vmatprep.mubr.bf16.mxu0 0
      %978 = vmatmul.mubr.bf16.gmra.mxu0 %v943
      %v979 = vpop.f32.mrf.mxu0
      %v980 = vadd.f32 %v930, %v979
      %v981 = vpop.f32.mrf.mxu0
      %v982 = vpop.f32.mrf.mxu0
      %v983 = vadd.f32 %v933, %v982
      %v984 = vpop.f32.mrf.mxu0
      %985 = vdwg.mxu0
      %v986 = vpack.c.bf16 %v653, %v652
      %s987 = scalar_lea.vmem %s3, 64
      %v988 = vld [vmem:[%s987] sm:$0xf]
      %v989 = vld [vmem:[%s987 + $0x4] sm:$0xf]
      %v992 = vunpack.c.l.b16 %v988
      %v993 = vunpack.c.l.b16 %v989
      %v994 = vpack.c.b16 %v993, %v992
      %v997 = vsel %vm474, %v986, 0
      %999 = vmatprep.subr.bf16.mxu0 0
      %1000 = vmatpush1.bf16.msra.mxu0 0
      %1001 = vmatprep.subr.bf16.mxu0 0
      %1002 = vmatpush1.bf16.msra.mxu0 0
      %1003 = vmatprep.subr.bf16.mxu0 0
      %1004 = vmatpush1.bf16.msra.mxu0 0
      %1005 = vmatprep.subr.bf16.mxu0 0
      %1006 = vmatpush1.bf16.msra.mxu0 0
      %1007 = vmatprep.subr.bf16.mxu0 0
      %1008 = vmatpush1.bf16.msra.mxu0 0
      %1009 = vmatprep.subr.bf16.mxu0 0
      %1010 = vmatpush1.bf16.msra.mxu0 0
      %1011 = vmatprep.subr.bf16.mxu0 0
      %1012 = vmatpush1.bf16.msra.mxu0 0
      %1013 = vmatprep.subr.bf16.mxu0 0
      %1014 = vmatpush1.bf16.msra.mxu0 %v994
      %1015 = vmatprep.subr.bf16.mxu0 0
      %1016 = vmatpush2.bf16.msra.mxu0 0
      %1017 = vmatprep.subr.bf16.mxu0 0
      %1018 = vmatpush2.bf16.msra.mxu0 0
      %1019 = vmatprep.subr.bf16.mxu0 0
      %1020 = vmatpush2.bf16.msra.mxu0 0
      %1021 = vmatprep.subr.bf16.mxu0 0
      %1022 = vmatpush2.bf16.msra.mxu0 0
      %1023 = vmatprep.subr.bf16.mxu0 0
      %1024 = vmatpush2.bf16.msra.mxu0 0
      %1025 = vmatprep.subr.bf16.mxu0 0
      %1026 = vmatpush2.bf16.msra.mxu0 0
      %1027 = vmatprep.subr.bf16.mxu0 0
      %1028 = vmatpush2.bf16.msra.mxu0 0
      %1029 = vmatprep.subr.bf16.mxu0 0
      %1030 = vmatpush2.bf16.msra.mxu0 0
      %1031 = vmatprep.mubr.bf16.mxu0 0
      %1032 = vmatmul.mubr.bf16.gmra.mxu0 %v997
      %v1033 = vpop.f32.mrf.mxu0
      %v1034 = vadd.f32 0.0, %v1033
      %v1035 = vpop.f32.mrf.mxu0
      %v1036 = vpop.f32.mrf.mxu0
      %v1037 = vadd.f32 0.0, %v1036
      %v1038 = vpop.f32.mrf.mxu0
      %1039 = vdwg.mxu0
      %v1040 = vadd.f32 %v980, %v1034
      %v1041 = vadd.f32 %v983, %v1037
      %v1042 = vmul.f32 %v1040, %v446
      %v1043 = vmul.f32 %v1041, %v447
      %v1044 = vadd.f32 %v876, %v1042
      %v1045 = vadd.f32 %v877, %v1043
      %v1047 = vlaneseq
      %v1048 = vshrl.u32 %v1047, 7
      %v1049 = vsub.s32 0, %v1048
      %v1050 = vrot.slane %v519, %v1049
      %v1052 = vadd.f32 %v1044, %v1050
      %v1053 = vadd.f32 %v1045, %v1050
      %v1054 = vmax.f32 %v1052, 0.0
      %v1055 = vmax.f32 %v1053, 0.0
      %v1056 = vpack.c.bf16 %v1055, %v1054
      %v1057 = vld [vmem:[%s5] sm:$0xf]
      %v1058 = vld [vmem:[%s5 + $0x4] sm:$0xf]
      %v1059 = vld [vmem:[%s6] sm:$0x1]
      %v1061 = vlaneseq
      %v1062 = vshrl.u32 %v1061, 7
      %v1063 = vsub.s32 0, %v1062
      %v1064 = vrot.slane %v1059, %v1063
      %v1068 = vunpack.c.l.b16 %v1057
      %v1069 = vunpack.c.l.b16 %v1058
      %v1070 = vpack.c.b16 %v1069, %v1068
      %v1073 = vsel %vm474, %v1056, 0
      %1075 = vmatprep.subr.bf16.mxu0 0
      %1076 = vmatpush1.bf16.msra.mxu0 0
      %1077 = vmatprep.subr.bf16.mxu0 0
      %1078 = vmatpush1.bf16.msra.mxu0 0
      %1079 = vmatprep.subr.bf16.mxu0 0
      %1080 = vmatpush1.bf16.msra.mxu0 0
      %1081 = vmatprep.subr.bf16.mxu0 0
      %1082 = vmatpush1.bf16.msra.mxu0 0
      %1083 = vmatprep.subr.bf16.mxu0 0
      %1084 = vmatpush1.bf16.msra.mxu0 0
      %1085 = vmatprep.subr.bf16.mxu0 0
      %1086 = vmatpush1.bf16.msra.mxu0 0
      %1087 = vmatprep.subr.bf16.mxu0 0
      %1088 = vmatpush1.bf16.msra.mxu0 0
      %1089 = vmatprep.subr.bf16.mxu0 0
      %1090 = vmatpush1.bf16.msra.mxu0 %v1070
      %1091 = vmatprep.subr.bf16.mxu0 0
      %1092 = vmatpush2.bf16.msra.mxu0 0
      %1093 = vmatprep.subr.bf16.mxu0 0
      %1094 = vmatpush2.bf16.msra.mxu0 0
      %1095 = vmatprep.subr.bf16.mxu0 0
      %1096 = vmatpush2.bf16.msra.mxu0 0
      %1097 = vmatprep.subr.bf16.mxu0 0
      %1098 = vmatpush2.bf16.msra.mxu0 0
      %1099 = vmatprep.subr.bf16.mxu0 0
      %1100 = vmatpush2.bf16.msra.mxu0 0
      %1101 = vmatprep.subr.bf16.mxu0 0
      %1102 = vmatpush2.bf16.msra.mxu0 0
      %1103 = vmatprep.subr.bf16.mxu0 0
      %1104 = vmatpush2.bf16.msra.mxu0 0
      %1105 = vmatprep.subr.bf16.mxu0 0
      %1106 = vmatpush2.bf16.msra.mxu0 0
      %1107 = vmatprep.mubr.bf16.mxu0 0
      %1108 = vmatmul.mubr.bf16.gmra.mxu0 %v1073
      %v1109 = vpop.f32.mrf.mxu0
      %v1110 = vadd.f32 %v1064, %v1109
      %v1111 = vpop.f32.mrf.mxu0
      %v1112 = vpop.f32.mrf.mxu0
      %v1113 = vadd.f32 %v1064, %v1112
      %v1114 = vpop.f32.mrf.mxu0
      %1115 = vdwg.mxu0
      %v1116 = vmax.f32 %v1110, 0.0
      %v1117 = vmax.f32 %v1113, 0.0
      %v1118 = vld [vmem:[%s8] sm:$0x1]
      %v1119 = vrot.slane %v1116, 7
      %v1120 = vrot.slane %v1117, 7
      %v1121 = vsel %vm522, %v1119, %v1120
      %v1122 = vsel %vm522, %v1120, %v1119
      %v1123 = vmul.f32 %v1122, %v428
      %v1124 = vmul.f32 %v1121, %v429
      %v1125 = vrot.slane %v1116, 1
      %v1126 = vrot.slane %v1117, 1
      %v1127 = vsel %vm529, %v1125, %v1126
      %v1128 = vsel %vm529, %v1126, %v1125
      %v1129 = vmul.f32 %v1127, %v434
      %v1130 = vmul.f32 %v1128, %v435
      %v1131 = vrot.slane %v1123, 4
      %v1132 = vrot.slane %v1124, 4
      %v1133 = vsel %vm536, %v1131, %v1132
      %v1134 = vsel %vm536, %v1132, %v1131
      %v1135 = vpack.c.bf16 %v1133, %v1134
      %v1136 = vld [vmem:[%s7] sm:$0xf]
      %v1137 = vld [vmem:[%s7 + $0x4] sm:$0xf]
      %v1138 = vrot.slane %v1116, 4
      %v1139 = vrot.slane %v1117, 4
      %v1140 = vsel %vm536, %v1138, %v1139
      %v1141 = vsel %vm536, %v1139, %v1138
      %v1142 = vpack.c.bf16 %v1140, %v1141
      %s1143 = scalar_lea.vmem %s7, 8
      %v1144 = vld [vmem:[%s1143] sm:$0xf]
      %v1145 = vld [vmem:[%s1143 + $0x4] sm:$0xf]
      %v1148 = vunpack.c.l.b16 %v1144
      %v1149 = vunpack.c.l.b16 %v1145
      %v1150 = vpack.c.b16 %v1149, %v1148
      %v1153 = vsel %vm474, %v1142, 0
      %1155 = vmatprep.subr.bf16.mxu0 0
      %1156 = vmatpush1.bf16.msra.mxu0 0
      %1157 = vmatprep.subr.bf16.mxu0 0
      %1158 = vmatpush1.bf16.msra.mxu0 0
      %1159 = vmatprep.subr.bf16.mxu0 0
      %1160 = vmatpush1.bf16.msra.mxu0 0
      %1161 = vmatprep.subr.bf16.mxu0 0
      %1162 = vmatpush1.bf16.msra.mxu0 0
      %1163 = vmatprep.subr.bf16.mxu0 0
      %1164 = vmatpush1.bf16.msra.mxu0 0
      %1165 = vmatprep.subr.bf16.mxu0 0
      %1166 = vmatpush1.bf16.msra.mxu0 0
      %1167 = vmatprep.subr.bf16.mxu0 0
      %1168 = vmatpush1.bf16.msra.mxu0 0
      %1169 = vmatprep.subr.bf16.mxu0 0
      %1170 = vmatpush1.bf16.msra.mxu0 %v1150
      %1171 = vmatprep.subr.bf16.mxu0 0
      %1172 = vmatpush2.bf16.msra.mxu0 0
      %1173 = vmatprep.subr.bf16.mxu0 0
      %1174 = vmatpush2.bf16.msra.mxu0 0
      %1175 = vmatprep.subr.bf16.mxu0 0
      %1176 = vmatpush2.bf16.msra.mxu0 0
      %1177 = vmatprep.subr.bf16.mxu0 0
      %1178 = vmatpush2.bf16.msra.mxu0 0
      %1179 = vmatprep.subr.bf16.mxu0 0
      %1180 = vmatpush2.bf16.msra.mxu0 0
      %1181 = vmatprep.subr.bf16.mxu0 0
      %1182 = vmatpush2.bf16.msra.mxu0 0
      %1183 = vmatprep.subr.bf16.mxu0 0
      %1184 = vmatpush2.bf16.msra.mxu0 0
      %1185 = vmatprep.subr.bf16.mxu0 0
      %1186 = vmatpush2.bf16.msra.mxu0 0
      %1187 = vmatprep.mubr.bf16.mxu0 0
      %1188 = vmatmul.mubr.bf16.gmra.mxu0 %v1153
      %v1189 = vpop.f32.mrf.mxu0
      %v1190 = vadd.f32 0.0, %v1189
      %v1191 = vpop.f32.mrf.mxu0
      %v1192 = vpop.f32.mrf.mxu0
      %v1193 = vadd.f32 0.0, %v1192
      %v1194 = vpop.f32.mrf.mxu0
      %1195 = vdwg.mxu0
      %v1198 = vunpack.c.l.b16 %v1136
      %v1199 = vunpack.c.l.b16 %v1137
      %v1200 = vpack.c.b16 %v1199, %v1198
      %v1203 = vsel %vm474, %v1135, 0
      %1205 = vmatprep.subr.bf16.mxu0 0
      %1206 = vmatpush1.bf16.msra.mxu0 0
      %1207 = vmatprep.subr.bf16.mxu0 0
      %1208 = vmatpush1.bf16.msra.mxu0 0
      %1209 = vmatprep.subr.bf16.mxu0 0
      %1210 = vmatpush1.bf16.msra.mxu0 0
      %1211 = vmatprep.subr.bf16.mxu0 0
      %1212 = vmatpush1.bf16.msra.mxu0 0
      %1213 = vmatprep.subr.bf16.mxu0 0
      %1214 = vmatpush1.bf16.msra.mxu0 0
      %1215 = vmatprep.subr.bf16.mxu0 0
      %1216 = vmatpush1.bf16.msra.mxu0 0
      %1217 = vmatprep.subr.bf16.mxu0 0
      %1218 = vmatpush1.bf16.msra.mxu0 0
      %1219 = vmatprep.subr.bf16.mxu0 0
      %1220 = vmatpush1.bf16.msra.mxu0 %v1200
      %1221 = vmatprep.subr.bf16.mxu0 0
      %1222 = vmatpush2.bf16.msra.mxu0 0
      %1223 = vmatprep.subr.bf16.mxu0 0
      %1224 = vmatpush2.bf16.msra.mxu0 0
      %1225 = vmatprep.subr.bf16.mxu0 0
      %1226 = vmatpush2.bf16.msra.mxu0 0
      %1227 = vmatprep.subr.bf16.mxu0 0
      %1228 = vmatpush2.bf16.msra.mxu0 0
      %1229 = vmatprep.subr.bf16.mxu0 0
      %1230 = vmatpush2.bf16.msra.mxu0 0
      %1231 = vmatprep.subr.bf16.mxu0 0
      %1232 = vmatpush2.bf16.msra.mxu0 0
      %1233 = vmatprep.subr.bf16.mxu0 0
      %1234 = vmatpush2.bf16.msra.mxu0 0
      %1235 = vmatprep.subr.bf16.mxu0 0
      %1236 = vmatpush2.bf16.msra.mxu0 0
      %1237 = vmatprep.mubr.bf16.mxu0 0
      %1238 = vmatmul.mubr.bf16.gmra.mxu0 %v1203
      %v1239 = vpop.f32.mrf.mxu0
      %v1240 = vadd.f32 %v1190, %v1239
      %v1241 = vpop.f32.mrf.mxu0
      %v1242 = vpop.f32.mrf.mxu0
      %v1243 = vadd.f32 %v1193, %v1242
      %v1244 = vpop.f32.mrf.mxu0
      %1245 = vdwg.mxu0
      %v1246 = vrot.slane %v1129, 4
      %v1247 = vrot.slane %v1130, 4
      %v1248 = vsel %vm536, %v1246, %v1247
      %v1249 = vsel %vm536, %v1247, %v1246
      %v1250 = vpack.c.bf16 %v1248, %v1249
      %s1251 = scalar_lea.vmem %s7, 16
      %v1252 = vld [vmem:[%s1251] sm:$0xf]
      %v1253 = vld [vmem:[%s1251 + $0x4] sm:$0xf]
      %v1256 = vunpack.c.l.b16 %v1252
      %v1257 = vunpack.c.l.b16 %v1253
      %v1258 = vpack.c.b16 %v1257, %v1256
      %v1261 = vsel %vm474, %v1250, 0
      %1263 = vmatprep.subr.bf16.mxu0 0
      %1264 = vmatpush1.bf16.msra.mxu0 0
      %1265 = vmatprep.subr.bf16.mxu0 0
      %1266 = vmatpush1.bf16.msra.mxu0 0
      %1267 = vmatprep.subr.bf16.mxu0 0
      %1268 = vmatpush1.bf16.msra.mxu0 0
      %1269 = vmatprep.subr.bf16.mxu0 0
      %1270 = vmatpush1.bf16.msra.mxu0 0
      %1271 = vmatprep.subr.bf16.mxu0 0
      %1272 = vmatpush1.bf16.msra.mxu0 0
      %1273 = vmatprep.subr.bf16.mxu0 0
      %1274 = vmatpush1.bf16.msra.mxu0 0
      %1275 = vmatprep.subr.bf16.mxu0 0
      %1276 = vmatpush1.bf16.msra.mxu0 0
      %1277 = vmatprep.subr.bf16.mxu0 0
      %1278 = vmatpush1.bf16.msra.mxu0 %v1258
      %1279 = vmatprep.subr.bf16.mxu0 0
      %1280 = vmatpush2.bf16.msra.mxu0 0
      %1281 = vmatprep.subr.bf16.mxu0 0
      %1282 = vmatpush2.bf16.msra.mxu0 0
      %1283 = vmatprep.subr.bf16.mxu0 0
      %1284 = vmatpush2.bf16.msra.mxu0 0
      %1285 = vmatprep.subr.bf16.mxu0 0
      %1286 = vmatpush2.bf16.msra.mxu0 0
      %1287 = vmatprep.subr.bf16.mxu0 0
      %1288 = vmatpush2.bf16.msra.mxu0 0
      %1289 = vmatprep.subr.bf16.mxu0 0
      %1290 = vmatpush2.bf16.msra.mxu0 0
      %1291 = vmatprep.subr.bf16.mxu0 0
      %1292 = vmatpush2.bf16.msra.mxu0 0
      %1293 = vmatprep.subr.bf16.mxu0 0
      %1294 = vmatpush2.bf16.msra.mxu0 0
      %1295 = vmatprep.mubr.bf16.mxu0 0
      %1296 = vmatmul.mubr.bf16.gmra.mxu0 %v1261
      %v1297 = vpop.f32.mrf.mxu0
      %v1298 = vadd.f32 0.0, %v1297
      %v1299 = vpop.f32.mrf.mxu0
      %v1300 = vpop.f32.mrf.mxu0
      %v1301 = vadd.f32 0.0, %v1300
      %v1302 = vpop.f32.mrf.mxu0
      %1303 = vdwg.mxu0
      %v1304 = vadd.f32 %v1240, %v1298
      %v1305 = vadd.f32 %v1243, %v1301
      %v1306 = vmul.f32 %v1304, %v440
      %v1307 = vmul.f32 %v1305, %v441
      %v1308 = vpack.c.bf16 %v1124, %v1123
      %s1309 = scalar_lea.vmem %s7, 24
      %v1310 = vld [vmem:[%s1309] sm:$0xf]
      %v1311 = vld [vmem:[%s1309 + $0x4] sm:$0xf]
      %v1312 = vpack.c.bf16 %v1117, %v1116
      %s1313 = scalar_lea.vmem %s7, 32
      %v1314 = vld [vmem:[%s1313] sm:$0xf]
      %v1315 = vld [vmem:[%s1313 + $0x4] sm:$0xf]
      %v1318 = vunpack.c.l.b16 %v1314
      %v1319 = vunpack.c.l.b16 %v1315
      %v1320 = vpack.c.b16 %v1319, %v1318
      %v1323 = vsel %vm474, %v1312, 0
      %1325 = vmatprep.subr.bf16.mxu0 0
      %1326 = vmatpush1.bf16.msra.mxu0 0
      %1327 = vmatprep.subr.bf16.mxu0 0
      %1328 = vmatpush1.bf16.msra.mxu0 0
      %1329 = vmatprep.subr.bf16.mxu0 0
      %1330 = vmatpush1.bf16.msra.mxu0 0
      %1331 = vmatprep.subr.bf16.mxu0 0
      %1332 = vmatpush1.bf16.msra.mxu0 0
      %1333 = vmatprep.subr.bf16.mxu0 0
      %1334 = vmatpush1.bf16.msra.mxu0 0
      %1335 = vmatprep.subr.bf16.mxu0 0
      %1336 = vmatpush1.bf16.msra.mxu0 0
      %1337 = vmatprep.subr.bf16.mxu0 0
      %1338 = vmatpush1.bf16.msra.mxu0 0
      %1339 = vmatprep.subr.bf16.mxu0 0
      %1340 = vmatpush1.bf16.msra.mxu0 %v1320
      %1341 = vmatprep.subr.bf16.mxu0 0
      %1342 = vmatpush2.bf16.msra.mxu0 0
      %1343 = vmatprep.subr.bf16.mxu0 0
      %1344 = vmatpush2.bf16.msra.mxu0 0
      %1345 = vmatprep.subr.bf16.mxu0 0
      %1346 = vmatpush2.bf16.msra.mxu0 0
      %1347 = vmatprep.subr.bf16.mxu0 0
      %1348 = vmatpush2.bf16.msra.mxu0 0
      %1349 = vmatprep.subr.bf16.mxu0 0
      %1350 = vmatpush2.bf16.msra.mxu0 0
      %1351 = vmatprep.subr.bf16.mxu0 0
      %1352 = vmatpush2.bf16.msra.mxu0 0
      %1353 = vmatprep.subr.bf16.mxu0 0
      %1354 = vmatpush2.bf16.msra.mxu0 0
      %1355 = vmatprep.subr.bf16.mxu0 0
      %1356 = vmatpush2.bf16.msra.mxu0 0
      %1357 = vmatprep.mubr.bf16.mxu0 0
      %1358 = vmatmul.mubr.bf16.gmra.mxu0 %v1323
      %v1359 = vpop.f32.mrf.mxu0
      %v1360 = vadd.f32 0.0, %v1359
      %v1361 = vpop.f32.mrf.mxu0
      %v1362 = vpop.f32.mrf.mxu0
      %v1363 = vadd.f32 0.0, %v1362
      %v1364 = vpop.f32.mrf.mxu0
      %1365 = vdwg.mxu0
      %v1368 = vunpack.c.l.b16 %v1310
      %v1369 = vunpack.c.l.b16 %v1311
      %v1370 = vpack.c.b16 %v1369, %v1368
      %v1373 = vsel %vm474, %v1308, 0
      %1375 = vmatprep.subr.bf16.mxu0 0
      %1376 = vmatpush1.bf16.msra.mxu0 0
      %1377 = vmatprep.subr.bf16.mxu0 0
      %1378 = vmatpush1.bf16.msra.mxu0 0
      %1379 = vmatprep.subr.bf16.mxu0 0
      %1380 = vmatpush1.bf16.msra.mxu0 0
      %1381 = vmatprep.subr.bf16.mxu0 0
      %1382 = vmatpush1.bf16.msra.mxu0 0
      %1383 = vmatprep.subr.bf16.mxu0 0
      %1384 = vmatpush1.bf16.msra.mxu0 0
      %1385 = vmatprep.subr.bf16.mxu0 0
      %1386 = vmatpush1.bf16.msra.mxu0 0
      %1387 = vmatprep.subr.bf16.mxu0 0
      %1388 = vmatpush1.bf16.msra.mxu0 0
      %1389 = vmatprep.subr.bf16.mxu0 0
      %1390 = vmatpush1.bf16.msra.mxu0 %v1370
      %1391 = vmatprep.subr.bf16.mxu0 0
      %1392 = vmatpush2.bf16.msra.mxu0 0
      %1393 = vmatprep.subr.bf16.mxu0 0
      %1394 = vmatpush2.bf16.msra.mxu0 0
      %1395 = vmatprep.subr.bf16.mxu0 0
      %1396 = vmatpush2.bf16.msra.mxu0 0
      %1397 = vmatprep.subr.bf16.mxu0 0
      %1398 = vmatpush2.bf16.msra.mxu0 0
      %1399 = vmatprep.subr.bf16.mxu0 0
      %1400 = vmatpush2.bf16.msra.mxu0 0
      %1401 = vmatprep.subr.bf16.mxu0 0
      %1402 = vmatpush2.bf16.msra.mxu0 0
      %1403 = vmatprep.subr.bf16.mxu0 0
      %1404 = vmatpush2.bf16.msra.mxu0 0
      %1405 = vmatprep.subr.bf16.mxu0 0
      %1406 = vmatpush2.bf16.msra.mxu0 0
      %1407 = vmatprep.mubr.bf16.mxu0 0
      %1408 = vmatmul.mubr.bf16.gmra.mxu0 %v1373
      %v1409 = vpop.f32.mrf.mxu0
      %v1410 = vadd.f32 %v1360, %v1409
      %v1411 = vpop.f32.mrf.mxu0
      %v1412 = vpop.f32.mrf.mxu0
      %v1413 = vadd.f32 %v1363, %v1412
      %v1414 = vpop.f32.mrf.mxu0
      %1415 = vdwg.mxu0
      %v1416 = vpack.c.bf16 %v1130, %v1129
      %s1417 = scalar_lea.vmem %s7, 40
      %v1418 = vld [vmem:[%s1417] sm:$0xf]
      %v1419 = vld [vmem:[%s1417 + $0x4] sm:$0xf]
      %v1422 = vunpack.c.l.b16 %v1418
      %v1423 = vunpack.c.l.b16 %v1419
      %v1424 = vpack.c.b16 %v1423, %v1422
      %v1427 = vsel %vm474, %v1416, 0
      %1429 = vmatprep.subr.bf16.mxu0 0
      %1430 = vmatpush1.bf16.msra.mxu0 0
      %1431 = vmatprep.subr.bf16.mxu0 0
      %1432 = vmatpush1.bf16.msra.mxu0 0
      %1433 = vmatprep.subr.bf16.mxu0 0
      %1434 = vmatpush1.bf16.msra.mxu0 0
      %1435 = vmatprep.subr.bf16.mxu0 0
      %1436 = vmatpush1.bf16.msra.mxu0 0
      %1437 = vmatprep.subr.bf16.mxu0 0
      %1438 = vmatpush1.bf16.msra.mxu0 0
      %1439 = vmatprep.subr.bf16.mxu0 0
      %1440 = vmatpush1.bf16.msra.mxu0 0
      %1441 = vmatprep.subr.bf16.mxu0 0
      %1442 = vmatpush1.bf16.msra.mxu0 0
      %1443 = vmatprep.subr.bf16.mxu0 0
      %1444 = vmatpush1.bf16.msra.mxu0 %v1424
      %1445 = vmatprep.subr.bf16.mxu0 0
      %1446 = vmatpush2.bf16.msra.mxu0 0
      %1447 = vmatprep.subr.bf16.mxu0 0
      %1448 = vmatpush2.bf16.msra.mxu0 0
      %1449 = vmatprep.subr.bf16.mxu0 0
      %1450 = vmatpush2.bf16.msra.mxu0 0
      %1451 = vmatprep.subr.bf16.mxu0 0
      %1452 = vmatpush2.bf16.msra.mxu0 0
      %1453 = vmatprep.subr.bf16.mxu0 0
      %1454 = vmatpush2.bf16.msra.mxu0 0
      %1455 = vmatprep.subr.bf16.mxu0 0
      %1456 = vmatpush2.bf16.msra.mxu0 0
      %1457 = vmatprep.subr.bf16.mxu0 0
      %1458 = vmatpush2.bf16.msra.mxu0 0
      %1459 = vmatprep.subr.bf16.mxu0 0
      %1460 = vmatpush2.bf16.msra.mxu0 0
      %1461 = vmatprep.mubr.bf16.mxu0 0
      %1462 = vmatmul.mubr.bf16.gmra.mxu0 %v1427
      %v1463 = vpop.f32.mrf.mxu0
      %v1464 = vadd.f32 0.0, %v1463
      %v1465 = vpop.f32.mrf.mxu0
      %v1466 = vpop.f32.mrf.mxu0
      %v1467 = vadd.f32 0.0, %v1466
      %v1468 = vpop.f32.mrf.mxu0
      %1469 = vdwg.mxu0
      %v1470 = vadd.f32 %v1410, %v1464
      %v1471 = vadd.f32 %v1413, %v1467
      %v1472 = vadd.f32 %v1306, %v1470
      %v1473 = vadd.f32 %v1307, %v1471
      %v1474 = vpack.c.bf16 %v1134, %v1133
      %s1475 = scalar_lea.vmem %s7, 48
      %v1476 = vld [vmem:[%s1475] sm:$0xf]
      %v1477 = vld [vmem:[%s1475 + $0x4] sm:$0xf]
      %v1478 = vpack.c.bf16 %v1141, %v1140
      %s1479 = scalar_lea.vmem %s7, 56
      %v1480 = vld [vmem:[%s1479] sm:$0xf]
      %v1481 = vld [vmem:[%s1479 + $0x4] sm:$0xf]
      %v1484 = vunpack.c.l.b16 %v1480
      %v1485 = vunpack.c.l.b16 %v1481
      %v1486 = vpack.c.b16 %v1485, %v1484
      %v1489 = vsel %vm474, %v1478, 0
      %1491 = vmatprep.subr.bf16.mxu0 0
      %1492 = vmatpush1.bf16.msra.mxu0 0
      %1493 = vmatprep.subr.bf16.mxu0 0
      %1494 = vmatpush1.bf16.msra.mxu0 0
      %1495 = vmatprep.subr.bf16.mxu0 0
      %1496 = vmatpush1.bf16.msra.mxu0 0
      %1497 = vmatprep.subr.bf16.mxu0 0
      %1498 = vmatpush1.bf16.msra.mxu0 0
      %1499 = vmatprep.subr.bf16.mxu0 0
      %1500 = vmatpush1.bf16.msra.mxu0 0
      %1501 = vmatprep.subr.bf16.mxu0 0
      %1502 = vmatpush1.bf16.msra.mxu0 0
      %1503 = vmatprep.subr.bf16.mxu0 0
      %1504 = vmatpush1.bf16.msra.mxu0 0
      %1505 = vmatprep.subr.bf16.mxu0 0
      %1506 = vmatpush1.bf16.msra.mxu0 %v1486
      %1507 = vmatprep.subr.bf16.mxu0 0
      %1508 = vmatpush2.bf16.msra.mxu0 0
      %1509 = vmatprep.subr.bf16.mxu0 0
      %1510 = vmatpush2.bf16.msra.mxu0 0
      %1511 = vmatprep.subr.bf16.mxu0 0
      %1512 = vmatpush2.bf16.msra.mxu0 0
      %1513 = vmatprep.subr.bf16.mxu0 0
      %1514 = vmatpush2.bf16.msra.mxu0 0
      %1515 = vmatprep.subr.bf16.mxu0 0
      %1516 = vmatpush2.bf16.msra.mxu0 0
      %1517 = vmatprep.subr.bf16.mxu0 0
      %1518 = vmatpush2.bf16.msra.mxu0 0
      %1519 = vmatprep.subr.bf16.mxu0 0
      %1520 = vmatpush2.bf16.msra.mxu0 0
      %1521 = vmatprep.subr.bf16.mxu0 0
      %1522 = vmatpush2.bf16.msra.mxu0 0
      %1523 = vmatprep.mubr.bf16.mxu0 0
      %1524 = vmatmul.mubr.bf16.gmra.mxu0 %v1489
      %v1525 = vpop.f32.mrf.mxu0
      %v1526 = vadd.f32 0.0, %v1525
      %v1527 = vpop.f32.mrf.mxu0
      %v1528 = vpop.f32.mrf.mxu0
      %v1529 = vadd.f32 0.0, %v1528
      %v1530 = vpop.f32.mrf.mxu0
      %1531 = vdwg.mxu0
      %v1534 = vunpack.c.l.b16 %v1476
      %v1535 = vunpack.c.l.b16 %v1477
      %v1536 = vpack.c.b16 %v1535, %v1534
      %v1539 = vsel %vm474, %v1474, 0
      %1541 = vmatprep.subr.bf16.mxu0 0
      %1542 = vmatpush1.bf16.msra.mxu0 0
      %1543 = vmatprep.subr.bf16.mxu0 0
      %1544 = vmatpush1.bf16.msra.mxu0 0
      %1545 = vmatprep.subr.bf16.mxu0 0
      %1546 = vmatpush1.bf16.msra.mxu0 0
      %1547 = vmatprep.subr.bf16.mxu0 0
      %1548 = vmatpush1.bf16.msra.mxu0 0
      %1549 = vmatprep.subr.bf16.mxu0 0
      %1550 = vmatpush1.bf16.msra.mxu0 0
      %1551 = vmatprep.subr.bf16.mxu0 0
      %1552 = vmatpush1.bf16.msra.mxu0 0
      %1553 = vmatprep.subr.bf16.mxu0 0
      %1554 = vmatpush1.bf16.msra.mxu0 0
      %1555 = vmatprep.subr.bf16.mxu0 0
      %1556 = vmatpush1.bf16.msra.mxu0 %v1536
      %1557 = vmatprep.subr.bf16.mxu0 0
      %1558 = vmatpush2.bf16.msra.mxu0 0
      %1559 = vmatprep.subr.bf16.mxu0 0
      %1560 = vmatpush2.bf16.msra.mxu0 0
      %1561 = vmatprep.subr.bf16.mxu0 0
      %1562 = vmatpush2.bf16.msra.mxu0 0
      %1563 = vmatprep.subr.bf16.mxu0 0
      %1564 = vmatpush2.bf16.msra.mxu0 0
      %1565 = vmatprep.subr.bf16.mxu0 0
      %1566 = vmatpush2.bf16.msra.mxu0 0
      %1567 = vmatprep.subr.bf16.mxu0 0
      %1568 = vmatpush2.bf16.msra.mxu0 0
      %1569 = vmatprep.subr.bf16.mxu0 0
      %1570 = vmatpush2.bf16.msra.mxu0 0
      %1571 = vmatprep.subr.bf16.mxu0 0
      %1572 = vmatpush2.bf16.msra.mxu0 0
      %1573 = vmatprep.mubr.bf16.mxu0 0
      %1574 = vmatmul.mubr.bf16.gmra.mxu0 %v1539
      %v1575 = vpop.f32.mrf.mxu0
      %v1576 = vadd.f32 %v1526, %v1575
      %v1577 = vpop.f32.mrf.mxu0
      %v1578 = vpop.f32.mrf.mxu0
      %v1579 = vadd.f32 %v1529, %v1578
      %v1580 = vpop.f32.mrf.mxu0
      %1581 = vdwg.mxu0
      %v1582 = vpack.c.bf16 %v1249, %v1248
      %s1583 = scalar_lea.vmem %s7, 64
      %v1584 = vld [vmem:[%s1583] sm:$0xf]
      %v1585 = vld [vmem:[%s1583 + $0x4] sm:$0xf]
      %v1588 = vunpack.c.l.b16 %v1584
      %v1589 = vunpack.c.l.b16 %v1585
      %v1590 = vpack.c.b16 %v1589, %v1588
      %v1593 = vsel %vm474, %v1582, 0
      %1595 = vmatprep.subr.bf16.mxu0 0
      %1596 = vmatpush1.bf16.msra.mxu0 0
      %1597 = vmatprep.subr.bf16.mxu0 0
      %1598 = vmatpush1.bf16.msra.mxu0 0
      %1599 = vmatprep.subr.bf16.mxu0 0
      %1600 = vmatpush1.bf16.msra.mxu0 0
      %1601 = vmatprep.subr.bf16.mxu0 0
      %1602 = vmatpush1.bf16.msra.mxu0 0
      %1603 = vmatprep.subr.bf16.mxu0 0
      %1604 = vmatpush1.bf16.msra.mxu0 0
      %1605 = vmatprep.subr.bf16.mxu0 0
      %1606 = vmatpush1.bf16.msra.mxu0 0
      %1607 = vmatprep.subr.bf16.mxu0 0
      %1608 = vmatpush1.bf16.msra.mxu0 0
      %1609 = vmatprep.subr.bf16.mxu0 0
      %1610 = vmatpush1.bf16.msra.mxu0 %v1590
      %1611 = vmatprep.subr.bf16.mxu0 0
      %1612 = vmatpush2.bf16.msra.mxu0 0
      %1613 = vmatprep.subr.bf16.mxu0 0
      %1614 = vmatpush2.bf16.msra.mxu0 0
      %1615 = vmatprep.subr.bf16.mxu0 0
      %1616 = vmatpush2.bf16.msra.mxu0 0
      %1617 = vmatprep.subr.bf16.mxu0 0
      %1618 = vmatpush2.bf16.msra.mxu0 0
      %1619 = vmatprep.subr.bf16.mxu0 0
      %1620 = vmatpush2.bf16.msra.mxu0 0
      %1621 = vmatprep.subr.bf16.mxu0 0
      %1622 = vmatpush2.bf16.msra.mxu0 0
      %1623 = vmatprep.subr.bf16.mxu0 0
      %1624 = vmatpush2.bf16.msra.mxu0 0
      %1625 = vmatprep.subr.bf16.mxu0 0
      %1626 = vmatpush2.bf16.msra.mxu0 0
      %1627 = vmatprep.mubr.bf16.mxu0 0
      %1628 = vmatmul.mubr.bf16.gmra.mxu0 %v1593
      %v1629 = vpop.f32.mrf.mxu0
      %v1630 = vadd.f32 0.0, %v1629
      %v1631 = vpop.f32.mrf.mxu0
      %v1632 = vpop.f32.mrf.mxu0
      %v1633 = vadd.f32 0.0, %v1632
      %v1634 = vpop.f32.mrf.mxu0
      %1635 = vdwg.mxu0
      %v1636 = vadd.f32 %v1576, %v1630
      %v1637 = vadd.f32 %v1579, %v1633
      %v1638 = vmul.f32 %v1636, %v446
      %v1639 = vmul.f32 %v1637, %v447
      %v1640 = vadd.f32 %v1472, %v1638
      %v1641 = vadd.f32 %v1473, %v1639
      %v1643 = vlaneseq
      %v1644 = vshrl.u32 %v1643, 7
      %v1645 = vsub.s32 0, %v1644
      %v1646 = vrot.slane %v1118, %v1645
      %v1648 = vadd.f32 %v1640, %v1646
      %v1649 = vadd.f32 %v1641, %v1646
      %v1650 = vpack.c.bf16 %v1649, %v1648
      %v1653 = vunpack.c.l.b16 %v454
      %v1654 = vunpack.c.l.b16 %v455
      %v1655 = vpack.c.b16 %v1654, %v1653
      %v1658 = vsel %vm474, %v1650, 0
      %1660 = vmatprep.subr.bf16.mxu0 0
      %1661 = vmatpush1.bf16.msra.mxu0 0
      %1662 = vmatprep.subr.bf16.mxu0 0
      %1663 = vmatpush1.bf16.msra.mxu0 0
      %1664 = vmatprep.subr.bf16.mxu0 0
      %1665 = vmatpush1.bf16.msra.mxu0 0
      %1666 = vmatprep.subr.bf16.mxu0 0
      %1667 = vmatpush1.bf16.msra.mxu0 0
      %1668 = vmatprep.subr.bf16.mxu0 0
      %1669 = vmatpush1.bf16.msra.mxu0 0
      %1670 = vmatprep.subr.bf16.mxu0 0
      %1671 = vmatpush1.bf16.msra.mxu0 0
      %1672 = vmatprep.subr.bf16.mxu0 0
      %1673 = vmatpush1.bf16.msra.mxu0 0
      %1674 = vmatprep.subr.bf16.mxu0 0
      %1675 = vmatpush1.bf16.msra.mxu0 %v1655
      %1676 = vmatprep.subr.bf16.mxu0 0
      %1677 = vmatpush2.bf16.msra.mxu0 0
      %1678 = vmatprep.subr.bf16.mxu0 0
      %1679 = vmatpush2.bf16.msra.mxu0 0
      %1680 = vmatprep.subr.bf16.mxu0 0
      %1681 = vmatpush2.bf16.msra.mxu0 0
      %1682 = vmatprep.subr.bf16.mxu0 0
      %1683 = vmatpush2.bf16.msra.mxu0 0
      %1684 = vmatprep.subr.bf16.mxu0 0
      %1685 = vmatpush2.bf16.msra.mxu0 0
      %1686 = vmatprep.subr.bf16.mxu0 0
      %1687 = vmatpush2.bf16.msra.mxu0 0
      %1688 = vmatprep.subr.bf16.mxu0 0
      %1689 = vmatpush2.bf16.msra.mxu0 0
      %1690 = vmatprep.subr.bf16.mxu0 0
      %1691 = vmatpush2.bf16.msra.mxu0 0
      %1692 = vmatprep.mubr.bf16.mxu0 0
      %1693 = vmatmul.mubr.bf16.gmra.mxu0 %v1658
      %v1694 = vpop.f32.mrf.mxu0
      %v1695 = vadd.f32 2.0, %v1694
      %v1696 = vpop.f32.mrf.mxu0
      %v1697 = vpop.f32.mrf.mxu0
      %v1698 = vadd.f32 2.0, %v1697
      %v1699 = vpop.f32.mrf.mxu0
      %1700 = vdwg.mxu0
      %v1701 = vmin.f32 %v1695, 0.0
      %v1702 = vmin.f32 %v1698, 0.0
      %v1703 = vand.u32 2147483647, %v1695
      %v1704 = vand.u32 2147483647, %v1698
      %v1705 = vsub.f32 0.0, %v1703
      %v1706 = vsub.f32 0.0, %v1704
      %v1707 = vmul.f32 %v1705, 1.442695
      %v1708 = vpow.pop %v1707
      %v1709 = vmul.f32 %v1706, 1.442695
      %v1710 = vpow.pop %v1709
      %v1711 = vadd.f32 %v1708, 1.0
      %v1712 = vadd.f32 %v1710, 1.0
      %v1713 = vlog2.pop %v1711
      %v1714 = vmul.f32 %v1713, 0.6931472
      %v1715 = vlog2.pop %v1712
      %v1716 = vmul.f32 %v1715, 0.6931472
      %v1717 = vsub.f32 %v1701, %v1714
      %v1718 = vsub.f32 %v1702, %v1716
      %v1719 = vmul.f32 %v1717, 1.442695
      %v1720 = vpow.pop %v1719
      %v1721 = vmul.f32 %v1718, 1.442695
      %v1722 = vpow.pop %v1721
      %v1723 = vmul.f32 %v513, %v453
      %v1724 = vmul.f32 %v516, %v453
      %v1725 = vadd.f32 %v513, %v1648
      %v1726 = vadd.f32 %v516, %v1649
      %v1727 = vmul.f32 %v1725, %v452
      %v1728 = vmul.f32 %v1726, %v452
      %v1729 = vmul.f32 %v1727, %v1720
      %v1730 = vmul.f32 %v1728, %v1722
      %v1731 = vadd.f32 %v1723, %v1729
      %v1732 = vadd.f32 %v1724, %v1730
      %v1733 = vmul.f32 %v1717, %v452
      %v1734 = vmul.f32 %v1718, %v452
      %v1735 = vsel %vm474, %v1733, 0.0
      %1736 = vadd.xlane.f32.xlu0 %v1735
      %v1737 = vpop.xlane.xlu0 %1736
      %v1738 = vsel %vm474, %v1734, 0.0
      %1739 = vadd.xlane.f32.xlu0 %v1738
      %v1740 = vpop.xlane.xlu0 %1739
      %v1741 = vadd.f32 %v1737, %v1740
      %v1742 = vrot.slane %v1741, 4
      %v1743 = vadd.f32 %v1741, %v1742
      %v1744 = vrot.slane %v1743, 2
      %v1745 = vadd.f32 %v1743, %v1744
      %v1746 = vrot.slane %v1745, 1
      %v1747 = vadd.f32 %v1745, %v1746
      %v1748 = vadd.f32 %v1747, 0.0
      %v1749 = vpack.c.bf16 %v1732, %v1731
      %s1750 = scalar_lea.vmem %s1, 8
      %v1751 = vld [vmem:[%s1750] sm:$0xf]
      %v1752 = vld [vmem:[%s1750 + $0x4] sm:$0xf]
      %s1753 = scalar_lea.vmem %s2, 1
      %v1754 = vld [vmem:[%s1753] sm:$0x1]
      %v1756 = vlaneseq
      %v1757 = vshrl.u32 %v1756, 7
      %v1758 = vsub.s32 0, %v1757
      %v1759 = vrot.slane %v1754, %v1758
      %v1763 = vunpack.c.l.b16 %v1751
      %v1764 = vunpack.c.l.b16 %v1752
      %v1765 = vpack.c.b16 %v1764, %v1763
      %v1768 = vsel %vm474, %v1749, 0
      %1770 = vmatprep.subr.bf16.mxu0 0
      %1771 = vmatpush1.bf16.msra.mxu0 0
      %1772 = vmatprep.subr.bf16.mxu0 0
      %1773 = vmatpush1.bf16.msra.mxu0 0
      %1774 = vmatprep.subr.bf16.mxu0 0
      %1775 = vmatpush1.bf16.msra.mxu0 0
      %1776 = vmatprep.subr.bf16.mxu0 0
      %1777 = vmatpush1.bf16.msra.mxu0 0
      %1778 = vmatprep.subr.bf16.mxu0 0
      %1779 = vmatpush1.bf16.msra.mxu0 0
      %1780 = vmatprep.subr.bf16.mxu0 0
      %1781 = vmatpush1.bf16.msra.mxu0 0
      %1782 = vmatprep.subr.bf16.mxu0 0
      %1783 = vmatpush1.bf16.msra.mxu0 0
      %1784 = vmatprep.subr.bf16.mxu0 0
      %1785 = vmatpush1.bf16.msra.mxu0 %v1765
      %1786 = vmatprep.subr.bf16.mxu0 0
      %1787 = vmatpush2.bf16.msra.mxu0 0
      %1788 = vmatprep.subr.bf16.mxu0 0
      %1789 = vmatpush2.bf16.msra.mxu0 0
      %1790 = vmatprep.subr.bf16.mxu0 0
      %1791 = vmatpush2.bf16.msra.mxu0 0
      %1792 = vmatprep.subr.bf16.mxu0 0
      %1793 = vmatpush2.bf16.msra.mxu0 0
      %1794 = vmatprep.subr.bf16.mxu0 0
      %1795 = vmatpush2.bf16.msra.mxu0 0
      %1796 = vmatprep.subr.bf16.mxu0 0
      %1797 = vmatpush2.bf16.msra.mxu0 0
      %1798 = vmatprep.subr.bf16.mxu0 0
      %1799 = vmatpush2.bf16.msra.mxu0 0
      %1800 = vmatprep.subr.bf16.mxu0 0
      %1801 = vmatpush2.bf16.msra.mxu0 0
      %1802 = vmatprep.mubr.bf16.mxu0 0
      %1803 = vmatmul.mubr.bf16.gmra.mxu0 %v1768
      %v1804 = vpop.f32.mrf.mxu0
      %v1805 = vadd.f32 %v1759, %v1804
      %v1806 = vpop.f32.mrf.mxu0
      %v1807 = vpop.f32.mrf.mxu0
      %v1808 = vadd.f32 %v1759, %v1807
      %v1809 = vpop.f32.mrf.mxu0
      %1810 = vdwg.mxu0
      %s1811 = scalar_lea.vmem %s4, 1
      %v1812 = vld [vmem:[%s1811] sm:$0x1]
      %v1813 = vrot.slane %v1805, 7
      %v1814 = vrot.slane %v1808, 7
      %v1815 = vsel %vm522, %v1813, %v1814
      %v1816 = vsel %vm522, %v1814, %v1813
      %v1817 = vmul.f32 %v1816, %v428
      %v1818 = vmul.f32 %v1815, %v429
      %v1819 = vrot.slane %v1805, 1
      %v1820 = vrot.slane %v1808, 1
      %v1821 = vsel %vm529, %v1819, %v1820
      %v1822 = vsel %vm529, %v1820, %v1819
      %v1823 = vmul.f32 %v1821, %v434
      %v1824 = vmul.f32 %v1822, %v435
      %v1825 = vrot.slane %v1817, 4
      %v1826 = vrot.slane %v1818, 4
      %v1827 = vsel %vm536, %v1825, %v1826
      %v1828 = vsel %vm536, %v1826, %v1825
      %v1829 = vpack.c.bf16 %v1827, %v1828
      %s1830 = scalar_lea.vmem %s3, 72
      %v1831 = vld [vmem:[%s1830] sm:$0xf]
      %v1832 = vld [vmem:[%s1830 + $0x4] sm:$0xf]
      %v1833 = vrot.slane %v1805, 4
      %v1834 = vrot.slane %v1808, 4
      %v1835 = vsel %vm536, %v1833, %v1834
      %v1836 = vsel %vm536, %v1834, %v1833
      %v1837 = vpack.c.bf16 %v1835, %v1836
      %s1838 = scalar_lea.vmem %s3, 80
      %v1839 = vld [vmem:[%s1838] sm:$0xf]
      %v1840 = vld [vmem:[%s1838 + $0x4] sm:$0xf]
      %v1843 = vunpack.c.l.b16 %v1839
      %v1844 = vunpack.c.l.b16 %v1840
      %v1845 = vpack.c.b16 %v1844, %v1843
      %v1848 = vsel %vm474, %v1837, 0
      %1850 = vmatprep.subr.bf16.mxu0 0
      %1851 = vmatpush1.bf16.msra.mxu0 0
      %1852 = vmatprep.subr.bf16.mxu0 0
      %1853 = vmatpush1.bf16.msra.mxu0 0
      %1854 = vmatprep.subr.bf16.mxu0 0
      %1855 = vmatpush1.bf16.msra.mxu0 0
      %1856 = vmatprep.subr.bf16.mxu0 0
      %1857 = vmatpush1.bf16.msra.mxu0 0
      %1858 = vmatprep.subr.bf16.mxu0 0
      %1859 = vmatpush1.bf16.msra.mxu0 0
      %1860 = vmatprep.subr.bf16.mxu0 0
      %1861 = vmatpush1.bf16.msra.mxu0 0
      %1862 = vmatprep.subr.bf16.mxu0 0
      %1863 = vmatpush1.bf16.msra.mxu0 0
      %1864 = vmatprep.subr.bf16.mxu0 0
      %1865 = vmatpush1.bf16.msra.mxu0 %v1845
      %1866 = vmatprep.subr.bf16.mxu0 0
      %1867 = vmatpush2.bf16.msra.mxu0 0
      %1868 = vmatprep.subr.bf16.mxu0 0
      %1869 = vmatpush2.bf16.msra.mxu0 0
      %1870 = vmatprep.subr.bf16.mxu0 0
      %1871 = vmatpush2.bf16.msra.mxu0 0
      %1872 = vmatprep.subr.bf16.mxu0 0
      %1873 = vmatpush2.bf16.msra.mxu0 0
      %1874 = vmatprep.subr.bf16.mxu0 0
      %1875 = vmatpush2.bf16.msra.mxu0 0
      %1876 = vmatprep.subr.bf16.mxu0 0
      %1877 = vmatpush2.bf16.msra.mxu0 0
      %1878 = vmatprep.subr.bf16.mxu0 0
      %1879 = vmatpush2.bf16.msra.mxu0 0
      %1880 = vmatprep.subr.bf16.mxu0 0
      %1881 = vmatpush2.bf16.msra.mxu0 0
      %1882 = vmatprep.mubr.bf16.mxu0 0
      %1883 = vmatmul.mubr.bf16.gmra.mxu0 %v1848
      %v1884 = vpop.f32.mrf.mxu0
      %v1885 = vadd.f32 0.0, %v1884
      %v1886 = vpop.f32.mrf.mxu0
      %v1887 = vpop.f32.mrf.mxu0
      %v1888 = vadd.f32 0.0, %v1887
      %v1889 = vpop.f32.mrf.mxu0
      %1890 = vdwg.mxu0
      %v1893 = vunpack.c.l.b16 %v1831
      %v1894 = vunpack.c.l.b16 %v1832
      %v1895 = vpack.c.b16 %v1894, %v1893
      %v1898 = vsel %vm474, %v1829, 0
      %1900 = vmatprep.subr.bf16.mxu0 0
      %1901 = vmatpush1.bf16.msra.mxu0 0
      %1902 = vmatprep.subr.bf16.mxu0 0
      %1903 = vmatpush1.bf16.msra.mxu0 0
      %1904 = vmatprep.subr.bf16.mxu0 0
      %1905 = vmatpush1.bf16.msra.mxu0 0
      %1906 = vmatprep.subr.bf16.mxu0 0
      %1907 = vmatpush1.bf16.msra.mxu0 0
      %1908 = vmatprep.subr.bf16.mxu0 0
      %1909 = vmatpush1.bf16.msra.mxu0 0
      %1910 = vmatprep.subr.bf16.mxu0 0
      %1911 = vmatpush1.bf16.msra.mxu0 0
      %1912 = vmatprep.subr.bf16.mxu0 0
      %1913 = vmatpush1.bf16.msra.mxu0 0
      %1914 = vmatprep.subr.bf16.mxu0 0
      %1915 = vmatpush1.bf16.msra.mxu0 %v1895
      %1916 = vmatprep.subr.bf16.mxu0 0
      %1917 = vmatpush2.bf16.msra.mxu0 0
      %1918 = vmatprep.subr.bf16.mxu0 0
      %1919 = vmatpush2.bf16.msra.mxu0 0
      %1920 = vmatprep.subr.bf16.mxu0 0
      %1921 = vmatpush2.bf16.msra.mxu0 0
      %1922 = vmatprep.subr.bf16.mxu0 0
      %1923 = vmatpush2.bf16.msra.mxu0 0
      %1924 = vmatprep.subr.bf16.mxu0 0
      %1925 = vmatpush2.bf16.msra.mxu0 0
      %1926 = vmatprep.subr.bf16.mxu0 0
      %1927 = vmatpush2.bf16.msra.mxu0 0
      %1928 = vmatprep.subr.bf16.mxu0 0
      %1929 = vmatpush2.bf16.msra.mxu0 0
      %1930 = vmatprep.subr.bf16.mxu0 0
      %1931 = vmatpush2.bf16.msra.mxu0 0
      %1932 = vmatprep.mubr.bf16.mxu0 0
      %1933 = vmatmul.mubr.bf16.gmra.mxu0 %v1898
      %v1934 = vpop.f32.mrf.mxu0
      %v1935 = vadd.f32 %v1885, %v1934
      %v1936 = vpop.f32.mrf.mxu0
      %v1937 = vpop.f32.mrf.mxu0
      %v1938 = vadd.f32 %v1888, %v1937
      %v1939 = vpop.f32.mrf.mxu0
      %1940 = vdwg.mxu0
      %v1941 = vrot.slane %v1823, 4
      %v1942 = vrot.slane %v1824, 4
      %v1943 = vsel %vm536, %v1941, %v1942
      %v1944 = vsel %vm536, %v1942, %v1941
      %v1945 = vpack.c.bf16 %v1943, %v1944
      %s1946 = scalar_lea.vmem %s3, 88
      %v1947 = vld [vmem:[%s1946] sm:$0xf]
      %v1948 = vld [vmem:[%s1946 + $0x4] sm:$0xf]
      %v1951 = vunpack.c.l.b16 %v1947
      %v1952 = vunpack.c.l.b16 %v1948
      %v1953 = vpack.c.b16 %v1952, %v1951
      %v1956 = vsel %vm474, %v1945, 0
      %1958 = vmatprep.subr.bf16.mxu0 0
      %1959 = vmatpush1.bf16.msra.mxu0 0
      %1960 = vmatprep.subr.bf16.mxu0 0
      %1961 = vmatpush1.bf16.msra.mxu0 0
      %1962 = vmatprep.subr.bf16.mxu0 0
      %1963 = vmatpush1.bf16.msra.mxu0 0
      %1964 = vmatprep.subr.bf16.mxu0 0
      %1965 = vmatpush1.bf16.msra.mxu0 0
      %1966 = vmatprep.subr.bf16.mxu0 0
      %1967 = vmatpush1.bf16.msra.mxu0 0
      %1968 = vmatprep.subr.bf16.mxu0 0
      %1969 = vmatpush1.bf16.msra.mxu0 0
      %1970 = vmatprep.subr.bf16.mxu0 0
      %1971 = vmatpush1.bf16.msra.mxu0 0
      %1972 = vmatprep.subr.bf16.mxu0 0
      %1973 = vmatpush1.bf16.msra.mxu0 %v1953
      %1974 = vmatprep.subr.bf16.mxu0 0
      %1975 = vmatpush2.bf16.msra.mxu0 0
      %1976 = vmatprep.subr.bf16.mxu0 0
      %1977 = vmatpush2.bf16.msra.mxu0 0
      %1978 = vmatprep.subr.bf16.mxu0 0
      %1979 = vmatpush2.bf16.msra.mxu0 0
      %1980 = vmatprep.subr.bf16.mxu0 0
      %1981 = vmatpush2.bf16.msra.mxu0 0
      %1982 = vmatprep.subr.bf16.mxu0 0
      %1983 = vmatpush2.bf16.msra.mxu0 0
      %1984 = vmatprep.subr.bf16.mxu0 0
      %1985 = vmatpush2.bf16.msra.mxu0 0
      %1986 = vmatprep.subr.bf16.mxu0 0
      %1987 = vmatpush2.bf16.msra.mxu0 0
      %1988 = vmatprep.subr.bf16.mxu0 0
      %1989 = vmatpush2.bf16.msra.mxu0 0
      %1990 = vmatprep.mubr.bf16.mxu0 0
      %1991 = vmatmul.mubr.bf16.gmra.mxu0 %v1956
      %v1992 = vpop.f32.mrf.mxu0
      %v1993 = vadd.f32 0.0, %v1992
      %v1994 = vpop.f32.mrf.mxu0
      %v1995 = vpop.f32.mrf.mxu0
      %v1996 = vadd.f32 0.0, %v1995
      %v1997 = vpop.f32.mrf.mxu0
      %1998 = vdwg.mxu0
      %v1999 = vadd.f32 %v1935, %v1993
      %v2000 = vadd.f32 %v1938, %v1996
      %v2001 = vmul.f32 %v1999, %v440
      %v2002 = vmul.f32 %v2000, %v441
      %v2003 = vpack.c.bf16 %v1818, %v1817
      %s2004 = scalar_lea.vmem %s3, 96
      %v2005 = vld [vmem:[%s2004] sm:$0xf]
      %v2006 = vld [vmem:[%s2004 + $0x4] sm:$0xf]
      %v2007 = vpack.c.bf16 %v1808, %v1805
      %s2008 = scalar_lea.vmem %s3, 104
      %v2009 = vld [vmem:[%s2008] sm:$0xf]
      %v2010 = vld [vmem:[%s2008 + $0x4] sm:$0xf]
      %v2013 = vunpack.c.l.b16 %v2009
      %v2014 = vunpack.c.l.b16 %v2010
      %v2015 = vpack.c.b16 %v2014, %v2013
      %v2018 = vsel %vm474, %v2007, 0
      %2020 = vmatprep.subr.bf16.mxu0 0
      %2021 = vmatpush1.bf16.msra.mxu0 0
      %2022 = vmatprep.subr.bf16.mxu0 0
      %2023 = vmatpush1.bf16.msra.mxu0 0
      %2024 = vmatprep.subr.bf16.mxu0 0
      %2025 = vmatpush1.bf16.msra.mxu0 0
      %2026 = vmatprep.subr.bf16.mxu0 0
      %2027 = vmatpush1.bf16.msra.mxu0 0
      %2028 = vmatprep.subr.bf16.mxu0 0
      %2029 = vmatpush1.bf16.msra.mxu0 0
      %2030 = vmatprep.subr.bf16.mxu0 0
      %2031 = vmatpush1.bf16.msra.mxu0 0
      %2032 = vmatprep.subr.bf16.mxu0 0
      %2033 = vmatpush1.bf16.msra.mxu0 0
      %2034 = vmatprep.subr.bf16.mxu0 0
      %2035 = vmatpush1.bf16.msra.mxu0 %v2015
      %2036 = vmatprep.subr.bf16.mxu0 0
      %2037 = vmatpush2.bf16.msra.mxu0 0
      %2038 = vmatprep.subr.bf16.mxu0 0
      %2039 = vmatpush2.bf16.msra.mxu0 0
      %2040 = vmatprep.subr.bf16.mxu0 0
      %2041 = vmatpush2.bf16.msra.mxu0 0
      %2042 = vmatprep.subr.bf16.mxu0 0
      %2043 = vmatpush2.bf16.msra.mxu0 0
      %2044 = vmatprep.subr.bf16.mxu0 0
      %2045 = vmatpush2.bf16.msra.mxu0 0
      %2046 = vmatprep.subr.bf16.mxu0 0
      %2047 = vmatpush2.bf16.msra.mxu0 0
      %2048 = vmatprep.subr.bf16.mxu0 0
      %2049 = vmatpush2.bf16.msra.mxu0 0
      %2050 = vmatprep.subr.bf16.mxu0 0
      %2051 = vmatpush2.bf16.msra.mxu0 0
      %2052 = vmatprep.mubr.bf16.mxu0 0
      %2053 = vmatmul.mubr.bf16.gmra.mxu0 %v2018
      %v2054 = vpop.f32.mrf.mxu0
      %v2055 = vadd.f32 0.0, %v2054
      %v2056 = vpop.f32.mrf.mxu0
      %v2057 = vpop.f32.mrf.mxu0
      %v2058 = vadd.f32 0.0, %v2057
      %v2059 = vpop.f32.mrf.mxu0
      %2060 = vdwg.mxu0
      %v2063 = vunpack.c.l.b16 %v2005
      %v2064 = vunpack.c.l.b16 %v2006
      %v2065 = vpack.c.b16 %v2064, %v2063
      %v2068 = vsel %vm474, %v2003, 0
      %2070 = vmatprep.subr.bf16.mxu0 0
      %2071 = vmatpush1.bf16.msra.mxu0 0
      %2072 = vmatprep.subr.bf16.mxu0 0
      %2073 = vmatpush1.bf16.msra.mxu0 0
      %2074 = vmatprep.subr.bf16.mxu0 0
      %2075 = vmatpush1.bf16.msra.mxu0 0
      %2076 = vmatprep.subr.bf16.mxu0 0
      %2077 = vmatpush1.bf16.msra.mxu0 0
      %2078 = vmatprep.subr.bf16.mxu0 0
      %2079 = vmatpush1.bf16.msra.mxu0 0
      %2080 = vmatprep.subr.bf16.mxu0 0
      %2081 = vmatpush1.bf16.msra.mxu0 0
      %2082 = vmatprep.subr.bf16.mxu0 0
      %2083 = vmatpush1.bf16.msra.mxu0 0
      %2084 = vmatprep.subr.bf16.mxu0 0
      %2085 = vmatpush1.bf16.msra.mxu0 %v2065
      %2086 = vmatprep.subr.bf16.mxu0 0
      %2087 = vmatpush2.bf16.msra.mxu0 0
      %2088 = vmatprep.subr.bf16.mxu0 0
      %2089 = vmatpush2.bf16.msra.mxu0 0
      %2090 = vmatprep.subr.bf16.mxu0 0
      %2091 = vmatpush2.bf16.msra.mxu0 0
      %2092 = vmatprep.subr.bf16.mxu0 0
      %2093 = vmatpush2.bf16.msra.mxu0 0
      %2094 = vmatprep.subr.bf16.mxu0 0
      %2095 = vmatpush2.bf16.msra.mxu0 0
      %2096 = vmatprep.subr.bf16.mxu0 0
      %2097 = vmatpush2.bf16.msra.mxu0 0
      %2098 = vmatprep.subr.bf16.mxu0 0
      %2099 = vmatpush2.bf16.msra.mxu0 0
      %2100 = vmatprep.subr.bf16.mxu0 0
      %2101 = vmatpush2.bf16.msra.mxu0 0
      %2102 = vmatprep.mubr.bf16.mxu0 0
      %2103 = vmatmul.mubr.bf16.gmra.mxu0 %v2068
      %v2104 = vpop.f32.mrf.mxu0
      %v2105 = vadd.f32 %v2055, %v2104
      %v2106 = vpop.f32.mrf.mxu0
      %v2107 = vpop.f32.mrf.mxu0
      %v2108 = vadd.f32 %v2058, %v2107
      %v2109 = vpop.f32.mrf.mxu0
      %2110 = vdwg.mxu0
      %v2111 = vpack.c.bf16 %v1824, %v1823
      %s2112 = scalar_lea.vmem %s3, 112
      %v2113 = vld [vmem:[%s2112] sm:$0xf]
      %v2114 = vld [vmem:[%s2112 + $0x4] sm:$0xf]
      %v2117 = vunpack.c.l.b16 %v2113
      %v2118 = vunpack.c.l.b16 %v2114
      %v2119 = vpack.c.b16 %v2118, %v2117
      %v2122 = vsel %vm474, %v2111, 0
      %2124 = vmatprep.subr.bf16.mxu0 0
      %2125 = vmatpush1.bf16.msra.mxu0 0
      %2126 = vmatprep.subr.bf16.mxu0 0
      %2127 = vmatpush1.bf16.msra.mxu0 0
      %2128 = vmatprep.subr.bf16.mxu0 0
      %2129 = vmatpush1.bf16.msra.mxu0 0
      %2130 = vmatprep.subr.bf16.mxu0 0
      %2131 = vmatpush1.bf16.msra.mxu0 0
      %2132 = vmatprep.subr.bf16.mxu0 0
      %2133 = vmatpush1.bf16.msra.mxu0 0
      %2134 = vmatprep.subr.bf16.mxu0 0
      %2135 = vmatpush1.bf16.msra.mxu0 0
      %2136 = vmatprep.subr.bf16.mxu0 0
      %2137 = vmatpush1.bf16.msra.mxu0 0
      %2138 = vmatprep.subr.bf16.mxu0 0
      %2139 = vmatpush1.bf16.msra.mxu0 %v2119
      %2140 = vmatprep.subr.bf16.mxu0 0
      %2141 = vmatpush2.bf16.msra.mxu0 0
      %2142 = vmatprep.subr.bf16.mxu0 0
      %2143 = vmatpush2.bf16.msra.mxu0 0
      %2144 = vmatprep.subr.bf16.mxu0 0
      %2145 = vmatpush2.bf16.msra.mxu0 0
      %2146 = vmatprep.subr.bf16.mxu0 0
      %2147 = vmatpush2.bf16.msra.mxu0 0
      %2148 = vmatprep.subr.bf16.mxu0 0
      %2149 = vmatpush2.bf16.msra.mxu0 0
      %2150 = vmatprep.subr.bf16.mxu0 0
      %2151 = vmatpush2.bf16.msra.mxu0 0
      %2152 = vmatprep.subr.bf16.mxu0 0
      %2153 = vmatpush2.bf16.msra.mxu0 0
      %2154 = vmatprep.subr.bf16.mxu0 0
      %2155 = vmatpush2.bf16.msra.mxu0 0
      %2156 = vmatprep.mubr.bf16.mxu0 0
      %2157 = vmatmul.mubr.bf16.gmra.mxu0 %v2122
      %v2158 = vpop.f32.mrf.mxu0
      %v2159 = vadd.f32 0.0, %v2158
      %v2160 = vpop.f32.mrf.mxu0
      %v2161 = vpop.f32.mrf.mxu0
      %v2162 = vadd.f32 0.0, %v2161
      %v2163 = vpop.f32.mrf.mxu0
      %2164 = vdwg.mxu0
      %v2165 = vadd.f32 %v2105, %v2159
      %v2166 = vadd.f32 %v2108, %v2162
      %v2167 = vadd.f32 %v2001, %v2165
      %v2168 = vadd.f32 %v2002, %v2166
      %v2169 = vpack.c.bf16 %v1828, %v1827
      %s2170 = scalar_lea.vmem %s3, 120
      %v2171 = vld [vmem:[%s2170] sm:$0xf]
      %v2172 = vld [vmem:[%s2170 + $0x4] sm:$0xf]
      %v2173 = vpack.c.bf16 %v1836, %v1835
      %s2174 = scalar_lea.vmem %s3, 128
      %v2175 = vld [vmem:[%s2174] sm:$0xf]
      %v2176 = vld [vmem:[%s2174 + $0x4] sm:$0xf]
      %v2179 = vunpack.c.l.b16 %v2175
      %v2180 = vunpack.c.l.b16 %v2176
      %v2181 = vpack.c.b16 %v2180, %v2179
      %v2184 = vsel %vm474, %v2173, 0
      %2186 = vmatprep.subr.bf16.mxu0 0
      %2187 = vmatpush1.bf16.msra.mxu0 0
      %2188 = vmatprep.subr.bf16.mxu0 0
      %2189 = vmatpush1.bf16.msra.mxu0 0
      %2190 = vmatprep.subr.bf16.mxu0 0
      %2191 = vmatpush1.bf16.msra.mxu0 0
      %2192 = vmatprep.subr.bf16.mxu0 0
      %2193 = vmatpush1.bf16.msra.mxu0 0
      %2194 = vmatprep.subr.bf16.mxu0 0
      %2195 = vmatpush1.bf16.msra.mxu0 0
      %2196 = vmatprep.subr.bf16.mxu0 0
      %2197 = vmatpush1.bf16.msra.mxu0 0
      %2198 = vmatprep.subr.bf16.mxu0 0
      %2199 = vmatpush1.bf16.msra.mxu0 0
      %2200 = vmatprep.subr.bf16.mxu0 0
      %2201 = vmatpush1.bf16.msra.mxu0 %v2181
      %2202 = vmatprep.subr.bf16.mxu0 0
      %2203 = vmatpush2.bf16.msra.mxu0 0
      %2204 = vmatprep.subr.bf16.mxu0 0
      %2205 = vmatpush2.bf16.msra.mxu0 0
      %2206 = vmatprep.subr.bf16.mxu0 0
      %2207 = vmatpush2.bf16.msra.mxu0 0
      %2208 = vmatprep.subr.bf16.mxu0 0
      %2209 = vmatpush2.bf16.msra.mxu0 0
      %2210 = vmatprep.subr.bf16.mxu0 0
      %2211 = vmatpush2.bf16.msra.mxu0 0
      %2212 = vmatprep.subr.bf16.mxu0 0
      %2213 = vmatpush2.bf16.msra.mxu0 0
      %2214 = vmatprep.subr.bf16.mxu0 0
      %2215 = vmatpush2.bf16.msra.mxu0 0
      %2216 = vmatprep.subr.bf16.mxu0 0
      %2217 = vmatpush2.bf16.msra.mxu0 0
      %2218 = vmatprep.mubr.bf16.mxu0 0
      %2219 = vmatmul.mubr.bf16.gmra.mxu0 %v2184
      %v2220 = vpop.f32.mrf.mxu0
      %v2221 = vadd.f32 0.0, %v2220
      %v2222 = vpop.f32.mrf.mxu0
      %v2223 = vpop.f32.mrf.mxu0
      %v2224 = vadd.f32 0.0, %v2223
      %v2225 = vpop.f32.mrf.mxu0
      %2226 = vdwg.mxu0
      %v2229 = vunpack.c.l.b16 %v2171
      %v2230 = vunpack.c.l.b16 %v2172
      %v2231 = vpack.c.b16 %v2230, %v2229
      %v2234 = vsel %vm474, %v2169, 0
      %2236 = vmatprep.subr.bf16.mxu0 0
      %2237 = vmatpush1.bf16.msra.mxu0 0
      %2238 = vmatprep.subr.bf16.mxu0 0
      %2239 = vmatpush1.bf16.msra.mxu0 0
      %2240 = vmatprep.subr.bf16.mxu0 0
      %2241 = vmatpush1.bf16.msra.mxu0 0
      %2242 = vmatprep.subr.bf16.mxu0 0
      %2243 = vmatpush1.bf16.msra.mxu0 0
      %2244 = vmatprep.subr.bf16.mxu0 0
      %2245 = vmatpush1.bf16.msra.mxu0 0
      %2246 = vmatprep.subr.bf16.mxu0 0
      %2247 = vmatpush1.bf16.msra.mxu0 0
      %2248 = vmatprep.subr.bf16.mxu0 0
      %2249 = vmatpush1.bf16.msra.mxu0 0
      %2250 = vmatprep.subr.bf16.mxu0 0
      %2251 = vmatpush1.bf16.msra.mxu0 %v2231
      %2252 = vmatprep.subr.bf16.mxu0 0
      %2253 = vmatpush2.bf16.msra.mxu0 0
      %2254 = vmatprep.subr.bf16.mxu0 0
      %2255 = vmatpush2.bf16.msra.mxu0 0
      %2256 = vmatprep.subr.bf16.mxu0 0
      %2257 = vmatpush2.bf16.msra.mxu0 0
      %2258 = vmatprep.subr.bf16.mxu0 0
      %2259 = vmatpush2.bf16.msra.mxu0 0
      %2260 = vmatprep.subr.bf16.mxu0 0
      %2261 = vmatpush2.bf16.msra.mxu0 0
      %2262 = vmatprep.subr.bf16.mxu0 0
      %2263 = vmatpush2.bf16.msra.mxu0 0
      %2264 = vmatprep.subr.bf16.mxu0 0
      %2265 = vmatpush2.bf16.msra.mxu0 0
      %2266 = vmatprep.subr.bf16.mxu0 0
      %2267 = vmatpush2.bf16.msra.mxu0 0
      %2268 = vmatprep.mubr.bf16.mxu0 0
      %2269 = vmatmul.mubr.bf16.gmra.mxu0 %v2234
      %v2270 = vpop.f32.mrf.mxu0
      %v2271 = vadd.f32 %v2221, %v2270
      %v2272 = vpop.f32.mrf.mxu0
      %v2273 = vpop.f32.mrf.mxu0
      %v2274 = vadd.f32 %v2224, %v2273
      %v2275 = vpop.f32.mrf.mxu0
      %2276 = vdwg.mxu0
      %v2277 = vpack.c.bf16 %v1944, %v1943
      %s2278 = scalar_lea.vmem %s3, 136
      %v2279 = vld [vmem:[%s2278] sm:$0xf]
      %v2280 = vld [vmem:[%s2278 + $0x4] sm:$0xf]
      %v2283 = vunpack.c.l.b16 %v2279
      %v2284 = vunpack.c.l.b16 %v2280
      %v2285 = vpack.c.b16 %v2284, %v2283
      %v2288 = vsel %vm474, %v2277, 0
      %2290 = vmatprep.subr.bf16.mxu0 0
      %2291 = vmatpush1.bf16.msra.mxu0 0
      %2292 = vmatprep.subr.bf16.mxu0 0
      %2293 = vmatpush1.bf16.msra.mxu0 0
      %2294 = vmatprep.subr.bf16.mxu0 0
      %2295 = vmatpush1.bf16.msra.mxu0 0
      %2296 = vmatprep.subr.bf16.mxu0 0
      %2297 = vmatpush1.bf16.msra.mxu0 0
      %2298 = vmatprep.subr.bf16.mxu0 0
      %2299 = vmatpush1.bf16.msra.mxu0 0
      %2300 = vmatprep.subr.bf16.mxu0 0
      %2301 = vmatpush1.bf16.msra.mxu0 0
      %2302 = vmatprep.subr.bf16.mxu0 0
      %2303 = vmatpush1.bf16.msra.mxu0 0
      %2304 = vmatprep.subr.bf16.mxu0 0
      %2305 = vmatpush1.bf16.msra.mxu0 %v2285
      %2306 = vmatprep.subr.bf16.mxu0 0
      %2307 = vmatpush2.bf16.msra.mxu0 0
      %2308 = vmatprep.subr.bf16.mxu0 0
      %2309 = vmatpush2.bf16.msra.mxu0 0
      %2310 = vmatprep.subr.bf16.mxu0 0
      %2311 = vmatpush2.bf16.msra.mxu0 0
      %2312 = vmatprep.subr.bf16.mxu0 0
      %2313 = vmatpush2.bf16.msra.mxu0 0
      %2314 = vmatprep.subr.bf16.mxu0 0
      %2315 = vmatpush2.bf16.msra.mxu0 0
      %2316 = vmatprep.subr.bf16.mxu0 0
      %2317 = vmatpush2.bf16.msra.mxu0 0
      %2318 = vmatprep.subr.bf16.mxu0 0
      %2319 = vmatpush2.bf16.msra.mxu0 0
      %2320 = vmatprep.subr.bf16.mxu0 0
      %2321 = vmatpush2.bf16.msra.mxu0 0
      %2322 = vmatprep.mubr.bf16.mxu0 0
      %2323 = vmatmul.mubr.bf16.gmra.mxu0 %v2288
      %v2324 = vpop.f32.mrf.mxu0
      %v2325 = vadd.f32 0.0, %v2324
      %v2326 = vpop.f32.mrf.mxu0
      %v2327 = vpop.f32.mrf.mxu0
      %v2328 = vadd.f32 0.0, %v2327
      %v2329 = vpop.f32.mrf.mxu0
      %2330 = vdwg.mxu0
      %v2331 = vadd.f32 %v2271, %v2325
      %v2332 = vadd.f32 %v2274, %v2328
      %v2333 = vmul.f32 %v2331, %v446
      %v2334 = vmul.f32 %v2332, %v447
      %v2335 = vadd.f32 %v2167, %v2333
      %v2336 = vadd.f32 %v2168, %v2334
      %v2338 = vlaneseq
      %v2339 = vshrl.u32 %v2338, 7
      %v2340 = vsub.s32 0, %v2339
      %v2341 = vrot.slane %v1812, %v2340
      %v2343 = vadd.f32 %v2335, %v2341
      %v2344 = vadd.f32 %v2336, %v2341
      %v2345 = vmax.f32 %v2343, 0.0
      %v2346 = vmax.f32 %v2344, 0.0
      %v2347 = vpack.c.bf16 %v2346, %v2345
      %s2348 = scalar_lea.vmem %s5, 8
      %v2349 = vld [vmem:[%s2348] sm:$0xf]
      %v2350 = vld [vmem:[%s2348 + $0x4] sm:$0xf]
      %s2351 = scalar_lea.vmem %s6, 1
      %v2352 = vld [vmem:[%s2351] sm:$0x1]
      %v2354 = vlaneseq
      %v2355 = vshrl.u32 %v2354, 7
      %v2356 = vsub.s32 0, %v2355
      %v2357 = vrot.slane %v2352, %v2356
      %v2361 = vunpack.c.l.b16 %v2349
      %v2362 = vunpack.c.l.b16 %v2350
      %v2363 = vpack.c.b16 %v2362, %v2361
      %v2366 = vsel %vm474, %v2347, 0
      %2368 = vmatprep.subr.bf16.mxu0 0
      %2369 = vmatpush1.bf16.msra.mxu0 0
      %2370 = vmatprep.subr.bf16.mxu0 0
      %2371 = vmatpush1.bf16.msra.mxu0 0
      %2372 = vmatprep.subr.bf16.mxu0 0
      %2373 = vmatpush1.bf16.msra.mxu0 0
      %2374 = vmatprep.subr.bf16.mxu0 0
      %2375 = vmatpush1.bf16.msra.mxu0 0
      %2376 = vmatprep.subr.bf16.mxu0 0
      %2377 = vmatpush1.bf16.msra.mxu0 0
      %2378 = vmatprep.subr.bf16.mxu0 0
      %2379 = vmatpush1.bf16.msra.mxu0 0
      %2380 = vmatprep.subr.bf16.mxu0 0
      %2381 = vmatpush1.bf16.msra.mxu0 0
      %2382 = vmatprep.subr.bf16.mxu0 0
      %2383 = vmatpush1.bf16.msra.mxu0 %v2363
      %2384 = vmatprep.subr.bf16.mxu0 0
      %2385 = vmatpush2.bf16.msra.mxu0 0
      %2386 = vmatprep.subr.bf16.mxu0 0
      %2387 = vmatpush2.bf16.msra.mxu0 0
      %2388 = vmatprep.subr.bf16.mxu0 0
      %2389 = vmatpush2.bf16.msra.mxu0 0
      %2390 = vmatprep.subr.bf16.mxu0 0
      %2391 = vmatpush2.bf16.msra.mxu0 0
      %2392 = vmatprep.subr.bf16.mxu0 0
      %2393 = vmatpush2.bf16.msra.mxu0 0
      %2394 = vmatprep.subr.bf16.mxu0 0
      %2395 = vmatpush2.bf16.msra.mxu0 0
      %2396 = vmatprep.subr.bf16.mxu0 0
      %2397 = vmatpush2.bf16.msra.mxu0 0
      %2398 = vmatprep.subr.bf16.mxu0 0
      %2399 = vmatpush2.bf16.msra.mxu0 0
      %2400 = vmatprep.mubr.bf16.mxu0 0
      %2401 = vmatmul.mubr.bf16.gmra.mxu0 %v2366
      %v2402 = vpop.f32.mrf.mxu0
      %v2403 = vadd.f32 %v2357, %v2402
      %v2404 = vpop.f32.mrf.mxu0
      %v2405 = vpop.f32.mrf.mxu0
      %v2406 = vadd.f32 %v2357, %v2405
      %v2407 = vpop.f32.mrf.mxu0
      %2408 = vdwg.mxu0
      %v2409 = vmax.f32 %v2403, 0.0
      %v2410 = vmax.f32 %v2406, 0.0
      %s2411 = scalar_lea.vmem %s8, 1
      %v2412 = vld [vmem:[%s2411] sm:$0x1]
      %v2413 = vrot.slane %v2409, 7
      %v2414 = vrot.slane %v2410, 7
      %v2415 = vsel %vm522, %v2413, %v2414
      %v2416 = vsel %vm522, %v2414, %v2413
      %v2417 = vmul.f32 %v2416, %v428
      %v2418 = vmul.f32 %v2415, %v429
      %v2419 = vrot.slane %v2409, 1
      %v2420 = vrot.slane %v2410, 1
      %v2421 = vsel %vm529, %v2419, %v2420
      %v2422 = vsel %vm529, %v2420, %v2419
      %v2423 = vmul.f32 %v2421, %v434
      %v2424 = vmul.f32 %v2422, %v435
      %v2425 = vrot.slane %v2417, 4
      %v2426 = vrot.slane %v2418, 4
      %v2427 = vsel %vm536, %v2425, %v2426
      %v2428 = vsel %vm536, %v2426, %v2425
      %v2429 = vpack.c.bf16 %v2427, %v2428
      %s2430 = scalar_lea.vmem %s7, 72
      %v2431 = vld [vmem:[%s2430] sm:$0xf]
      %v2432 = vld [vmem:[%s2430 + $0x4] sm:$0xf]
      %v2433 = vrot.slane %v2409, 4
      %v2434 = vrot.slane %v2410, 4
      %v2435 = vsel %vm536, %v2433, %v2434
      %v2436 = vsel %vm536, %v2434, %v2433
      %v2437 = vpack.c.bf16 %v2435, %v2436
      %s2438 = scalar_lea.vmem %s7, 80
      %v2439 = vld [vmem:[%s2438] sm:$0xf]
      %v2440 = vld [vmem:[%s2438 + $0x4] sm:$0xf]
      %v2443 = vunpack.c.l.b16 %v2439
      %v2444 = vunpack.c.l.b16 %v2440
      %v2445 = vpack.c.b16 %v2444, %v2443
      %v2448 = vsel %vm474, %v2437, 0
      %2450 = vmatprep.subr.bf16.mxu0 0
      %2451 = vmatpush1.bf16.msra.mxu0 0
      %2452 = vmatprep.subr.bf16.mxu0 0
      %2453 = vmatpush1.bf16.msra.mxu0 0
      %2454 = vmatprep.subr.bf16.mxu0 0
      %2455 = vmatpush1.bf16.msra.mxu0 0
      %2456 = vmatprep.subr.bf16.mxu0 0
      %2457 = vmatpush1.bf16.msra.mxu0 0
      %2458 = vmatprep.subr.bf16.mxu0 0
      %2459 = vmatpush1.bf16.msra.mxu0 0
      %2460 = vmatprep.subr.bf16.mxu0 0
      %2461 = vmatpush1.bf16.msra.mxu0 0
      %2462 = vmatprep.subr.bf16.mxu0 0
      %2463 = vmatpush1.bf16.msra.mxu0 0
      %2464 = vmatprep.subr.bf16.mxu0 0
      %2465 = vmatpush1.bf16.msra.mxu0 %v2445
      %2466 = vmatprep.subr.bf16.mxu0 0
      %2467 = vmatpush2.bf16.msra.mxu0 0
      %2468 = vmatprep.subr.bf16.mxu0 0
      %2469 = vmatpush2.bf16.msra.mxu0 0
      %2470 = vmatprep.subr.bf16.mxu0 0
      %2471 = vmatpush2.bf16.msra.mxu0 0
      %2472 = vmatprep.subr.bf16.mxu0 0
      %2473 = vmatpush2.bf16.msra.mxu0 0
      %2474 = vmatprep.subr.bf16.mxu0 0
      %2475 = vmatpush2.bf16.msra.mxu0 0
      %2476 = vmatprep.subr.bf16.mxu0 0
      %2477 = vmatpush2.bf16.msra.mxu0 0
      %2478 = vmatprep.subr.bf16.mxu0 0
      %2479 = vmatpush2.bf16.msra.mxu0 0
      %2480 = vmatprep.subr.bf16.mxu0 0
      %2481 = vmatpush2.bf16.msra.mxu0 0
      %2482 = vmatprep.mubr.bf16.mxu0 0
      %2483 = vmatmul.mubr.bf16.gmra.mxu0 %v2448
      %v2484 = vpop.f32.mrf.mxu0
      %v2485 = vadd.f32 0.0, %v2484
      %v2486 = vpop.f32.mrf.mxu0
      %v2487 = vpop.f32.mrf.mxu0
      %v2488 = vadd.f32 0.0, %v2487
      %v2489 = vpop.f32.mrf.mxu0
      %2490 = vdwg.mxu0
      %v2493 = vunpack.c.l.b16 %v2431
      %v2494 = vunpack.c.l.b16 %v2432
      %v2495 = vpack.c.b16 %v2494, %v2493
      %v2498 = vsel %vm474, %v2429, 0
      %2500 = vmatprep.subr.bf16.mxu0 0
      %2501 = vmatpush1.bf16.msra.mxu0 0
      %2502 = vmatprep.subr.bf16.mxu0 0
      %2503 = vmatpush1.bf16.msra.mxu0 0
      %2504 = vmatprep.subr.bf16.mxu0 0
      %2505 = vmatpush1.bf16.msra.mxu0 0
      %2506 = vmatprep.subr.bf16.mxu0 0
      %2507 = vmatpush1.bf16.msra.mxu0 0
      %2508 = vmatprep.subr.bf16.mxu0 0
      %2509 = vmatpush1.bf16.msra.mxu0 0
      %2510 = vmatprep.subr.bf16.mxu0 0
      %2511 = vmatpush1.bf16.msra.mxu0 0
      %2512 = vmatprep.subr.bf16.mxu0 0
      %2513 = vmatpush1.bf16.msra.mxu0 0
      %2514 = vmatprep.subr.bf16.mxu0 0
      %2515 = vmatpush1.bf16.msra.mxu0 %v2495
      %2516 = vmatprep.subr.bf16.mxu0 0
      %2517 = vmatpush2.bf16.msra.mxu0 0
      %2518 = vmatprep.subr.bf16.mxu0 0
      %2519 = vmatpush2.bf16.msra.mxu0 0
      %2520 = vmatprep.subr.bf16.mxu0 0
      %2521 = vmatpush2.bf16.msra.mxu0 0
      %2522 = vmatprep.subr.bf16.mxu0 0
      %2523 = vmatpush2.bf16.msra.mxu0 0
      %2524 = vmatprep.subr.bf16.mxu0 0
      %2525 = vmatpush2.bf16.msra.mxu0 0
      %2526 = vmatprep.subr.bf16.mxu0 0
      %2527 = vmatpush2.bf16.msra.mxu0 0
      %2528 = vmatprep.subr.bf16.mxu0 0
      %2529 = vmatpush2.bf16.msra.mxu0 0
      %2530 = vmatprep.subr.bf16.mxu0 0
      %2531 = vmatpush2.bf16.msra.mxu0 0
      %2532 = vmatprep.mubr.bf16.mxu0 0
      %2533 = vmatmul.mubr.bf16.gmra.mxu0 %v2498
      %v2534 = vpop.f32.mrf.mxu0
      %v2535 = vadd.f32 %v2485, %v2534
      %v2536 = vpop.f32.mrf.mxu0
      %v2537 = vpop.f32.mrf.mxu0
      %v2538 = vadd.f32 %v2488, %v2537
      %v2539 = vpop.f32.mrf.mxu0
      %2540 = vdwg.mxu0
      %v2541 = vrot.slane %v2423, 4
      %v2542 = vrot.slane %v2424, 4
      %v2543 = vsel %vm536, %v2541, %v2542
      %v2544 = vsel %vm536, %v2542, %v2541
      %v2545 = vpack.c.bf16 %v2543, %v2544
      %s2546 = scalar_lea.vmem %s7, 88
      %v2547 = vld [vmem:[%s2546] sm:$0xf]
      %v2548 = vld [vmem:[%s2546 + $0x4] sm:$0xf]
      %v2551 = vunpack.c.l.b16 %v2547
      %v2552 = vunpack.c.l.b16 %v2548
      %v2553 = vpack.c.b16 %v2552, %v2551
      %v2556 = vsel %vm474, %v2545, 0
      %2558 = vmatprep.subr.bf16.mxu0 0
      %2559 = vmatpush1.bf16.msra.mxu0 0
      %2560 = vmatprep.subr.bf16.mxu0 0
      %2561 = vmatpush1.bf16.msra.mxu0 0
      %2562 = vmatprep.subr.bf16.mxu0 0
      %2563 = vmatpush1.bf16.msra.mxu0 0
      %2564 = vmatprep.subr.bf16.mxu0 0
      %2565 = vmatpush1.bf16.msra.mxu0 0
      %2566 = vmatprep.subr.bf16.mxu0 0
      %2567 = vmatpush1.bf16.msra.mxu0 0
      %2568 = vmatprep.subr.bf16.mxu0 0
      %2569 = vmatpush1.bf16.msra.mxu0 0
      %2570 = vmatprep.subr.bf16.mxu0 0
      %2571 = vmatpush1.bf16.msra.mxu0 0
      %2572 = vmatprep.subr.bf16.mxu0 0
      %2573 = vmatpush1.bf16.msra.mxu0 %v2553
      %2574 = vmatprep.subr.bf16.mxu0 0
      %2575 = vmatpush2.bf16.msra.mxu0 0
      %2576 = vmatprep.subr.bf16.mxu0 0
      %2577 = vmatpush2.bf16.msra.mxu0 0
      %2578 = vmatprep.subr.bf16.mxu0 0
      %2579 = vmatpush2.bf16.msra.mxu0 0
      %2580 = vmatprep.subr.bf16.mxu0 0
      %2581 = vmatpush2.bf16.msra.mxu0 0
      %2582 = vmatprep.subr.bf16.mxu0 0
      %2583 = vmatpush2.bf16.msra.mxu0 0
      %2584 = vmatprep.subr.bf16.mxu0 0
      %2585 = vmatpush2.bf16.msra.mxu0 0
      %2586 = vmatprep.subr.bf16.mxu0 0
      %2587 = vmatpush2.bf16.msra.mxu0 0
      %2588 = vmatprep.subr.bf16.mxu0 0
      %2589 = vmatpush2.bf16.msra.mxu0 0
      %2590 = vmatprep.mubr.bf16.mxu0 0
      %2591 = vmatmul.mubr.bf16.gmra.mxu0 %v2556
      %v2592 = vpop.f32.mrf.mxu0
      %v2593 = vadd.f32 0.0, %v2592
      %v2594 = vpop.f32.mrf.mxu0
      %v2595 = vpop.f32.mrf.mxu0
      %v2596 = vadd.f32 0.0, %v2595
      %v2597 = vpop.f32.mrf.mxu0
      %2598 = vdwg.mxu0
      %v2599 = vadd.f32 %v2535, %v2593
      %v2600 = vadd.f32 %v2538, %v2596
      %v2601 = vmul.f32 %v2599, %v440
      %v2602 = vmul.f32 %v2600, %v441
      %v2603 = vpack.c.bf16 %v2418, %v2417
      %s2604 = scalar_lea.vmem %s7, 96
      %v2605 = vld [vmem:[%s2604] sm:$0xf]
      %v2606 = vld [vmem:[%s2604 + $0x4] sm:$0xf]
      %v2607 = vpack.c.bf16 %v2410, %v2409
      %s2608 = scalar_lea.vmem %s7, 104
      %v2609 = vld [vmem:[%s2608] sm:$0xf]
      %v2610 = vld [vmem:[%s2608 + $0x4] sm:$0xf]
      %v2613 = vunpack.c.l.b16 %v2609
      %v2614 = vunpack.c.l.b16 %v2610
      %v2615 = vpack.c.b16 %v2614, %v2613
      %v2618 = vsel %vm474, %v2607, 0
      %2620 = vmatprep.subr.bf16.mxu0 0
      %2621 = vmatpush1.bf16.msra.mxu0 0
      %2622 = vmatprep.subr.bf16.mxu0 0
      %2623 = vmatpush1.bf16.msra.mxu0 0
      %2624 = vmatprep.subr.bf16.mxu0 0
      %2625 = vmatpush1.bf16.msra.mxu0 0
      %2626 = vmatprep.subr.bf16.mxu0 0
      %2627 = vmatpush1.bf16.msra.mxu0 0
      %2628 = vmatprep.subr.bf16.mxu0 0
      %2629 = vmatpush1.bf16.msra.mxu0 0
      %2630 = vmatprep.subr.bf16.mxu0 0
      %2631 = vmatpush1.bf16.msra.mxu0 0
      %2632 = vmatprep.subr.bf16.mxu0 0
      %2633 = vmatpush1.bf16.msra.mxu0 0
      %2634 = vmatprep.subr.bf16.mxu0 0
      %2635 = vmatpush1.bf16.msra.mxu0 %v2615
      %2636 = vmatprep.subr.bf16.mxu0 0
      %2637 = vmatpush2.bf16.msra.mxu0 0
      %2638 = vmatprep.subr.bf16.mxu0 0
      %2639 = vmatpush2.bf16.msra.mxu0 0
      %2640 = vmatprep.subr.bf16.mxu0 0
      %2641 = vmatpush2.bf16.msra.mxu0 0
      %2642 = vmatprep.subr.bf16.mxu0 0
      %2643 = vmatpush2.bf16.msra.mxu0 0
      %2644 = vmatprep.subr.bf16.mxu0 0
      %2645 = vmatpush2.bf16.msra.mxu0 0
      %2646 = vmatprep.subr.bf16.mxu0 0
      %2647 = vmatpush2.bf16.msra.mxu0 0
      %2648 = vmatprep.subr.bf16.mxu0 0
      %2649 = vmatpush2.bf16.msra.mxu0 0
      %2650 = vmatprep.subr.bf16.mxu0 0
      %2651 = vmatpush2.bf16.msra.mxu0 0
      %2652 = vmatprep.mubr.bf16.mxu0 0
      %2653 = vmatmul.mubr.bf16.gmra.mxu0 %v2618
      %v2654 = vpop.f32.mrf.mxu0
      %v2655 = vadd.f32 0.0, %v2654
      %v2656 = vpop.f32.mrf.mxu0
      %v2657 = vpop.f32.mrf.mxu0
      %v2658 = vadd.f32 0.0, %v2657
      %v2659 = vpop.f32.mrf.mxu0
      %2660 = vdwg.mxu0
      %v2663 = vunpack.c.l.b16 %v2605
      %v2664 = vunpack.c.l.b16 %v2606
      %v2665 = vpack.c.b16 %v2664, %v2663
      %v2668 = vsel %vm474, %v2603, 0
      %2670 = vmatprep.subr.bf16.mxu0 0
      %2671 = vmatpush1.bf16.msra.mxu0 0
      %2672 = vmatprep.subr.bf16.mxu0 0
      %2673 = vmatpush1.bf16.msra.mxu0 0
      %2674 = vmatprep.subr.bf16.mxu0 0
      %2675 = vmatpush1.bf16.msra.mxu0 0
      %2676 = vmatprep.subr.bf16.mxu0 0
      %2677 = vmatpush1.bf16.msra.mxu0 0
      %2678 = vmatprep.subr.bf16.mxu0 0
      %2679 = vmatpush1.bf16.msra.mxu0 0
      %2680 = vmatprep.subr.bf16.mxu0 0
      %2681 = vmatpush1.bf16.msra.mxu0 0
      %2682 = vmatprep.subr.bf16.mxu0 0
      %2683 = vmatpush1.bf16.msra.mxu0 0
      %2684 = vmatprep.subr.bf16.mxu0 0
      %2685 = vmatpush1.bf16.msra.mxu0 %v2665
      %2686 = vmatprep.subr.bf16.mxu0 0
      %2687 = vmatpush2.bf16.msra.mxu0 0
      %2688 = vmatprep.subr.bf16.mxu0 0
      %2689 = vmatpush2.bf16.msra.mxu0 0
      %2690 = vmatprep.subr.bf16.mxu0 0
      %2691 = vmatpush2.bf16.msra.mxu0 0
      %2692 = vmatprep.subr.bf16.mxu0 0
      %2693 = vmatpush2.bf16.msra.mxu0 0
      %2694 = vmatprep.subr.bf16.mxu0 0
      %2695 = vmatpush2.bf16.msra.mxu0 0
      %2696 = vmatprep.subr.bf16.mxu0 0
      %2697 = vmatpush2.bf16.msra.mxu0 0
      %2698 = vmatprep.subr.bf16.mxu0 0
      %2699 = vmatpush2.bf16.msra.mxu0 0
      %2700 = vmatprep.subr.bf16.mxu0 0
      %2701 = vmatpush2.bf16.msra.mxu0 0
      %2702 = vmatprep.mubr.bf16.mxu0 0
      %2703 = vmatmul.mubr.bf16.gmra.mxu0 %v2668
      %v2704 = vpop.f32.mrf.mxu0
      %v2705 = vadd.f32 %v2655, %v2704
      %v2706 = vpop.f32.mrf.mxu0
      %v2707 = vpop.f32.mrf.mxu0
      %v2708 = vadd.f32 %v2658, %v2707
      %v2709 = vpop.f32.mrf.mxu0
      %2710 = vdwg.mxu0
      %v2711 = vpack.c.bf16 %v2424, %v2423
      %s2712 = scalar_lea.vmem %s7, 112
      %v2713 = vld [vmem:[%s2712] sm:$0xf]
      %v2714 = vld [vmem:[%s2712 + $0x4] sm:$0xf]
      %v2717 = vunpack.c.l.b16 %v2713
      %v2718 = vunpack.c.l.b16 %v2714
      %v2719 = vpack.c.b16 %v2718, %v2717
      %v2722 = vsel %vm474, %v2711, 0
      %2724 = vmatprep.subr.bf16.mxu0 0
      %2725 = vmatpush1.bf16.msra.mxu0 0
      %2726 = vmatprep.subr.bf16.mxu0 0
      %2727 = vmatpush1.bf16.msra.mxu0 0
      %2728 = vmatprep.subr.bf16.mxu0 0
      %2729 = vmatpush1.bf16.msra.mxu0 0
      %2730 = vmatprep.subr.bf16.mxu0 0
      %2731 = vmatpush1.bf16.msra.mxu0 0
      %2732 = vmatprep.subr.bf16.mxu0 0
      %2733 = vmatpush1.bf16.msra.mxu0 0
      %2734 = vmatprep.subr.bf16.mxu0 0
      %2735 = vmatpush1.bf16.msra.mxu0 0
      %2736 = vmatprep.subr.bf16.mxu0 0
      %2737 = vmatpush1.bf16.msra.mxu0 0
      %2738 = vmatprep.subr.bf16.mxu0 0
      %2739 = vmatpush1.bf16.msra.mxu0 %v2719
      %2740 = vmatprep.subr.bf16.mxu0 0
      %2741 = vmatpush2.bf16.msra.mxu0 0
      %2742 = vmatprep.subr.bf16.mxu0 0
      %2743 = vmatpush2.bf16.msra.mxu0 0
      %2744 = vmatprep.subr.bf16.mxu0 0
      %2745 = vmatpush2.bf16.msra.mxu0 0
      %2746 = vmatprep.subr.bf16.mxu0 0
      %2747 = vmatpush2.bf16.msra.mxu0 0
      %2748 = vmatprep.subr.bf16.mxu0 0
      %2749 = vmatpush2.bf16.msra.mxu0 0
      %2750 = vmatprep.subr.bf16.mxu0 0
      %2751 = vmatpush2.bf16.msra.mxu0 0
      %2752 = vmatprep.subr.bf16.mxu0 0
      %2753 = vmatpush2.bf16.msra.mxu0 0
      %2754 = vmatprep.subr.bf16.mxu0 0
      %2755 = vmatpush2.bf16.msra.mxu0 0
      %2756 = vmatprep.mubr.bf16.mxu0 0
      %2757 = vmatmul.mubr.bf16.gmra.mxu0 %v2722
      %v2758 = vpop.f32.mrf.mxu0
      %v2759 = vadd.f32 0.0, %v2758
      %v2760 = vpop.f32.mrf.mxu0
      %v2761 = vpop.f32.mrf.mxu0
      %v2762 = vadd.f32 0.0, %v2761
      %v2763 = vpop.f32.mrf.mxu0
      %2764 = vdwg.mxu0
      %v2765 = vadd.f32 %v2705, %v2759
      %v2766 = vadd.f32 %v2708, %v2762
      %v2767 = vadd.f32 %v2601, %v2765
      %v2768 = vadd.f32 %v2602, %v2766
      %v2769 = vpack.c.bf16 %v2428, %v2427
      %s2770 = scalar_lea.vmem %s7, 120
      %v2771 = vld [vmem:[%s2770] sm:$0xf]
      %v2772 = vld [vmem:[%s2770 + $0x4] sm:$0xf]
      %v2773 = vpack.c.bf16 %v2436, %v2435
      %s2774 = scalar_lea.vmem %s7, 128
      %v2775 = vld [vmem:[%s2774] sm:$0xf]
      %v2776 = vld [vmem:[%s2774 + $0x4] sm:$0xf]
      %v2779 = vunpack.c.l.b16 %v2775
      %v2780 = vunpack.c.l.b16 %v2776
      %v2781 = vpack.c.b16 %v2780, %v2779
      %v2784 = vsel %vm474, %v2773, 0
      %2786 = vmatprep.subr.bf16.mxu0 0
      %2787 = vmatpush1.bf16.msra.mxu0 0
      %2788 = vmatprep.subr.bf16.mxu0 0
      %2789 = vmatpush1.bf16.msra.mxu0 0
      %2790 = vmatprep.subr.bf16.mxu0 0
      %2791 = vmatpush1.bf16.msra.mxu0 0
      %2792 = vmatprep.subr.bf16.mxu0 0
      %2793 = vmatpush1.bf16.msra.mxu0 0
      %2794 = vmatprep.subr.bf16.mxu0 0
      %2795 = vmatpush1.bf16.msra.mxu0 0
      %2796 = vmatprep.subr.bf16.mxu0 0
      %2797 = vmatpush1.bf16.msra.mxu0 0
      %2798 = vmatprep.subr.bf16.mxu0 0
      %2799 = vmatpush1.bf16.msra.mxu0 0
      %2800 = vmatprep.subr.bf16.mxu0 0
      %2801 = vmatpush1.bf16.msra.mxu0 %v2781
      %2802 = vmatprep.subr.bf16.mxu0 0
      %2803 = vmatpush2.bf16.msra.mxu0 0
      %2804 = vmatprep.subr.bf16.mxu0 0
      %2805 = vmatpush2.bf16.msra.mxu0 0
      %2806 = vmatprep.subr.bf16.mxu0 0
      %2807 = vmatpush2.bf16.msra.mxu0 0
      %2808 = vmatprep.subr.bf16.mxu0 0
      %2809 = vmatpush2.bf16.msra.mxu0 0
      %2810 = vmatprep.subr.bf16.mxu0 0
      %2811 = vmatpush2.bf16.msra.mxu0 0
      %2812 = vmatprep.subr.bf16.mxu0 0
      %2813 = vmatpush2.bf16.msra.mxu0 0
      %2814 = vmatprep.subr.bf16.mxu0 0
      %2815 = vmatpush2.bf16.msra.mxu0 0
      %2816 = vmatprep.subr.bf16.mxu0 0
      %2817 = vmatpush2.bf16.msra.mxu0 0
      %2818 = vmatprep.mubr.bf16.mxu0 0
      %2819 = vmatmul.mubr.bf16.gmra.mxu0 %v2784
      %v2820 = vpop.f32.mrf.mxu0
      %v2821 = vadd.f32 0.0, %v2820
      %v2822 = vpop.f32.mrf.mxu0
      %v2823 = vpop.f32.mrf.mxu0
      %v2824 = vadd.f32 0.0, %v2823
      %v2825 = vpop.f32.mrf.mxu0
      %2826 = vdwg.mxu0
      %v2829 = vunpack.c.l.b16 %v2771
      %v2830 = vunpack.c.l.b16 %v2772
      %v2831 = vpack.c.b16 %v2830, %v2829
      %v2834 = vsel %vm474, %v2769, 0
      %2836 = vmatprep.subr.bf16.mxu0 0
      %2837 = vmatpush1.bf16.msra.mxu0 0
      %2838 = vmatprep.subr.bf16.mxu0 0
      %2839 = vmatpush1.bf16.msra.mxu0 0
      %2840 = vmatprep.subr.bf16.mxu0 0
      %2841 = vmatpush1.bf16.msra.mxu0 0
      %2842 = vmatprep.subr.bf16.mxu0 0
      %2843 = vmatpush1.bf16.msra.mxu0 0
      %2844 = vmatprep.subr.bf16.mxu0 0
      %2845 = vmatpush1.bf16.msra.mxu0 0
      %2846 = vmatprep.subr.bf16.mxu0 0
      %2847 = vmatpush1.bf16.msra.mxu0 0
      %2848 = vmatprep.subr.bf16.mxu0 0
      %2849 = vmatpush1.bf16.msra.mxu0 0
      %2850 = vmatprep.subr.bf16.mxu0 0
      %2851 = vmatpush1.bf16.msra.mxu0 %v2831
      %2852 = vmatprep.subr.bf16.mxu0 0
      %2853 = vmatpush2.bf16.msra.mxu0 0
      %2854 = vmatprep.subr.bf16.mxu0 0
      %2855 = vmatpush2.bf16.msra.mxu0 0
      %2856 = vmatprep.subr.bf16.mxu0 0
      %2857 = vmatpush2.bf16.msra.mxu0 0
      %2858 = vmatprep.subr.bf16.mxu0 0
      %2859 = vmatpush2.bf16.msra.mxu0 0
      %2860 = vmatprep.subr.bf16.mxu0 0
      %2861 = vmatpush2.bf16.msra.mxu0 0
      %2862 = vmatprep.subr.bf16.mxu0 0
      %2863 = vmatpush2.bf16.msra.mxu0 0
      %2864 = vmatprep.subr.bf16.mxu0 0
      %2865 = vmatpush2.bf16.msra.mxu0 0
      %2866 = vmatprep.subr.bf16.mxu0 0
      %2867 = vmatpush2.bf16.msra.mxu0 0
      %2868 = vmatprep.mubr.bf16.mxu0 0
      %2869 = vmatmul.mubr.bf16.gmra.mxu0 %v2834
      %v2870 = vpop.f32.mrf.mxu0
      %v2871 = vadd.f32 %v2821, %v2870
      %v2872 = vpop.f32.mrf.mxu0
      %v2873 = vpop.f32.mrf.mxu0
      %v2874 = vadd.f32 %v2824, %v2873
      %v2875 = vpop.f32.mrf.mxu0
      %2876 = vdwg.mxu0
      %v2877 = vpack.c.bf16 %v2544, %v2543
      %s2878 = scalar_lea.vmem %s7, 136
      %v2879 = vld [vmem:[%s2878] sm:$0xf]
      %v2880 = vld [vmem:[%s2878 + $0x4] sm:$0xf]
      %v2883 = vunpack.c.l.b16 %v2879
      %v2884 = vunpack.c.l.b16 %v2880
      %v2885 = vpack.c.b16 %v2884, %v2883
      %v2888 = vsel %vm474, %v2877, 0
      %2890 = vmatprep.subr.bf16.mxu0 0
      %2891 = vmatpush1.bf16.msra.mxu0 0
      %2892 = vmatprep.subr.bf16.mxu0 0
      %2893 = vmatpush1.bf16.msra.mxu0 0
      %2894 = vmatprep.subr.bf16.mxu0 0
      %2895 = vmatpush1.bf16.msra.mxu0 0
      %2896 = vmatprep.subr.bf16.mxu0 0
      %2897 = vmatpush1.bf16.msra.mxu0 0
      %2898 = vmatprep.subr.bf16.mxu0 0
      %2899 = vmatpush1.bf16.msra.mxu0 0
      %2900 = vmatprep.subr.bf16.mxu0 0
      %2901 = vmatpush1.bf16.msra.mxu0 0
      %2902 = vmatprep.subr.bf16.mxu0 0
      %2903 = vmatpush1.bf16.msra.mxu0 0
      %2904 = vmatprep.subr.bf16.mxu0 0
      %2905 = vmatpush1.bf16.msra.mxu0 %v2885
      %2906 = vmatprep.subr.bf16.mxu0 0
      %2907 = vmatpush2.bf16.msra.mxu0 0
      %2908 = vmatprep.subr.bf16.mxu0 0
      %2909 = vmatpush2.bf16.msra.mxu0 0
      %2910 = vmatprep.subr.bf16.mxu0 0
      %2911 = vmatpush2.bf16.msra.mxu0 0
      %2912 = vmatprep.subr.bf16.mxu0 0
      %2913 = vmatpush2.bf16.msra.mxu0 0
      %2914 = vmatprep.subr.bf16.mxu0 0
      %2915 = vmatpush2.bf16.msra.mxu0 0
      %2916 = vmatprep.subr.bf16.mxu0 0
      %2917 = vmatpush2.bf16.msra.mxu0 0
      %2918 = vmatprep.subr.bf16.mxu0 0
      %2919 = vmatpush2.bf16.msra.mxu0 0
      %2920 = vmatprep.subr.bf16.mxu0 0
      %2921 = vmatpush2.bf16.msra.mxu0 0
      %2922 = vmatprep.mubr.bf16.mxu0 0
      %2923 = vmatmul.mubr.bf16.gmra.mxu0 %v2888
      %v2924 = vpop.f32.mrf.mxu0
      %v2925 = vadd.f32 0.0, %v2924
      %v2926 = vpop.f32.mrf.mxu0
      %v2927 = vpop.f32.mrf.mxu0
      %v2928 = vadd.f32 0.0, %v2927
      %v2929 = vpop.f32.mrf.mxu0
      %2930 = vdwg.mxu0
      %v2931 = vadd.f32 %v2871, %v2925
      %v2932 = vadd.f32 %v2874, %v2928
      %v2933 = vmul.f32 %v2931, %v446
      %v2934 = vmul.f32 %v2932, %v447
      %v2935 = vadd.f32 %v2767, %v2933
      %v2936 = vadd.f32 %v2768, %v2934
      %v2938 = vlaneseq
      %v2939 = vshrl.u32 %v2938, 7
      %v2940 = vsub.s32 0, %v2939
      %v2941 = vrot.slane %v2412, %v2940
      %v2943 = vadd.f32 %v2935, %v2941
      %v2944 = vadd.f32 %v2936, %v2941
      %v2945 = vpack.c.bf16 %v2944, %v2943
      %v2947 = vsel %vm474, %v2945, 0
      %2949 = vmatprep.subr.bf16.mxu0 0
      %2950 = vmatpush1.bf16.msra.mxu0 0
      %2951 = vmatprep.subr.bf16.mxu0 0
      %2952 = vmatpush1.bf16.msra.mxu0 0
      %2953 = vmatprep.subr.bf16.mxu0 0
      %2954 = vmatpush1.bf16.msra.mxu0 0
      %2955 = vmatprep.subr.bf16.mxu0 0
      %2956 = vmatpush1.bf16.msra.mxu0 0
      %2957 = vmatprep.subr.bf16.mxu0 0
      %2958 = vmatpush1.bf16.msra.mxu0 0
      %2959 = vmatprep.subr.bf16.mxu0 0
      %2960 = vmatpush1.bf16.msra.mxu0 0
      %2961 = vmatprep.subr.bf16.mxu0 0
      %2962 = vmatpush1.bf16.msra.mxu0 0
      %2963 = vmatprep.subr.bf16.mxu0 0
      %2964 = vmatpush1.bf16.msra.mxu0 %v1655
      %2965 = vmatprep.subr.bf16.mxu0 0
      %2966 = vmatpush2.bf16.msra.mxu0 0
      %2967 = vmatprep.subr.bf16.mxu0 0
      %2968 = vmatpush2.bf16.msra.mxu0 0
      %2969 = vmatprep.subr.bf16.mxu0 0
      %2970 = vmatpush2.bf16.msra.mxu0 0
      %2971 = vmatprep.subr.bf16.mxu0 0
      %2972 = vmatpush2.bf16.msra.mxu0 0
      %2973 = vmatprep.subr.bf16.mxu0 0
      %2974 = vmatpush2.bf16.msra.mxu0 0
      %2975 = vmatprep.subr.bf16.mxu0 0
      %2976 = vmatpush2.bf16.msra.mxu0 0
      %2977 = vmatprep.subr.bf16.mxu0 0
      %2978 = vmatpush2.bf16.msra.mxu0 0
      %2979 = vmatprep.subr.bf16.mxu0 0
      %2980 = vmatpush2.bf16.msra.mxu0 0
      %2981 = vmatprep.mubr.bf16.mxu0 0
      %2982 = vmatmul.mubr.bf16.gmra.mxu0 %v2947
      %v2983 = vpop.f32.mrf.mxu0
      %v2984 = vadd.f32 2.0, %v2983
      %v2985 = vpop.f32.mrf.mxu0
      %v2986 = vpop.f32.mrf.mxu0
      %v2987 = vadd.f32 2.0, %v2986
      %v2988 = vpop.f32.mrf.mxu0
      %2989 = vdwg.mxu0
      %v2990 = vmin.f32 %v2984, 0.0
      %v2991 = vmin.f32 %v2987, 0.0
      %v2992 = vand.u32 2147483647, %v2984
      %v2993 = vand.u32 2147483647, %v2987
      %v2994 = vsub.f32 0.0, %v2992
      %v2995 = vsub.f32 0.0, %v2993
      %v2996 = vmul.f32 %v2994, 1.442695
      %v2997 = vpow.pop %v2996
      %v2998 = vmul.f32 %v2995, 1.442695
      %v2999 = vpow.pop %v2998
      %v3000 = vadd.f32 %v2997, 1.0
      %v3001 = vadd.f32 %v2999, 1.0
      %v3002 = vlog2.pop %v3000
      %v3003 = vmul.f32 %v3002, 0.6931472
      %v3004 = vlog2.pop %v3001
      %v3005 = vmul.f32 %v3004, 0.6931472
      %v3006 = vsub.f32 %v2990, %v3003
      %v3007 = vsub.f32 %v2991, %v3005
      %v3008 = vmul.f32 %v3006, 1.442695
      %v3009 = vpow.pop %v3008
      %v3010 = vmul.f32 %v3007, 1.442695
      %v3011 = vpow.pop %v3010
      %v3012 = vmul.f32 %v1805, %v453
      %v3013 = vmul.f32 %v1808, %v453
      %v3014 = vadd.f32 %v1805, %v2943
      %v3015 = vadd.f32 %v1808, %v2944
      %v3016 = vmul.f32 %v3014, %v452
      %v3017 = vmul.f32 %v3015, %v452
      %v3018 = vmul.f32 %v3016, %v3009
      %v3019 = vmul.f32 %v3017, %v3011
      %v3020 = vadd.f32 %v3012, %v3018
      %v3021 = vadd.f32 %v3013, %v3019
      %v3022 = vmul.f32 %v3006, %v452
      %v3023 = vmul.f32 %v3007, %v452
      %v3024 = vsel %vm474, %v3022, 0.0
      %3025 = vadd.xlane.f32.xlu0 %v3024
      %v3026 = vpop.xlane.xlu0 %3025
      %v3027 = vsel %vm474, %v3023, 0.0
      %3028 = vadd.xlane.f32.xlu0 %v3027
      %v3029 = vpop.xlane.xlu0 %3028
      %v3030 = vadd.f32 %v3026, %v3029
      %v3031 = vrot.slane %v3030, 4
      %v3032 = vadd.f32 %v3030, %v3031
      %v3033 = vrot.slane %v3032, 2
      %v3034 = vadd.f32 %v3032, %v3033
      %v3035 = vrot.slane %v3034, 1
      %v3036 = vadd.f32 %v3034, %v3035
      %v3037 = vadd.f32 %v1748, %v3036
      %3038 = vst.msk [vmem:[%s392] sm:$0xff] %vm474, %v3020
      %3039 = vst.msk [vmem:[%s392 + $0x8] sm:$0xff] %vm474, %v3021
      %s3040 = vtos %v3037
      %v3041 = vstv %s3040
      %v3042 = vadd.f32 %v3041, 0.0
      %3043 = vst [vmem:[%s395] sm:$0x1] %v3042
      %p3044 = scmp.lt.s32.totalorder %s23, 1
      %s3045 = scalar_select %p3044, %s23, 1
      %s3046 = smul.addr %s3045, 2
      %s3047 = smul.addr %s3046, 8
      %s3048 = scalar_lea.vmem %s10, %s3047
      %p3049 = scmp.lt.s32.totalorder %s23, 1
      %s3050 = scalar_select %p3049, %s23, 1
      %s3051 = scalar_lea.vmem %s11, %s3050
      // Predicated region
      $region61: #{_lambda_.3} parent=59 // pred_check
        %p3052 = pneg %p256
      $region62: #{_lambda_.3} parent=59 // pred_check_branch
        %3054 = sbr.rel (%p3052) target = $region64
      $region63: #{_lambda_.3} parent=59 // pred_region
        _
      $region64: #{_lambda_.3} parent=59 // pred_fallthru
        _
      // Predicated region
      $region65: #{_lambda_.3} parent=59 // pred_check
        %p3055 = pneg %p282
      $region66: #{_lambda_.3} parent=59 // pred_check_branch
        %3057 = sbr.rel (%p3055) target = $region68
      $region67: #{_lambda_.3} parent=59 // pred_region
        _
      $region68: #{_lambda_.3} parent=59 // pred_fallthru
        _
    $region60: #{_lambda_.3} parent=5 // pred_fallthru
      _
    %p3058 = scmp.le.s32.totalorder 2, %s18
    // Predicated region
    $region69: #{_lambda_.3} parent=5 // pred_check
      %p3059 = pneg %p3058
    $region70: #{_lambda_.3} parent=5 // pred_check_branch
      %3061 = sbr.rel (%p3059) target = $region72
    $region71: #{_lambda_.3} parent=5 // pred_region
      %s3062 = ssub.s32 %s18, 2
      // Predicated region
      $region73: #{_lambda_.3} parent=71 // pred_check
        %p3063 = pneg %p262
      $region74: #{_lambda_.3} parent=71 // pred_check_branch
        %3065 = sbr.rel (%p3063) target = $region76
      $region75: #{_lambda_.3} parent=71 // pred_region
        %p3066 = scmp.lt.s32.totalorder %s24, 1
        %s3067 = scalar_select %p3066, %s24, 1
        %s3068 = smul.addr %s3067, 2
        %s3069 = smul.addr %s3068, 8
        %s3070 = scalar_lea.vmem %s10, %s3069
      $region76: #{_lambda_.3} parent=71 // pred_fallthru
        _
      // Predicated region
      $region77: #{_lambda_.3} parent=71 // pred_check
        %p3071 = pneg %p288
      $region78: #{_lambda_.3} parent=71 // pred_check_branch
        %3073 = sbr.rel (%p3071) target = $region80
      $region79: #{_lambda_.3} parent=71 // pred_region
        %p3074 = scmp.lt.s32.totalorder %s24, 1
        %s3075 = scalar_select %p3074, %s24, 1
        %s3076 = scalar_lea.vmem %s11, %s3075
      $region80: #{_lambda_.3} parent=71 // pred_fallthru
        _
    $region72: #{_lambda_.3} parent=5 // pred_fallthru
      _
  $region6: #{_lambda_.3} parent=0 // loop_footer
    %s22 = sadd.s32 1, %s18
  $region7: #{_lambda_.3} parent=0 // loop_footer_branch
    %17 = sbr.rel target = $region3
  $region8: #{_lambda_.3} parent=0 // loop_exit
    _

// kernel: _lambda_.2
$region0: #{_lambda_.2}
  #allocation0 [shape = 'u32[]', space=smem, size = 0x4, offset = 0x4, fixed_abs, tag = 'smem constant byte address 0x4 - core index']
  #allocation1 [shape = 'u32[144,128]{1,0:T(1,128)}', space=vmem, size = 0x12000, scoped, tag = 'internal scratch']
  %s0 = inlined_call_operand.vmem [shape: f32[2,64,4], index: 0, kind: input, shape index: {}]
  %s1 = inlined_call_operand.vmem [shape: bf16[2,4,4], index: 1, kind: input, shape index: {}]
  %s2 = inlined_call_operand.vmem [shape: f32[2,1,4], index: 2, kind: input, shape index: {}]
  %s3 = inlined_call_operand.vmem [shape: bf16[2,9,4,16], index: 3, kind: input, shape index: {}]
  %s4 = inlined_call_operand.vmem [shape: f32[2,1,16], index: 4, kind: input, shape index: {}]
  %s5 = inlined_call_operand.vmem [shape: bf16[2,16,16], index: 5, kind: input, shape index: {}]
  %s6 = inlined_call_operand.vmem [shape: f32[2,1,16], index: 6, kind: input, shape index: {}]
  %s7 = inlined_call_operand.vmem [shape: bf16[2,9,16,4], index: 7, kind: input, shape index: {}]
  %s8 = inlined_call_operand.vmem [shape: f32[2,1,4], index: 8, kind: input, shape index: {}]
  %s9 = inlined_call_operand.vmem [shape: bf16[4,4], index: 9, kind: input, shape index: {}]
  %s10 = inlined_call_operand.vmem [shape: f32[2,64,4], index: 10, kind: output, shape index: {0}]
  %s11 = inlined_call_operand.vmem [shape: f32[2,1,128], index: 11, kind: output, shape index: {1}]
  %12 = xla_tuple %s10, %s11
  %s13 = sld [smem:[#allocation0]]
  $region81: #{_lambda_.2} parent=0
    _
  %s15 = ssub.s32 1, %s13
  %s16 = scalar_select 0, %s15, %s13
  loop: start=0, step=1, limit=4
  $region2: #{_lambda_.2} parent=0 // loop_pre_header
    _
  $region3: #{_lambda_.2} parent=0 // loop_header
    %s18 = sphi 0, %s22
    %p19 = scmp.ge.s32.totalorder %s18, 4
    %s28 = sphi 0, %s30
    %s31 = sphi 0, %s28
    %s32 = sphi 0, %s31
    %s48 = sphi 0, %s32
    %s52 = sphi 0, %s52
    %s54 = sphi 0, %s52
    %s55 = sphi 0, %s54
    %s69 = sphi 0, %s55
    %s73 = sphi 0, %s73
    %s75 = sphi 0, %s73
    %s76 = sphi 0, %s75
    %s90 = sphi 0, %s76
    %s94 = sphi 0, %s94
    %s96 = sphi 0, %s94
    %s97 = sphi 0, %s96
    %s111 = sphi 0, %s97
    %s115 = sphi 0, %s115
    %s117 = sphi 0, %s115
    %s118 = sphi 0, %s117
    %s132 = sphi 0, %s118
    %s136 = sphi 0, %s136
    %s138 = sphi 0, %s136
    %s139 = sphi 0, %s138
    %s153 = sphi 0, %s139
    %s157 = sphi 0, %s157
    %s159 = sphi 0, %s157
    %s160 = sphi 0, %s159
    %s174 = sphi 0, %s160
    %s178 = sphi 0, %s178
    %s180 = sphi 0, %s178
    %s181 = sphi 0, %s180
    %s195 = sphi 0, %s181
    %s199 = sphi 0, %s199
    %s201 = sphi 0, %s199
    %s202 = sphi 0, %s201
    %s216 = sphi 0, %s202
    %s220 = sphi 0, %s220
    %s222 = sphi 0, %s220
    %s223 = sphi 0, %s222
    %s237 = sphi 0, %s223
    %s243 = sphi 0, %s245
    %s246 = sphi 0, %s243
    %s247 = sphi 0, %s246
    %s263 = sphi 0, %s247
    %s269 = sphi 0, %s271
    %s272 = sphi 0, %s269
    %s273 = sphi 0, %s272
    %s289 = sphi 0, %s273
  $region4: #{_lambda_.2} parent=0 // loop_header_branch
    %21 = sbr.rel (%p19) target = $region8
  $region5: #{_lambda_.2} parent=0 // loop_body
    %s23 = ssub.s32 %s18, 1
    %s24 = ssub.s32 %s18, 2
    %s25 = sadd.s32 %s18, 1
    %s26 = ssub.s32 %s18, %s25
    %p27 = scmp.eq.s32.totalorder %s26, 0
    %s29 = sadd.s32 %s28, 1
    %s30 = scalar_select %p27, %s28, %s29
    %p33 = pneg %p27
    %p34 = scmp.eq.s32.totalorder %s18, 1
    %p35 = por %p33, %p34
    %p36 = scmp.ne.s32.totalorder %s28, %s31
    %p37 = scmp.eq.s32.totalorder %s18, 0
    %p38 = por %p36, %p37
    %p39 = scmp.ne.s32.totalorder %s28, %s31
    %p40 = scmp.eq.s32.totalorder %s23, 1
    %p41 = por %p39, %p40
    %p42 = scmp.ne.s32.totalorder %s31, %s32
    %p43 = scmp.eq.s32.totalorder %s23, 0
    %p44 = por %p42, %p43
    %p45 = scmp.ne.s32.totalorder %s31, %s32
    %p46 = scmp.eq.s32.totalorder %s24, 1
    %p47 = por %p45, %p46
    %p49 = scmp.ne.s32.totalorder %s32, %s48
    %p50 = scmp.eq.s32.totalorder %s24, 0
    %p51 = por %p49, %p50
    %s53 = sadd.s32 %s52, 1
    %p56 = scmp.eq.s32.totalorder %s18, 1
    %p57 = scmp.ne.s32.totalorder %s52, %s54
    %p58 = scmp.eq.s32.totalorder %s18, 0
    %p59 = por %p57, %p58
    %p60 = scmp.ne.s32.totalorder %s52, %s54
    %p61 = scmp.eq.s32.totalorder %s23, 1
    %p62 = por %p60, %p61
    %p63 = scmp.ne.s32.totalorder %s54, %s55
    %p64 = scmp.eq.s32.totalorder %s23, 0
    %p65 = por %p63, %p64
    %p66 = scmp.ne.s32.totalorder %s54, %s55
    %p67 = scmp.eq.s32.totalorder %s24, 1
    %p68 = por %p66, %p67
    %p70 = scmp.ne.s32.totalorder %s55, %s69
    %p71 = scmp.eq.s32.totalorder %s24, 0
    %p72 = por %p70, %p71
    %s74 = sadd.s32 %s73, 1
    %p77 = scmp.eq.s32.totalorder %s18, 1
    %p78 = scmp.ne.s32.totalorder %s73, %s75
    %p79 = scmp.eq.s32.totalorder %s18, 0
    %p80 = por %p78, %p79
    %p81 = scmp.ne.s32.totalorder %s73, %s75
    %p82 = scmp.eq.s32.totalorder %s23, 1
    %p83 = por %p81, %p82
    %p84 = scmp.ne.s32.totalorder %s75, %s76
    %p85 = scmp.eq.s32.totalorder %s23, 0
    %p86 = por %p84, %p85
    %p87 = scmp.ne.s32.totalorder %s75, %s76
    %p88 = scmp.eq.s32.totalorder %s24, 1
    %p89 = por %p87, %p88
    %p91 = scmp.ne.s32.totalorder %s76, %s90
    %p92 = scmp.eq.s32.totalorder %s24, 0
    %p93 = por %p91, %p92
    %s95 = sadd.s32 %s94, 1
    %p98 = scmp.eq.s32.totalorder %s18, 1
    %p99 = scmp.ne.s32.totalorder %s94, %s96
    %p100 = scmp.eq.s32.totalorder %s18, 0
    %p101 = por %p99, %p100
    %p102 = scmp.ne.s32.totalorder %s94, %s96
    %p103 = scmp.eq.s32.totalorder %s23, 1
    %p104 = por %p102, %p103
    %p105 = scmp.ne.s32.totalorder %s96, %s97
    %p106 = scmp.eq.s32.totalorder %s23, 0
    %p107 = por %p105, %p106
    %p108 = scmp.ne.s32.totalorder %s96, %s97
    %p109 = scmp.eq.s32.totalorder %s24, 1
    %p110 = por %p108, %p109
    %p112 = scmp.ne.s32.totalorder %s97, %s111
    %p113 = scmp.eq.s32.totalorder %s24, 0
    %p114 = por %p112, %p113
    %s116 = sadd.s32 %s115, 1
    %p119 = scmp.eq.s32.totalorder %s18, 1
    %p120 = scmp.ne.s32.totalorder %s115, %s117
    %p121 = scmp.eq.s32.totalorder %s18, 0
    %p122 = por %p120, %p121
    %p123 = scmp.ne.s32.totalorder %s115, %s117
    %p124 = scmp.eq.s32.totalorder %s23, 1
    %p125 = por %p123, %p124
    %p126 = scmp.ne.s32.totalorder %s117, %s118
    %p127 = scmp.eq.s32.totalorder %s23, 0
    %p128 = por %p126, %p127
    %p129 = scmp.ne.s32.totalorder %s117, %s118
    %p130 = scmp.eq.s32.totalorder %s24, 1
    %p131 = por %p129, %p130
    %p133 = scmp.ne.s32.totalorder %s118, %s132
    %p134 = scmp.eq.s32.totalorder %s24, 0
    %p135 = por %p133, %p134
    %s137 = sadd.s32 %s136, 1
    %p140 = scmp.eq.s32.totalorder %s18, 1
    %p141 = scmp.ne.s32.totalorder %s136, %s138
    %p142 = scmp.eq.s32.totalorder %s18, 0
    %p143 = por %p141, %p142
    %p144 = scmp.ne.s32.totalorder %s136, %s138
    %p145 = scmp.eq.s32.totalorder %s23, 1
    %p146 = por %p144, %p145
    %p147 = scmp.ne.s32.totalorder %s138, %s139
    %p148 = scmp.eq.s32.totalorder %s23, 0
    %p149 = por %p147, %p148
    %p150 = scmp.ne.s32.totalorder %s138, %s139
    %p151 = scmp.eq.s32.totalorder %s24, 1
    %p152 = por %p150, %p151
    %p154 = scmp.ne.s32.totalorder %s139, %s153
    %p155 = scmp.eq.s32.totalorder %s24, 0
    %p156 = por %p154, %p155
    %s158 = sadd.s32 %s157, 1
    %p161 = scmp.eq.s32.totalorder %s18, 1
    %p162 = scmp.ne.s32.totalorder %s157, %s159
    %p163 = scmp.eq.s32.totalorder %s18, 0
    %p164 = por %p162, %p163
    %p165 = scmp.ne.s32.totalorder %s157, %s159
    %p166 = scmp.eq.s32.totalorder %s23, 1
    %p167 = por %p165, %p166
    %p168 = scmp.ne.s32.totalorder %s159, %s160
    %p169 = scmp.eq.s32.totalorder %s23, 0
    %p170 = por %p168, %p169
    %p171 = scmp.ne.s32.totalorder %s159, %s160
    %p172 = scmp.eq.s32.totalorder %s24, 1
    %p173 = por %p171, %p172
    %p175 = scmp.ne.s32.totalorder %s160, %s174
    %p176 = scmp.eq.s32.totalorder %s24, 0
    %p177 = por %p175, %p176
    %s179 = sadd.s32 %s178, 1
    %p182 = scmp.eq.s32.totalorder %s18, 1
    %p183 = scmp.ne.s32.totalorder %s178, %s180
    %p184 = scmp.eq.s32.totalorder %s18, 0
    %p185 = por %p183, %p184
    %p186 = scmp.ne.s32.totalorder %s178, %s180
    %p187 = scmp.eq.s32.totalorder %s23, 1
    %p188 = por %p186, %p187
    %p189 = scmp.ne.s32.totalorder %s180, %s181
    %p190 = scmp.eq.s32.totalorder %s23, 0
    %p191 = por %p189, %p190
    %p192 = scmp.ne.s32.totalorder %s180, %s181
    %p193 = scmp.eq.s32.totalorder %s24, 1
    %p194 = por %p192, %p193
    %p196 = scmp.ne.s32.totalorder %s181, %s195
    %p197 = scmp.eq.s32.totalorder %s24, 0
    %p198 = por %p196, %p197
    %s200 = sadd.s32 %s199, 1
    %p203 = scmp.eq.s32.totalorder %s18, 1
    %p204 = scmp.ne.s32.totalorder %s199, %s201
    %p205 = scmp.eq.s32.totalorder %s18, 0
    %p206 = por %p204, %p205
    %p207 = scmp.ne.s32.totalorder %s199, %s201
    %p208 = scmp.eq.s32.totalorder %s23, 1
    %p209 = por %p207, %p208
    %p210 = scmp.ne.s32.totalorder %s201, %s202
    %p211 = scmp.eq.s32.totalorder %s23, 0
    %p212 = por %p210, %p211
    %p213 = scmp.ne.s32.totalorder %s201, %s202
    %p214 = scmp.eq.s32.totalorder %s24, 1
    %p215 = por %p213, %p214
    %p217 = scmp.ne.s32.totalorder %s202, %s216
    %p218 = scmp.eq.s32.totalorder %s24, 0
    %p219 = por %p217, %p218
    %s221 = sadd.s32 %s220, 1
    %p224 = scmp.eq.s32.totalorder %s18, 1
    %p225 = scmp.ne.s32.totalorder %s220, %s222
    %p226 = scmp.eq.s32.totalorder %s18, 0
    %p227 = por %p225, %p226
    %p228 = scmp.ne.s32.totalorder %s220, %s222
    %p229 = scmp.eq.s32.totalorder %s23, 1
    %p230 = por %p228, %p229
    %p231 = scmp.ne.s32.totalorder %s222, %s223
    %p232 = scmp.eq.s32.totalorder %s23, 0
    %p233 = por %p231, %p232
    %p234 = scmp.ne.s32.totalorder %s222, %s223
    %p235 = scmp.eq.s32.totalorder %s24, 1
    %p236 = por %p234, %p235
    %p238 = scmp.ne.s32.totalorder %s223, %s237
    %p239 = scmp.eq.s32.totalorder %s24, 0
    %p240 = por %p238, %p239
    %s241 = ssub.s32 %s18, %s25
    %p242 = scmp.eq.s32.totalorder %s241, 0
    %s244 = sadd.s32 %s243, 1
    %s245 = scalar_select %p242, %s243, %s244
    %p248 = pneg %p242
    %p249 = scmp.eq.s32.totalorder %s18, 1
    %p250 = por %p248, %p249
    %p251 = scmp.ne.s32.totalorder %s243, %s246
    %p252 = scmp.eq.s32.totalorder %s18, 0
    %p253 = por %p251, %p252
    %p254 = scmp.ne.s32.totalorder %s243, %s246
    %p255 = scmp.eq.s32.totalorder %s23, 1
    %p256 = por %p254, %p255
    %p257 = scmp.ne.s32.totalorder %s246, %s247
    %p258 = scmp.eq.s32.totalorder %s23, 0
    %p259 = por %p257, %p258
    %p260 = scmp.ne.s32.totalorder %s246, %s247
    %p261 = scmp.eq.s32.totalorder %s24, 1
    %p262 = por %p260, %p261
    %p264 = scmp.ne.s32.totalorder %s247, %s263
    %p265 = scmp.eq.s32.totalorder %s24, 0
    %p266 = por %p264, %p265
    %s267 = ssub.s32 %s18, %s25
    %p268 = scmp.eq.s32.totalorder %s267, 0
    %s270 = sadd.s32 %s269, 1
    %s271 = scalar_select %p268, %s269, %s270
    %p274 = pneg %p268
    %p275 = scmp.eq.s32.totalorder %s18, 1
    %p276 = por %p274, %p275
    %p277 = scmp.ne.s32.totalorder %s269, %s272
    %p278 = scmp.eq.s32.totalorder %s18, 0
    %p279 = por %p277, %p278
    %p280 = scmp.ne.s32.totalorder %s269, %s272
    %p281 = scmp.eq.s32.totalorder %s23, 1
    %p282 = por %p280, %p281
    %p283 = scmp.ne.s32.totalorder %s272, %s273
    %p284 = scmp.eq.s32.totalorder %s23, 0
    %p285 = por %p283, %p284
    %p286 = scmp.ne.s32.totalorder %s272, %s273
    %p287 = scmp.eq.s32.totalorder %s24, 1
    %p288 = por %p286, %p287
    %p290 = scmp.ne.s32.totalorder %s273, %s289
    %p291 = scmp.eq.s32.totalorder %s24, 0
    %p292 = por %p290, %p291
    %p293 = scmp.le.s32.totalorder 1, %s18
    %p294 = scmp.lt.s32.totalorder %s18, 3
    %p295 = pnand %p293, %p294
    %p296 = pneg %p295
    // Predicated region
    $region9: #{_lambda_.2} parent=5 // pred_check
      _
    $region10: #{_lambda_.2} parent=5 // pred_check_branch
      %298 = sbr.rel (%p295) target = $region12
    $region11: #{_lambda_.2} parent=5 // pred_region
      %s299 = ssub.s32 %s18, 1
      // Predicated region
      $region13: #{_lambda_.2} parent=11 // pred_check
        %p300 = pneg %p65
      $region14: #{_lambda_.2} parent=11 // pred_check_branch
        %302 = sbr.rel (%p300) target = $region16
      $region15: #{_lambda_.2} parent=11 // pred_region
        _
      $region16: #{_lambda_.2} parent=11 // pred_fallthru
        _
      // Predicated region
      $region17: #{_lambda_.2} parent=11 // pred_check
        %p303 = pneg %p86
      $region18: #{_lambda_.2} parent=11 // pred_check_branch
        %305 = sbr.rel (%p303) target = $region20
      $region19: #{_lambda_.2} parent=11 // pred_region
        _
      $region20: #{_lambda_.2} parent=11 // pred_fallthru
        _
      // Predicated region
      $region21: #{_lambda_.2} parent=11 // pred_check
        %p306 = pneg %p107
      $region22: #{_lambda_.2} parent=11 // pred_check_branch
        %308 = sbr.rel (%p306) target = $region24
      $region23: #{_lambda_.2} parent=11 // pred_region
        _
      $region24: #{_lambda_.2} parent=11 // pred_fallthru
        _
      // Predicated region
      $region25: #{_lambda_.2} parent=11 // pred_check
        %p309 = pneg %p128
      $region26: #{_lambda_.2} parent=11 // pred_check_branch
        %311 = sbr.rel (%p309) target = $region28
      $region27: #{_lambda_.2} parent=11 // pred_region
        _
      $region28: #{_lambda_.2} parent=11 // pred_fallthru
        _
      // Predicated region
      $region29: #{_lambda_.2} parent=11 // pred_check
        %p312 = pneg %p149
      $region30: #{_lambda_.2} parent=11 // pred_check_branch
        %314 = sbr.rel (%p312) target = $region32
      $region31: #{_lambda_.2} parent=11 // pred_region
        _
      $region32: #{_lambda_.2} parent=11 // pred_fallthru
        _
      // Predicated region
      $region33: #{_lambda_.2} parent=11 // pred_check
        %p315 = pneg %p170
      $region34: #{_lambda_.2} parent=11 // pred_check_branch
        %317 = sbr.rel (%p315) target = $region36
      $region35: #{_lambda_.2} parent=11 // pred_region
        _
      $region36: #{_lambda_.2} parent=11 // pred_fallthru
        _
      // Predicated region
      $region37: #{_lambda_.2} parent=11 // pred_check
        %p318 = pneg %p191
      $region38: #{_lambda_.2} parent=11 // pred_check_branch
        %320 = sbr.rel (%p318) target = $region40
      $region39: #{_lambda_.2} parent=11 // pred_region
        _
      $region40: #{_lambda_.2} parent=11 // pred_fallthru
        _
      // Predicated region
      $region41: #{_lambda_.2} parent=11 // pred_check
        %p321 = pneg %p212
      $region42: #{_lambda_.2} parent=11 // pred_check_branch
        %323 = sbr.rel (%p321) target = $region44
      $region43: #{_lambda_.2} parent=11 // pred_region
        _
      $region44: #{_lambda_.2} parent=11 // pred_fallthru
        _
      // Predicated region
      $region45: #{_lambda_.2} parent=11 // pred_check
        %p324 = pneg %p233
      $region46: #{_lambda_.2} parent=11 // pred_check_branch
        %326 = sbr.rel (%p324) target = $region48
      $region47: #{_lambda_.2} parent=11 // pred_region
        _
      $region48: #{_lambda_.2} parent=11 // pred_fallthru
        _
    $region12: #{_lambda_.2} parent=5 // pred_fallthru
      _
    %p327 = scmp.lt.s32.totalorder %s18, 2
    // Predicated region
    $region49: #{_lambda_.2} parent=5 // pred_check
      %p328 = pneg %p327
    $region50: #{_lambda_.2} parent=5 // pred_check_branch
      %330 = sbr.rel (%p328) target = $region52
    $region51: #{_lambda_.2} parent=5 // pred_region
      // Predicated region
      $region53: #{_lambda_.2} parent=51 // pred_check
        %p331 = pneg %p38
      $region54: #{_lambda_.2} parent=51 // pred_check_branch
        %333 = sbr.rel (%p331) target = $region56
      $region55: #{_lambda_.2} parent=51 // pred_region
        %p334 = scmp.lt.s32.totalorder %s18, 1
        %s335 = scalar_select %p334, %s18, 1
        %s336 = smul.addr %s335, 8
        %s337 = smul.addr %s336, 8
        %s338 = scalar_lea.vmem %s0, %s337
      $region56: #{_lambda_.2} parent=51 // pred_fallthru
        _
    $region52: #{_lambda_.2} parent=5 // pred_fallthru
      _
    %p339 = scmp.le.s32.totalorder 1, %s18
    %p340 = scmp.lt.s32.totalorder %s18, 3
    %p341 = pnand %p339, %p340
    %p342 = pneg %p341
    // Predicated region
    $region57: #{_lambda_.2} parent=5 // pred_check
      _
    $region58: #{_lambda_.2} parent=5 // pred_check_branch
      %344 = sbr.rel (%p341) target = $region60
    $region59: #{_lambda_.2} parent=5 // pred_region
      %s345 = ssub.s32 %s18, 1
      %p346 = scmp.lt.s32.totalorder %s23, 1
      %s347 = scalar_select %p346, %s23, 1
      %s348 = smul.addr %s347, 8
      %s349 = smul.addr %s348, 8
      %s350 = scalar_lea.vmem %s0, %s349
      %p351 = pneg %p44
      %p352 = pneg %p41
      %p353 = pneg %p65
      %p354 = pneg %p62
      %p355 = pneg %p86
      %p356 = pneg %p83
      %p357 = pneg %p107
      %p358 = pneg %p104
      %p359 = pneg %p128
      %p360 = pneg %p125
      %p361 = pneg %p149
      %p362 = pneg %p146
      %p363 = pneg %p170
      %p364 = pneg %p167
      %p365 = pneg %p191
      %p366 = pneg %p188
      %p367 = pneg %p212
      %p368 = pneg %p209
      %p369 = pneg %p233
      %p370 = pneg %p230
      %p371 = pneg %p259
      %p372 = pneg %p256
      %p373 = scmp.lt.s32.totalorder %s23, 1
      %s374 = scalar_select %p373, %s23, 1
      %s375 = smul.addr %s374, 8
      %s376 = smul.addr %s375, 8
      %s377 = scalar_lea.vmem %s10, %s376
      %p378 = pneg %p285
      %p379 = pneg %p282
      %p380 = scmp.lt.s32.totalorder %s23, 1
      %s381 = scalar_select %p380, %s23, 1
      %s382 = scalar_lea.vmem %s11, %s381
      %p383 = scmp.lt.s32.totalorder %s23, 1
      %s384 = scalar_select %p383, %s23, 1
      %s385 = smul.addr %s384, 8
      %s386 = smul.addr %s385, 8
      %s387 = scalar_lea.vmem %s0, %s386
      %p388 = scmp.lt.s32.totalorder %s23, 1
      %s389 = scalar_select %p388, %s23, 1
      %s390 = smul.addr %s389, 8
      %s391 = smul.addr %s390, 8
      %s392 = scalar_lea.vmem %s10, %s391
      %p393 = scmp.lt.s32.totalorder %s23, 1
      %s394 = scalar_select %p393, %s23, 1
      %s395 = scalar_lea.vmem %s11, %s394
      %v397 = vlaneseq
      %v398 = vshrl.u32 %v397, 7
      %v399 = vadd.s32 %v398, 8
      %v400 = vadd.s32 %v398, 16
      %v401 = vadd.s32 %v398, 24
      %v402 = vadd.s32 %v398, 32
      %v403 = vadd.s32 %v398, 40
      %v404 = vadd.s32 %v398, 48
      %v405 = vadd.s32 %v398, 56
      %vm406 = vcmp.lt.s32.totalorder %v398, 0
      %v407 = vsub.s32 0, %v398
      %v408 = vsel %vm406, %v407, %v398
      %v409 = vshrl.u32 %v408, 3
      %v410 = vand.u32 %v408, 7
      %v411 = vsub.s32 0, %v410
      %v412 = vsel %vm406, %v411, %v410
      %vm413 = vcmp.lt.s32.totalorder %v399, 0
      %v414 = vsub.s32 0, %v399
      %v415 = vsel %vm413, %v414, %v399
      %v416 = vshrl.u32 %v415, 3
      %v417 = vand.u32 %v415, 7
      %v418 = vsub.s32 0, %v417
      %v419 = vsel %vm413, %v418, %v417
      %vm420 = vcmp.lt.s32.totalorder %v400, 0
      %v421 = vsub.s32 0, %v400
      %v422 = vsel %vm420, %v421, %v400
      %v423 = vshrl.u32 %v422, 3
      %v424 = vand.u32 %v422, 7
      %v425 = vsub.s32 0, %v424
      %v426 = vsel %vm420, %v425, %v424
      %vm427 = vcmp.lt.s32.totalorder %v401, 0
      %v428 = vsub.s32 0, %v401
      %v429 = vsel %vm427, %v428, %v401
      %v430 = vshrl.u32 %v429, 3
      %v431 = vand.u32 %v429, 7
      %v432 = vsub.s32 0, %v431
      %v433 = vsel %vm427, %v432, %v431
      %vm434 = vcmp.lt.s32.totalorder %v402, 0
      %v435 = vsub.s32 0, %v402
      %v436 = vsel %vm434, %v435, %v402
      %v437 = vshrl.u32 %v436, 3
      %v438 = vand.u32 %v436, 7
      %v439 = vsub.s32 0, %v438
      %v440 = vsel %vm434, %v439, %v438
      %vm441 = vcmp.lt.s32.totalorder %v403, 0
      %v442 = vsub.s32 0, %v403
      %v443 = vsel %vm441, %v442, %v403
      %v444 = vshrl.u32 %v443, 3
      %v445 = vand.u32 %v443, 7
      %v446 = vsub.s32 0, %v445
      %v447 = vsel %vm441, %v446, %v445
      %vm448 = vcmp.lt.s32.totalorder %v404, 0
      %v449 = vsub.s32 0, %v404
      %v450 = vsel %vm448, %v449, %v404
      %v451 = vshrl.u32 %v450, 3
      %v452 = vand.u32 %v450, 7
      %v453 = vsub.s32 0, %v452
      %v454 = vsel %vm448, %v453, %v452
      %vm455 = vcmp.lt.s32.totalorder %v405, 0
      %v456 = vsub.s32 0, %v405
      %v457 = vsel %vm455, %v456, %v405
      %v458 = vshrl.u32 %v457, 3
      %v459 = vand.u32 %v457, 7
      %v460 = vsub.s32 0, %v459
      %v461 = vsel %vm455, %v460, %v459
      %vm462 = vcmp.ne.s32.totalorder %v412, 0
      %vm463 = vcmp.ne.s32.totalorder %v419, 0
      %vm464 = vcmp.ne.s32.totalorder %v426, 0
      %vm465 = vcmp.ne.s32.totalorder %v433, 0
      %vm466 = vcmp.ne.s32.totalorder %v440, 0
      %vm467 = vcmp.ne.s32.totalorder %v447, 0
      %vm468 = vcmp.ne.s32.totalorder %v454, 0
      %vm469 = vcmp.ne.s32.totalorder %v461, 0
      %vm470 = vcmp.lt.s32.totalorder %v412, 0
      %vm471 = vcmp.lt.s32.totalorder %v419, 0
      %vm472 = vcmp.lt.s32.totalorder %v426, 0
      %vm473 = vcmp.lt.s32.totalorder %v433, 0
      %vm474 = vcmp.lt.s32.totalorder %v440, 0
      %vm475 = vcmp.lt.s32.totalorder %v447, 0
      %vm476 = vcmp.lt.s32.totalorder %v454, 0
      %vm477 = vcmp.lt.s32.totalorder %v461, 0
      %vm478 = vmand %vm470, %vm462
      %vm479 = vmand %vm471, %vm463
      %vm480 = vmand %vm472, %vm464
      %vm481 = vmand %vm473, %vm465
      %vm482 = vmand %vm474, %vm466
      %vm483 = vmand %vm475, %vm467
      %vm484 = vmand %vm476, %vm468
      %vm485 = vmand %vm477, %vm469
      %v486 = vadd.s32 %v412, 8
      %v487 = vadd.s32 %v419, 8
      %v488 = vadd.s32 %v426, 8
      %v489 = vadd.s32 %v433, 8
      %v490 = vadd.s32 %v440, 8
      %v491 = vadd.s32 %v447, 8
      %v492 = vadd.s32 %v454, 8
      %v493 = vadd.s32 %v461, 8
      %v494 = vsel %vm478, %v486, %v412
      %v495 = vsel %vm479, %v487, %v419
      %v496 = vsel %vm480, %v488, %v426
      %v497 = vsel %vm481, %v489, %v433
      %v498 = vsel %vm482, %v490, %v440
      %v499 = vsel %vm483, %v491, %v447
      %v500 = vsel %vm484, %v492, %v454
      %v501 = vsel %vm485, %v493, %v461
      %vm502 = vcmp.ne.s32.totalorder %v494, 0
      %vm503 = vcmp.ne.s32.totalorder %v495, 0
      %vm504 = vcmp.ne.s32.totalorder %v496, 0
      %vm505 = vcmp.ne.s32.totalorder %v497, 0
      %vm506 = vcmp.ne.s32.totalorder %v498, 0
      %vm507 = vcmp.ne.s32.totalorder %v499, 0
      %vm508 = vcmp.ne.s32.totalorder %v500, 0
      %vm509 = vcmp.ne.s32.totalorder %v501, 0
      %v510 = vsel %vm502, 1, 0
      %v511 = vsel %vm503, 1, 0
      %v512 = vsel %vm504, 1, 0
      %v513 = vsel %vm505, 1, 0
      %v514 = vsel %vm506, 1, 0
      %v515 = vsel %vm507, 1, 0
      %v516 = vsel %vm508, 1, 0
      %v517 = vsel %vm509, 1, 0
      %v518 = vcvt.s32.f32 %v510
      %v519 = vcvt.s32.f32 %v511
      %v520 = vcvt.s32.f32 %v512
      %v521 = vcvt.s32.f32 %v513
      %v522 = vcvt.s32.f32 %v514
      %v523 = vcvt.s32.f32 %v515
      %v524 = vcvt.s32.f32 %v516
      %v525 = vcvt.s32.f32 %v517
      %vm526 = vcmp.ne.s32.totalorder %v494, 7
      %vm527 = vcmp.ne.s32.totalorder %v495, 7
      %vm528 = vcmp.ne.s32.totalorder %v496, 7
      %vm529 = vcmp.ne.s32.totalorder %v497, 7
      %vm530 = vcmp.ne.s32.totalorder %v498, 7
      %vm531 = vcmp.ne.s32.totalorder %v499, 7
      %vm532 = vcmp.ne.s32.totalorder %v500, 7
      %vm533 = vcmp.ne.s32.totalorder %v501, 7
      %v534 = vsel %vm526, 1, 0
      %v535 = vsel %vm527, 1, 0
      %v536 = vsel %vm528, 1, 0
      %v537 = vsel %vm529, 1, 0
      %v538 = vsel %vm530, 1, 0
      %v539 = vsel %vm531, 1, 0
      %v540 = vsel %vm532, 1, 0
      %v541 = vsel %vm533, 1, 0
      %v542 = vcvt.s32.f32 %v534
      %v543 = vcvt.s32.f32 %v535
      %v544 = vcvt.s32.f32 %v536
      %v545 = vcvt.s32.f32 %v537
      %v546 = vcvt.s32.f32 %v538
      %v547 = vcvt.s32.f32 %v539
      %v548 = vcvt.s32.f32 %v540
      %v549 = vcvt.s32.f32 %v541
      %vm550 = vcmp.ge.s32.totalorder %v398, 8
      %vm551 = vcmp.ge.s32.totalorder %v399, 8
      %vm552 = vcmp.ge.s32.totalorder %v400, 8
      %vm553 = vcmp.ge.s32.totalorder %v401, 8
      %vm554 = vcmp.ge.s32.totalorder %v402, 8
      %vm555 = vcmp.ge.s32.totalorder %v403, 8
      %vm556 = vcmp.ge.s32.totalorder %v404, 8
      %vm557 = vcmp.ge.s32.totalorder %v405, 8
      %v558 = vsel %vm550, 1, 0
      %v559 = vsel %vm551, 1, 0
      %v560 = vsel %vm552, 1, 0
      %v561 = vsel %vm553, 1, 0
      %v562 = vsel %vm554, 1, 0
      %v563 = vsel %vm555, 1, 0
      %v564 = vsel %vm556, 1, 0
      %v565 = vsel %vm557, 1, 0
      %v566 = vcvt.s32.f32 %v558
      %v567 = vcvt.s32.f32 %v559
      %v568 = vcvt.s32.f32 %v560
      %v569 = vcvt.s32.f32 %v561
      %v570 = vcvt.s32.f32 %v562
      %v571 = vcvt.s32.f32 %v563
      %v572 = vcvt.s32.f32 %v564
      %v573 = vcvt.s32.f32 %v565
      %vm574 = vcmp.lt.s32.totalorder %v398, 56
      %vm575 = vcmp.lt.s32.totalorder %v399, 56
      %vm576 = vcmp.lt.s32.totalorder %v400, 56
      %vm577 = vcmp.lt.s32.totalorder %v401, 56
      %vm578 = vcmp.lt.s32.totalorder %v402, 56
      %vm579 = vcmp.lt.s32.totalorder %v403, 56
      %vm580 = vcmp.lt.s32.totalorder %v404, 56
      %vm581 = vcmp.lt.s32.totalorder %v405, 56
      %v582 = vsel %vm574, 1, 0
      %v583 = vsel %vm575, 1, 0
      %v584 = vsel %vm576, 1, 0
      %v585 = vsel %vm577, 1, 0
      %v586 = vsel %vm578, 1, 0
      %v587 = vsel %vm579, 1, 0
      %v588 = vsel %vm580, 1, 0
      %v589 = vsel %vm581, 1, 0
      %v590 = vcvt.s32.f32 %v582
      %v591 = vcvt.s32.f32 %v583
      %v592 = vcvt.s32.f32 %v584
      %v593 = vcvt.s32.f32 %v585
      %v594 = vcvt.s32.f32 %v586
      %v595 = vcvt.s32.f32 %v587
      %v596 = vcvt.s32.f32 %v588
      %v597 = vcvt.s32.f32 %v589
      %v598 = vlaneseq
      %v599 = vand.u32 %v598, 127
      %vm600 = vcmp.ge.s32.totalorder %v599, 2
      %v601 = vsel %vm600, 1, 0
      %v602 = vcvt.s32.f32 %v601
      %v603 = vsub.f32 1.0, %v602
      %v604 = vld [vmem:[%s9] sm:$0x3]
      %v605 = vld [vmem:[%s387] sm:$0xff]
      %v606 = vld [vmem:[%s387 + $0x8] sm:$0xff]
      %v607 = vld [vmem:[%s387 + $0x10] sm:$0xff]
      %v608 = vld [vmem:[%s387 + $0x18] sm:$0xff]
      %v609 = vld [vmem:[%s387 + $0x20] sm:$0xff]
      %v610 = vld [vmem:[%s387 + $0x28] sm:$0xff]
      %v611 = vld [vmem:[%s387 + $0x30] sm:$0xff]
      %v612 = vld [vmem:[%s387 + $0x38] sm:$0xff]
      %v613 = vpack.c.bf16 %v606, %v605
      %v614 = vpack.c.bf16 %v608, %v607
      %v615 = vpack.c.bf16 %v610, %v609
      %v616 = vpack.c.bf16 %v612, %v611
      %v617 = vld [vmem:[%s1] sm:$0x3]
      %v618 = vld [vmem:[%s2] sm:$0x1]
      %v620 = vlaneseq
      %v621 = vshrl.u32 %v620, 7
      %v622 = vsub.s32 0, %v621
      %v623 = vrot.slane %v618, %v622
      %vm625 = vcmask 31744
      %v627 = vsel %vm625, %v613, 0
      %v630 = vsel %vm625, %v614, 0
      %v633 = vsel %vm625, %v615, 0
      %v636 = vsel %vm625, %v616, 0
      %vm638 = vcmask 1041408
      %v640 = vsel %vm638, %v617, 0
      %642 = vmatprep.subr.bf16.mxu0 0
      %643 = vmatpush1.bf16.msra.mxu0 0
      %644 = vmatprep.subr.bf16.mxu0 0
      %645 = vmatpush1.bf16.msra.mxu0 0
      %646 = vmatprep.subr.bf16.mxu0 0
      %647 = vmatpush1.bf16.msra.mxu0 0
      %648 = vmatprep.subr.bf16.mxu0 0
      %649 = vmatpush1.bf16.msra.mxu0 0
      %650 = vmatprep.subr.bf16.mxu0 0
      %651 = vmatpush1.bf16.msra.mxu0 0
      %652 = vmatprep.subr.bf16.mxu0 0
      %653 = vmatpush1.bf16.msra.mxu0 0
      %654 = vmatprep.subr.bf16.mxu0 0
      %655 = vmatpush1.bf16.msra.mxu0 0
      %656 = vmatprep.subr.bf16.mxu0 0
      %657 = vmatpush1.bf16.msra.mxu0 %v640
      %658 = vmatprep.subr.bf16.mxu0 0
      %659 = vmatpush2.bf16.msra.mxu0 0
      %660 = vmatprep.subr.bf16.mxu0 0
      %661 = vmatpush2.bf16.msra.mxu0 0
      %662 = vmatprep.subr.bf16.mxu0 0
      %663 = vmatpush2.bf16.msra.mxu0 0
      %664 = vmatprep.subr.bf16.mxu0 0
      %665 = vmatpush2.bf16.msra.mxu0 0
      %666 = vmatprep.subr.bf16.mxu0 0
      %667 = vmatpush2.bf16.msra.mxu0 0
      %668 = vmatprep.subr.bf16.mxu0 0
      %669 = vmatpush2.bf16.msra.mxu0 0
      %670 = vmatprep.subr.bf16.mxu0 0
      %671 = vmatpush2.bf16.msra.mxu0 0
      %672 = vmatprep.subr.bf16.mxu0 0
      %673 = vmatpush2.bf16.msra.mxu0 0
      %674 = vmatprep.mubr.bf16.mxu0 0
      %675 = vmatmul.mubr.bf16.gmra.mxu0 %v627
      %v676 = vpop.f32.mrf.mxu0
      %v677 = vadd.f32 %v623, %v676
      %v678 = vpop.f32.mrf.mxu0
      %v679 = vpop.f32.mrf.mxu0
      %v680 = vadd.f32 %v623, %v679
      %v681 = vpop.f32.mrf.mxu0
      %682 = vmatprep.mubr.bf16.mxu0 0
      %683 = vmatmul.mubr.bf16.gmra.mxu0 %v630
      %v684 = vpop.f32.mrf.mxu0
      %v685 = vadd.f32 %v623, %v684
      %v686 = vpop.f32.mrf.mxu0
      %v687 = vpop.f32.mrf.mxu0
      %v688 = vadd.f32 %v623, %v687
      %v689 = vpop.f32.mrf.mxu0
      %690 = vmatprep.mubr.bf16.mxu0 0
      %691 = vmatmul.mubr.bf16.gmra.mxu0 %v633
      %v692 = vpop.f32.mrf.mxu0
      %v693 = vadd.f32 %v623, %v692
      %v694 = vpop.f32.mrf.mxu0
      %v695 = vpop.f32.mrf.mxu0
      %v696 = vadd.f32 %v623, %v695
      %v697 = vpop.f32.mrf.mxu0
      %698 = vmatprep.mubr.bf16.mxu0 0
      %699 = vmatmul.mubr.bf16.gmra.mxu0 %v636
      %v700 = vpop.f32.mrf.mxu0
      %v701 = vadd.f32 %v623, %v700
      %v702 = vpop.f32.mrf.mxu0
      %v703 = vpop.f32.mrf.mxu0
      %v704 = vadd.f32 %v623, %v703
      %v705 = vpop.f32.mrf.mxu0
      %706 = vdwg.mxu0
      %v707 = vld [vmem:[%s4] sm:$0x1]
      %v708 = vrot.slane %v677, 7
      %v709 = vrot.slane %v680, 7
      %v710 = vrot.slane %v685, 7
      %v711 = vrot.slane %v688, 7
      %v712 = vrot.slane %v693, 7
      %v713 = vrot.slane %v696, 7
      %v714 = vrot.slane %v701, 7
      %v715 = vrot.slane %v704, 7
      %vm716 = vcmp.lt.s32.totalorder %v398, 1
      %v717 = vsel %vm716, %v714, %v715
      %v718 = vsel %vm716, %v713, %v714
      %v719 = vsel %vm716, %v712, %v713
      %v720 = vsel %vm716, %v711, %v712
      %v721 = vsel %vm716, %v710, %v711
      %v722 = vsel %vm716, %v709, %v710
      %v723 = vsel %vm716, %v708, %v709
      %v724 = vsel %vm716, %v715, %v708
      %v725 = vmul.f32 %v724, %v518
      %v726 = vmul.f32 %v723, %v519
      %v727 = vmul.f32 %v722, %v520
      %v728 = vmul.f32 %v721, %v521
      %v729 = vmul.f32 %v720, %v522
      %v730 = vmul.f32 %v719, %v523
      %v731 = vmul.f32 %v718, %v524
      %v732 = vmul.f32 %v717, %v525
      %v733 = vrot.slane %v677, 1
      %v734 = vrot.slane %v680, 1
      %v735 = vrot.slane %v685, 1
      %v736 = vrot.slane %v688, 1
      %v737 = vrot.slane %v693, 1
      %v738 = vrot.slane %v696, 1
      %v739 = vrot.slane %v701, 1
      %v740 = vrot.slane %v704, 1
      %vm741 = vcmp.lt.s32.totalorder %v398, 7
      %v742 = vsel %vm741, %v739, %v740
      %v743 = vsel %vm741, %v738, %v739
      %v744 = vsel %vm741, %v737, %v738
      %v745 = vsel %vm741, %v736, %v737
      %v746 = vsel %vm741, %v735, %v736
      %v747 = vsel %vm741, %v734, %v735
      %v748 = vsel %vm741, %v733, %v734
      %v749 = vsel %vm741, %v740, %v733
      %v750 = vmul.f32 %v748, %v542
      %v751 = vmul.f32 %v747, %v543
      %v752 = vmul.f32 %v746, %v544
      %v753 = vmul.f32 %v745, %v545
      %v754 = vmul.f32 %v744, %v546
      %v755 = vmul.f32 %v743, %v547
      %v756 = vmul.f32 %v742, %v548
      %v757 = vmul.f32 %v749, %v549
      %v758 = vpack.c.bf16 %v725, %v732
      %v759 = vpack.c.bf16 %v727, %v726
      %v760 = vpack.c.bf16 %v729, %v728
      %v761 = vpack.c.bf16 %v731, %v730
      %v762 = vld [vmem:[%s3] sm:$0x3]
      %v763 = vpack.c.bf16 %v677, %v704
      %v764 = vpack.c.bf16 %v685, %v680
      %v765 = vpack.c.bf16 %v693, %v688
      %v766 = vpack.c.bf16 %v701, %v696
      %s767 = scalar_lea.vmem %s3, 2
      %v768 = vld [vmem:[%s767] sm:$0x3]
      %v770 = vsel %vm625, %v763, 0
      %v773 = vsel %vm625, %v764, 0
      %v776 = vsel %vm625, %v765, 0
      %v779 = vsel %vm625, %v766, 0
      %v782 = vsel %vm638, %v768, 0
      %784 = vmatprep.subr.bf16.mxu0 0
      %785 = vmatpush1.bf16.msra.mxu0 0
      %786 = vmatprep.subr.bf16.mxu0 0
      %787 = vmatpush1.bf16.msra.mxu0 0
      %788 = vmatprep.subr.bf16.mxu0 0
      %789 = vmatpush1.bf16.msra.mxu0 0
      %790 = vmatprep.subr.bf16.mxu0 0
      %791 = vmatpush1.bf16.msra.mxu0 0
      %792 = vmatprep.subr.bf16.mxu0 0
      %793 = vmatpush1.bf16.msra.mxu0 0
      %794 = vmatprep.subr.bf16.mxu0 0
      %795 = vmatpush1.bf16.msra.mxu0 0
      %796 = vmatprep.subr.bf16.mxu0 0
      %797 = vmatpush1.bf16.msra.mxu0 0
      %798 = vmatprep.subr.bf16.mxu0 0
      %799 = vmatpush1.bf16.msra.mxu0 %v782
      %800 = vmatprep.subr.bf16.mxu0 0
      %801 = vmatpush2.bf16.msra.mxu0 0
      %802 = vmatprep.subr.bf16.mxu0 0
      %803 = vmatpush2.bf16.msra.mxu0 0
      %804 = vmatprep.subr.bf16.mxu0 0
      %805 = vmatpush2.bf16.msra.mxu0 0
      %806 = vmatprep.subr.bf16.mxu0 0
      %807 = vmatpush2.bf16.msra.mxu0 0
      %808 = vmatprep.subr.bf16.mxu0 0
      %809 = vmatpush2.bf16.msra.mxu0 0
      %810 = vmatprep.subr.bf16.mxu0 0
      %811 = vmatpush2.bf16.msra.mxu0 0
      %812 = vmatprep.subr.bf16.mxu0 0
      %813 = vmatpush2.bf16.msra.mxu0 0
      %814 = vmatprep.subr.bf16.mxu0 0
      %815 = vmatpush2.bf16.msra.mxu0 0
      %816 = vmatprep.mubr.bf16.mxu0 0
      %817 = vmatmul.mubr.bf16.gmra.mxu0 %v770
      %v818 = vpop.f32.mrf.mxu0
      %v819 = vadd.f32 0.0, %v818
      %v820 = vpop.f32.mrf.mxu0
      %v821 = vpop.f32.mrf.mxu0
      %v822 = vadd.f32 0.0, %v821
      %v823 = vpop.f32.mrf.mxu0
      %824 = vmatprep.mubr.bf16.mxu0 0
      %825 = vmatmul.mubr.bf16.gmra.mxu0 %v773
      %v826 = vpop.f32.mrf.mxu0
      %v827 = vadd.f32 0.0, %v826
      %v828 = vpop.f32.mrf.mxu0
      %v829 = vpop.f32.mrf.mxu0
      %v830 = vadd.f32 0.0, %v829
      %v831 = vpop.f32.mrf.mxu0
      %832 = vmatprep.mubr.bf16.mxu0 0
      %833 = vmatmul.mubr.bf16.gmra.mxu0 %v776
      %v834 = vpop.f32.mrf.mxu0
      %v835 = vadd.f32 0.0, %v834
      %v836 = vpop.f32.mrf.mxu0
      %v837 = vpop.f32.mrf.mxu0
      %v838 = vadd.f32 0.0, %v837
      %v839 = vpop.f32.mrf.mxu0
      %840 = vmatprep.mubr.bf16.mxu0 0
      %841 = vmatmul.mubr.bf16.gmra.mxu0 %v779
      %v842 = vpop.f32.mrf.mxu0
      %v843 = vadd.f32 0.0, %v842
      %v844 = vpop.f32.mrf.mxu0
      %v845 = vpop.f32.mrf.mxu0
      %v846 = vadd.f32 0.0, %v845
      %v847 = vpop.f32.mrf.mxu0
      %848 = vdwg.mxu0
      %v850 = vsel %vm625, %v758, 0
      %v853 = vsel %vm625, %v759, 0
      %v856 = vsel %vm625, %v760, 0
      %v859 = vsel %vm625, %v761, 0
      %v862 = vsel %vm638, %v762, 0
      %864 = vmatprep.subr.bf16.mxu0 0
      %865 = vmatpush1.bf16.msra.mxu0 0
      %866 = vmatprep.subr.bf16.mxu0 0
      %867 = vmatpush1.bf16.msra.mxu0 0
      %868 = vmatprep.subr.bf16.mxu0 0
      %869 = vmatpush1.bf16.msra.mxu0 0
      %870 = vmatprep.subr.bf16.mxu0 0
      %871 = vmatpush1.bf16.msra.mxu0 0
      %872 = vmatprep.subr.bf16.mxu0 0
      %873 = vmatpush1.bf16.msra.mxu0 0
      %874 = vmatprep.subr.bf16.mxu0 0
      %875 = vmatpush1.bf16.msra.mxu0 0
      %876 = vmatprep.subr.bf16.mxu0 0
      %877 = vmatpush1.bf16.msra.mxu0 0
      %878 = vmatprep.subr.bf16.mxu0 0
      %879 = vmatpush1.bf16.msra.mxu0 %v862
      %880 = vmatprep.subr.bf16.mxu0 0
      %881 = vmatpush2.bf16.msra.mxu0 0
      %882 = vmatprep.subr.bf16.mxu0 0
      %883 = vmatpush2.bf16.msra.mxu0 0
      %884 = vmatprep.subr.bf16.mxu0 0
      %885 = vmatpush2.bf16.msra.mxu0 0
      %886 = vmatprep.subr.bf16.mxu0 0
      %887 = vmatpush2.bf16.msra.mxu0 0
      %888 = vmatprep.subr.bf16.mxu0 0
      %889 = vmatpush2.bf16.msra.mxu0 0
      %890 = vmatprep.subr.bf16.mxu0 0
      %891 = vmatpush2.bf16.msra.mxu0 0
      %892 = vmatprep.subr.bf16.mxu0 0
      %893 = vmatpush2.bf16.msra.mxu0 0
      %894 = vmatprep.subr.bf16.mxu0 0
      %895 = vmatpush2.bf16.msra.mxu0 0
      %896 = vmatprep.mubr.bf16.mxu0 0
      %897 = vmatmul.mubr.bf16.gmra.mxu0 %v850
      %v898 = vpop.f32.mrf.mxu0
      %v899 = vadd.f32 %v819, %v898
      %v900 = vpop.f32.mrf.mxu0
      %v901 = vpop.f32.mrf.mxu0
      %v902 = vadd.f32 %v822, %v901
      %v903 = vpop.f32.mrf.mxu0
      %904 = vmatprep.mubr.bf16.mxu0 0
      %905 = vmatmul.mubr.bf16.gmra.mxu0 %v853
      %v906 = vpop.f32.mrf.mxu0
      %v907 = vadd.f32 %v827, %v906
      %v908 = vpop.f32.mrf.mxu0
      %v909 = vpop.f32.mrf.mxu0
      %v910 = vadd.f32 %v830, %v909
      %v911 = vpop.f32.mrf.mxu0
      %912 = vmatprep.mubr.bf16.mxu0 0
      %913 = vmatmul.mubr.bf16.gmra.mxu0 %v856
      %v914 = vpop.f32.mrf.mxu0
      %v915 = vadd.f32 %v835, %v914
      %v916 = vpop.f32.mrf.mxu0
      %v917 = vpop.f32.mrf.mxu0
      %v918 = vadd.f32 %v838, %v917
      %v919 = vpop.f32.mrf.mxu0
      %920 = vmatprep.mubr.bf16.mxu0 0
      %921 = vmatmul.mubr.bf16.gmra.mxu0 %v859
      %v922 = vpop.f32.mrf.mxu0
      %v923 = vadd.f32 %v843, %v922
      %v924 = vpop.f32.mrf.mxu0
      %v925 = vpop.f32.mrf.mxu0
      %v926 = vadd.f32 %v846, %v925
      %v927 = vpop.f32.mrf.mxu0
      %928 = vdwg.mxu0
      %v929 = vpack.c.bf16 %v750, %v757
      %v930 = vpack.c.bf16 %v752, %v751
      %v931 = vpack.c.bf16 %v754, %v753
      %v932 = vpack.c.bf16 %v756, %v755
      %s933 = scalar_lea.vmem %s3, 4
      %v934 = vld [vmem:[%s933] sm:$0x3]
      %v936 = vsel %vm625, %v929, 0
      %v939 = vsel %vm625, %v930, 0
      %v942 = vsel %vm625, %v931, 0
      %v945 = vsel %vm625, %v932, 0
      %v948 = vsel %vm638, %v934, 0
      %950 = vmatprep.subr.bf16.mxu0 0
      %951 = vmatpush1.bf16.msra.mxu0 0
      %952 = vmatprep.subr.bf16.mxu0 0
      %953 = vmatpush1.bf16.msra.mxu0 0
      %954 = vmatprep.subr.bf16.mxu0 0
      %955 = vmatpush1.bf16.msra.mxu0 0
      %956 = vmatprep.subr.bf16.mxu0 0
      %957 = vmatpush1.bf16.msra.mxu0 0
      %958 = vmatprep.subr.bf16.mxu0 0
      %959 = vmatpush1.bf16.msra.mxu0 0
      %960 = vmatprep.subr.bf16.mxu0 0
      %961 = vmatpush1.bf16.msra.mxu0 0
      %962 = vmatprep.subr.bf16.mxu0 0
      %963 = vmatpush1.bf16.msra.mxu0 0
      %964 = vmatprep.subr.bf16.mxu0 0
      %965 = vmatpush1.bf16.msra.mxu0 %v948
      %966 = vmatprep.subr.bf16.mxu0 0
      %967 = vmatpush2.bf16.msra.mxu0 0
      %968 = vmatprep.subr.bf16.mxu0 0
      %969 = vmatpush2.bf16.msra.mxu0 0
      %970 = vmatprep.subr.bf16.mxu0 0
      %971 = vmatpush2.bf16.msra.mxu0 0
      %972 = vmatprep.subr.bf16.mxu0 0
      %973 = vmatpush2.bf16.msra.mxu0 0
      %974 = vmatprep.subr.bf16.mxu0 0
      %975 = vmatpush2.bf16.msra.mxu0 0
      %976 = vmatprep.subr.bf16.mxu0 0
      %977 = vmatpush2.bf16.msra.mxu0 0
      %978 = vmatprep.subr.bf16.mxu0 0
      %979 = vmatpush2.bf16.msra.mxu0 0
      %980 = vmatprep.subr.bf16.mxu0 0
      %981 = vmatpush2.bf16.msra.mxu0 0
      %982 = vmatprep.mubr.bf16.mxu0 0
      %983 = vmatmul.mubr.bf16.gmra.mxu0 %v936
      %v984 = vpop.f32.mrf.mxu0
      %v985 = vadd.f32 0.0, %v984
      %v986 = vpop.f32.mrf.mxu0
      %v987 = vpop.f32.mrf.mxu0
      %v988 = vadd.f32 0.0, %v987
      %v989 = vpop.f32.mrf.mxu0
      %990 = vmatprep.mubr.bf16.mxu0 0
      %991 = vmatmul.mubr.bf16.gmra.mxu0 %v939
      %v992 = vpop.f32.mrf.mxu0
      %v993 = vadd.f32 0.0, %v992
      %v994 = vpop.f32.mrf.mxu0
      %v995 = vpop.f32.mrf.mxu0
      %v996 = vadd.f32 0.0, %v995
      %v997 = vpop.f32.mrf.mxu0
      %998 = vmatprep.mubr.bf16.mxu0 0
      %999 = vmatmul.mubr.bf16.gmra.mxu0 %v942
      %v1000 = vpop.f32.mrf.mxu0
      %v1001 = vadd.f32 0.0, %v1000
      %v1002 = vpop.f32.mrf.mxu0
      %v1003 = vpop.f32.mrf.mxu0
      %v1004 = vadd.f32 0.0, %v1003
      %v1005 = vpop.f32.mrf.mxu0
      %1006 = vmatprep.mubr.bf16.mxu0 0
      %1007 = vmatmul.mubr.bf16.gmra.mxu0 %v945
      %v1008 = vpop.f32.mrf.mxu0
      %v1009 = vadd.f32 0.0, %v1008
      %v1010 = vpop.f32.mrf.mxu0
      %v1011 = vpop.f32.mrf.mxu0
      %v1012 = vadd.f32 0.0, %v1011
      %v1013 = vpop.f32.mrf.mxu0
      %1014 = vdwg.mxu0
      %v1015 = vadd.f32 %v899, %v985
      %v1016 = vadd.f32 %v902, %v988
      %v1017 = vadd.f32 %v907, %v993
      %v1018 = vadd.f32 %v910, %v996
      %v1019 = vadd.f32 %v915, %v1001
      %v1020 = vadd.f32 %v918, %v1004
      %v1021 = vadd.f32 %v923, %v1009
      %v1022 = vadd.f32 %v926, %v1012
      %v1023 = vmul.f32 %v1015, %v566
      %v1024 = vmul.f32 %v1016, %v567
      %v1025 = vmul.f32 %v1017, %v568
      %v1026 = vmul.f32 %v1018, %v569
      %v1027 = vmul.f32 %v1019, %v570
      %v1028 = vmul.f32 %v1020, %v571
      %v1029 = vmul.f32 %v1021, %v572
      %v1030 = vmul.f32 %v1022, %v573
      %v1031 = vpack.c.bf16 %v726, %v725
      %v1032 = vpack.c.bf16 %v728, %v727
      %v1033 = vpack.c.bf16 %v730, %v729
      %v1034 = vpack.c.bf16 %v732, %v731
      %s1035 = scalar_lea.vmem %s3, 6
      %v1036 = vld [vmem:[%s1035] sm:$0x3]
      %v1037 = vpack.c.bf16 %v680, %v677
      %v1038 = vpack.c.bf16 %v688, %v685
      %v1039 = vpack.c.bf16 %v696, %v693
      %v1040 = vpack.c.bf16 %v704, %v701
      %s1041 = scalar_lea.vmem %s3, 8
      %v1042 = vld [vmem:[%s1041] sm:$0x3]
      %v1044 = vsel %vm625, %v1037, 0
      %v1047 = vsel %vm625, %v1038, 0
      %v1050 = vsel %vm625, %v1039, 0
      %v1053 = vsel %vm625, %v1040, 0
      %v1056 = vsel %vm638, %v1042, 0
      %1058 = vmatprep.subr.bf16.mxu0 0
      %1059 = vmatpush1.bf16.msra.mxu0 0
      %1060 = vmatprep.subr.bf16.mxu0 0
      %1061 = vmatpush1.bf16.msra.mxu0 0
      %1062 = vmatprep.subr.bf16.mxu0 0
      %1063 = vmatpush1.bf16.msra.mxu0 0
      %1064 = vmatprep.subr.bf16.mxu0 0
      %1065 = vmatpush1.bf16.msra.mxu0 0
      %1066 = vmatprep.subr.bf16.mxu0 0
      %1067 = vmatpush1.bf16.msra.mxu0 0
      %1068 = vmatprep.subr.bf16.mxu0 0
      %1069 = vmatpush1.bf16.msra.mxu0 0
      %1070 = vmatprep.subr.bf16.mxu0 0
      %1071 = vmatpush1.bf16.msra.mxu0 0
      %1072 = vmatprep.subr.bf16.mxu0 0
      %1073 = vmatpush1.bf16.msra.mxu0 %v1056
      %1074 = vmatprep.subr.bf16.mxu0 0
      %1075 = vmatpush2.bf16.msra.mxu0 0
      %1076 = vmatprep.subr.bf16.mxu0 0
      %1077 = vmatpush2.bf16.msra.mxu0 0
      %1078 = vmatprep.subr.bf16.mxu0 0
      %1079 = vmatpush2.bf16.msra.mxu0 0
      %1080 = vmatprep.subr.bf16.mxu0 0
      %1081 = vmatpush2.bf16.msra.mxu0 0
      %1082 = vmatprep.subr.bf16.mxu0 0
      %1083 = vmatpush2.bf16.msra.mxu0 0
      %1084 = vmatprep.subr.bf16.mxu0 0
      %1085 = vmatpush2.bf16.msra.mxu0 0
      %1086 = vmatprep.subr.bf16.mxu0 0
      %1087 = vmatpush2.bf16.msra.mxu0 0
      %1088 = vmatprep.subr.bf16.mxu0 0
      %1089 = vmatpush2.bf16.msra.mxu0 0
      %1090 = vmatprep.mubr.bf16.mxu0 0
      %1091 = vmatmul.mubr.bf16.gmra.mxu0 %v1044
      %v1092 = vpop.f32.mrf.mxu0
      %v1093 = vadd.f32 0.0, %v1092
      %v1094 = vpop.f32.mrf.mxu0
      %v1095 = vpop.f32.mrf.mxu0
      %v1096 = vadd.f32 0.0, %v1095
      %v1097 = vpop.f32.mrf.mxu0
      %1098 = vmatprep.mubr.bf16.mxu0 0
      %1099 = vmatmul.mubr.bf16.gmra.mxu0 %v1047
      %v1100 = vpop.f32.mrf.mxu0
      %v1101 = vadd.f32 0.0, %v1100
      %v1102 = vpop.f32.mrf.mxu0
      %v1103 = vpop.f32.mrf.mxu0
      %v1104 = vadd.f32 0.0, %v1103
      %v1105 = vpop.f32.mrf.mxu0
      %1106 = vmatprep.mubr.bf16.mxu0 0
      %1107 = vmatmul.mubr.bf16.gmra.mxu0 %v1050
      %v1108 = vpop.f32.mrf.mxu0
      %v1109 = vadd.f32 0.0, %v1108
      %v1110 = vpop.f32.mrf.mxu0
      %v1111 = vpop.f32.mrf.mxu0
      %v1112 = vadd.f32 0.0, %v1111
      %v1113 = vpop.f32.mrf.mxu0
      %1114 = vmatprep.mubr.bf16.mxu0 0
      %1115 = vmatmul.mubr.bf16.gmra.mxu0 %v1053
      %v1116 = vpop.f32.mrf.mxu0
      %v1117 = vadd.f32 0.0, %v1116
      %v1118 = vpop.f32.mrf.mxu0
      %v1119 = vpop.f32.mrf.mxu0
      %v1120 = vadd.f32 0.0, %v1119
      %v1121 = vpop.f32.mrf.mxu0
      %1122 = vdwg.mxu0
      %v1124 = vsel %vm625, %v1031, 0
      %v1127 = vsel %vm625, %v1032, 0
      %v1130 = vsel %vm625, %v1033, 0
      %v1133 = vsel %vm625, %v1034, 0
      %v1136 = vsel %vm638, %v1036, 0
      %1138 = vmatprep.subr.bf16.mxu0 0
      %1139 = vmatpush1.bf16.msra.mxu0 0
      %1140 = vmatprep.subr.bf16.mxu0 0
      %1141 = vmatpush1.bf16.msra.mxu0 0
      %1142 = vmatprep.subr.bf16.mxu0 0
      %1143 = vmatpush1.bf16.msra.mxu0 0
      %1144 = vmatprep.subr.bf16.mxu0 0
      %1145 = vmatpush1.bf16.msra.mxu0 0
      %1146 = vmatprep.subr.bf16.mxu0 0
      %1147 = vmatpush1.bf16.msra.mxu0 0
      %1148 = vmatprep.subr.bf16.mxu0 0
      %1149 = vmatpush1.bf16.msra.mxu0 0
      %1150 = vmatprep.subr.bf16.mxu0 0
      %1151 = vmatpush1.bf16.msra.mxu0 0
      %1152 = vmatprep.subr.bf16.mxu0 0
      %1153 = vmatpush1.bf16.msra.mxu0 %v1136
      %1154 = vmatprep.subr.bf16.mxu0 0
      %1155 = vmatpush2.bf16.msra.mxu0 0
      %1156 = vmatprep.subr.bf16.mxu0 0
      %1157 = vmatpush2.bf16.msra.mxu0 0
      %1158 = vmatprep.subr.bf16.mxu0 0
      %1159 = vmatpush2.bf16.msra.mxu0 0
      %1160 = vmatprep.subr.bf16.mxu0 0
      %1161 = vmatpush2.bf16.msra.mxu0 0
      %1162 = vmatprep.subr.bf16.mxu0 0
      %1163 = vmatpush2.bf16.msra.mxu0 0
      %1164 = vmatprep.subr.bf16.mxu0 0
      %1165 = vmatpush2.bf16.msra.mxu0 0
      %1166 = vmatprep.subr.bf16.mxu0 0
      %1167 = vmatpush2.bf16.msra.mxu0 0
      %1168 = vmatprep.subr.bf16.mxu0 0
      %1169 = vmatpush2.bf16.msra.mxu0 0
      %1170 = vmatprep.mubr.bf16.mxu0 0
      %1171 = vmatmul.mubr.bf16.gmra.mxu0 %v1124
      %v1172 = vpop.f32.mrf.mxu0
      %v1173 = vadd.f32 %v1093, %v1172
      %v1174 = vpop.f32.mrf.mxu0
      %v1175 = vpop.f32.mrf.mxu0
      %v1176 = vadd.f32 %v1096, %v1175
      %v1177 = vpop.f32.mrf.mxu0
      %1178 = vmatprep.mubr.bf16.mxu0 0
      %1179 = vmatmul.mubr.bf16.gmra.mxu0 %v1127
      %v1180 = vpop.f32.mrf.mxu0
      %v1181 = vadd.f32 %v1101, %v1180
      %v1182 = vpop.f32.mrf.mxu0
      %v1183 = vpop.f32.mrf.mxu0
      %v1184 = vadd.f32 %v1104, %v1183
      %v1185 = vpop.f32.mrf.mxu0
      %1186 = vmatprep.mubr.bf16.mxu0 0
      %1187 = vmatmul.mubr.bf16.gmra.mxu0 %v1130
      %v1188 = vpop.f32.mrf.mxu0
      %v1189 = vadd.f32 %v1109, %v1188
      %v1190 = vpop.f32.mrf.mxu0
      %v1191 = vpop.f32.mrf.mxu0
      %v1192 = vadd.f32 %v1112, %v1191
      %v1193 = vpop.f32.mrf.mxu0
      %1194 = vmatprep.mubr.bf16.mxu0 0
      %1195 = vmatmul.mubr.bf16.gmra.mxu0 %v1133
      %v1196 = vpop.f32.mrf.mxu0
      %v1197 = vadd.f32 %v1117, %v1196
      %v1198 = vpop.f32.mrf.mxu0
      %v1199 = vpop.f32.mrf.mxu0
      %v1200 = vadd.f32 %v1120, %v1199
      %v1201 = vpop.f32.mrf.mxu0
      %1202 = vdwg.mxu0
      %v1203 = vpack.c.bf16 %v751, %v750
      %v1204 = vpack.c.bf16 %v753, %v752
      %v1205 = vpack.c.bf16 %v755, %v754
      %v1206 = vpack.c.bf16 %v757, %v756
      %s1207 = scalar_lea.vmem %s3, 10
      %v1208 = vld [vmem:[%s1207] sm:$0x3]
      %v1210 = vsel %vm625, %v1203, 0
      %v1213 = vsel %vm625, %v1204, 0
      %v1216 = vsel %vm625, %v1205, 0
      %v1219 = vsel %vm625, %v1206, 0
      %v1222 = vsel %vm638, %v1208, 0
      %1224 = vmatprep.subr.bf16.mxu0 0
      %1225 = vmatpush1.bf16.msra.mxu0 0
      %1226 = vmatprep.subr.bf16.mxu0 0
      %1227 = vmatpush1.bf16.msra.mxu0 0
      %1228 = vmatprep.subr.bf16.mxu0 0
      %1229 = vmatpush1.bf16.msra.mxu0 0
      %1230 = vmatprep.subr.bf16.mxu0 0
      %1231 = vmatpush1.bf16.msra.mxu0 0
      %1232 = vmatprep.subr.bf16.mxu0 0
      %1233 = vmatpush1.bf16.msra.mxu0 0
      %1234 = vmatprep.subr.bf16.mxu0 0
      %1235 = vmatpush1.bf16.msra.mxu0 0
      %1236 = vmatprep.subr.bf16.mxu0 0
      %1237 = vmatpush1.bf16.msra.mxu0 0
      %1238 = vmatprep.subr.bf16.mxu0 0
      %1239 = vmatpush1.bf16.msra.mxu0 %v1222
      %1240 = vmatprep.subr.bf16.mxu0 0
      %1241 = vmatpush2.bf16.msra.mxu0 0
      %1242 = vmatprep.subr.bf16.mxu0 0
      %1243 = vmatpush2.bf16.msra.mxu0 0
      %1244 = vmatprep.subr.bf16.mxu0 0
      %1245 = vmatpush2.bf16.msra.mxu0 0
      %1246 = vmatprep.subr.bf16.mxu0 0
      %1247 = vmatpush2.bf16.msra.mxu0 0
      %1248 = vmatprep.subr.bf16.mxu0 0
      %1249 = vmatpush2.bf16.msra.mxu0 0
      %1250 = vmatprep.subr.bf16.mxu0 0
      %1251 = vmatpush2.bf16.msra.mxu0 0
      %1252 = vmatprep.subr.bf16.mxu0 0
      %1253 = vmatpush2.bf16.msra.mxu0 0
      %1254 = vmatprep.subr.bf16.mxu0 0
      %1255 = vmatpush2.bf16.msra.mxu0 0
      %1256 = vmatprep.mubr.bf16.mxu0 0
      %1257 = vmatmul.mubr.bf16.gmra.mxu0 %v1210
      %v1258 = vpop.f32.mrf.mxu0
      %v1259 = vadd.f32 0.0, %v1258
      %v1260 = vpop.f32.mrf.mxu0
      %v1261 = vpop.f32.mrf.mxu0
      %v1262 = vadd.f32 0.0, %v1261
      %v1263 = vpop.f32.mrf.mxu0
      %1264 = vmatprep.mubr.bf16.mxu0 0
      %1265 = vmatmul.mubr.bf16.gmra.mxu0 %v1213
      %v1266 = vpop.f32.mrf.mxu0
      %v1267 = vadd.f32 0.0, %v1266
      %v1268 = vpop.f32.mrf.mxu0
      %v1269 = vpop.f32.mrf.mxu0
      %v1270 = vadd.f32 0.0, %v1269
      %v1271 = vpop.f32.mrf.mxu0
      %1272 = vmatprep.mubr.bf16.mxu0 0
      %1273 = vmatmul.mubr.bf16.gmra.mxu0 %v1216
      %v1274 = vpop.f32.mrf.mxu0
      %v1275 = vadd.f32 0.0, %v1274
      %v1276 = vpop.f32.mrf.mxu0
      %v1277 = vpop.f32.mrf.mxu0
      %v1278 = vadd.f32 0.0, %v1277
      %v1279 = vpop.f32.mrf.mxu0
      %1280 = vmatprep.mubr.bf16.mxu0 0
      %1281 = vmatmul.mubr.bf16.gmra.mxu0 %v1219
      %v1282 = vpop.f32.mrf.mxu0
      %v1283 = vadd.f32 0.0, %v1282
      %v1284 = vpop.f32.mrf.mxu0
      %v1285 = vpop.f32.mrf.mxu0
      %v1286 = vadd.f32 0.0, %v1285
      %v1287 = vpop.f32.mrf.mxu0
      %1288 = vdwg.mxu0
      %v1289 = vadd.f32 %v1173, %v1259
      %v1290 = vadd.f32 %v1176, %v1262
      %v1291 = vadd.f32 %v1181, %v1267
      %v1292 = vadd.f32 %v1184, %v1270
      %v1293 = vadd.f32 %v1189, %v1275
      %v1294 = vadd.f32 %v1192, %v1278
      %v1295 = vadd.f32 %v1197, %v1283
      %v1296 = vadd.f32 %v1200, %v1286
      %v1297 = vadd.f32 %v1023, %v1289
      %v1298 = vadd.f32 %v1024, %v1290
      %v1299 = vadd.f32 %v1025, %v1291
      %v1300 = vadd.f32 %v1026, %v1292
      %v1301 = vadd.f32 %v1027, %v1293
      %v1302 = vadd.f32 %v1028, %v1294
      %v1303 = vadd.f32 %v1029, %v1295
      %v1304 = vadd.f32 %v1030, %v1296
      %s1305 = scalar_lea.vmem %s3, 12
      %v1306 = vld [vmem:[%s1305] sm:$0x3]
      %s1307 = scalar_lea.vmem %s3, 14
      %v1308 = vld [vmem:[%s1307] sm:$0x3]
      %v1310 = vsel %vm638, %v1308, 0
      %1312 = vmatprep.subr.bf16.mxu0 0
      %1313 = vmatpush1.bf16.msra.mxu0 0
      %1314 = vmatprep.subr.bf16.mxu0 0
      %1315 = vmatpush1.bf16.msra.mxu0 0
      %1316 = vmatprep.subr.bf16.mxu0 0
      %1317 = vmatpush1.bf16.msra.mxu0 0
      %1318 = vmatprep.subr.bf16.mxu0 0
      %1319 = vmatpush1.bf16.msra.mxu0 0
      %1320 = vmatprep.subr.bf16.mxu0 0
      %1321 = vmatpush1.bf16.msra.mxu0 0
      %1322 = vmatprep.subr.bf16.mxu0 0
      %1323 = vmatpush1.bf16.msra.mxu0 0
      %1324 = vmatprep.subr.bf16.mxu0 0
      %1325 = vmatpush1.bf16.msra.mxu0 0
      %1326 = vmatprep.subr.bf16.mxu0 0
      %1327 = vmatpush1.bf16.msra.mxu0 %v1310
      %1328 = vmatprep.subr.bf16.mxu0 0
      %1329 = vmatpush2.bf16.msra.mxu0 0
      %1330 = vmatprep.subr.bf16.mxu0 0
      %1331 = vmatpush2.bf16.msra.mxu0 0
      %1332 = vmatprep.subr.bf16.mxu0 0
      %1333 = vmatpush2.bf16.msra.mxu0 0
      %1334 = vmatprep.subr.bf16.mxu0 0
      %1335 = vmatpush2.bf16.msra.mxu0 0
      %1336 = vmatprep.subr.bf16.mxu0 0
      %1337 = vmatpush2.bf16.msra.mxu0 0
      %1338 = vmatprep.subr.bf16.mxu0 0
      %1339 = vmatpush2.bf16.msra.mxu0 0
      %1340 = vmatprep.subr.bf16.mxu0 0
      %1341 = vmatpush2.bf16.msra.mxu0 0
      %1342 = vmatprep.subr.bf16.mxu0 0
      %1343 = vmatpush2.bf16.msra.mxu0 0
      %1344 = vmatprep.mubr.bf16.mxu0 0
      %1345 = vmatmul.mubr.bf16.gmra.mxu0 %v773
      %v1346 = vpop.f32.mrf.mxu0
      %v1347 = vadd.f32 0.0, %v1346
      %v1348 = vpop.f32.mrf.mxu0
      %v1349 = vpop.f32.mrf.mxu0
      %v1350 = vadd.f32 0.0, %v1349
      %v1351 = vpop.f32.mrf.mxu0
      %1352 = vmatprep.mubr.bf16.mxu0 0
      %1353 = vmatmul.mubr.bf16.gmra.mxu0 %v776
      %v1354 = vpop.f32.mrf.mxu0
      %v1355 = vadd.f32 0.0, %v1354
      %v1356 = vpop.f32.mrf.mxu0
      %v1357 = vpop.f32.mrf.mxu0
      %v1358 = vadd.f32 0.0, %v1357
      %v1359 = vpop.f32.mrf.mxu0
      %1360 = vmatprep.mubr.bf16.mxu0 0
      %1361 = vmatmul.mubr.bf16.gmra.mxu0 %v779
      %v1362 = vpop.f32.mrf.mxu0
      %v1363 = vadd.f32 0.0, %v1362
      %v1364 = vpop.f32.mrf.mxu0
      %v1365 = vpop.f32.mrf.mxu0
      %v1366 = vadd.f32 0.0, %v1365
      %v1367 = vpop.f32.mrf.mxu0
      %1368 = vmatprep.mubr.bf16.mxu0 0
      %1369 = vmatmul.mubr.bf16.gmra.mxu0 %v770
      %v1370 = vpop.f32.mrf.mxu0
      %v1371 = vadd.f32 0.0, %v1370
      %v1372 = vpop.f32.mrf.mxu0
      %v1373 = vpop.f32.mrf.mxu0
      %v1374 = vadd.f32 0.0, %v1373
      %v1375 = vpop.f32.mrf.mxu0
      %1376 = vdwg.mxu0
      %v1378 = vsel %vm638, %v1306, 0
      %1380 = vmatprep.subr.bf16.mxu0 0
      %1381 = vmatpush1.bf16.msra.mxu0 0
      %1382 = vmatprep.subr.bf16.mxu0 0
      %1383 = vmatpush1.bf16.msra.mxu0 0
      %1384 = vmatprep.subr.bf16.mxu0 0
      %1385 = vmatpush1.bf16.msra.mxu0 0
      %1386 = vmatprep.subr.bf16.mxu0 0
      %1387 = vmatpush1.bf16.msra.mxu0 0
      %1388 = vmatprep.subr.bf16.mxu0 0
      %1389 = vmatpush1.bf16.msra.mxu0 0
      %1390 = vmatprep.subr.bf16.mxu0 0
      %1391 = vmatpush1.bf16.msra.mxu0 0
      %1392 = vmatprep.subr.bf16.mxu0 0
      %1393 = vmatpush1.bf16.msra.mxu0 0
      %1394 = vmatprep.subr.bf16.mxu0 0
      %1395 = vmatpush1.bf16.msra.mxu0 %v1378
      %1396 = vmatprep.subr.bf16.mxu0 0
      %1397 = vmatpush2.bf16.msra.mxu0 0
      %1398 = vmatprep.subr.bf16.mxu0 0
      %1399 = vmatpush2.bf16.msra.mxu0 0
      %1400 = vmatprep.subr.bf16.mxu0 0
      %1401 = vmatpush2.bf16.msra.mxu0 0
      %1402 = vmatprep.subr.bf16.mxu0 0
      %1403 = vmatpush2.bf16.msra.mxu0 0
      %1404 = vmatprep.subr.bf16.mxu0 0
      %1405 = vmatpush2.bf16.msra.mxu0 0
      %1406 = vmatprep.subr.bf16.mxu0 0
      %1407 = vmatpush2.bf16.msra.mxu0 0
      %1408 = vmatprep.subr.bf16.mxu0 0
      %1409 = vmatpush2.bf16.msra.mxu0 0
      %1410 = vmatprep.subr.bf16.mxu0 0
      %1411 = vmatpush2.bf16.msra.mxu0 0
      %1412 = vmatprep.mubr.bf16.mxu0 0
      %1413 = vmatmul.mubr.bf16.gmra.mxu0 %v853
      %v1414 = vpop.f32.mrf.mxu0
      %v1415 = vadd.f32 %v1347, %v1414
      %v1416 = vpop.f32.mrf.mxu0
      %v1417 = vpop.f32.mrf.mxu0
      %v1418 = vadd.f32 %v1350, %v1417
      %v1419 = vpop.f32.mrf.mxu0
      %1420 = vmatprep.mubr.bf16.mxu0 0
      %1421 = vmatmul.mubr.bf16.gmra.mxu0 %v856
      %v1422 = vpop.f32.mrf.mxu0
      %v1423 = vadd.f32 %v1355, %v1422
      %v1424 = vpop.f32.mrf.mxu0
      %v1425 = vpop.f32.mrf.mxu0
      %v1426 = vadd.f32 %v1358, %v1425
      %v1427 = vpop.f32.mrf.mxu0
      %1428 = vmatprep.mubr.bf16.mxu0 0
      %1429 = vmatmul.mubr.bf16.gmra.mxu0 %v859
      %v1430 = vpop.f32.mrf.mxu0
      %v1431 = vadd.f32 %v1363, %v1430
      %v1432 = vpop.f32.mrf.mxu0
      %v1433 = vpop.f32.mrf.mxu0
      %v1434 = vadd.f32 %v1366, %v1433
      %v1435 = vpop.f32.mrf.mxu0
      %1436 = vmatprep.mubr.bf16.mxu0 0
      %1437 = vmatmul.mubr.bf16.gmra.mxu0 %v850
      %v1438 = vpop.f32.mrf.mxu0
      %v1439 = vadd.f32 %v1371, %v1438
      %v1440 = vpop.f32.mrf.mxu0
      %v1441 = vpop.f32.mrf.mxu0
      %v1442 = vadd.f32 %v1374, %v1441
      %v1443 = vpop.f32.mrf.mxu0
      %1444 = vdwg.mxu0
      %s1445 = scalar_lea.vmem %s3, 16
      %v1446 = vld [vmem:[%s1445] sm:$0x3]
      %v1448 = vsel %vm638, %v1446, 0
      %1450 = vmatprep.subr.bf16.mxu0 0
      %1451 = vmatpush1.bf16.msra.mxu0 0
      %1452 = vmatprep.subr.bf16.mxu0 0
      %1453 = vmatpush1.bf16.msra.mxu0 0
      %1454 = vmatprep.subr.bf16.mxu0 0
      %1455 = vmatpush1.bf16.msra.mxu0 0
      %1456 = vmatprep.subr.bf16.mxu0 0
      %1457 = vmatpush1.bf16.msra.mxu0 0
      %1458 = vmatprep.subr.bf16.mxu0 0
      %1459 = vmatpush1.bf16.msra.mxu0 0
      %1460 = vmatprep.subr.bf16.mxu0 0
      %1461 = vmatpush1.bf16.msra.mxu0 0
      %1462 = vmatprep.subr.bf16.mxu0 0
      %1463 = vmatpush1.bf16.msra.mxu0 0
      %1464 = vmatprep.subr.bf16.mxu0 0
      %1465 = vmatpush1.bf16.msra.mxu0 %v1448
      %1466 = vmatprep.subr.bf16.mxu0 0
      %1467 = vmatpush2.bf16.msra.mxu0 0
      %1468 = vmatprep.subr.bf16.mxu0 0
      %1469 = vmatpush2.bf16.msra.mxu0 0
      %1470 = vmatprep.subr.bf16.mxu0 0
      %1471 = vmatpush2.bf16.msra.mxu0 0
      %1472 = vmatprep.subr.bf16.mxu0 0
      %1473 = vmatpush2.bf16.msra.mxu0 0
      %1474 = vmatprep.subr.bf16.mxu0 0
      %1475 = vmatpush2.bf16.msra.mxu0 0
      %1476 = vmatprep.subr.bf16.mxu0 0
      %1477 = vmatpush2.bf16.msra.mxu0 0
      %1478 = vmatprep.subr.bf16.mxu0 0
      %1479 = vmatpush2.bf16.msra.mxu0 0
      %1480 = vmatprep.subr.bf16.mxu0 0
      %1481 = vmatpush2.bf16.msra.mxu0 0
      %1482 = vmatprep.mubr.bf16.mxu0 0
      %1483 = vmatmul.mubr.bf16.gmra.mxu0 %v939
      %v1484 = vpop.f32.mrf.mxu0
      %v1485 = vadd.f32 0.0, %v1484
      %v1486 = vpop.f32.mrf.mxu0
      %v1487 = vpop.f32.mrf.mxu0
      %v1488 = vadd.f32 0.0, %v1487
      %v1489 = vpop.f32.mrf.mxu0
      %1490 = vmatprep.mubr.bf16.mxu0 0
      %1491 = vmatmul.mubr.bf16.gmra.mxu0 %v942
      %v1492 = vpop.f32.mrf.mxu0
      %v1493 = vadd.f32 0.0, %v1492
      %v1494 = vpop.f32.mrf.mxu0
      %v1495 = vpop.f32.mrf.mxu0
      %v1496 = vadd.f32 0.0, %v1495
      %v1497 = vpop.f32.mrf.mxu0
      %1498 = vmatprep.mubr.bf16.mxu0 0
      %1499 = vmatmul.mubr.bf16.gmra.mxu0 %v945
      %v1500 = vpop.f32.mrf.mxu0
      %v1501 = vadd.f32 0.0, %v1500
      %v1502 = vpop.f32.mrf.mxu0
      %v1503 = vpop.f32.mrf.mxu0
      %v1504 = vadd.f32 0.0, %v1503
      %v1505 = vpop.f32.mrf.mxu0
      %1506 = vmatprep.mubr.bf16.mxu0 0
      %1507 = vmatmul.mubr.bf16.gmra.mxu0 %v936
      %v1508 = vpop.f32.mrf.mxu0
      %v1509 = vadd.f32 0.0, %v1508
      %v1510 = vpop.f32.mrf.mxu0
      %v1511 = vpop.f32.mrf.mxu0
      %v1512 = vadd.f32 0.0, %v1511
      %v1513 = vpop.f32.mrf.mxu0
      %1514 = vdwg.mxu0
      %v1515 = vadd.f32 %v1415, %v1485
      %v1516 = vadd.f32 %v1418, %v1488
      %v1517 = vadd.f32 %v1423, %v1493
      %v1518 = vadd.f32 %v1426, %v1496
      %v1519 = vadd.f32 %v1431, %v1501
      %v1520 = vadd.f32 %v1434, %v1504
      %v1521 = vadd.f32 %v1439, %v1509
      %v1522 = vadd.f32 %v1442, %v1512
      %v1523 = vmul.f32 %v1515, %v590
      %v1524 = vmul.f32 %v1516, %v591
      %v1525 = vmul.f32 %v1517, %v592
      %v1526 = vmul.f32 %v1518, %v593
      %v1527 = vmul.f32 %v1519, %v594
      %v1528 = vmul.f32 %v1520, %v595
      %v1529 = vmul.f32 %v1521, %v596
      %v1530 = vmul.f32 %v1522, %v597
      %v1531 = vadd.f32 %v1297, %v1523
      %v1532 = vadd.f32 %v1298, %v1524
      %v1533 = vadd.f32 %v1299, %v1525
      %v1534 = vadd.f32 %v1300, %v1526
      %v1535 = vadd.f32 %v1301, %v1527
      %v1536 = vadd.f32 %v1302, %v1528
      %v1537 = vadd.f32 %v1303, %v1529
      %v1538 = vadd.f32 %v1304, %v1530
      %v1540 = vlaneseq
      %v1541 = vshrl.u32 %v1540, 7
      %v1542 = vsub.s32 0, %v1541
      %v1543 = vrot.slane %v707, %v1542
      %v1545 = vadd.f32 %v1531, %v1543
      %v1546 = vadd.f32 %v1532, %v1543
      %v1547 = vadd.f32 %v1533, %v1543
      %v1548 = vadd.f32 %v1534, %v1543
      %v1549 = vadd.f32 %v1535, %v1543
      %v1550 = vadd.f32 %v1536, %v1543
      %v1551 = vadd.f32 %v1537, %v1543
      %v1552 = vadd.f32 %v1538, %v1543
      %v1553 = vmax.f32 %v1545, 0.0
      %v1554 = vmax.f32 %v1546, 0.0
      %v1555 = vmax.f32 %v1547, 0.0
      %v1556 = vmax.f32 %v1548, 0.0
      %v1557 = vmax.f32 %v1549, 0.0
      %v1558 = vmax.f32 %v1550, 0.0
      %v1559 = vmax.f32 %v1551, 0.0
      %v1560 = vmax.f32 %v1552, 0.0
      %v1561 = vpack.c.bf16 %v1554, %v1553
      %v1562 = vpack.c.bf16 %v1556, %v1555
      %v1563 = vpack.c.bf16 %v1558, %v1557
      %v1564 = vpack.c.bf16 %v1560, %v1559
      %v1565 = vld [vmem:[%s5] sm:$0xf]
      %v1566 = vld [vmem:[%s5 + $0x4] sm:$0xf]
      %v1567 = vld [vmem:[%s6] sm:$0x1]
      %v1569 = vlaneseq
      %v1570 = vshrl.u32 %v1569, 7
      %v1571 = vsub.s32 0, %v1570
      %v1572 = vrot.slane %v1567, %v1571
      %v1576 = vunpack.c.l.b16 %v1565
      %v1577 = vunpack.c.l.b16 %v1566
      %v1578 = vpack.c.b16 %v1577, %v1576
      %vm1580 = vcmask 130048
      %v1582 = vsel %vm1580, %v1561, 0
      %v1585 = vsel %vm1580, %v1562, 0
      %v1588 = vsel %vm1580, %v1563, 0
      %v1591 = vsel %vm1580, %v1564, 0
      %1593 = vmatprep.subr.bf16.mxu0 0
      %1594 = vmatpush1.bf16.msra.mxu0 0
      %1595 = vmatprep.subr.bf16.mxu0 0
      %1596 = vmatpush1.bf16.msra.mxu0 0
      %1597 = vmatprep.subr.bf16.mxu0 0
      %1598 = vmatpush1.bf16.msra.mxu0 0
      %1599 = vmatprep.subr.bf16.mxu0 0
      %1600 = vmatpush1.bf16.msra.mxu0 0
      %1601 = vmatprep.subr.bf16.mxu0 0
      %1602 = vmatpush1.bf16.msra.mxu0 0
      %1603 = vmatprep.subr.bf16.mxu0 0
      %1604 = vmatpush1.bf16.msra.mxu0 0
      %1605 = vmatprep.subr.bf16.mxu0 0
      %1606 = vmatpush1.bf16.msra.mxu0 0
      %1607 = vmatprep.subr.bf16.mxu0 0
      %1608 = vmatpush1.bf16.msra.mxu0 %v1578
      %1609 = vmatprep.subr.bf16.mxu0 0
      %1610 = vmatpush2.bf16.msra.mxu0 0
      %1611 = vmatprep.subr.bf16.mxu0 0
      %1612 = vmatpush2.bf16.msra.mxu0 0
      %1613 = vmatprep.subr.bf16.mxu0 0
      %1614 = vmatpush2.bf16.msra.mxu0 0
      %1615 = vmatprep.subr.bf16.mxu0 0
      %1616 = vmatpush2.bf16.msra.mxu0 0
      %1617 = vmatprep.subr.bf16.mxu0 0
      %1618 = vmatpush2.bf16.msra.mxu0 0
      %1619 = vmatprep.subr.bf16.mxu0 0
      %1620 = vmatpush2.bf16.msra.mxu0 0
      %1621 = vmatprep.subr.bf16.mxu0 0
      %1622 = vmatpush2.bf16.msra.mxu0 0
      %1623 = vmatprep.subr.bf16.mxu0 0
      %1624 = vmatpush2.bf16.msra.mxu0 0
      %1625 = vmatprep.mubr.bf16.mxu0 0
      %1626 = vmatmul.mubr.bf16.gmra.mxu0 %v1582
      %v1627 = vpop.f32.mrf.mxu0
      %v1628 = vadd.f32 %v1572, %v1627
      %v1629 = vpop.f32.mrf.mxu0
      %v1630 = vpop.f32.mrf.mxu0
      %v1631 = vadd.f32 %v1572, %v1630
      %v1632 = vpop.f32.mrf.mxu0
      %1633 = vmatprep.mubr.bf16.mxu0 0
      %1634 = vmatmul.mubr.bf16.gmra.mxu0 %v1585
      %v1635 = vpop.f32.mrf.mxu0
      %v1636 = vadd.f32 %v1572, %v1635
      %v1637 = vpop.f32.mrf.mxu0
      %v1638 = vpop.f32.mrf.mxu0
      %v1639 = vadd.f32 %v1572, %v1638
      %v1640 = vpop.f32.mrf.mxu0
      %1641 = vmatprep.mubr.bf16.mxu0 0
      %1642 = vmatmul.mubr.bf16.gmra.mxu0 %v1588
      %v1643 = vpop.f32.mrf.mxu0
      %v1644 = vadd.f32 %v1572, %v1643
      %v1645 = vpop.f32.mrf.mxu0
      %v1646 = vpop.f32.mrf.mxu0
      %v1647 = vadd.f32 %v1572, %v1646
      %v1648 = vpop.f32.mrf.mxu0
      %1649 = vmatprep.mubr.bf16.mxu0 0
      %1650 = vmatmul.mubr.bf16.gmra.mxu0 %v1591
      %v1651 = vpop.f32.mrf.mxu0
      %v1652 = vadd.f32 %v1572, %v1651
      %v1653 = vpop.f32.mrf.mxu0
      %v1654 = vpop.f32.mrf.mxu0
      %v1655 = vadd.f32 %v1572, %v1654
      %v1656 = vpop.f32.mrf.mxu0
      %1657 = vdwg.mxu0
      %v1658 = vmax.f32 %v1628, 0.0
      %v1659 = vmax.f32 %v1631, 0.0
      %v1660 = vmax.f32 %v1636, 0.0
      %v1661 = vmax.f32 %v1639, 0.0
      %v1662 = vmax.f32 %v1644, 0.0
      %v1663 = vmax.f32 %v1647, 0.0
      %v1664 = vmax.f32 %v1652, 0.0
      %v1665 = vmax.f32 %v1655, 0.0
      %v1666 = vld [vmem:[%s8] sm:$0x1]
      %v1667 = vrot.slane %v1658, 7
      %v1668 = vrot.slane %v1659, 7
      %v1669 = vrot.slane %v1660, 7
      %v1670 = vrot.slane %v1661, 7
      %v1671 = vrot.slane %v1662, 7
      %v1672 = vrot.slane %v1663, 7
      %v1673 = vrot.slane %v1664, 7
      %v1674 = vrot.slane %v1665, 7
      %v1675 = vsel %vm716, %v1673, %v1674
      %v1676 = vsel %vm716, %v1672, %v1673
      %v1677 = vsel %vm716, %v1671, %v1672
      %v1678 = vsel %vm716, %v1670, %v1671
      %v1679 = vsel %vm716, %v1669, %v1670
      %v1680 = vsel %vm716, %v1668, %v1669
      %v1681 = vsel %vm716, %v1667, %v1668
      %v1682 = vsel %vm716, %v1674, %v1667
      %v1683 = vmul.f32 %v1682, %v518
      %v1684 = vmul.f32 %v1681, %v519
      %v1685 = vmul.f32 %v1680, %v520
      %v1686 = vmul.f32 %v1679, %v521
      %v1687 = vmul.f32 %v1678, %v522
      %v1688 = vmul.f32 %v1677, %v523
      %v1689 = vmul.f32 %v1676, %v524
      %v1690 = vmul.f32 %v1675, %v525
      %v1691 = vrot.slane %v1658, 1
      %v1692 = vrot.slane %v1659, 1
      %v1693 = vrot.slane %v1660, 1
      %v1694 = vrot.slane %v1661, 1
      %v1695 = vrot.slane %v1662, 1
      %v1696 = vrot.slane %v1663, 1
      %v1697 = vrot.slane %v1664, 1
      %v1698 = vrot.slane %v1665, 1
      %v1699 = vsel %vm741, %v1697, %v1698
      %v1700 = vsel %vm741, %v1696, %v1697
      %v1701 = vsel %vm741, %v1695, %v1696
      %v1702 = vsel %vm741, %v1694, %v1695
      %v1703 = vsel %vm741, %v1693, %v1694
      %v1704 = vsel %vm741, %v1692, %v1693
      %v1705 = vsel %vm741, %v1691, %v1692
      %v1706 = vsel %vm741, %v1698, %v1691
      %v1707 = vmul.f32 %v1705, %v542
      %v1708 = vmul.f32 %v1704, %v543
      %v1709 = vmul.f32 %v1703, %v544
      %v1710 = vmul.f32 %v1702, %v545
      %v1711 = vmul.f32 %v1701, %v546
      %v1712 = vmul.f32 %v1700, %v547
      %v1713 = vmul.f32 %v1699, %v548
      %v1714 = vmul.f32 %v1706, %v549
      %v1715 = vpack.c.bf16 %v1683, %v1690
      %v1716 = vpack.c.bf16 %v1685, %v1684
      %v1717 = vpack.c.bf16 %v1687, %v1686
      %v1718 = vpack.c.bf16 %v1689, %v1688
      %v1719 = vld [vmem:[%s7] sm:$0xf]
      %v1720 = vld [vmem:[%s7 + $0x4] sm:$0xf]
      %v1721 = vpack.c.bf16 %v1658, %v1665
      %v1722 = vpack.c.bf16 %v1660, %v1659
      %v1723 = vpack.c.bf16 %v1662, %v1661
      %v1724 = vpack.c.bf16 %v1664, %v1663
      %s1725 = scalar_lea.vmem %s7, 8
      %v1726 = vld [vmem:[%s1725] sm:$0xf]
      %v1727 = vld [vmem:[%s1725 + $0x4] sm:$0xf]
      %v1730 = vunpack.c.l.b16 %v1726
      %v1731 = vunpack.c.l.b16 %v1727
      %v1732 = vpack.c.b16 %v1731, %v1730
      %v1735 = vsel %vm1580, %v1721, 0
      %v1738 = vsel %vm1580, %v1722, 0
      %v1741 = vsel %vm1580, %v1723, 0
      %v1744 = vsel %vm1580, %v1724, 0
      %1746 = vmatprep.subr.bf16.mxu0 0
      %1747 = vmatpush1.bf16.msra.mxu0 0
      %1748 = vmatprep.subr.bf16.mxu0 0
      %1749 = vmatpush1.bf16.msra.mxu0 0
      %1750 = vmatprep.subr.bf16.mxu0 0
      %1751 = vmatpush1.bf16.msra.mxu0 0
      %1752 = vmatprep.subr.bf16.mxu0 0
      %1753 = vmatpush1.bf16.msra.mxu0 0
      %1754 = vmatprep.subr.bf16.mxu0 0
      %1755 = vmatpush1.bf16.msra.mxu0 0
      %1756 = vmatprep.subr.bf16.mxu0 0
      %1757 = vmatpush1.bf16.msra.mxu0 0
      %1758 = vmatprep.subr.bf16.mxu0 0
      %1759 = vmatpush1.bf16.msra.mxu0 0
      %1760 = vmatprep.subr.bf16.mxu0 0
      %1761 = vmatpush1.bf16.msra.mxu0 %v1732
      %1762 = vmatprep.subr.bf16.mxu0 0
      %1763 = vmatpush2.bf16.msra.mxu0 0
      %1764 = vmatprep.subr.bf16.mxu0 0
      %1765 = vmatpush2.bf16.msra.mxu0 0
      %1766 = vmatprep.subr.bf16.mxu0 0
      %1767 = vmatpush2.bf16.msra.mxu0 0
      %1768 = vmatprep.subr.bf16.mxu0 0
      %1769 = vmatpush2.bf16.msra.mxu0 0
      %1770 = vmatprep.subr.bf16.mxu0 0
      %1771 = vmatpush2.bf16.msra.mxu0 0
      %1772 = vmatprep.subr.bf16.mxu0 0
      %1773 = vmatpush2.bf16.msra.mxu0 0
      %1774 = vmatprep.subr.bf16.mxu0 0
      %1775 = vmatpush2.bf16.msra.mxu0 0
      %1776 = vmatprep.subr.bf16.mxu0 0
      %1777 = vmatpush2.bf16.msra.mxu0 0
      %1778 = vmatprep.mubr.bf16.mxu0 0
      %1779 = vmatmul.mubr.bf16.gmra.mxu0 %v1735
      %v1780 = vpop.f32.mrf.mxu0
      %v1781 = vadd.f32 0.0, %v1780
      %v1782 = vpop.f32.mrf.mxu0
      %v1783 = vpop.f32.mrf.mxu0
      %v1784 = vadd.f32 0.0, %v1783
      %v1785 = vpop.f32.mrf.mxu0
      %1786 = vmatprep.mubr.bf16.mxu0 0
      %1787 = vmatmul.mubr.bf16.gmra.mxu0 %v1738
      %v1788 = vpop.f32.mrf.mxu0
      %v1789 = vadd.f32 0.0, %v1788
      %v1790 = vpop.f32.mrf.mxu0
      %v1791 = vpop.f32.mrf.mxu0
      %v1792 = vadd.f32 0.0, %v1791
      %v1793 = vpop.f32.mrf.mxu0
      %1794 = vmatprep.mubr.bf16.mxu0 0
      %1795 = vmatmul.mubr.bf16.gmra.mxu0 %v1741
      %v1796 = vpop.f32.mrf.mxu0
      %v1797 = vadd.f32 0.0, %v1796
      %v1798 = vpop.f32.mrf.mxu0
      %v1799 = vpop.f32.mrf.mxu0
      %v1800 = vadd.f32 0.0, %v1799
      %v1801 = vpop.f32.mrf.mxu0
      %1802 = vmatprep.mubr.bf16.mxu0 0
      %1803 = vmatmul.mubr.bf16.gmra.mxu0 %v1744
      %v1804 = vpop.f32.mrf.mxu0
      %v1805 = vadd.f32 0.0, %v1804
      %v1806 = vpop.f32.mrf.mxu0
      %v1807 = vpop.f32.mrf.mxu0
      %v1808 = vadd.f32 0.0, %v1807
      %v1809 = vpop.f32.mrf.mxu0
      %1810 = vdwg.mxu0
      %v1813 = vunpack.c.l.b16 %v1719
      %v1814 = vunpack.c.l.b16 %v1720
      %v1815 = vpack.c.b16 %v1814, %v1813
      %v1818 = vsel %vm1580, %v1715, 0
      %v1821 = vsel %vm1580, %v1716, 0
      %v1824 = vsel %vm1580, %v1717, 0
      %v1827 = vsel %vm1580, %v1718, 0
      %1829 = vmatprep.subr.bf16.mxu0 0
      %1830 = vmatpush1.bf16.msra.mxu0 0
      %1831 = vmatprep.subr.bf16.mxu0 0
      %1832 = vmatpush1.bf16.msra.mxu0 0
      %1833 = vmatprep.subr.bf16.mxu0 0
      %1834 = vmatpush1.bf16.msra.mxu0 0
      %1835 = vmatprep.subr.bf16.mxu0 0
      %1836 = vmatpush1.bf16.msra.mxu0 0
      %1837 = vmatprep.subr.bf16.mxu0 0
      %1838 = vmatpush1.bf16.msra.mxu0 0
      %1839 = vmatprep.subr.bf16.mxu0 0
      %1840 = vmatpush1.bf16.msra.mxu0 0
      %1841 = vmatprep.subr.bf16.mxu0 0
      %1842 = vmatpush1.bf16.msra.mxu0 0
      %1843 = vmatprep.subr.bf16.mxu0 0
      %1844 = vmatpush1.bf16.msra.mxu0 %v1815
      %1845 = vmatprep.subr.bf16.mxu0 0
      %1846 = vmatpush2.bf16.msra.mxu0 0
      %1847 = vmatprep.subr.bf16.mxu0 0
      %1848 = vmatpush2.bf16.msra.mxu0 0
      %1849 = vmatprep.subr.bf16.mxu0 0
      %1850 = vmatpush2.bf16.msra.mxu0 0
      %1851 = vmatprep.subr.bf16.mxu0 0
      %1852 = vmatpush2.bf16.msra.mxu0 0
      %1853 = vmatprep.subr.bf16.mxu0 0
      %1854 = vmatpush2.bf16.msra.mxu0 0
      %1855 = vmatprep.subr.bf16.mxu0 0
      %1856 = vmatpush2.bf16.msra.mxu0 0
      %1857 = vmatprep.subr.bf16.mxu0 0
      %1858 = vmatpush2.bf16.msra.mxu0 0
      %1859 = vmatprep.subr.bf16.mxu0 0
      %1860 = vmatpush2.bf16.msra.mxu0 0
      %1861 = vmatprep.mubr.bf16.mxu0 0
      %1862 = vmatmul.mubr.bf16.gmra.mxu0 %v1818
      %v1863 = vpop.f32.mrf.mxu0
      %v1864 = vadd.f32 %v1781, %v1863
      %v1865 = vpop.f32.mrf.mxu0
      %v1866 = vpop.f32.mrf.mxu0
      %v1867 = vadd.f32 %v1784, %v1866
      %v1868 = vpop.f32.mrf.mxu0
      %1869 = vmatprep.mubr.bf16.mxu0 0
      %1870 = vmatmul.mubr.bf16.gmra.mxu0 %v1821
      %v1871 = vpop.f32.mrf.mxu0
      %v1872 = vadd.f32 %v1789, %v1871
      %v1873 = vpop.f32.mrf.mxu0
      %v1874 = vpop.f32.mrf.mxu0
      %v1875 = vadd.f32 %v1792, %v1874
      %v1876 = vpop.f32.mrf.mxu0
      %1877 = vmatprep.mubr.bf16.mxu0 0
      %1878 = vmatmul.mubr.bf16.gmra.mxu0 %v1824
      %v1879 = vpop.f32.mrf.mxu0
      %v1880 = vadd.f32 %v1797, %v1879
      %v1881 = vpop.f32.mrf.mxu0
      %v1882 = vpop.f32.mrf.mxu0
      %v1883 = vadd.f32 %v1800, %v1882
      %v1884 = vpop.f32.mrf.mxu0
      %1885 = vmatprep.mubr.bf16.mxu0 0
      %1886 = vmatmul.mubr.bf16.gmra.mxu0 %v1827
      %v1887 = vpop.f32.mrf.mxu0
      %v1888 = vadd.f32 %v1805, %v1887
      %v1889 = vpop.f32.mrf.mxu0
      %v1890 = vpop.f32.mrf.mxu0
      %v1891 = vadd.f32 %v1808, %v1890
      %v1892 = vpop.f32.mrf.mxu0
      %1893 = vdwg.mxu0
      %v1894 = vpack.c.bf16 %v1707, %v1714
      %v1895 = vpack.c.bf16 %v1709, %v1708
      %v1896 = vpack.c.bf16 %v1711, %v1710
      %v1897 = vpack.c.bf16 %v1713, %v1712
      %s1898 = scalar_lea.vmem %s7, 16
      %v1899 = vld [vmem:[%s1898] sm:$0xf]
      %v1900 = vld [vmem:[%s1898 + $0x4] sm:$0xf]
      %v1903 = vunpack.c.l.b16 %v1899
      %v1904 = vunpack.c.l.b16 %v1900
      %v1905 = vpack.c.b16 %v1904, %v1903
      %v1908 = vsel %vm1580, %v1894, 0
      %v1911 = vsel %vm1580, %v1895, 0
      %v1914 = vsel %vm1580, %v1896, 0
      %v1917 = vsel %vm1580, %v1897, 0
      %1919 = vmatprep.subr.bf16.mxu0 0
      %1920 = vmatpush1.bf16.msra.mxu0 0
      %1921 = vmatprep.subr.bf16.mxu0 0
      %1922 = vmatpush1.bf16.msra.mxu0 0
      %1923 = vmatprep.subr.bf16.mxu0 0
      %1924 = vmatpush1.bf16.msra.mxu0 0
      %1925 = vmatprep.subr.bf16.mxu0 0
      %1926 = vmatpush1.bf16.msra.mxu0 0
      %1927 = vmatprep.subr.bf16.mxu0 0
      %1928 = vmatpush1.bf16.msra.mxu0 0
      %1929 = vmatprep.subr.bf16.mxu0 0
      %1930 = vmatpush1.bf16.msra.mxu0 0
      %1931 = vmatprep.subr.bf16.mxu0 0
      %1932 = vmatpush1.bf16.msra.mxu0 0
      %1933 = vmatprep.subr.bf16.mxu0 0
      %1934 = vmatpush1.bf16.msra.mxu0 %v1905
      %1935 = vmatprep.subr.bf16.mxu0 0
      %1936 = vmatpush2.bf16.msra.mxu0 0
      %1937 = vmatprep.subr.bf16.mxu0 0
      %1938 = vmatpush2.bf16.msra.mxu0 0
      %1939 = vmatprep.subr.bf16.mxu0 0
      %1940 = vmatpush2.bf16.msra.mxu0 0
      %1941 = vmatprep.subr.bf16.mxu0 0
      %1942 = vmatpush2.bf16.msra.mxu0 0
      %1943 = vmatprep.subr.bf16.mxu0 0
      %1944 = vmatpush2.bf16.msra.mxu0 0
      %1945 = vmatprep.subr.bf16.mxu0 0
      %1946 = vmatpush2.bf16.msra.mxu0 0
      %1947 = vmatprep.subr.bf16.mxu0 0
      %1948 = vmatpush2.bf16.msra.mxu0 0
      %1949 = vmatprep.subr.bf16.mxu0 0
      %1950 = vmatpush2.bf16.msra.mxu0 0
      %1951 = vmatprep.mubr.bf16.mxu0 0
      %1952 = vmatmul.mubr.bf16.gmra.mxu0 %v1908
      %v1953 = vpop.f32.mrf.mxu0
      %v1954 = vadd.f32 0.0, %v1953
      %v1955 = vpop.f32.mrf.mxu0
      %v1956 = vpop.f32.mrf.mxu0
      %v1957 = vadd.f32 0.0, %v1956
      %v1958 = vpop.f32.mrf.mxu0
      %1959 = vmatprep.mubr.bf16.mxu0 0
      %1960 = vmatmul.mubr.bf16.gmra.mxu0 %v1911
      %v1961 = vpop.f32.mrf.mxu0
      %v1962 = vadd.f32 0.0, %v1961
      %v1963 = vpop.f32.mrf.mxu0
      %v1964 = vpop.f32.mrf.mxu0
      %v1965 = vadd.f32 0.0, %v1964
      %v1966 = vpop.f32.mrf.mxu0
      %1967 = vmatprep.mubr.bf16.mxu0 0
      %1968 = vmatmul.mubr.bf16.gmra.mxu0 %v1914
      %v1969 = vpop.f32.mrf.mxu0
      %v1970 = vadd.f32 0.0, %v1969
      %v1971 = vpop.f32.mrf.mxu0
      %v1972 = vpop.f32.mrf.mxu0
      %v1973 = vadd.f32 0.0, %v1972
      %v1974 = vpop.f32.mrf.mxu0
      %1975 = vmatprep.mubr.bf16.mxu0 0
      %1976 = vmatmul.mubr.bf16.gmra.mxu0 %v1917
      %v1977 = vpop.f32.mrf.mxu0
      %v1978 = vadd.f32 0.0, %v1977
      %v1979 = vpop.f32.mrf.mxu0
      %v1980 = vpop.f32.mrf.mxu0
      %v1981 = vadd.f32 0.0, %v1980
      %v1982 = vpop.f32.mrf.mxu0
      %1983 = vdwg.mxu0
      %v1984 = vadd.f32 %v1864, %v1954
      %v1985 = vadd.f32 %v1867, %v1957
      %v1986 = vadd.f32 %v1872, %v1962
      %v1987 = vadd.f32 %v1875, %v1965
      %v1988 = vadd.f32 %v1880, %v1970
      %v1989 = vadd.f32 %v1883, %v1973
      %v1990 = vadd.f32 %v1888, %v1978
      %v1991 = vadd.f32 %v1891, %v1981
      %v1992 = vmul.f32 %v1984, %v566
      %v1993 = vmul.f32 %v1985, %v567
      %v1994 = vmul.f32 %v1986, %v568
      %v1995 = vmul.f32 %v1987, %v569
      %v1996 = vmul.f32 %v1988, %v570
      %v1997 = vmul.f32 %v1989, %v571
      %v1998 = vmul.f32 %v1990, %v572
      %v1999 = vmul.f32 %v1991, %v573
      %v2000 = vpack.c.bf16 %v1684, %v1683
      %v2001 = vpack.c.bf16 %v1686, %v1685
      %v2002 = vpack.c.bf16 %v1688, %v1687
      %v2003 = vpack.c.bf16 %v1690, %v1689
      %s2004 = scalar_lea.vmem %s7, 24
      %v2005 = vld [vmem:[%s2004] sm:$0xf]
      %v2006 = vld [vmem:[%s2004 + $0x4] sm:$0xf]
      %v2007 = vpack.c.bf16 %v1659, %v1658
      %v2008 = vpack.c.bf16 %v1661, %v1660
      %v2009 = vpack.c.bf16 %v1663, %v1662
      %v2010 = vpack.c.bf16 %v1665, %v1664
      %s2011 = scalar_lea.vmem %s7, 32
      %v2012 = vld [vmem:[%s2011] sm:$0xf]
      %v2013 = vld [vmem:[%s2011 + $0x4] sm:$0xf]
      %v2016 = vunpack.c.l.b16 %v2012
      %v2017 = vunpack.c.l.b16 %v2013
      %v2018 = vpack.c.b16 %v2017, %v2016
      %v2021 = vsel %vm1580, %v2007, 0
      %v2024 = vsel %vm1580, %v2008, 0
      %v2027 = vsel %vm1580, %v2009, 0
      %v2030 = vsel %vm1580, %v2010, 0
      %2032 = vmatprep.subr.bf16.mxu0 0
      %2033 = vmatpush1.bf16.msra.mxu0 0
      %2034 = vmatprep.subr.bf16.mxu0 0
      %2035 = vmatpush1.bf16.msra.mxu0 0
      %2036 = vmatprep.subr.bf16.mxu0 0
      %2037 = vmatpush1.bf16.msra.mxu0 0
      %2038 = vmatprep.subr.bf16.mxu0 0
      %2039 = vmatpush1.bf16.msra.mxu0 0
      %2040 = vmatprep.subr.bf16.mxu0 0
      %2041 = vmatpush1.bf16.msra.mxu0 0
      %2042 = vmatprep.subr.bf16.mxu0 0
      %2043 = vmatpush1.bf16.msra.mxu0 0
      %2044 = vmatprep.subr.bf16.mxu0 0
      %2045 = vmatpush1.bf16.msra.mxu0 0
      %2046 = vmatprep.subr.bf16.mxu0 0
      %2047 = vmatpush1.bf16.msra.mxu0 %v2018
      %2048 = vmatprep.subr.bf16.mxu0 0
      %2049 = vmatpush2.bf16.msra.mxu0 0
      %2050 = vmatprep.subr.bf16.mxu0 0
      %2051 = vmatpush2.bf16.msra.mxu0 0
      %2052 = vmatprep.subr.bf16.mxu0 0
      %2053 = vmatpush2.bf16.msra.mxu0 0
      %2054 = vmatprep.subr.bf16.mxu0 0
      %2055 = vmatpush2.bf16.msra.mxu0 0
      %2056 = vmatprep.subr.bf16.mxu0 0
      %2057 = vmatpush2.bf16.msra.mxu0 0
      %2058 = vmatprep.subr.bf16.mxu0 0
      %2059 = vmatpush2.bf16.msra.mxu0 0
      %2060 = vmatprep.subr.bf16.mxu0 0
      %2061 = vmatpush2.bf16.msra.mxu0 0
      %2062 = vmatprep.subr.bf16.mxu0 0
      %2063 = vmatpush2.bf16.msra.mxu0 0
      %2064 = vmatprep.mubr.bf16.mxu0 0
      %2065 = vmatmul.mubr.bf16.gmra.mxu0 %v2021
      %v2066 = vpop.f32.mrf.mxu0
      %v2067 = vadd.f32 0.0, %v2066
      %v2068 = vpop.f32.mrf.mxu0
      %v2069 = vpop.f32.mrf.mxu0
      %v2070 = vadd.f32 0.0, %v2069
      %v2071 = vpop.f32.mrf.mxu0
      %2072 = vmatprep.mubr.bf16.mxu0 0
      %2073 = vmatmul.mubr.bf16.gmra.mxu0 %v2024
      %v2074 = vpop.f32.mrf.mxu0
      %v2075 = vadd.f32 0.0, %v2074
      %v2076 = vpop.f32.mrf.mxu0
      %v2077 = vpop.f32.mrf.mxu0
      %v2078 = vadd.f32 0.0, %v2077
      %v2079 = vpop.f32.mrf.mxu0
      %2080 = vmatprep.mubr.bf16.mxu0 0
      %2081 = vmatmul.mubr.bf16.gmra.mxu0 %v2027
      %v2082 = vpop.f32.mrf.mxu0
      %v2083 = vadd.f32 0.0, %v2082
      %v2084 = vpop.f32.mrf.mxu0
      %v2085 = vpop.f32.mrf.mxu0
      %v2086 = vadd.f32 0.0, %v2085
      %v2087 = vpop.f32.mrf.mxu0
      %2088 = vmatprep.mubr.bf16.mxu0 0
      %2089 = vmatmul.mubr.bf16.gmra.mxu0 %v2030
      %v2090 = vpop.f32.mrf.mxu0
      %v2091 = vadd.f32 0.0, %v2090
      %v2092 = vpop.f32.mrf.mxu0
      %v2093 = vpop.f32.mrf.mxu0
      %v2094 = vadd.f32 0.0, %v2093
      %v2095 = vpop.f32.mrf.mxu0
      %2096 = vdwg.mxu0
      %v2099 = vunpack.c.l.b16 %v2005
      %v2100 = vunpack.c.l.b16 %v2006
      %v2101 = vpack.c.b16 %v2100, %v2099
      %v2104 = vsel %vm1580, %v2000, 0
      %v2107 = vsel %vm1580, %v2001, 0
      %v2110 = vsel %vm1580, %v2002, 0
      %v2113 = vsel %vm1580, %v2003, 0
      %2115 = vmatprep.subr.bf16.mxu0 0
      %2116 = vmatpush1.bf16.msra.mxu0 0
      %2117 = vmatprep.subr.bf16.mxu0 0
      %2118 = vmatpush1.bf16.msra.mxu0 0
      %2119 = vmatprep.subr.bf16.mxu0 0
      %2120 = vmatpush1.bf16.msra.mxu0 0
      %2121 = vmatprep.subr.bf16.mxu0 0
      %2122 = vmatpush1.bf16.msra.mxu0 0
      %2123 = vmatprep.subr.bf16.mxu0 0
      %2124 = vmatpush1.bf16.msra.mxu0 0
      %2125 = vmatprep.subr.bf16.mxu0 0
      %2126 = vmatpush1.bf16.msra.mxu0 0
      %2127 = vmatprep.subr.bf16.mxu0 0
      %2128 = vmatpush1.bf16.msra.mxu0 0
      %2129 = vmatprep.subr.bf16.mxu0 0
      %2130 = vmatpush1.bf16.msra.mxu0 %v2101
      %2131 = vmatprep.subr.bf16.mxu0 0
      %2132 = vmatpush2.bf16.msra.mxu0 0
      %2133 = vmatprep.subr.bf16.mxu0 0
      %2134 = vmatpush2.bf16.msra.mxu0 0
      %2135 = vmatprep.subr.bf16.mxu0 0
      %2136 = vmatpush2.bf16.msra.mxu0 0
      %2137 = vmatprep.subr.bf16.mxu0 0
      %2138 = vmatpush2.bf16.msra.mxu0 0
      %2139 = vmatprep.subr.bf16.mxu0 0
      %2140 = vmatpush2.bf16.msra.mxu0 0
      %2141 = vmatprep.subr.bf16.mxu0 0
      %2142 = vmatpush2.bf16.msra.mxu0 0
      %2143 = vmatprep.subr.bf16.mxu0 0
      %2144 = vmatpush2.bf16.msra.mxu0 0
      %2145 = vmatprep.subr.bf16.mxu0 0
      %2146 = vmatpush2.bf16.msra.mxu0 0
      %2147 = vmatprep.mubr.bf16.mxu0 0
      %2148 = vmatmul.mubr.bf16.gmra.mxu0 %v2104
      %v2149 = vpop.f32.mrf.mxu0
      %v2150 = vadd.f32 %v2067, %v2149
      %v2151 = vpop.f32.mrf.mxu0
      %v2152 = vpop.f32.mrf.mxu0
      %v2153 = vadd.f32 %v2070, %v2152
      %v2154 = vpop.f32.mrf.mxu0
      %2155 = vmatprep.mubr.bf16.mxu0 0
      %2156 = vmatmul.mubr.bf16.gmra.mxu0 %v2107
      %v2157 = vpop.f32.mrf.mxu0
      %v2158 = vadd.f32 %v2075, %v2157
      %v2159 = vpop.f32.mrf.mxu0
      %v2160 = vpop.f32.mrf.mxu0
      %v2161 = vadd.f32 %v2078, %v2160
      %v2162 = vpop.f32.mrf.mxu0
      %2163 = vmatprep.mubr.bf16.mxu0 0
      %2164 = vmatmul.mubr.bf16.gmra.mxu0 %v2110
      %v2165 = vpop.f32.mrf.mxu0
      %v2166 = vadd.f32 %v2083, %v2165
      %v2167 = vpop.f32.mrf.mxu0
      %v2168 = vpop.f32.mrf.mxu0
      %v2169 = vadd.f32 %v2086, %v2168
      %v2170 = vpop.f32.mrf.mxu0
      %2171 = vmatprep.mubr.bf16.mxu0 0
      %2172 = vmatmul.mubr.bf16.gmra.mxu0 %v2113
      %v2173 = vpop.f32.mrf.mxu0
      %v2174 = vadd.f32 %v2091, %v2173
      %v2175 = vpop.f32.mrf.mxu0
      %v2176 = vpop.f32.mrf.mxu0
      %v2177 = vadd.f32 %v2094, %v2176
      %v2178 = vpop.f32.mrf.mxu0
      %2179 = vdwg.mxu0
      %v2180 = vpack.c.bf16 %v1708, %v1707
      %v2181 = vpack.c.bf16 %v1710, %v1709
      %v2182 = vpack.c.bf16 %v1712, %v1711
      %v2183 = vpack.c.bf16 %v1714, %v1713
      %s2184 = scalar_lea.vmem %s7, 40
      %v2185 = vld [vmem:[%s2184] sm:$0xf]
      %v2186 = vld [vmem:[%s2184 + $0x4] sm:$0xf]
      %v2189 = vunpack.c.l.b16 %v2185
      %v2190 = vunpack.c.l.b16 %v2186
      %v2191 = vpack.c.b16 %v2190, %v2189
      %v2194 = vsel %vm1580, %v2180, 0
      %v2197 = vsel %vm1580, %v2181, 0
      %v2200 = vsel %vm1580, %v2182, 0
      %v2203 = vsel %vm1580, %v2183, 0
      %2205 = vmatprep.subr.bf16.mxu0 0
      %2206 = vmatpush1.bf16.msra.mxu0 0
      %2207 = vmatprep.subr.bf16.mxu0 0
      %2208 = vmatpush1.bf16.msra.mxu0 0
      %2209 = vmatprep.subr.bf16.mxu0 0
      %2210 = vmatpush1.bf16.msra.mxu0 0
      %2211 = vmatprep.subr.bf16.mxu0 0
      %2212 = vmatpush1.bf16.msra.mxu0 0
      %2213 = vmatprep.subr.bf16.mxu0 0
      %2214 = vmatpush1.bf16.msra.mxu0 0
      %2215 = vmatprep.subr.bf16.mxu0 0
      %2216 = vmatpush1.bf16.msra.mxu0 0
      %2217 = vmatprep.subr.bf16.mxu0 0
      %2218 = vmatpush1.bf16.msra.mxu0 0
      %2219 = vmatprep.subr.bf16.mxu0 0
      %2220 = vmatpush1.bf16.msra.mxu0 %v2191
      %2221 = vmatprep.subr.bf16.mxu0 0
      %2222 = vmatpush2.bf16.msra.mxu0 0
      %2223 = vmatprep.subr.bf16.mxu0 0
      %2224 = vmatpush2.bf16.msra.mxu0 0
      %2225 = vmatprep.subr.bf16.mxu0 0
      %2226 = vmatpush2.bf16.msra.mxu0 0
      %2227 = vmatprep.subr.bf16.mxu0 0
      %2228 = vmatpush2.bf16.msra.mxu0 0
      %2229 = vmatprep.subr.bf16.mxu0 0
      %2230 = vmatpush2.bf16.msra.mxu0 0
      %2231 = vmatprep.subr.bf16.mxu0 0
      %2232 = vmatpush2.bf16.msra.mxu0 0
      %2233 = vmatprep.subr.bf16.mxu0 0
      %2234 = vmatpush2.bf16.msra.mxu0 0
      %2235 = vmatprep.subr.bf16.mxu0 0
      %2236 = vmatpush2.bf16.msra.mxu0 0
      %2237 = vmatprep.mubr.bf16.mxu0 0
      %2238 = vmatmul.mubr.bf16.gmra.mxu0 %v2194
      %v2239 = vpop.f32.mrf.mxu0
      %v2240 = vadd.f32 0.0, %v2239
      %v2241 = vpop.f32.mrf.mxu0
      %v2242 = vpop.f32.mrf.mxu0
      %v2243 = vadd.f32 0.0, %v2242
      %v2244 = vpop.f32.mrf.mxu0
      %2245 = vmatprep.mubr.bf16.mxu0 0
      %2246 = vmatmul.mubr.bf16.gmra.mxu0 %v2197
      %v2247 = vpop.f32.mrf.mxu0
      %v2248 = vadd.f32 0.0, %v2247
      %v2249 = vpop.f32.mrf.mxu0
      %v2250 = vpop.f32.mrf.mxu0
      %v2251 = vadd.f32 0.0, %v2250
      %v2252 = vpop.f32.mrf.mxu0
      %2253 = vmatprep.mubr.bf16.mxu0 0
      %2254 = vmatmul.mubr.bf16.gmra.mxu0 %v2200
      %v2255 = vpop.f32.mrf.mxu0
      %v2256 = vadd.f32 0.0, %v2255
      %v2257 = vpop.f32.mrf.mxu0
      %v2258 = vpop.f32.mrf.mxu0
      %v2259 = vadd.f32 0.0, %v2258
      %v2260 = vpop.f32.mrf.mxu0
      %2261 = vmatprep.mubr.bf16.mxu0 0
      %2262 = vmatmul.mubr.bf16.gmra.mxu0 %v2203
      %v2263 = vpop.f32.mrf.mxu0
      %v2264 = vadd.f32 0.0, %v2263
      %v2265 = vpop.f32.mrf.mxu0
      %v2266 = vpop.f32.mrf.mxu0
      %v2267 = vadd.f32 0.0, %v2266
      %v2268 = vpop.f32.mrf.mxu0
      %2269 = vdwg.mxu0
      %v2270 = vadd.f32 %v2150, %v2240
      %v2271 = vadd.f32 %v2153, %v2243
      %v2272 = vadd.f32 %v2158, %v2248
      %v2273 = vadd.f32 %v2161, %v2251
      %v2274 = vadd.f32 %v2166, %v2256
      %v2275 = vadd.f32 %v2169, %v2259
      %v2276 = vadd.f32 %v2174, %v2264
      %v2277 = vadd.f32 %v2177, %v2267
      %v2278 = vadd.f32 %v1992, %v2270
      %v2279 = vadd.f32 %v1993, %v2271
      %v2280 = vadd.f32 %v1994, %v2272
      %v2281 = vadd.f32 %v1995, %v2273
      %v2282 = vadd.f32 %v1996, %v2274
      %v2283 = vadd.f32 %v1997, %v2275
      %v2284 = vadd.f32 %v1998, %v2276
      %v2285 = vadd.f32 %v1999, %v2277
      %s2286 = scalar_lea.vmem %s7, 48
      %v2287 = vld [vmem:[%s2286] sm:$0xf]
      %v2288 = vld [vmem:[%s2286 + $0x4] sm:$0xf]
      %s2289 = scalar_lea.vmem %s7, 56
      %v2290 = vld [vmem:[%s2289] sm:$0xf]
      %v2291 = vld [vmem:[%s2289 + $0x4] sm:$0xf]
      %v2294 = vunpack.c.l.b16 %v2290
      %v2295 = vunpack.c.l.b16 %v2291
      %v2296 = vpack.c.b16 %v2295, %v2294
      %2298 = vmatprep.subr.bf16.mxu0 0
      %2299 = vmatpush1.bf16.msra.mxu0 0
      %2300 = vmatprep.subr.bf16.mxu0 0
      %2301 = vmatpush1.bf16.msra.mxu0 0
      %2302 = vmatprep.subr.bf16.mxu0 0
      %2303 = vmatpush1.bf16.msra.mxu0 0
      %2304 = vmatprep.subr.bf16.mxu0 0
      %2305 = vmatpush1.bf16.msra.mxu0 0
      %2306 = vmatprep.subr.bf16.mxu0 0
      %2307 = vmatpush1.bf16.msra.mxu0 0
      %2308 = vmatprep.subr.bf16.mxu0 0
      %2309 = vmatpush1.bf16.msra.mxu0 0
      %2310 = vmatprep.subr.bf16.mxu0 0
      %2311 = vmatpush1.bf16.msra.mxu0 0
      %2312 = vmatprep.subr.bf16.mxu0 0
      %2313 = vmatpush1.bf16.msra.mxu0 %v2296
      %2314 = vmatprep.subr.bf16.mxu0 0
      %2315 = vmatpush2.bf16.msra.mxu0 0
      %2316 = vmatprep.subr.bf16.mxu0 0
      %2317 = vmatpush2.bf16.msra.mxu0 0
      %2318 = vmatprep.subr.bf16.mxu0 0
      %2319 = vmatpush2.bf16.msra.mxu0 0
      %2320 = vmatprep.subr.bf16.mxu0 0
      %2321 = vmatpush2.bf16.msra.mxu0 0
      %2322 = vmatprep.subr.bf16.mxu0 0
      %2323 = vmatpush2.bf16.msra.mxu0 0
      %2324 = vmatprep.subr.bf16.mxu0 0
      %2325 = vmatpush2.bf16.msra.mxu0 0
      %2326 = vmatprep.subr.bf16.mxu0 0
      %2327 = vmatpush2.bf16.msra.mxu0 0
      %2328 = vmatprep.subr.bf16.mxu0 0
      %2329 = vmatpush2.bf16.msra.mxu0 0
      %2330 = vmatprep.mubr.bf16.mxu0 0
      %2331 = vmatmul.mubr.bf16.gmra.mxu0 %v1738
      %v2332 = vpop.f32.mrf.mxu0
      %v2333 = vadd.f32 0.0, %v2332
      %v2334 = vpop.f32.mrf.mxu0
      %v2335 = vpop.f32.mrf.mxu0
      %v2336 = vadd.f32 0.0, %v2335
      %v2337 = vpop.f32.mrf.mxu0
      %2338 = vmatprep.mubr.bf16.mxu0 0
      %2339 = vmatmul.mubr.bf16.gmra.mxu0 %v1741
      %v2340 = vpop.f32.mrf.mxu0
      %v2341 = vadd.f32 0.0, %v2340
      %v2342 = vpop.f32.mrf.mxu0
      %v2343 = vpop.f32.mrf.mxu0
      %v2344 = vadd.f32 0.0, %v2343
      %v2345 = vpop.f32.mrf.mxu0
      %2346 = vmatprep.mubr.bf16.mxu0 0
      %2347 = vmatmul.mubr.bf16.gmra.mxu0 %v1744
      %v2348 = vpop.f32.mrf.mxu0
      %v2349 = vadd.f32 0.0, %v2348
      %v2350 = vpop.f32.mrf.mxu0
      %v2351 = vpop.f32.mrf.mxu0
      %v2352 = vadd.f32 0.0, %v2351
      %v2353 = vpop.f32.mrf.mxu0
      %2354 = vmatprep.mubr.bf16.mxu0 0
      %2355 = vmatmul.mubr.bf16.gmra.mxu0 %v1735
      %v2356 = vpop.f32.mrf.mxu0
      %v2357 = vadd.f32 0.0, %v2356
      %v2358 = vpop.f32.mrf.mxu0
      %v2359 = vpop.f32.mrf.mxu0
      %v2360 = vadd.f32 0.0, %v2359
      %v2361 = vpop.f32.mrf.mxu0
      %2362 = vdwg.mxu0
      %v2365 = vunpack.c.l.b16 %v2287
      %v2366 = vunpack.c.l.b16 %v2288
      %v2367 = vpack.c.b16 %v2366, %v2365
      %2369 = vmatprep.subr.bf16.mxu0 0
      %2370 = vmatpush1.bf16.msra.mxu0 0
      %2371 = vmatprep.subr.bf16.mxu0 0
      %2372 = vmatpush1.bf16.msra.mxu0 0
      %2373 = vmatprep.subr.bf16.mxu0 0
      %2374 = vmatpush1.bf16.msra.mxu0 0
      %2375 = vmatprep.subr.bf16.mxu0 0
      %2376 = vmatpush1.bf16.msra.mxu0 0
      %2377 = vmatprep.subr.bf16.mxu0 0
      %2378 = vmatpush1.bf16.msra.mxu0 0
      %2379 = vmatprep.subr.bf16.mxu0 0
      %2380 = vmatpush1.bf16.msra.mxu0 0
      %2381 = vmatprep.subr.bf16.mxu0 0
      %2382 = vmatpush1.bf16.msra.mxu0 0
      %2383 = vmatprep.subr.bf16.mxu0 0
      %2384 = vmatpush1.bf16.msra.mxu0 %v2367
      %2385 = vmatprep.subr.bf16.mxu0 0
      %2386 = vmatpush2.bf16.msra.mxu0 0
      %2387 = vmatprep.subr.bf16.mxu0 0
      %2388 = vmatpush2.bf16.msra.mxu0 0
      %2389 = vmatprep.subr.bf16.mxu0 0
      %2390 = vmatpush2.bf16.msra.mxu0 0
      %2391 = vmatprep.subr.bf16.mxu0 0
      %2392 = vmatpush2.bf16.msra.mxu0 0
      %2393 = vmatprep.subr.bf16.mxu0 0
      %2394 = vmatpush2.bf16.msra.mxu0 0
      %2395 = vmatprep.subr.bf16.mxu0 0
      %2396 = vmatpush2.bf16.msra.mxu0 0
      %2397 = vmatprep.subr.bf16.mxu0 0
      %2398 = vmatpush2.bf16.msra.mxu0 0
      %2399 = vmatprep.subr.bf16.mxu0 0
      %2400 = vmatpush2.bf16.msra.mxu0 0
      %2401 = vmatprep.mubr.bf16.mxu0 0
      %2402 = vmatmul.mubr.bf16.gmra.mxu0 %v1821
      %v2403 = vpop.f32.mrf.mxu0
      %v2404 = vadd.f32 %v2333, %v2403
      %v2405 = vpop.f32.mrf.mxu0
      %v2406 = vpop.f32.mrf.mxu0
      %v2407 = vadd.f32 %v2336, %v2406
      %v2408 = vpop.f32.mrf.mxu0
      %2409 = vmatprep.mubr.bf16.mxu0 0
      %2410 = vmatmul.mubr.bf16.gmra.mxu0 %v1824
      %v2411 = vpop.f32.mrf.mxu0
      %v2412 = vadd.f32 %v2341, %v2411
      %v2413 = vpop.f32.mrf.mxu0
      %v2414 = vpop.f32.mrf.mxu0
      %v2415 = vadd.f32 %v2344, %v2414
      %v2416 = vpop.f32.mrf.mxu0
      %2417 = vmatprep.mubr.bf16.mxu0 0
      %2418 = vmatmul.mubr.bf16.gmra.mxu0 %v1827
      %v2419 = vpop.f32.mrf.mxu0
      %v2420 = vadd.f32 %v2349, %v2419
      %v2421 = vpop.f32.mrf.mxu0
      %v2422 = vpop.f32.mrf.mxu0
      %v2423 = vadd.f32 %v2352, %v2422
      %v2424 = vpop.f32.mrf.mxu0
      %2425 = vmatprep.mubr.bf16.mxu0 0
      %2426 = vmatmul.mubr.bf16.gmra.mxu0 %v1818
      %v2427 = vpop.f32.mrf.mxu0
      %v2428 = vadd.f32 %v2357, %v2427
      %v2429 = vpop.f32.mrf.mxu0
      %v2430 = vpop.f32.mrf.mxu0
      %v2431 = vadd.f32 %v2360, %v2430
      %v2432 = vpop.f32.mrf.mxu0
      %2433 = vdwg.mxu0
      %s2434 = scalar_lea.vmem %s7, 64
      %v2435 = vld [vmem:[%s2434] sm:$0xf]
      %v2436 = vld [vmem:[%s2434 + $0x4] sm:$0xf]
      %v2439 = vunpack.c.l.b16 %v2435
      %v2440 = vunpack.c.l.b16 %v2436
      %v2441 = vpack.c.b16 %v2440, %v2439
      %2443 = vmatprep.subr.bf16.mxu0 0
      %2444 = vmatpush1.bf16.msra.mxu0 0
      %2445 = vmatprep.subr.bf16.mxu0 0
      %2446 = vmatpush1.bf16.msra.mxu0 0
      %2447 = vmatprep.subr.bf16.mxu0 0
      %2448 = vmatpush1.bf16.msra.mxu0 0
      %2449 = vmatprep.subr.bf16.mxu0 0
      %2450 = vmatpush1.bf16.msra.mxu0 0
      %2451 = vmatprep.subr.bf16.mxu0 0
      %2452 = vmatpush1.bf16.msra.mxu0 0
      %2453 = vmatprep.subr.bf16.mxu0 0
      %2454 = vmatpush1.bf16.msra.mxu0 0
      %2455 = vmatprep.subr.bf16.mxu0 0
      %2456 = vmatpush1.bf16.msra.mxu0 0
      %2457 = vmatprep.subr.bf16.mxu0 0
      %2458 = vmatpush1.bf16.msra.mxu0 %v2441
      %2459 = vmatprep.subr.bf16.mxu0 0
      %2460 = vmatpush2.bf16.msra.mxu0 0
      %2461 = vmatprep.subr.bf16.mxu0 0
      %2462 = vmatpush2.bf16.msra.mxu0 0
      %2463 = vmatprep.subr.bf16.mxu0 0
      %2464 = vmatpush2.bf16.msra.mxu0 0
      %2465 = vmatprep.subr.bf16.mxu0 0
      %2466 = vmatpush2.bf16.msra.mxu0 0
      %2467 = vmatprep.subr.bf16.mxu0 0
      %2468 = vmatpush2.bf16.msra.mxu0 0
      %2469 = vmatprep.subr.bf16.mxu0 0
      %2470 = vmatpush2.bf16.msra.mxu0 0
      %2471 = vmatprep.subr.bf16.mxu0 0
      %2472 = vmatpush2.bf16.msra.mxu0 0
      %2473 = vmatprep.subr.bf16.mxu0 0
      %2474 = vmatpush2.bf16.msra.mxu0 0
      %2475 = vmatprep.mubr.bf16.mxu0 0
      %2476 = vmatmul.mubr.bf16.gmra.mxu0 %v1911
      %v2477 = vpop.f32.mrf.mxu0
      %v2478 = vadd.f32 0.0, %v2477
      %v2479 = vpop.f32.mrf.mxu0
      %v2480 = vpop.f32.mrf.mxu0
      %v2481 = vadd.f32 0.0, %v2480
      %v2482 = vpop.f32.mrf.mxu0
      %2483 = vmatprep.mubr.bf16.mxu0 0
      %2484 = vmatmul.mubr.bf16.gmra.mxu0 %v1914
      %v2485 = vpop.f32.mrf.mxu0
      %v2486 = vadd.f32 0.0, %v2485
      %v2487 = vpop.f32.mrf.mxu0
      %v2488 = vpop.f32.mrf.mxu0
      %v2489 = vadd.f32 0.0, %v2488
      %v2490 = vpop.f32.mrf.mxu0
      %2491 = vmatprep.mubr.bf16.mxu0 0
      %2492 = vmatmul.mubr.bf16.gmra.mxu0 %v1917
      %v2493 = vpop.f32.mrf.mxu0
      %v2494 = vadd.f32 0.0, %v2493
      %v2495 = vpop.f32.mrf.mxu0
      %v2496 = vpop.f32.mrf.mxu0
      %v2497 = vadd.f32 0.0, %v2496
      %v2498 = vpop.f32.mrf.mxu0
      %2499 = vmatprep.mubr.bf16.mxu0 0
      %2500 = vmatmul.mubr.bf16.gmra.mxu0 %v1908
      %v2501 = vpop.f32.mrf.mxu0
      %v2502 = vadd.f32 0.0, %v2501
      %v2503 = vpop.f32.mrf.mxu0
      %v2504 = vpop.f32.mrf.mxu0
      %v2505 = vadd.f32 0.0, %v2504
      %v2506 = vpop.f32.mrf.mxu0
      %2507 = vdwg.mxu0
      %v2508 = vadd.f32 %v2404, %v2478
      %v2509 = vadd.f32 %v2407, %v2481
      %v2510 = vadd.f32 %v2412, %v2486
      %v2511 = vadd.f32 %v2415, %v2489
      %v2512 = vadd.f32 %v2420, %v2494
      %v2513 = vadd.f32 %v2423, %v2497
      %v2514 = vadd.f32 %v2428, %v2502
      %v2515 = vadd.f32 %v2431, %v2505
      %v2516 = vmul.f32 %v2508, %v590
      %v2517 = vmul.f32 %v2509, %v591
      %v2518 = vmul.f32 %v2510, %v592
      %v2519 = vmul.f32 %v2511, %v593
      %v2520 = vmul.f32 %v2512, %v594
      %v2521 = vmul.f32 %v2513, %v595
      %v2522 = vmul.f32 %v2514, %v596
      %v2523 = vmul.f32 %v2515, %v597
      %v2524 = vadd.f32 %v2278, %v2516
      %v2525 = vadd.f32 %v2279, %v2517
      %v2526 = vadd.f32 %v2280, %v2518
      %v2527 = vadd.f32 %v2281, %v2519
      %v2528 = vadd.f32 %v2282, %v2520
      %v2529 = vadd.f32 %v2283, %v2521
      %v2530 = vadd.f32 %v2284, %v2522
      %v2531 = vadd.f32 %v2285, %v2523
      %v2533 = vlaneseq
      %v2534 = vshrl.u32 %v2533, 7
      %v2535 = vsub.s32 0, %v2534
      %v2536 = vrot.slane %v1666, %v2535
      %v2538 = vadd.f32 %v2524, %v2536
      %v2539 = vadd.f32 %v2525, %v2536
      %v2540 = vadd.f32 %v2526, %v2536
      %v2541 = vadd.f32 %v2527, %v2536
      %v2542 = vadd.f32 %v2528, %v2536
      %v2543 = vadd.f32 %v2529, %v2536
      %v2544 = vadd.f32 %v2530, %v2536
      %v2545 = vadd.f32 %v2531, %v2536
      %v2546 = vpack.c.bf16 %v2539, %v2538
      %v2547 = vpack.c.bf16 %v2541, %v2540
      %v2548 = vpack.c.bf16 %v2543, %v2542
      %v2549 = vpack.c.bf16 %v2545, %v2544
      %v2551 = vsel %vm625, %v2546, 0
      %v2554 = vsel %vm625, %v2547, 0
      %v2557 = vsel %vm625, %v2548, 0
      %v2560 = vsel %vm625, %v2549, 0
      %v2563 = vsel %vm638, %v604, 0
      %2565 = vmatprep.subr.bf16.mxu0 0
      %2566 = vmatpush1.bf16.msra.mxu0 0
      %2567 = vmatprep.subr.bf16.mxu0 0
      %2568 = vmatpush1.bf16.msra.mxu0 0
      %2569 = vmatprep.subr.bf16.mxu0 0
      %2570 = vmatpush1.bf16.msra.mxu0 0
      %2571 = vmatprep.subr.bf16.mxu0 0
      %2572 = vmatpush1.bf16.msra.mxu0 0
      %2573 = vmatprep.subr.bf16.mxu0 0
      %2574 = vmatpush1.bf16.msra.mxu0 0
      %2575 = vmatprep.subr.bf16.mxu0 0
      %2576 = vmatpush1.bf16.msra.mxu0 0
      %2577 = vmatprep.subr.bf16.mxu0 0
      %2578 = vmatpush1.bf16.msra.mxu0 0
      %2579 = vmatprep.subr.bf16.mxu0 0
      %2580 = vmatpush1.bf16.msra.mxu0 %v2563
      %2581 = vmatprep.subr.bf16.mxu0 0
      %2582 = vmatpush2.bf16.msra.mxu0 0
      %2583 = vmatprep.subr.bf16.mxu0 0
      %2584 = vmatpush2.bf16.msra.mxu0 0
      %2585 = vmatprep.subr.bf16.mxu0 0
      %2586 = vmatpush2.bf16.msra.mxu0 0
      %2587 = vmatprep.subr.bf16.mxu0 0
      %2588 = vmatpush2.bf16.msra.mxu0 0
      %2589 = vmatprep.subr.bf16.mxu0 0
      %2590 = vmatpush2.bf16.msra.mxu0 0
      %2591 = vmatprep.subr.bf16.mxu0 0
      %2592 = vmatpush2.bf16.msra.mxu0 0
      %2593 = vmatprep.subr.bf16.mxu0 0
      %2594 = vmatpush2.bf16.msra.mxu0 0
      %2595 = vmatprep.subr.bf16.mxu0 0
      %2596 = vmatpush2.bf16.msra.mxu0 0
      %2597 = vmatprep.mubr.bf16.mxu0 0
      %2598 = vmatmul.mubr.bf16.gmra.mxu0 %v2551
      %v2599 = vpop.f32.mrf.mxu0
      %v2600 = vadd.f32 2.0, %v2599
      %v2601 = vpop.f32.mrf.mxu0
      %v2602 = vpop.f32.mrf.mxu0
      %v2603 = vadd.f32 2.0, %v2602
      %v2604 = vpop.f32.mrf.mxu0
      %2605 = vmatprep.mubr.bf16.mxu0 0
      %2606 = vmatmul.mubr.bf16.gmra.mxu0 %v2554
      %v2607 = vpop.f32.mrf.mxu0
      %v2608 = vadd.f32 2.0, %v2607
      %v2609 = vpop.f32.mrf.mxu0
      %v2610 = vpop.f32.mrf.mxu0
      %v2611 = vadd.f32 2.0, %v2610
      %v2612 = vpop.f32.mrf.mxu0
      %2613 = vmatprep.mubr.bf16.mxu0 0
      %2614 = vmatmul.mubr.bf16.gmra.mxu0 %v2557
      %v2615 = vpop.f32.mrf.mxu0
      %v2616 = vadd.f32 2.0, %v2615
      %v2617 = vpop.f32.mrf.mxu0
      %v2618 = vpop.f32.mrf.mxu0
      %v2619 = vadd.f32 2.0, %v2618
      %v2620 = vpop.f32.mrf.mxu0
      %2621 = vmatprep.mubr.bf16.mxu0 0
      %2622 = vmatmul.mubr.bf16.gmra.mxu0 %v2560
      %v2623 = vpop.f32.mrf.mxu0
      %v2624 = vadd.f32 2.0, %v2623
      %v2625 = vpop.f32.mrf.mxu0
      %v2626 = vpop.f32.mrf.mxu0
      %v2627 = vadd.f32 2.0, %v2626
      %v2628 = vpop.f32.mrf.mxu0
      %2629 = vdwg.mxu0
      %v2630 = vmin.f32 %v2600, 0.0
      %v2631 = vmin.f32 %v2603, 0.0
      %v2632 = vmin.f32 %v2608, 0.0
      %v2633 = vmin.f32 %v2611, 0.0
      %v2634 = vmin.f32 %v2616, 0.0
      %v2635 = vmin.f32 %v2619, 0.0
      %v2636 = vmin.f32 %v2624, 0.0
      %v2637 = vmin.f32 %v2627, 0.0
      %v2638 = vand.u32 2147483647, %v2600
      %v2639 = vand.u32 2147483647, %v2603
      %v2640 = vand.u32 2147483647, %v2608
      %v2641 = vand.u32 2147483647, %v2611
      %v2642 = vand.u32 2147483647, %v2616
      %v2643 = vand.u32 2147483647, %v2619
      %v2644 = vand.u32 2147483647, %v2624
      %v2645 = vand.u32 2147483647, %v2627
      %v2646 = vsub.f32 0.0, %v2638
      %v2647 = vsub.f32 0.0, %v2639
      %v2648 = vsub.f32 0.0, %v2640
      %v2649 = vsub.f32 0.0, %v2641
      %v2650 = vsub.f32 0.0, %v2642
      %v2651 = vsub.f32 0.0, %v2643
      %v2652 = vsub.f32 0.0, %v2644
      %v2653 = vsub.f32 0.0, %v2645
      %v2654 = vmul.f32 %v2646, 1.442695
      %v2655 = vpow.pop %v2654
      %v2656 = vmul.f32 %v2647, 1.442695
      %v2657 = vpow.pop %v2656
      %v2658 = vmul.f32 %v2648, 1.442695
      %v2659 = vpow.pop %v2658
      %v2660 = vmul.f32 %v2649, 1.442695
      %v2661 = vpow.pop %v2660
      %v2662 = vmul.f32 %v2650, 1.442695
      %v2663 = vpow.pop %v2662
      %v2664 = vmul.f32 %v2651, 1.442695
      %v2665 = vpow.pop %v2664
      %v2666 = vmul.f32 %v2652, 1.442695
      %v2667 = vpow.pop %v2666
      %v2668 = vmul.f32 %v2653, 1.442695
      %v2669 = vpow.pop %v2668
      %v2670 = vadd.f32 %v2655, 1.0
      %v2671 = vadd.f32 %v2657, 1.0
      %v2672 = vadd.f32 %v2659, 1.0
      %v2673 = vadd.f32 %v2661, 1.0
      %v2674 = vadd.f32 %v2663, 1.0
      %v2675 = vadd.f32 %v2665, 1.0
      %v2676 = vadd.f32 %v2667, 1.0
      %v2677 = vadd.f32 %v2669, 1.0
      %v2678 = vlog2.pop %v2670
      %v2679 = vmul.f32 %v2678, 0.6931472
      %v2680 = vlog2.pop %v2671
      %v2681 = vmul.f32 %v2680, 0.6931472
      %v2682 = vlog2.pop %v2672
      %v2683 = vmul.f32 %v2682, 0.6931472
      %v2684 = vlog2.pop %v2673
      %v2685 = vmul.f32 %v2684, 0.6931472
      %v2686 = vlog2.pop %v2674
      %v2687 = vmul.f32 %v2686, 0.6931472
      %v2688 = vlog2.pop %v2675
      %v2689 = vmul.f32 %v2688, 0.6931472
      %v2690 = vlog2.pop %v2676
      %v2691 = vmul.f32 %v2690, 0.6931472
      %v2692 = vlog2.pop %v2677
      %v2693 = vmul.f32 %v2692, 0.6931472
      %v2694 = vsub.f32 %v2630, %v2679
      %v2695 = vsub.f32 %v2631, %v2681
      %v2696 = vsub.f32 %v2632, %v2683
      %v2697 = vsub.f32 %v2633, %v2685
      %v2698 = vsub.f32 %v2634, %v2687
      %v2699 = vsub.f32 %v2635, %v2689
      %v2700 = vsub.f32 %v2636, %v2691
      %v2701 = vsub.f32 %v2637, %v2693
      %v2702 = vmul.f32 %v2694, 1.442695
      %v2703 = vpow.pop %v2702
      %v2704 = vmul.f32 %v2695, 1.442695
      %v2705 = vpow.pop %v2704
      %v2706 = vmul.f32 %v2696, 1.442695
      %v2707 = vpow.pop %v2706
      %v2708 = vmul.f32 %v2697, 1.442695
      %v2709 = vpow.pop %v2708
      %v2710 = vmul.f32 %v2698, 1.442695
      %v2711 = vpow.pop %v2710
      %v2712 = vmul.f32 %v2699, 1.442695
      %v2713 = vpow.pop %v2712
      %v2714 = vmul.f32 %v2700, 1.442695
      %v2715 = vpow.pop %v2714
      %v2716 = vmul.f32 %v2701, 1.442695
      %v2717 = vpow.pop %v2716
      %v2718 = vmul.f32 %v677, %v603
      %v2719 = vmul.f32 %v680, %v603
      %v2720 = vmul.f32 %v685, %v603
      %v2721 = vmul.f32 %v688, %v603
      %v2722 = vmul.f32 %v693, %v603
      %v2723 = vmul.f32 %v696, %v603
      %v2724 = vmul.f32 %v701, %v603
      %v2725 = vmul.f32 %v704, %v603
      %v2726 = vadd.f32 %v677, %v2538
      %v2727 = vadd.f32 %v680, %v2539
      %v2728 = vadd.f32 %v685, %v2540
      %v2729 = vadd.f32 %v688, %v2541
      %v2730 = vadd.f32 %v693, %v2542
      %v2731 = vadd.f32 %v696, %v2543
      %v2732 = vadd.f32 %v701, %v2544
      %v2733 = vadd.f32 %v704, %v2545
      %v2734 = vmul.f32 %v2726, %v602
      %v2735 = vmul.f32 %v2727, %v602
      %v2736 = vmul.f32 %v2728, %v602
      %v2737 = vmul.f32 %v2729, %v602
      %v2738 = vmul.f32 %v2730, %v602
      %v2739 = vmul.f32 %v2731, %v602
      %v2740 = vmul.f32 %v2732, %v602
      %v2741 = vmul.f32 %v2733, %v602
      %v2742 = vmul.f32 %v2734, %v2703
      %v2743 = vmul.f32 %v2735, %v2705
      %v2744 = vmul.f32 %v2736, %v2707
      %v2745 = vmul.f32 %v2737, %v2709
      %v2746 = vmul.f32 %v2738, %v2711
      %v2747 = vmul.f32 %v2739, %v2713
      %v2748 = vmul.f32 %v2740, %v2715
      %v2749 = vmul.f32 %v2741, %v2717
      %v2750 = vadd.f32 %v2718, %v2742
      %v2751 = vadd.f32 %v2719, %v2743
      %v2752 = vadd.f32 %v2720, %v2744
      %v2753 = vadd.f32 %v2721, %v2745
      %v2754 = vadd.f32 %v2722, %v2746
      %v2755 = vadd.f32 %v2723, %v2747
      %v2756 = vadd.f32 %v2724, %v2748
      %v2757 = vadd.f32 %v2725, %v2749
      %v2758 = vmul.f32 %v2694, %v602
      %v2759 = vmul.f32 %v2695, %v602
      %v2760 = vmul.f32 %v2696, %v602
      %v2761 = vmul.f32 %v2697, %v602
      %v2762 = vmul.f32 %v2698, %v602
      %v2763 = vmul.f32 %v2699, %v602
      %v2764 = vmul.f32 %v2700, %v602
      %v2765 = vmul.f32 %v2701, %v602
      %v2766 = vsel %vm625, %v2758, 0.0
      %2767 = vadd.xlane.f32.xlu0 %v2766
      %v2768 = vpop.xlane.xlu0 %2767
      %v2769 = vsel %vm625, %v2759, 0.0
      %2770 = vadd.xlane.f32.xlu0 %v2769
      %v2771 = vpop.xlane.xlu0 %2770
      %v2772 = vsel %vm625, %v2760, 0.0
      %2773 = vadd.xlane.f32.xlu0 %v2772
      %v2774 = vpop.xlane.xlu0 %2773
      %v2775 = vsel %vm625, %v2761, 0.0
      %2776 = vadd.xlane.f32.xlu0 %v2775
      %v2777 = vpop.xlane.xlu0 %2776
      %v2778 = vsel %vm625, %v2762, 0.0
      %2779 = vadd.xlane.f32.xlu0 %v2778
      %v2780 = vpop.xlane.xlu0 %2779
      %v2781 = vsel %vm625, %v2763, 0.0
      %2782 = vadd.xlane.f32.xlu0 %v2781
      %v2783 = vpop.xlane.xlu0 %2782
      %v2784 = vsel %vm625, %v2764, 0.0
      %2785 = vadd.xlane.f32.xlu0 %v2784
      %v2786 = vpop.xlane.xlu0 %2785
      %v2787 = vsel %vm625, %v2765, 0.0
      %2788 = vadd.xlane.f32.xlu0 %v2787
      %v2789 = vpop.xlane.xlu0 %2788
      %v2790 = vadd.f32 %v2768, %v2771
      %v2791 = vadd.f32 %v2790, %v2774
      %v2792 = vadd.f32 %v2791, %v2777
      %v2793 = vadd.f32 %v2792, %v2780
      %v2794 = vadd.f32 %v2793, %v2783
      %v2795 = vadd.f32 %v2794, %v2786
      %v2796 = vadd.f32 %v2795, %v2789
      %v2797 = vrot.slane %v2796, 4
      %v2798 = vadd.f32 %v2796, %v2797
      %v2799 = vrot.slane %v2798, 2
      %v2800 = vadd.f32 %v2798, %v2799
      %v2801 = vrot.slane %v2800, 1
      %v2802 = vadd.f32 %v2800, %v2801
      %v2803 = vadd.f32 %v2802, 0.0
      %v2804 = vpack.c.bf16 %v2751, %v2750
      %v2805 = vpack.c.bf16 %v2753, %v2752
      %v2806 = vpack.c.bf16 %v2755, %v2754
      %v2807 = vpack.c.bf16 %v2757, %v2756
      %s2808 = scalar_lea.vmem %s1, 2
      %v2809 = vld [vmem:[%s2808] sm:$0x3]
      %s2810 = scalar_lea.vmem %s2, 1
      %v2811 = vld [vmem:[%s2810] sm:$0x1]
      %v2813 = vlaneseq
      %v2814 = vshrl.u32 %v2813, 7
      %v2815 = vsub.s32 0, %v2814
      %v2816 = vrot.slane %v2811, %v2815
      %v2819 = vsel %vm625, %v2804, 0
      %v2822 = vsel %vm625, %v2805, 0
      %v2825 = vsel %vm625, %v2806, 0
      %v2828 = vsel %vm625, %v2807, 0
      %v2831 = vsel %vm638, %v2809, 0
      %2833 = vmatprep.subr.bf16.mxu0 0
      %2834 = vmatpush1.bf16.msra.mxu0 0
      %2835 = vmatprep.subr.bf16.mxu0 0
      %2836 = vmatpush1.bf16.msra.mxu0 0
      %2837 = vmatprep.subr.bf16.mxu0 0
      %2838 = vmatpush1.bf16.msra.mxu0 0
      %2839 = vmatprep.subr.bf16.mxu0 0
      %2840 = vmatpush1.bf16.msra.mxu0 0
      %2841 = vmatprep.subr.bf16.mxu0 0
      %2842 = vmatpush1.bf16.msra.mxu0 0
      %2843 = vmatprep.subr.bf16.mxu0 0
      %2844 = vmatpush1.bf16.msra.mxu0 0
      %2845 = vmatprep.subr.bf16.mxu0 0
      %2846 = vmatpush1.bf16.msra.mxu0 0
      %2847 = vmatprep.subr.bf16.mxu0 0
      %2848 = vmatpush1.bf16.msra.mxu0 %v2831
      %2849 = vmatprep.subr.bf16.mxu0 0
      %2850 = vmatpush2.bf16.msra.mxu0 0
      %2851 = vmatprep.subr.bf16.mxu0 0
      %2852 = vmatpush2.bf16.msra.mxu0 0
      %2853 = vmatprep.subr.bf16.mxu0 0
      %2854 = vmatpush2.bf16.msra.mxu0 0
      %2855 = vmatprep.subr.bf16.mxu0 0
      %2856 = vmatpush2.bf16.msra.mxu0 0
      %2857 = vmatprep.subr.bf16.mxu0 0
      %2858 = vmatpush2.bf16.msra.mxu0 0
      %2859 = vmatprep.subr.bf16.mxu0 0
      %2860 = vmatpush2.bf16.msra.mxu0 0
      %2861 = vmatprep.subr.bf16.mxu0 0
      %2862 = vmatpush2.bf16.msra.mxu0 0
      %2863 = vmatprep.subr.bf16.mxu0 0
      %2864 = vmatpush2.bf16.msra.mxu0 0
      %2865 = vmatprep.mubr.bf16.mxu0 0
      %2866 = vmatmul.mubr.bf16.gmra.mxu0 %v2819
      %v2867 = vpop.f32.mrf.mxu0
      %v2868 = vadd.f32 %v2816, %v2867
      %v2869 = vpop.f32.mrf.mxu0
      %v2870 = vpop.f32.mrf.mxu0
      %v2871 = vadd.f32 %v2816, %v2870
      %v2872 = vpop.f32.mrf.mxu0
      %2873 = vmatprep.mubr.bf16.mxu0 0
      %2874 = vmatmul.mubr.bf16.gmra.mxu0 %v2822
      %v2875 = vpop.f32.mrf.mxu0
      %v2876 = vadd.f32 %v2816, %v2875
      %v2877 = vpop.f32.mrf.mxu0
      %v2878 = vpop.f32.mrf.mxu0
      %v2879 = vadd.f32 %v2816, %v2878
      %v2880 = vpop.f32.mrf.mxu0
      %2881 = vmatprep.mubr.bf16.mxu0 0
      %2882 = vmatmul.mubr.bf16.gmra.mxu0 %v2825
      %v2883 = vpop.f32.mrf.mxu0
      %v2884 = vadd.f32 %v2816, %v2883
      %v2885 = vpop.f32.mrf.mxu0
      %v2886 = vpop.f32.mrf.mxu0
      %v2887 = vadd.f32 %v2816, %v2886
      %v2888 = vpop.f32.mrf.mxu0
      %2889 = vmatprep.mubr.bf16.mxu0 0
      %2890 = vmatmul.mubr.bf16.gmra.mxu0 %v2828
      %v2891 = vpop.f32.mrf.mxu0
      %v2892 = vadd.f32 %v2816, %v2891
      %v2893 = vpop.f32.mrf.mxu0
      %v2894 = vpop.f32.mrf.mxu0
      %v2895 = vadd.f32 %v2816, %v2894
      %v2896 = vpop.f32.mrf.mxu0
      %2897 = vdwg.mxu0
      %s2898 = scalar_lea.vmem %s4, 1
      %v2899 = vld [vmem:[%s2898] sm:$0x1]
      %v2900 = vrot.slane %v2868, 7
      %v2901 = vrot.slane %v2871, 7
      %v2902 = vrot.slane %v2876, 7
      %v2903 = vrot.slane %v2879, 7
      %v2904 = vrot.slane %v2884, 7
      %v2905 = vrot.slane %v2887, 7
      %v2906 = vrot.slane %v2892, 7
      %v2907 = vrot.slane %v2895, 7
      %v2908 = vsel %vm716, %v2906, %v2907
      %v2909 = vsel %vm716, %v2905, %v2906
      %v2910 = vsel %vm716, %v2904, %v2905
      %v2911 = vsel %vm716, %v2903, %v2904
      %v2912 = vsel %vm716, %v2902, %v2903
      %v2913 = vsel %vm716, %v2901, %v2902
      %v2914 = vsel %vm716, %v2900, %v2901
      %v2915 = vsel %vm716, %v2907, %v2900
      %v2916 = vmul.f32 %v2915, %v518
      %v2917 = vmul.f32 %v2914, %v519
      %v2918 = vmul.f32 %v2913, %v520
      %v2919 = vmul.f32 %v2912, %v521
      %v2920 = vmul.f32 %v2911, %v522
      %v2921 = vmul.f32 %v2910, %v523
      %v2922 = vmul.f32 %v2909, %v524
      %v2923 = vmul.f32 %v2908, %v525
      %v2924 = vrot.slane %v2868, 1
      %v2925 = vrot.slane %v2871, 1
      %v2926 = vrot.slane %v2876, 1
      %v2927 = vrot.slane %v2879, 1
      %v2928 = vrot.slane %v2884, 1
      %v2929 = vrot.slane %v2887, 1
      %v2930 = vrot.slane %v2892, 1
      %v2931 = vrot.slane %v2895, 1
      %v2932 = vsel %vm741, %v2930, %v2931
      %v2933 = vsel %vm741, %v2929, %v2930
      %v2934 = vsel %vm741, %v2928, %v2929
      %v2935 = vsel %vm741, %v2927, %v2928
      %v2936 = vsel %vm741, %v2926, %v2927
      %v2937 = vsel %vm741, %v2925, %v2926
      %v2938 = vsel %vm741, %v2924, %v2925
      %v2939 = vsel %vm741, %v2931, %v2924
      %v2940 = vmul.f32 %v2938, %v542
      %v2941 = vmul.f32 %v2937, %v543
      %v2942 = vmul.f32 %v2936, %v544
      %v2943 = vmul.f32 %v2935, %v545
      %v2944 = vmul.f32 %v2934, %v546
      %v2945 = vmul.f32 %v2933, %v547
      %v2946 = vmul.f32 %v2932, %v548
      %v2947 = vmul.f32 %v2939, %v549
      %v2948 = vpack.c.bf16 %v2916, %v2923
      %v2949 = vpack.c.bf16 %v2918, %v2917
      %v2950 = vpack.c.bf16 %v2920, %v2919
      %v2951 = vpack.c.bf16 %v2922, %v2921
      %s2952 = scalar_lea.vmem %s3, 18
      %v2953 = vld [vmem:[%s2952] sm:$0x3]
      %v2954 = vpack.c.bf16 %v2868, %v2895
      %v2955 = vpack.c.bf16 %v2876, %v2871
      %v2956 = vpack.c.bf16 %v2884, %v2879
      %v2957 = vpack.c.bf16 %v2892, %v2887
      %s2958 = scalar_lea.vmem %s3, 20
      %v2959 = vld [vmem:[%s2958] sm:$0x3]
      %v2961 = vsel %vm625, %v2954, 0
      %v2964 = vsel %vm625, %v2955, 0
      %v2967 = vsel %vm625, %v2956, 0
      %v2970 = vsel %vm625, %v2957, 0
      %v2973 = vsel %vm638, %v2959, 0
      %2975 = vmatprep.subr.bf16.mxu0 0
      %2976 = vmatpush1.bf16.msra.mxu0 0
      %2977 = vmatprep.subr.bf16.mxu0 0
      %2978 = vmatpush1.bf16.msra.mxu0 0
      %2979 = vmatprep.subr.bf16.mxu0 0
      %2980 = vmatpush1.bf16.msra.mxu0 0
      %2981 = vmatprep.subr.bf16.mxu0 0
      %2982 = vmatpush1.bf16.msra.mxu0 0
      %2983 = vmatprep.subr.bf16.mxu0 0
      %2984 = vmatpush1.bf16.msra.mxu0 0
      %2985 = vmatprep.subr.bf16.mxu0 0
      %2986 = vmatpush1.bf16.msra.mxu0 0
      %2987 = vmatprep.subr.bf16.mxu0 0
      %2988 = vmatpush1.bf16.msra.mxu0 0
      %2989 = vmatprep.subr.bf16.mxu0 0
      %2990 = vmatpush1.bf16.msra.mxu0 %v2973
      %2991 = vmatprep.subr.bf16.mxu0 0
      %2992 = vmatpush2.bf16.msra.mxu0 0
      %2993 = vmatprep.subr.bf16.mxu0 0
      %2994 = vmatpush2.bf16.msra.mxu0 0
      %2995 = vmatprep.subr.bf16.mxu0 0
      %2996 = vmatpush2.bf16.msra.mxu0 0
      %2997 = vmatprep.subr.bf16.mxu0 0
      %2998 = vmatpush2.bf16.msra.mxu0 0
      %2999 = vmatprep.subr.bf16.mxu0 0
      %3000 = vmatpush2.bf16.msra.mxu0 0
      %3001 = vmatprep.subr.bf16.mxu0 0
      %3002 = vmatpush2.bf16.msra.mxu0 0
      %3003 = vmatprep.subr.bf16.mxu0 0
      %3004 = vmatpush2.bf16.msra.mxu0 0
      %3005 = vmatprep.subr.bf16.mxu0 0
      %3006 = vmatpush2.bf16.msra.mxu0 0
      %3007 = vmatprep.mubr.bf16.mxu0 0
      %3008 = vmatmul.mubr.bf16.gmra.mxu0 %v2961
      %v3009 = vpop.f32.mrf.mxu0
      %v3010 = vadd.f32 0.0, %v3009
      %v3011 = vpop.f32.mrf.mxu0
      %v3012 = vpop.f32.mrf.mxu0
      %v3013 = vadd.f32 0.0, %v3012
      %v3014 = vpop.f32.mrf.mxu0
      %3015 = vmatprep.mubr.bf16.mxu0 0
      %3016 = vmatmul.mubr.bf16.gmra.mxu0 %v2964
      %v3017 = vpop.f32.mrf.mxu0
      %v3018 = vadd.f32 0.0, %v3017
      %v3019 = vpop.f32.mrf.mxu0
      %v3020 = vpop.f32.mrf.mxu0
      %v3021 = vadd.f32 0.0, %v3020
      %v3022 = vpop.f32.mrf.mxu0
      %3023 = vmatprep.mubr.bf16.mxu0 0
      %3024 = vmatmul.mubr.bf16.gmra.mxu0 %v2967
      %v3025 = vpop.f32.mrf.mxu0
      %v3026 = vadd.f32 0.0, %v3025
      %v3027 = vpop.f32.mrf.mxu0
      %v3028 = vpop.f32.mrf.mxu0
      %v3029 = vadd.f32 0.0, %v3028
      %v3030 = vpop.f32.mrf.mxu0
      %3031 = vmatprep.mubr.bf16.mxu0 0
      %3032 = vmatmul.mubr.bf16.gmra.mxu0 %v2970
      %v3033 = vpop.f32.mrf.mxu0
      %v3034 = vadd.f32 0.0, %v3033
      %v3035 = vpop.f32.mrf.mxu0
      %v3036 = vpop.f32.mrf.mxu0
      %v3037 = vadd.f32 0.0, %v3036
      %v3038 = vpop.f32.mrf.mxu0
      %3039 = vdwg.mxu0
      %v3041 = vsel %vm625, %v2948, 0
      %v3044 = vsel %vm625, %v2949, 0
      %v3047 = vsel %vm625, %v2950, 0
      %v3050 = vsel %vm625, %v2951, 0
      %v3053 = vsel %vm638, %v2953, 0
      %3055 = vmatprep.subr.bf16.mxu0 0
      %3056 = vmatpush1.bf16.msra.mxu0 0
      %3057 = vmatprep.subr.bf16.mxu0 0
      %3058 = vmatpush1.bf16.msra.mxu0 0
      %3059 = vmatprep.subr.bf16.mxu0 0
      %3060 = vmatpush1.bf16.msra.mxu0 0
      %3061 = vmatprep.subr.bf16.mxu0 0
      %3062 = vmatpush1.bf16.msra.mxu0 0
      %3063 = vmatprep.subr.bf16.mxu0 0
      %3064 = vmatpush1.bf16.msra.mxu0 0
      %3065 = vmatprep.subr.bf16.mxu0 0
      %3066 = vmatpush1.bf16.msra.mxu0 0
      %3067 = vmatprep.subr.bf16.mxu0 0
      %3068 = vmatpush1.bf16.msra.mxu0 0
      %3069 = vmatprep.subr.bf16.mxu0 0
      %3070 = vmatpush1.bf16.msra.mxu0 %v3053
      %3071 = vmatprep.subr.bf16.mxu0 0
      %3072 = vmatpush2.bf16.msra.mxu0 0
      %3073 = vmatprep.subr.bf16.mxu0 0
      %3074 = vmatpush2.bf16.msra.mxu0 0
      %3075 = vmatprep.subr.bf16.mxu0 0
      %3076 = vmatpush2.bf16.msra.mxu0 0
      %3077 = vmatprep.subr.bf16.mxu0 0
      %3078 = vmatpush2.bf16.msra.mxu0 0
      %3079 = vmatprep.subr.bf16.mxu0 0
      %3080 = vmatpush2.bf16.msra.mxu0 0
      %3081 = vmatprep.subr.bf16.mxu0 0
      %3082 = vmatpush2.bf16.msra.mxu0 0
      %3083 = vmatprep.subr.bf16.mxu0 0
      %3084 = vmatpush2.bf16.msra.mxu0 0
      %3085 = vmatprep.subr.bf16.mxu0 0
      %3086 = vmatpush2.bf16.msra.mxu0 0
      %3087 = vmatprep.mubr.bf16.mxu0 0
      %3088 = vmatmul.mubr.bf16.gmra.mxu0 %v3041
      %v3089 = vpop.f32.mrf.mxu0
      %v3090 = vadd.f32 %v3010, %v3089
      %v3091 = vpop.f32.mrf.mxu0
      %v3092 = vpop.f32.mrf.mxu0
      %v3093 = vadd.f32 %v3013, %v3092
      %v3094 = vpop.f32.mrf.mxu0
      %3095 = vmatprep.mubr.bf16.mxu0 0
      %3096 = vmatmul.mubr.bf16.gmra.mxu0 %v3044
      %v3097 = vpop.f32.mrf.mxu0
      %v3098 = vadd.f32 %v3018, %v3097
      %v3099 = vpop.f32.mrf.mxu0
      %v3100 = vpop.f32.mrf.mxu0
      %v3101 = vadd.f32 %v3021, %v3100
      %v3102 = vpop.f32.mrf.mxu0
      %3103 = vmatprep.mubr.bf16.mxu0 0
      %3104 = vmatmul.mubr.bf16.gmra.mxu0 %v3047
      %v3105 = vpop.f32.mrf.mxu0
      %v3106 = vadd.f32 %v3026, %v3105
      %v3107 = vpop.f32.mrf.mxu0
      %v3108 = vpop.f32.mrf.mxu0
      %v3109 = vadd.f32 %v3029, %v3108
      %v3110 = vpop.f32.mrf.mxu0
      %3111 = vmatprep.mubr.bf16.mxu0 0
      %3112 = vmatmul.mubr.bf16.gmra.mxu0 %v3050
      %v3113 = vpop.f32.mrf.mxu0
      %v3114 = vadd.f32 %v3034, %v3113
      %v3115 = vpop.f32.mrf.mxu0
      %v3116 = vpop.f32.mrf.mxu0
      %v3117 = vadd.f32 %v3037, %v3116
      %v3118 = vpop.f32.mrf.mxu0
      %3119 = vdwg.mxu0
      %v3120 = vpack.c.bf16 %v2940, %v2947
      %v3121 = vpack.c.bf16 %v2942, %v2941
      %v3122 = vpack.c.bf16 %v2944, %v2943
      %v3123 = vpack.c.bf16 %v2946, %v2945
      %s3124 = scalar_lea.vmem %s3, 22
      %v3125 = vld [vmem:[%s3124] sm:$0x3]
      %v3127 = vsel %vm625, %v3120, 0
      %v3130 = vsel %vm625, %v3121, 0
      %v3133 = vsel %vm625, %v3122, 0
      %v3136 = vsel %vm625, %v3123, 0
      %v3139 = vsel %vm638, %v3125, 0
      %3141 = vmatprep.subr.bf16.mxu0 0
      %3142 = vmatpush1.bf16.msra.mxu0 0
      %3143 = vmatprep.subr.bf16.mxu0 0
      %3144 = vmatpush1.bf16.msra.mxu0 0
      %3145 = vmatprep.subr.bf16.mxu0 0
      %3146 = vmatpush1.bf16.msra.mxu0 0
      %3147 = vmatprep.subr.bf16.mxu0 0
      %3148 = vmatpush1.bf16.msra.mxu0 0
      %3149 = vmatprep.subr.bf16.mxu0 0
      %3150 = vmatpush1.bf16.msra.mxu0 0
      %3151 = vmatprep.subr.bf16.mxu0 0
      %3152 = vmatpush1.bf16.msra.mxu0 0
      %3153 = vmatprep.subr.bf16.mxu0 0
      %3154 = vmatpush1.bf16.msra.mxu0 0
      %3155 = vmatprep.subr.bf16.mxu0 0
      %3156 = vmatpush1.bf16.msra.mxu0 %v3139
      %3157 = vmatprep.subr.bf16.mxu0 0
      %3158 = vmatpush2.bf16.msra.mxu0 0
      %3159 = vmatprep.subr.bf16.mxu0 0
      %3160 = vmatpush2.bf16.msra.mxu0 0
      %3161 = vmatprep.subr.bf16.mxu0 0
      %3162 = vmatpush2.bf16.msra.mxu0 0
      %3163 = vmatprep.subr.bf16.mxu0 0
      %3164 = vmatpush2.bf16.msra.mxu0 0
      %3165 = vmatprep.subr.bf16.mxu0 0
      %3166 = vmatpush2.bf16.msra.mxu0 0
      %3167 = vmatprep.subr.bf16.mxu0 0
      %3168 = vmatpush2.bf16.msra.mxu0 0
      %3169 = vmatprep.subr.bf16.mxu0 0
      %3170 = vmatpush2.bf16.msra.mxu0 0
      %3171 = vmatprep.subr.bf16.mxu0 0
      %3172 = vmatpush2.bf16.msra.mxu0 0
      %3173 = vmatprep.mubr.bf16.mxu0 0
      %3174 = vmatmul.mubr.bf16.gmra.mxu0 %v3127
      %v3175 = vpop.f32.mrf.mxu0
      %v3176 = vadd.f32 0.0, %v3175
      %v3177 = vpop.f32.mrf.mxu0
      %v3178 = vpop.f32.mrf.mxu0
      %v3179 = vadd.f32 0.0, %v3178
      %v3180 = vpop.f32.mrf.mxu0
      %3181 = vmatprep.mubr.bf16.mxu0 0
      %3182 = vmatmul.mubr.bf16.gmra.mxu0 %v3130
      %v3183 = vpop.f32.mrf.mxu0
      %v3184 = vadd.f32 0.0, %v3183
      %v3185 = vpop.f32.mrf.mxu0
      %v3186 = vpop.f32.mrf.mxu0
      %v3187 = vadd.f32 0.0, %v3186
      %v3188 = vpop.f32.mrf.mxu0
      %3189 = vmatprep.mubr.bf16.mxu0 0
      %3190 = vmatmul.mubr.bf16.gmra.mxu0 %v3133
      %v3191 = vpop.f32.mrf.mxu0
      %v3192 = vadd.f32 0.0, %v3191
      %v3193 = vpop.f32.mrf.mxu0
      %v3194 = vpop.f32.mrf.mxu0
      %v3195 = vadd.f32 0.0, %v3194
      %v3196 = vpop.f32.mrf.mxu0
      %3197 = vmatprep.mubr.bf16.mxu0 0
      %3198 = vmatmul.mubr.bf16.gmra.mxu0 %v3136
      %v3199 = vpop.f32.mrf.mxu0
      %v3200 = vadd.f32 0.0, %v3199
      %v3201 = vpop.f32.mrf.mxu0
      %v3202 = vpop.f32.mrf.mxu0
      %v3203 = vadd.f32 0.0, %v3202
      %v3204 = vpop.f32.mrf.mxu0
      %3205 = vdwg.mxu0
      %v3206 = vadd.f32 %v3090, %v3176
      %v3207 = vadd.f32 %v3093, %v3179
      %v3208 = vadd.f32 %v3098, %v3184
      %v3209 = vadd.f32 %v3101, %v3187
      %v3210 = vadd.f32 %v3106, %v3192
      %v3211 = vadd.f32 %v3109, %v3195
      %v3212 = vadd.f32 %v3114, %v3200
      %v3213 = vadd.f32 %v3117, %v3203
      %v3214 = vmul.f32 %v3206, %v566
      %v3215 = vmul.f32 %v3207, %v567
      %v3216 = vmul.f32 %v3208, %v568
      %v3217 = vmul.f32 %v3209, %v569
      %v3218 = vmul.f32 %v3210, %v570
      %v3219 = vmul.f32 %v3211, %v571
      %v3220 = vmul.f32 %v3212, %v572
      %v3221 = vmul.f32 %v3213, %v573
      %v3222 = vpack.c.bf16 %v2917, %v2916
      %v3223 = vpack.c.bf16 %v2919, %v2918
      %v3224 = vpack.c.bf16 %v2921, %v2920
      %v3225 = vpack.c.bf16 %v2923, %v2922
      %s3226 = scalar_lea.vmem %s3, 24
      %v3227 = vld [vmem:[%s3226] sm:$0x3]
      %v3228 = vpack.c.bf16 %v2871, %v2868
      %v3229 = vpack.c.bf16 %v2879, %v2876
      %v3230 = vpack.c.bf16 %v2887, %v2884
      %v3231 = vpack.c.bf16 %v2895, %v2892
      %s3232 = scalar_lea.vmem %s3, 26
      %v3233 = vld [vmem:[%s3232] sm:$0x3]
      %v3235 = vsel %vm625, %v3228, 0
      %v3238 = vsel %vm625, %v3229, 0
      %v3241 = vsel %vm625, %v3230, 0
      %v3244 = vsel %vm625, %v3231, 0
      %v3247 = vsel %vm638, %v3233, 0
      %3249 = vmatprep.subr.bf16.mxu0 0
      %3250 = vmatpush1.bf16.msra.mxu0 0
      %3251 = vmatprep.subr.bf16.mxu0 0
      %3252 = vmatpush1.bf16.msra.mxu0 0
      %3253 = vmatprep.subr.bf16.mxu0 0
      %3254 = vmatpush1.bf16.msra.mxu0 0
      %3255 = vmatprep.subr.bf16.mxu0 0
      %3256 = vmatpush1.bf16.msra.mxu0 0
      %3257 = vmatprep.subr.bf16.mxu0 0
      %3258 = vmatpush1.bf16.msra.mxu0 0
      %3259 = vmatprep.subr.bf16.mxu0 0
      %3260 = vmatpush1.bf16.msra.mxu0 0
      %3261 = vmatprep.subr.bf16.mxu0 0
      %3262 = vmatpush1.bf16.msra.mxu0 0
      %3263 = vmatprep.subr.bf16.mxu0 0
      %3264 = vmatpush1.bf16.msra.mxu0 %v3247
      %3265 = vmatprep.subr.bf16.mxu0 0
      %3266 = vmatpush2.bf16.msra.mxu0 0
      %3267 = vmatprep.subr.bf16.mxu0 0
      %3268 = vmatpush2.bf16.msra.mxu0 0
      %3269 = vmatprep.subr.bf16.mxu0 0
      %3270 = vmatpush2.bf16.msra.mxu0 0
      %3271 = vmatprep.subr.bf16.mxu0 0
      %3272 = vmatpush2.bf16.msra.mxu0 0
      %3273 = vmatprep.subr.bf16.mxu0 0
      %3274 = vmatpush2.bf16.msra.mxu0 0
      %3275 = vmatprep.subr.bf16.mxu0 0
      %3276 = vmatpush2.bf16.msra.mxu0 0
      %3277 = vmatprep.subr.bf16.mxu0 0
      %3278 = vmatpush2.bf16.msra.mxu0 0
      %3279 = vmatprep.subr.bf16.mxu0 0
      %3280 = vmatpush2.bf16.msra.mxu0 0
      %3281 = vmatprep.mubr.bf16.mxu0 0
      %3282 = vmatmul.mubr.bf16.gmra.mxu0 %v3235
      %v3283 = vpop.f32.mrf.mxu0
      %v3284 = vadd.f32 0.0, %v3283
      %v3285 = vpop.f32.mrf.mxu0
      %v3286 = vpop.f32.mrf.mxu0
      %v3287 = vadd.f32 0.0, %v3286
      %v3288 = vpop.f32.mrf.mxu0
      %3289 = vmatprep.mubr.bf16.mxu0 0
      %3290 = vmatmul.mubr.bf16.gmra.mxu0 %v3238
      %v3291 = vpop.f32.mrf.mxu0
      %v3292 = vadd.f32 0.0, %v3291
      %v3293 = vpop.f32.mrf.mxu0
      %v3294 = vpop.f32.mrf.mxu0
      %v3295 = vadd.f32 0.0, %v3294
      %v3296 = vpop.f32.mrf.mxu0
      %3297 = vmatprep.mubr.bf16.mxu0 0
      %3298 = vmatmul.mubr.bf16.gmra.mxu0 %v3241
      %v3299 = vpop.f32.mrf.mxu0
      %v3300 = vadd.f32 0.0, %v3299
      %v3301 = vpop.f32.mrf.mxu0
      %v3302 = vpop.f32.mrf.mxu0
      %v3303 = vadd.f32 0.0, %v3302
      %v3304 = vpop.f32.mrf.mxu0
      %3305 = vmatprep.mubr.bf16.mxu0 0
      %3306 = vmatmul.mubr.bf16.gmra.mxu0 %v3244
      %v3307 = vpop.f32.mrf.mxu0
      %v3308 = vadd.f32 0.0, %v3307
      %v3309 = vpop.f32.mrf.mxu0
      %v3310 = vpop.f32.mrf.mxu0
      %v3311 = vadd.f32 0.0, %v3310
      %v3312 = vpop.f32.mrf.mxu0
      %3313 = vdwg.mxu0
      %v3315 = vsel %vm625, %v3222, 0
      %v3318 = vsel %vm625, %v3223, 0
      %v3321 = vsel %vm625, %v3224, 0
      %v3324 = vsel %vm625, %v3225, 0
      %v3327 = vsel %vm638, %v3227, 0
      %3329 = vmatprep.subr.bf16.mxu0 0
      %3330 = vmatpush1.bf16.msra.mxu0 0
      %3331 = vmatprep.subr.bf16.mxu0 0
      %3332 = vmatpush1.bf16.msra.mxu0 0
      %3333 = vmatprep.subr.bf16.mxu0 0
      %3334 = vmatpush1.bf16.msra.mxu0 0
      %3335 = vmatprep.subr.bf16.mxu0 0
      %3336 = vmatpush1.bf16.msra.mxu0 0
      %3337 = vmatprep.subr.bf16.mxu0 0
      %3338 = vmatpush1.bf16.msra.mxu0 0
      %3339 = vmatprep.subr.bf16.mxu0 0
      %3340 = vmatpush1.bf16.msra.mxu0 0
      %3341 = vmatprep.subr.bf16.mxu0 0
      %3342 = vmatpush1.bf16.msra.mxu0 0
      %3343 = vmatprep.subr.bf16.mxu0 0
      %3344 = vmatpush1.bf16.msra.mxu0 %v3327
      %3345 = vmatprep.subr.bf16.mxu0 0
      %3346 = vmatpush2.bf16.msra.mxu0 0
      %3347 = vmatprep.subr.bf16.mxu0 0
      %3348 = vmatpush2.bf16.msra.mxu0 0
      %3349 = vmatprep.subr.bf16.mxu0 0
      %3350 = vmatpush2.bf16.msra.mxu0 0
      %3351 = vmatprep.subr.bf16.mxu0 0
      %3352 = vmatpush2.bf16.msra.mxu0 0
      %3353 = vmatprep.subr.bf16.mxu0 0
      %3354 = vmatpush2.bf16.msra.mxu0 0
      %3355 = vmatprep.subr.bf16.mxu0 0
      %3356 = vmatpush2.bf16.msra.mxu0 0
      %3357 = vmatprep.subr.bf16.mxu0 0
      %3358 = vmatpush2.bf16.msra.mxu0 0
      %3359 = vmatprep.subr.bf16.mxu0 0
      %3360 = vmatpush2.bf16.msra.mxu0 0
      %3361 = vmatprep.mubr.bf16.mxu0 0
      %3362 = vmatmul.mubr.bf16.gmra.mxu0 %v3315
      %v3363 = vpop.f32.mrf.mxu0
      %v3364 = vadd.f32 %v3284, %v3363
      %v3365 = vpop.f32.mrf.mxu0
      %v3366 = vpop.f32.mrf.mxu0
      %v3367 = vadd.f32 %v3287, %v3366
      %v3368 = vpop.f32.mrf.mxu0
      %3369 = vmatprep.mubr.bf16.mxu0 0
      %3370 = vmatmul.mubr.bf16.gmra.mxu0 %v3318
      %v3371 = vpop.f32.mrf.mxu0
      %v3372 = vadd.f32 %v3292, %v3371
      %v3373 = vpop.f32.mrf.mxu0
      %v3374 = vpop.f32.mrf.mxu0
      %v3375 = vadd.f32 %v3295, %v3374
      %v3376 = vpop.f32.mrf.mxu0
      %3377 = vmatprep.mubr.bf16.mxu0 0
      %3378 = vmatmul.mubr.bf16.gmra.mxu0 %v3321
      %v3379 = vpop.f32.mrf.mxu0
      %v3380 = vadd.f32 %v3300, %v3379
      %v3381 = vpop.f32.mrf.mxu0
      %v3382 = vpop.f32.mrf.mxu0
      %v3383 = vadd.f32 %v3303, %v3382
      %v3384 = vpop.f32.mrf.mxu0
      %3385 = vmatprep.mubr.bf16.mxu0 0
      %3386 = vmatmul.mubr.bf16.gmra.mxu0 %v3324
      %v3387 = vpop.f32.mrf.mxu0
      %v3388 = vadd.f32 %v3308, %v3387
      %v3389 = vpop.f32.mrf.mxu0
      %v3390 = vpop.f32.mrf.mxu0
      %v3391 = vadd.f32 %v3311, %v3390
      %v3392 = vpop.f32.mrf.mxu0
      %3393 = vdwg.mxu0
      %v3394 = vpack.c.bf16 %v2941, %v2940
      %v3395 = vpack.c.bf16 %v2943, %v2942
      %v3396 = vpack.c.bf16 %v2945, %v2944
      %v3397 = vpack.c.bf16 %v2947, %v2946
      %s3398 = scalar_lea.vmem %s3, 28
      %v3399 = vld [vmem:[%s3398] sm:$0x3]
      %v3401 = vsel %vm625, %v3394, 0
      %v3404 = vsel %vm625, %v3395, 0
      %v3407 = vsel %vm625, %v3396, 0
      %v3410 = vsel %vm625, %v3397, 0
      %v3413 = vsel %vm638, %v3399, 0
      %3415 = vmatprep.subr.bf16.mxu0 0
      %3416 = vmatpush1.bf16.msra.mxu0 0
      %3417 = vmatprep.subr.bf16.mxu0 0
      %3418 = vmatpush1.bf16.msra.mxu0 0
      %3419 = vmatprep.subr.bf16.mxu0 0
      %3420 = vmatpush1.bf16.msra.mxu0 0
      %3421 = vmatprep.subr.bf16.mxu0 0
      %3422 = vmatpush1.bf16.msra.mxu0 0
      %3423 = vmatprep.subr.bf16.mxu0 0
      %3424 = vmatpush1.bf16.msra.mxu0 0
      %3425 = vmatprep.subr.bf16.mxu0 0
      %3426 = vmatpush1.bf16.msra.mxu0 0
      %3427 = vmatprep.subr.bf16.mxu0 0
      %3428 = vmatpush1.bf16.msra.mxu0 0
      %3429 = vmatprep.subr.bf16.mxu0 0
      %3430 = vmatpush1.bf16.msra.mxu0 %v3413
      %3431 = vmatprep.subr.bf16.mxu0 0
      %3432 = vmatpush2.bf16.msra.mxu0 0
      %3433 = vmatprep.subr.bf16.mxu0 0
      %3434 = vmatpush2.bf16.msra.mxu0 0
      %3435 = vmatprep.subr.bf16.mxu0 0
      %3436 = vmatpush2.bf16.msra.mxu0 0
      %3437 = vmatprep.subr.bf16.mxu0 0
      %3438 = vmatpush2.bf16.msra.mxu0 0
      %3439 = vmatprep.subr.bf16.mxu0 0
      %3440 = vmatpush2.bf16.msra.mxu0 0
      %3441 = vmatprep.subr.bf16.mxu0 0
      %3442 = vmatpush2.bf16.msra.mxu0 0
      %3443 = vmatprep.subr.bf16.mxu0 0
      %3444 = vmatpush2.bf16.msra.mxu0 0
      %3445 = vmatprep.subr.bf16.mxu0 0
      %3446 = vmatpush2.bf16.msra.mxu0 0
      %3447 = vmatprep.mubr.bf16.mxu0 0
      %3448 = vmatmul.mubr.bf16.gmra.mxu0 %v3401
      %v3449 = vpop.f32.mrf.mxu0
      %v3450 = vadd.f32 0.0, %v3449
      %v3451 = vpop.f32.mrf.mxu0
      %v3452 = vpop.f32.mrf.mxu0
      %v3453 = vadd.f32 0.0, %v3452
      %v3454 = vpop.f32.mrf.mxu0
      %3455 = vmatprep.mubr.bf16.mxu0 0
      %3456 = vmatmul.mubr.bf16.gmra.mxu0 %v3404
      %v3457 = vpop.f32.mrf.mxu0
      %v3458 = vadd.f32 0.0, %v3457
      %v3459 = vpop.f32.mrf.mxu0
      %v3460 = vpop.f32.mrf.mxu0
      %v3461 = vadd.f32 0.0, %v3460
      %v3462 = vpop.f32.mrf.mxu0
      %3463 = vmatprep.mubr.bf16.mxu0 0
      %3464 = vmatmul.mubr.bf16.gmra.mxu0 %v3407
      %v3465 = vpop.f32.mrf.mxu0
      %v3466 = vadd.f32 0.0, %v3465
      %v3467 = vpop.f32.mrf.mxu0
      %v3468 = vpop.f32.mrf.mxu0
      %v3469 = vadd.f32 0.0, %v3468
      %v3470 = vpop.f32.mrf.mxu0
      %3471 = vmatprep.mubr.bf16.mxu0 0
      %3472 = vmatmul.mubr.bf16.gmra.mxu0 %v3410
      %v3473 = vpop.f32.mrf.mxu0
      %v3474 = vadd.f32 0.0, %v3473
      %v3475 = vpop.f32.mrf.mxu0
      %v3476 = vpop.f32.mrf.mxu0
      %v3477 = vadd.f32 0.0, %v3476
      %v3478 = vpop.f32.mrf.mxu0
      %3479 = vdwg.mxu0
      %v3480 = vadd.f32 %v3364, %v3450
      %v3481 = vadd.f32 %v3367, %v3453
      %v3482 = vadd.f32 %v3372, %v3458
      %v3483 = vadd.f32 %v3375, %v3461
      %v3484 = vadd.f32 %v3380, %v3466
      %v3485 = vadd.f32 %v3383, %v3469
      %v3486 = vadd.f32 %v3388, %v3474
      %v3487 = vadd.f32 %v3391, %v3477
      %v3488 = vadd.f32 %v3214, %v3480
      %v3489 = vadd.f32 %v3215, %v3481
      %v3490 = vadd.f32 %v3216, %v3482
      %v3491 = vadd.f32 %v3217, %v3483
      %v3492 = vadd.f32 %v3218, %v3484
      %v3493 = vadd.f32 %v3219, %v3485
      %v3494 = vadd.f32 %v3220, %v3486
      %v3495 = vadd.f32 %v3221, %v3487
      %s3496 = scalar_lea.vmem %s3, 30
      %v3497 = vld [vmem:[%s3496] sm:$0x3]
      %s3498 = scalar_lea.vmem %s3, 32
      %v3499 = vld [vmem:[%s3498] sm:$0x3]
      %v3501 = vsel %vm638, %v3499, 0
      %3503 = vmatprep.subr.bf16.mxu0 0
      %3504 = vmatpush1.bf16.msra.mxu0 0
      %3505 = vmatprep.subr.bf16.mxu0 0
      %3506 = vmatpush1.bf16.msra.mxu0 0
      %3507 = vmatprep.subr.bf16.mxu0 0
      %3508 = vmatpush1.bf16.msra.mxu0 0
      %3509 = vmatprep.subr.bf16.mxu0 0
      %3510 = vmatpush1.bf16.msra.mxu0 0
      %3511 = vmatprep.subr.bf16.mxu0 0
      %3512 = vmatpush1.bf16.msra.mxu0 0
      %3513 = vmatprep.subr.bf16.mxu0 0
      %3514 = vmatpush1.bf16.msra.mxu0 0
      %3515 = vmatprep.subr.bf16.mxu0 0
      %3516 = vmatpush1.bf16.msra.mxu0 0
      %3517 = vmatprep.subr.bf16.mxu0 0
      %3518 = vmatpush1.bf16.msra.mxu0 %v3501
      %3519 = vmatprep.subr.bf16.mxu0 0
      %3520 = vmatpush2.bf16.msra.mxu0 0
      %3521 = vmatprep.subr.bf16.mxu0 0
      %3522 = vmatpush2.bf16.msra.mxu0 0
      %3523 = vmatprep.subr.bf16.mxu0 0
      %3524 = vmatpush2.bf16.msra.mxu0 0
      %3525 = vmatprep.subr.bf16.mxu0 0
      %3526 = vmatpush2.bf16.msra.mxu0 0
      %3527 = vmatprep.subr.bf16.mxu0 0
      %3528 = vmatpush2.bf16.msra.mxu0 0
      %3529 = vmatprep.subr.bf16.mxu0 0
      %3530 = vmatpush2.bf16.msra.mxu0 0
      %3531 = vmatprep.subr.bf16.mxu0 0
      %3532 = vmatpush2.bf16.msra.mxu0 0
      %3533 = vmatprep.subr.bf16.mxu0 0
      %3534 = vmatpush2.bf16.msra.mxu0 0
      %3535 = vmatprep.mubr.bf16.mxu0 0
      %3536 = vmatmul.mubr.bf16.gmra.mxu0 %v2964
      %v3537 = vpop.f32.mrf.mxu0
      %v3538 = vadd.f32 0.0, %v3537
      %v3539 = vpop.f32.mrf.mxu0
      %v3540 = vpop.f32.mrf.mxu0
      %v3541 = vadd.f32 0.0, %v3540
      %v3542 = vpop.f32.mrf.mxu0
      %3543 = vmatprep.mubr.bf16.mxu0 0
      %3544 = vmatmul.mubr.bf16.gmra.mxu0 %v2967
      %v3545 = vpop.f32.mrf.mxu0
      %v3546 = vadd.f32 0.0, %v3545
      %v3547 = vpop.f32.mrf.mxu0
      %v3548 = vpop.f32.mrf.mxu0
      %v3549 = vadd.f32 0.0, %v3548
      %v3550 = vpop.f32.mrf.mxu0
      %3551 = vmatprep.mubr.bf16.mxu0 0
      %3552 = vmatmul.mubr.bf16.gmra.mxu0 %v2970
      %v3553 = vpop.f32.mrf.mxu0
      %v3554 = vadd.f32 0.0, %v3553
      %v3555 = vpop.f32.mrf.mxu0
      %v3556 = vpop.f32.mrf.mxu0
      %v3557 = vadd.f32 0.0, %v3556
      %v3558 = vpop.f32.mrf.mxu0
      %3559 = vmatprep.mubr.bf16.mxu0 0
      %3560 = vmatmul.mubr.bf16.gmra.mxu0 %v2961
      %v3561 = vpop.f32.mrf.mxu0
      %v3562 = vadd.f32 0.0, %v3561
      %v3563 = vpop.f32.mrf.mxu0
      %v3564 = vpop.f32.mrf.mxu0
      %v3565 = vadd.f32 0.0, %v3564
      %v3566 = vpop.f32.mrf.mxu0
      %3567 = vdwg.mxu0
      %v3569 = vsel %vm638, %v3497, 0
      %3571 = vmatprep.subr.bf16.mxu0 0
      %3572 = vmatpush1.bf16.msra.mxu0 0
      %3573 = vmatprep.subr.bf16.mxu0 0
      %3574 = vmatpush1.bf16.msra.mxu0 0
      %3575 = vmatprep.subr.bf16.mxu0 0
      %3576 = vmatpush1.bf16.msra.mxu0 0
      %3577 = vmatprep.subr.bf16.mxu0 0
      %3578 = vmatpush1.bf16.msra.mxu0 0
      %3579 = vmatprep.subr.bf16.mxu0 0
      %3580 = vmatpush1.bf16.msra.mxu0 0
      %3581 = vmatprep.subr.bf16.mxu0 0
      %3582 = vmatpush1.bf16.msra.mxu0 0
      %3583 = vmatprep.subr.bf16.mxu0 0
      %3584 = vmatpush1.bf16.msra.mxu0 0
      %3585 = vmatprep.subr.bf16.mxu0 0
      %3586 = vmatpush1.bf16.msra.mxu0 %v3569
      %3587 = vmatprep.subr.bf16.mxu0 0
      %3588 = vmatpush2.bf16.msra.mxu0 0
      %3589 = vmatprep.subr.bf16.mxu0 0
      %3590 = vmatpush2.bf16.msra.mxu0 0
      %3591 = vmatprep.subr.bf16.mxu0 0
      %3592 = vmatpush2.bf16.msra.mxu0 0
      %3593 = vmatprep.subr.bf16.mxu0 0
      %3594 = vmatpush2.bf16.msra.mxu0 0
      %3595 = vmatprep.subr.bf16.mxu0 0
      %3596 = vmatpush2.bf16.msra.mxu0 0
      %3597 = vmatprep.subr.bf16.mxu0 0
      %3598 = vmatpush2.bf16.msra.mxu0 0
      %3599 = vmatprep.subr.bf16.mxu0 0
      %3600 = vmatpush2.bf16.msra.mxu0 0
      %3601 = vmatprep.subr.bf16.mxu0 0
      %3602 = vmatpush2.bf16.msra.mxu0 0
      %3603 = vmatprep.mubr.bf16.mxu0 0
      %3604 = vmatmul.mubr.bf16.gmra.mxu0 %v3044
      %v3605 = vpop.f32.mrf.mxu0
      %v3606 = vadd.f32 %v3538, %v3605
      %v3607 = vpop.f32.mrf.mxu0
      %v3608 = vpop.f32.mrf.mxu0
      %v3609 = vadd.f32 %v3541, %v3608
      %v3610 = vpop.f32.mrf.mxu0
      %3611 = vmatprep.mubr.bf16.mxu0 0
      %3612 = vmatmul.mubr.bf16.gmra.mxu0 %v3047
      %v3613 = vpop.f32.mrf.mxu0
      %v3614 = vadd.f32 %v3546, %v3613
      %v3615 = vpop.f32.mrf.mxu0
      %v3616 = vpop.f32.mrf.mxu0
      %v3617 = vadd.f32 %v3549, %v3616
      %v3618 = vpop.f32.mrf.mxu0
      %3619 = vmatprep.mubr.bf16.mxu0 0
      %3620 = vmatmul.mubr.bf16.gmra.mxu0 %v3050
      %v3621 = vpop.f32.mrf.mxu0
      %v3622 = vadd.f32 %v3554, %v3621
      %v3623 = vpop.f32.mrf.mxu0
      %v3624 = vpop.f32.mrf.mxu0
      %v3625 = vadd.f32 %v3557, %v3624
      %v3626 = vpop.f32.mrf.mxu0
      %3627 = vmatprep.mubr.bf16.mxu0 0
      %3628 = vmatmul.mubr.bf16.gmra.mxu0 %v3041
      %v3629 = vpop.f32.mrf.mxu0
      %v3630 = vadd.f32 %v3562, %v3629
      %v3631 = vpop.f32.mrf.mxu0
      %v3632 = vpop.f32.mrf.mxu0
      %v3633 = vadd.f32 %v3565, %v3632
      %v3634 = vpop.f32.mrf.mxu0
      %3635 = vdwg.mxu0
      %s3636 = scalar_lea.vmem %s3, 34
      %v3637 = vld [vmem:[%s3636] sm:$0x3]
      %v3639 = vsel %vm638, %v3637, 0
      %3641 = vmatprep.subr.bf16.mxu0 0
      %3642 = vmatpush1.bf16.msra.mxu0 0
      %3643 = vmatprep.subr.bf16.mxu0 0
      %3644 = vmatpush1.bf16.msra.mxu0 0
      %3645 = vmatprep.subr.bf16.mxu0 0
      %3646 = vmatpush1.bf16.msra.mxu0 0
      %3647 = vmatprep.subr.bf16.mxu0 0
      %3648 = vmatpush1.bf16.msra.mxu0 0
      %3649 = vmatprep.subr.bf16.mxu0 0
      %3650 = vmatpush1.bf16.msra.mxu0 0
      %3651 = vmatprep.subr.bf16.mxu0 0
      %3652 = vmatpush1.bf16.msra.mxu0 0
      %3653 = vmatprep.subr.bf16.mxu0 0
      %3654 = vmatpush1.bf16.msra.mxu0 0
      %3655 = vmatprep.subr.bf16.mxu0 0
      %3656 = vmatpush1.bf16.msra.mxu0 %v3639
      %3657 = vmatprep.subr.bf16.mxu0 0
      %3658 = vmatpush2.bf16.msra.mxu0 0
      %3659 = vmatprep.subr.bf16.mxu0 0
      %3660 = vmatpush2.bf16.msra.mxu0 0
      %3661 = vmatprep.subr.bf16.mxu0 0
      %3662 = vmatpush2.bf16.msra.mxu0 0
      %3663 = vmatprep.subr.bf16.mxu0 0
      %3664 = vmatpush2.bf16.msra.mxu0 0
      %3665 = vmatprep.subr.bf16.mxu0 0
      %3666 = vmatpush2.bf16.msra.mxu0 0
      %3667 = vmatprep.subr.bf16.mxu0 0
      %3668 = vmatpush2.bf16.msra.mxu0 0
      %3669 = vmatprep.subr.bf16.mxu0 0
      %3670 = vmatpush2.bf16.msra.mxu0 0
      %3671 = vmatprep.subr.bf16.mxu0 0
      %3672 = vmatpush2.bf16.msra.mxu0 0
      %3673 = vmatprep.mubr.bf16.mxu0 0
      %3674 = vmatmul.mubr.bf16.gmra.mxu0 %v3130
      %v3675 = vpop.f32.mrf.mxu0
      %v3676 = vadd.f32 0.0, %v3675
      %v3677 = vpop.f32.mrf.mxu0
      %v3678 = vpop.f32.mrf.mxu0
      %v3679 = vadd.f32 0.0, %v3678
      %v3680 = vpop.f32.mrf.mxu0
      %3681 = vmatprep.mubr.bf16.mxu0 0
      %3682 = vmatmul.mubr.bf16.gmra.mxu0 %v3133
      %v3683 = vpop.f32.mrf.mxu0
      %v3684 = vadd.f32 0.0, %v3683
      %v3685 = vpop.f32.mrf.mxu0
      %v3686 = vpop.f32.mrf.mxu0
      %v3687 = vadd.f32 0.0, %v3686
      %v3688 = vpop.f32.mrf.mxu0
      %3689 = vmatprep.mubr.bf16.mxu0 0
      %3690 = vmatmul.mubr.bf16.gmra.mxu0 %v3136
      %v3691 = vpop.f32.mrf.mxu0
      %v3692 = vadd.f32 0.0, %v3691
      %v3693 = vpop.f32.mrf.mxu0
      %v3694 = vpop.f32.mrf.mxu0
      %v3695 = vadd.f32 0.0, %v3694
      %v3696 = vpop.f32.mrf.mxu0
      %3697 = vmatprep.mubr.bf16.mxu0 0
      %3698 = vmatmul.mubr.bf16.gmra.mxu0 %v3127
      %v3699 = vpop.f32.mrf.mxu0
      %v3700 = vadd.f32 0.0, %v3699
      %v3701 = vpop.f32.mrf.mxu0
      %v3702 = vpop.f32.mrf.mxu0
      %v3703 = vadd.f32 0.0, %v3702
      %v3704 = vpop.f32.mrf.mxu0
      %3705 = vdwg.mxu0
      %v3706 = vadd.f32 %v3606, %v3676
      %v3707 = vadd.f32 %v3609, %v3679
      %v3708 = vadd.f32 %v3614, %v3684
      %v3709 = vadd.f32 %v3617, %v3687
      %v3710 = vadd.f32 %v3622, %v3692
      %v3711 = vadd.f32 %v3625, %v3695
      %v3712 = vadd.f32 %v3630, %v3700
      %v3713 = vadd.f32 %v3633, %v3703
      %v3714 = vmul.f32 %v3706, %v590
      %v3715 = vmul.f32 %v3707, %v591
      %v3716 = vmul.f32 %v3708, %v592
      %v3717 = vmul.f32 %v3709, %v593
      %v3718 = vmul.f32 %v3710, %v594
      %v3719 = vmul.f32 %v3711, %v595
      %v3720 = vmul.f32 %v3712, %v596
      %v3721 = vmul.f32 %v3713, %v597
      %v3722 = vadd.f32 %v3488, %v3714
      %v3723 = vadd.f32 %v3489, %v3715
      %v3724 = vadd.f32 %v3490, %v3716
      %v3725 = vadd.f32 %v3491, %v3717
      %v3726 = vadd.f32 %v3492, %v3718
      %v3727 = vadd.f32 %v3493, %v3719
      %v3728 = vadd.f32 %v3494, %v3720
      %v3729 = vadd.f32 %v3495, %v3721
      %v3731 = vlaneseq
      %v3732 = vshrl.u32 %v3731, 7
      %v3733 = vsub.s32 0, %v3732
      %v3734 = vrot.slane %v2899, %v3733
      %v3736 = vadd.f32 %v3722, %v3734
      %v3737 = vadd.f32 %v3723, %v3734
      %v3738 = vadd.f32 %v3724, %v3734
      %v3739 = vadd.f32 %v3725, %v3734
      %v3740 = vadd.f32 %v3726, %v3734
      %v3741 = vadd.f32 %v3727, %v3734
      %v3742 = vadd.f32 %v3728, %v3734
      %v3743 = vadd.f32 %v3729, %v3734
      %v3744 = vmax.f32 %v3736, 0.0
      %v3745 = vmax.f32 %v3737, 0.0
      %v3746 = vmax.f32 %v3738, 0.0
      %v3747 = vmax.f32 %v3739, 0.0
      %v3748 = vmax.f32 %v3740, 0.0
      %v3749 = vmax.f32 %v3741, 0.0
      %v3750 = vmax.f32 %v3742, 0.0
      %v3751 = vmax.f32 %v3743, 0.0
      %v3752 = vpack.c.bf16 %v3745, %v3744
      %v3753 = vpack.c.bf16 %v3747, %v3746
      %v3754 = vpack.c.bf16 %v3749, %v3748
      %v3755 = vpack.c.bf16 %v3751, %v3750
      %s3756 = scalar_lea.vmem %s5, 8
      %v3757 = vld [vmem:[%s3756] sm:$0xf]
      %v3758 = vld [vmem:[%s3756 + $0x4] sm:$0xf]
      %s3759 = scalar_lea.vmem %s6, 1
      %v3760 = vld [vmem:[%s3759] sm:$0x1]
      %v3762 = vlaneseq
      %v3763 = vshrl.u32 %v3762, 7
      %v3764 = vsub.s32 0, %v3763
      %v3765 = vrot.slane %v3760, %v3764
      %v3769 = vunpack.c.l.b16 %v3757
      %v3770 = vunpack.c.l.b16 %v3758
      %v3771 = vpack.c.b16 %v3770, %v3769
      %v3774 = vsel %vm1580, %v3752, 0
      %v3777 = vsel %vm1580, %v3753, 0
      %v3780 = vsel %vm1580, %v3754, 0
      %v3783 = vsel %vm1580, %v3755, 0
      %3785 = vmatprep.subr.bf16.mxu0 0
      %3786 = vmatpush1.bf16.msra.mxu0 0
      %3787 = vmatprep.subr.bf16.mxu0 0
      %3788 = vmatpush1.bf16.msra.mxu0 0
      %3789 = vmatprep.subr.bf16.mxu0 0
      %3790 = vmatpush1.bf16.msra.mxu0 0
      %3791 = vmatprep.subr.bf16.mxu0 0
      %3792 = vmatpush1.bf16.msra.mxu0 0
      %3793 = vmatprep.subr.bf16.mxu0 0
      %3794 = vmatpush1.bf16.msra.mxu0 0
      %3795 = vmatprep.subr.bf16.mxu0 0
      %3796 = vmatpush1.bf16.msra.mxu0 0
      %3797 = vmatprep.subr.bf16.mxu0 0
      %3798 = vmatpush1.bf16.msra.mxu0 0
      %3799 = vmatprep.subr.bf16.mxu0 0
      %3800 = vmatpush1.bf16.msra.mxu0 %v3771
      %3801 = vmatprep.subr.bf16.mxu0 0
      %3802 = vmatpush2.bf16.msra.mxu0 0
      %3803 = vmatprep.subr.bf16.mxu0 0
      %3804 = vmatpush2.bf16.msra.mxu0 0
      %3805 = vmatprep.subr.bf16.mxu0 0
      %3806 = vmatpush2.bf16.msra.mxu0 0
      %3807 = vmatprep.subr.bf16.mxu0 0
      %3808 = vmatpush2.bf16.msra.mxu0 0
      %3809 = vmatprep.subr.bf16.mxu0 0
      %3810 = vmatpush2.bf16.msra.mxu0 0
      %3811 = vmatprep.subr.bf16.mxu0 0
      %3812 = vmatpush2.bf16.msra.mxu0 0
      %3813 = vmatprep.subr.bf16.mxu0 0
      %3814 = vmatpush2.bf16.msra.mxu0 0
      %3815 = vmatprep.subr.bf16.mxu0 0
      %3816 = vmatpush2.bf16.msra.mxu0 0
      %3817 = vmatprep.mubr.bf16.mxu0 0
      %3818 = vmatmul.mubr.bf16.gmra.mxu0 %v3774
      %v3819 = vpop.f32.mrf.mxu0
      %v3820 = vadd.f32 %v3765, %v3819
      %v3821 = vpop.f32.mrf.mxu0
      %v3822 = vpop.f32.mrf.mxu0
      %v3823 = vadd.f32 %v3765, %v3822
      %v3824 = vpop.f32.mrf.mxu0
      %3825 = vmatprep.mubr.bf16.mxu0 0
      %3826 = vmatmul.mubr.bf16.gmra.mxu0 %v3777
      %v3827 = vpop.f32.mrf.mxu0
      %v3828 = vadd.f32 %v3765, %v3827
      %v3829 = vpop.f32.mrf.mxu0
      %v3830 = vpop.f32.mrf.mxu0
      %v3831 = vadd.f32 %v3765, %v3830
      %v3832 = vpop.f32.mrf.mxu0
      %3833 = vmatprep.mubr.bf16.mxu0 0
      %3834 = vmatmul.mubr.bf16.gmra.mxu0 %v3780
      %v3835 = vpop.f32.mrf.mxu0
      %v3836 = vadd.f32 %v3765, %v3835
      %v3837 = vpop.f32.mrf.mxu0
      %v3838 = vpop.f32.mrf.mxu0
      %v3839 = vadd.f32 %v3765, %v3838
      %v3840 = vpop.f32.mrf.mxu0
      %3841 = vmatprep.mubr.bf16.mxu0 0
      %3842 = vmatmul.mubr.bf16.gmra.mxu0 %v3783
      %v3843 = vpop.f32.mrf.mxu0
      %v3844 = vadd.f32 %v3765, %v3843
      %v3845 = vpop.f32.mrf.mxu0
      %v3846 = vpop.f32.mrf.mxu0
      %v3847 = vadd.f32 %v3765, %v3846
      %v3848 = vpop.f32.mrf.mxu0
      %3849 = vdwg.mxu0
      %v3850 = vmax.f32 %v3820, 0.0
      %v3851 = vmax.f32 %v3823, 0.0
      %v3852 = vmax.f32 %v3828, 0.0
      %v3853 = vmax.f32 %v3831, 0.0
      %v3854 = vmax.f32 %v3836, 0.0
      %v3855 = vmax.f32 %v3839, 0.0
      %v3856 = vmax.f32 %v3844, 0.0
      %v3857 = vmax.f32 %v3847, 0.0
      %s3858 = scalar_lea.vmem %s8, 1
      %v3859 = vld [vmem:[%s3858] sm:$0x1]
      %v3860 = vrot.slane %v3850, 7
      %v3861 = vrot.slane %v3851, 7
      %v3862 = vrot.slane %v3852, 7
      %v3863 = vrot.slane %v3853, 7
      %v3864 = vrot.slane %v3854, 7
      %v3865 = vrot.slane %v3855, 7
      %v3866 = vrot.slane %v3856, 7
      %v3867 = vrot.slane %v3857, 7
      %v3868 = vsel %vm716, %v3866, %v3867
      %v3869 = vsel %vm716, %v3865, %v3866
      %v3870 = vsel %vm716, %v3864, %v3865
      %v3871 = vsel %vm716, %v3863, %v3864
      %v3872 = vsel %vm716, %v3862, %v3863
      %v3873 = vsel %vm716, %v3861, %v3862
      %v3874 = vsel %vm716, %v3860, %v3861
      %v3875 = vsel %vm716, %v3867, %v3860
      %v3876 = vmul.f32 %v3875, %v518
      %v3877 = vmul.f32 %v3874, %v519
      %v3878 = vmul.f32 %v3873, %v520
      %v3879 = vmul.f32 %v3872, %v521
      %v3880 = vmul.f32 %v3871, %v522
      %v3881 = vmul.f32 %v3870, %v523
      %v3882 = vmul.f32 %v3869, %v524
      %v3883 = vmul.f32 %v3868, %v525
      %v3884 = vrot.slane %v3850, 1
      %v3885 = vrot.slane %v3851, 1
      %v3886 = vrot.slane %v3852, 1
      %v3887 = vrot.slane %v3853, 1
      %v3888 = vrot.slane %v3854, 1
      %v3889 = vrot.slane %v3855, 1
      %v3890 = vrot.slane %v3856, 1
      %v3891 = vrot.slane %v3857, 1
      %v3892 = vsel %vm741, %v3890, %v3891
      %v3893 = vsel %vm741, %v3889, %v3890
      %v3894 = vsel %vm741, %v3888, %v3889
      %v3895 = vsel %vm741, %v3887, %v3888
      %v3896 = vsel %vm741, %v3886, %v3887
      %v3897 = vsel %vm741, %v3885, %v3886
      %v3898 = vsel %vm741, %v3884, %v3885
      %v3899 = vsel %vm741, %v3891, %v3884
      %v3900 = vmul.f32 %v3898, %v542
      %v3901 = vmul.f32 %v3897, %v543
      %v3902 = vmul.f32 %v3896, %v544
      %v3903 = vmul.f32 %v3895, %v545
      %v3904 = vmul.f32 %v3894, %v546
      %v3905 = vmul.f32 %v3893, %v547
      %v3906 = vmul.f32 %v3892, %v548
      %v3907 = vmul.f32 %v3899, %v549
      %v3908 = vpack.c.bf16 %v3876, %v3883
      %v3909 = vpack.c.bf16 %v3878, %v3877
      %v3910 = vpack.c.bf16 %v3880, %v3879
      %v3911 = vpack.c.bf16 %v3882, %v3881
      %s3912 = scalar_lea.vmem %s7, 72
      %v3913 = vld [vmem:[%s3912] sm:$0xf]
      %v3914 = vld [vmem:[%s3912 + $0x4] sm:$0xf]
      %v3915 = vpack.c.bf16 %v3850, %v3857
      %v3916 = vpack.c.bf16 %v3852, %v3851
      %v3917 = vpack.c.bf16 %v3854, %v3853
      %v3918 = vpack.c.bf16 %v3856, %v3855
      %s3919 = scalar_lea.vmem %s7, 80
      %v3920 = vld [vmem:[%s3919] sm:$0xf]
      %v3921 = vld [vmem:[%s3919 + $0x4] sm:$0xf]
      %v3924 = vunpack.c.l.b16 %v3920
      %v3925 = vunpack.c.l.b16 %v3921
      %v3926 = vpack.c.b16 %v3925, %v3924
      %v3929 = vsel %vm1580, %v3915, 0
      %v3932 = vsel %vm1580, %v3916, 0
      %v3935 = vsel %vm1580, %v3917, 0
      %v3938 = vsel %vm1580, %v3918, 0
      %3940 = vmatprep.subr.bf16.mxu0 0
      %3941 = vmatpush1.bf16.msra.mxu0 0
      %3942 = vmatprep.subr.bf16.mxu0 0
      %3943 = vmatpush1.bf16.msra.mxu0 0
      %3944 = vmatprep.subr.bf16.mxu0 0
      %3945 = vmatpush1.bf16.msra.mxu0 0
      %3946 = vmatprep.subr.bf16.mxu0 0
      %3947 = vmatpush1.bf16.msra.mxu0 0
      %3948 = vmatprep.subr.bf16.mxu0 0
      %3949 = vmatpush1.bf16.msra.mxu0 0
      %3950 = vmatprep.subr.bf16.mxu0 0
      %3951 = vmatpush1.bf16.msra.mxu0 0
      %3952 = vmatprep.subr.bf16.mxu0 0
      %3953 = vmatpush1.bf16.msra.mxu0 0
      %3954 = vmatprep.subr.bf16.mxu0 0
      %3955 = vmatpush1.bf16.msra.mxu0 %v3926
      %3956 = vmatprep.subr.bf16.mxu0 0
      %3957 = vmatpush2.bf16.msra.mxu0 0
      %3958 = vmatprep.subr.bf16.mxu0 0
      %3959 = vmatpush2.bf16.msra.mxu0 0
      %3960 = vmatprep.subr.bf16.mxu0 0
      %3961 = vmatpush2.bf16.msra.mxu0 0
      %3962 = vmatprep.subr.bf16.mxu0 0
      %3963 = vmatpush2.bf16.msra.mxu0 0
      %3964 = vmatprep.subr.bf16.mxu0 0
      %3965 = vmatpush2.bf16.msra.mxu0 0
      %3966 = vmatprep.subr.bf16.mxu0 0
      %3967 = vmatpush2.bf16.msra.mxu0 0
      %3968 = vmatprep.subr.bf16.mxu0 0
      %3969 = vmatpush2.bf16.msra.mxu0 0
      %3970 = vmatprep.subr.bf16.mxu0 0
      %3971 = vmatpush2.bf16.msra.mxu0 0
      %3972 = vmatprep.mubr.bf16.mxu0 0
      %3973 = vmatmul.mubr.bf16.gmra.mxu0 %v3929
      %v3974 = vpop.f32.mrf.mxu0
      %v3975 = vadd.f32 0.0, %v3974
      %v3976 = vpop.f32.mrf.mxu0
      %v3977 = vpop.f32.mrf.mxu0
      %v3978 = vadd.f32 0.0, %v3977
      %v3979 = vpop.f32.mrf.mxu0
      %3980 = vmatprep.mubr.bf16.mxu0 0
      %3981 = vmatmul.mubr.bf16.gmra.mxu0 %v3932
      %v3982 = vpop.f32.mrf.mxu0
      %v3983 = vadd.f32 0.0, %v3982
      %v3984 = vpop.f32.mrf.mxu0
      %v3985 = vpop.f32.mrf.mxu0
      %v3986 = vadd.f32 0.0, %v3985
      %v3987 = vpop.f32.mrf.mxu0
      %3988 = vmatprep.mubr.bf16.mxu0 0
      %3989 = vmatmul.mubr.bf16.gmra.mxu0 %v3935
      %v3990 = vpop.f32.mrf.mxu0
      %v3991 = vadd.f32 0.0, %v3990
      %v3992 = vpop.f32.mrf.mxu0
      %v3993 = vpop.f32.mrf.mxu0
      %v3994 = vadd.f32 0.0, %v3993
      %v3995 = vpop.f32.mrf.mxu0
      %3996 = vmatprep.mubr.bf16.mxu0 0
      %3997 = vmatmul.mubr.bf16.gmra.mxu0 %v3938
      %v3998 = vpop.f32.mrf.mxu0
      %v3999 = vadd.f32 0.0, %v3998
      %v4000 = vpop.f32.mrf.mxu0
      %v4001 = vpop.f32.mrf.mxu0
      %v4002 = vadd.f32 0.0, %v4001
      %v4003 = vpop.f32.mrf.mxu0
      %4004 = vdwg.mxu0
      %v4007 = vunpack.c.l.b16 %v3913
      %v4008 = vunpack.c.l.b16 %v3914
      %v4009 = vpack.c.b16 %v4008, %v4007
      %v4012 = vsel %vm1580, %v3908, 0
      %v4015 = vsel %vm1580, %v3909, 0
      %v4018 = vsel %vm1580, %v3910, 0
      %v4021 = vsel %vm1580, %v3911, 0
      %4023 = vmatprep.subr.bf16.mxu0 0
      %4024 = vmatpush1.bf16.msra.mxu0 0
      %4025 = vmatprep.subr.bf16.mxu0 0
      %4026 = vmatpush1.bf16.msra.mxu0 0
      %4027 = vmatprep.subr.bf16.mxu0 0
      %4028 = vmatpush1.bf16.msra.mxu0 0
      %4029 = vmatprep.subr.bf16.mxu0 0
      %4030 = vmatpush1.bf16.msra.mxu0 0
      %4031 = vmatprep.subr.bf16.mxu0 0
      %4032 = vmatpush1.bf16.msra.mxu0 0
      %4033 = vmatprep.subr.bf16.mxu0 0
      %4034 = vmatpush1.bf16.msra.mxu0 0
      %4035 = vmatprep.subr.bf16.mxu0 0
      %4036 = vmatpush1.bf16.msra.mxu0 0
      %4037 = vmatprep.subr.bf16.mxu0 0
      %4038 = vmatpush1.bf16.msra.mxu0 %v4009
      %4039 = vmatprep.subr.bf16.mxu0 0
      %4040 = vmatpush2.bf16.msra.mxu0 0
      %4041 = vmatprep.subr.bf16.mxu0 0
      %4042 = vmatpush2.bf16.msra.mxu0 0
      %4043 = vmatprep.subr.bf16.mxu0 0
      %4044 = vmatpush2.bf16.msra.mxu0 0
      %4045 = vmatprep.subr.bf16.mxu0 0
      %4046 = vmatpush2.bf16.msra.mxu0 0
      %4047 = vmatprep.subr.bf16.mxu0 0
      %4048 = vmatpush2.bf16.msra.mxu0 0
      %4049 = vmatprep.subr.bf16.mxu0 0
      %4050 = vmatpush2.bf16.msra.mxu0 0
      %4051 = vmatprep.subr.bf16.mxu0 0
      %4052 = vmatpush2.bf16.msra.mxu0 0
      %4053 = vmatprep.subr.bf16.mxu0 0
      %4054 = vmatpush2.bf16.msra.mxu0 0
      %4055 = vmatprep.mubr.bf16.mxu0 0
      %4056 = vmatmul.mubr.bf16.gmra.mxu0 %v4012
      %v4057 = vpop.f32.mrf.mxu0
      %v4058 = vadd.f32 %v3975, %v4057
      %v4059 = vpop.f32.mrf.mxu0
      %v4060 = vpop.f32.mrf.mxu0
      %v4061 = vadd.f32 %v3978, %v4060
      %v4062 = vpop.f32.mrf.mxu0
      %4063 = vmatprep.mubr.bf16.mxu0 0
      %4064 = vmatmul.mubr.bf16.gmra.mxu0 %v4015
      %v4065 = vpop.f32.mrf.mxu0
      %v4066 = vadd.f32 %v3983, %v4065
      %v4067 = vpop.f32.mrf.mxu0
      %v4068 = vpop.f32.mrf.mxu0
      %v4069 = vadd.f32 %v3986, %v4068
      %v4070 = vpop.f32.mrf.mxu0
      %4071 = vmatprep.mubr.bf16.mxu0 0
      %4072 = vmatmul.mubr.bf16.gmra.mxu0 %v4018
      %v4073 = vpop.f32.mrf.mxu0
      %v4074 = vadd.f32 %v3991, %v4073
      %v4075 = vpop.f32.mrf.mxu0
      %v4076 = vpop.f32.mrf.mxu0
      %v4077 = vadd.f32 %v3994, %v4076
      %v4078 = vpop.f32.mrf.mxu0
      %4079 = vmatprep.mubr.bf16.mxu0 0
      %4080 = vmatmul.mubr.bf16.gmra.mxu0 %v4021
      %v4081 = vpop.f32.mrf.mxu0
      %v4082 = vadd.f32 %v3999, %v4081
      %v4083 = vpop.f32.mrf.mxu0
      %v4084 = vpop.f32.mrf.mxu0
      %v4085 = vadd.f32 %v4002, %v4084
      %v4086 = vpop.f32.mrf.mxu0
      %4087 = vdwg.mxu0
      %v4088 = vpack.c.bf16 %v3900, %v3907
      %v4089 = vpack.c.bf16 %v3902, %v3901
      %v4090 = vpack.c.bf16 %v3904, %v3903
      %v4091 = vpack.c.bf16 %v3906, %v3905
      %s4092 = scalar_lea.vmem %s7, 88
      %v4093 = vld [vmem:[%s4092] sm:$0xf]
      %v4094 = vld [vmem:[%s4092 + $0x4] sm:$0xf]
      %v4097 = vunpack.c.l.b16 %v4093
      %v4098 = vunpack.c.l.b16 %v4094
      %v4099 = vpack.c.b16 %v4098, %v4097
      %v4102 = vsel %vm1580, %v4088, 0
      %v4105 = vsel %vm1580, %v4089, 0
      %v4108 = vsel %vm1580, %v4090, 0
      %v4111 = vsel %vm1580, %v4091, 0
      %4113 = vmatprep.subr.bf16.mxu0 0
      %4114 = vmatpush1.bf16.msra.mxu0 0
      %4115 = vmatprep.subr.bf16.mxu0 0
      %4116 = vmatpush1.bf16.msra.mxu0 0
      %4117 = vmatprep.subr.bf16.mxu0 0
      %4118 = vmatpush1.bf16.msra.mxu0 0
      %4119 = vmatprep.subr.bf16.mxu0 0
      %4120 = vmatpush1.bf16.msra.mxu0 0
      %4121 = vmatprep.subr.bf16.mxu0 0
      %4122 = vmatpush1.bf16.msra.mxu0 0
      %4123 = vmatprep.subr.bf16.mxu0 0
      %4124 = vmatpush1.bf16.msra.mxu0 0
      %4125 = vmatprep.subr.bf16.mxu0 0
      %4126 = vmatpush1.bf16.msra.mxu0 0
      %4127 = vmatprep.subr.bf16.mxu0 0
      %4128 = vmatpush1.bf16.msra.mxu0 %v4099
      %4129 = vmatprep.subr.bf16.mxu0 0
      %4130 = vmatpush2.bf16.msra.mxu0 0
      %4131 = vmatprep.subr.bf16.mxu0 0
      %4132 = vmatpush2.bf16.msra.mxu0 0
      %4133 = vmatprep.subr.bf16.mxu0 0
      %4134 = vmatpush2.bf16.msra.mxu0 0
      %4135 = vmatprep.subr.bf16.mxu0 0
      %4136 = vmatpush2.bf16.msra.mxu0 0
      %4137 = vmatprep.subr.bf16.mxu0 0
      %4138 = vmatpush2.bf16.msra.mxu0 0
      %4139 = vmatprep.subr.bf16.mxu0 0
      %4140 = vmatpush2.bf16.msra.mxu0 0
      %4141 = vmatprep.subr.bf16.mxu0 0
      %4142 = vmatpush2.bf16.msra.mxu0 0
      %4143 = vmatprep.subr.bf16.mxu0 0
      %4144 = vmatpush2.bf16.msra.mxu0 0
      %4145 = vmatprep.mubr.bf16.mxu0 0
      %4146 = vmatmul.mubr.bf16.gmra.mxu0 %v4102
      %v4147 = vpop.f32.mrf.mxu0
      %v4148 = vadd.f32 0.0, %v4147
      %v4149 = vpop.f32.mrf.mxu0
      %v4150 = vpop.f32.mrf.mxu0
      %v4151 = vadd.f32 0.0, %v4150
      %v4152 = vpop.f32.mrf.mxu0
      %4153 = vmatprep.mubr.bf16.mxu0 0
      %4154 = vmatmul.mubr.bf16.gmra.mxu0 %v4105
      %v4155 = vpop.f32.mrf.mxu0
      %v4156 = vadd.f32 0.0, %v4155
      %v4157 = vpop.f32.mrf.mxu0
      %v4158 = vpop.f32.mrf.mxu0
      %v4159 = vadd.f32 0.0, %v4158
      %v4160 = vpop.f32.mrf.mxu0
      %4161 = vmatprep.mubr.bf16.mxu0 0
      %4162 = vmatmul.mubr.bf16.gmra.mxu0 %v4108
      %v4163 = vpop.f32.mrf.mxu0
      %v4164 = vadd.f32 0.0, %v4163
      %v4165 = vpop.f32.mrf.mxu0
      %v4166 = vpop.f32.mrf.mxu0
      %v4167 = vadd.f32 0.0, %v4166
      %v4168 = vpop.f32.mrf.mxu0
      %4169 = vmatprep.mubr.bf16.mxu0 0
      %4170 = vmatmul.mubr.bf16.gmra.mxu0 %v4111
      %v4171 = vpop.f32.mrf.mxu0
      %v4172 = vadd.f32 0.0, %v4171
      %v4173 = vpop.f32.mrf.mxu0
      %v4174 = vpop.f32.mrf.mxu0
      %v4175 = vadd.f32 0.0, %v4174
      %v4176 = vpop.f32.mrf.mxu0
      %4177 = vdwg.mxu0
      %v4178 = vadd.f32 %v4058, %v4148
      %v4179 = vadd.f32 %v4061, %v4151
      %v4180 = vadd.f32 %v4066, %v4156
      %v4181 = vadd.f32 %v4069, %v4159
      %v4182 = vadd.f32 %v4074, %v4164
      %v4183 = vadd.f32 %v4077, %v4167
      %v4184 = vadd.f32 %v4082, %v4172
      %v4185 = vadd.f32 %v4085, %v4175
      %v4186 = vmul.f32 %v4178, %v566
      %v4187 = vmul.f32 %v4179, %v567
      %v4188 = vmul.f32 %v4180, %v568
      %v4189 = vmul.f32 %v4181, %v569
      %v4190 = vmul.f32 %v4182, %v570
      %v4191 = vmul.f32 %v4183, %v571
      %v4192 = vmul.f32 %v4184, %v572
      %v4193 = vmul.f32 %v4185, %v573
      %v4194 = vpack.c.bf16 %v3877, %v3876
      %v4195 = vpack.c.bf16 %v3879, %v3878
      %v4196 = vpack.c.bf16 %v3881, %v3880
      %v4197 = vpack.c.bf16 %v3883, %v3882
      %s4198 = scalar_lea.vmem %s7, 96
      %v4199 = vld [vmem:[%s4198] sm:$0xf]
      %v4200 = vld [vmem:[%s4198 + $0x4] sm:$0xf]
      %v4201 = vpack.c.bf16 %v3851, %v3850
      %v4202 = vpack.c.bf16 %v3853, %v3852
      %v4203 = vpack.c.bf16 %v3855, %v3854
      %v4204 = vpack.c.bf16 %v3857, %v3856
      %s4205 = scalar_lea.vmem %s7, 104
      %v4206 = vld [vmem:[%s4205] sm:$0xf]
      %v4207 = vld [vmem:[%s4205 + $0x4] sm:$0xf]
      %v4210 = vunpack.c.l.b16 %v4206
      %v4211 = vunpack.c.l.b16 %v4207
      %v4212 = vpack.c.b16 %v4211, %v4210
      %v4215 = vsel %vm1580, %v4201, 0
      %v4218 = vsel %vm1580, %v4202, 0
      %v4221 = vsel %vm1580, %v4203, 0
      %v4224 = vsel %vm1580, %v4204, 0
      %4226 = vmatprep.subr.bf16.mxu0 0
      %4227 = vmatpush1.bf16.msra.mxu0 0
      %4228 = vmatprep.subr.bf16.mxu0 0
      %4229 = vmatpush1.bf16.msra.mxu0 0
      %4230 = vmatprep.subr.bf16.mxu0 0
      %4231 = vmatpush1.bf16.msra.mxu0 0
      %4232 = vmatprep.subr.bf16.mxu0 0
      %4233 = vmatpush1.bf16.msra.mxu0 0
      %4234 = vmatprep.subr.bf16.mxu0 0
      %4235 = vmatpush1.bf16.msra.mxu0 0
      %4236 = vmatprep.subr.bf16.mxu0 0
      %4237 = vmatpush1.bf16.msra.mxu0 0
      %4238 = vmatprep.subr.bf16.mxu0 0
      %4239 = vmatpush1.bf16.msra.mxu0 0
      %4240 = vmatprep.subr.bf16.mxu0 0
      %4241 = vmatpush1.bf16.msra.mxu0 %v4212
      %4242 = vmatprep.subr.bf16.mxu0 0
      %4243 = vmatpush2.bf16.msra.mxu0 0
      %4244 = vmatprep.subr.bf16.mxu0 0
      %4245 = vmatpush2.bf16.msra.mxu0 0
      %4246 = vmatprep.subr.bf16.mxu0 0
      %4247 = vmatpush2.bf16.msra.mxu0 0
      %4248 = vmatprep.subr.bf16.mxu0 0
      %4249 = vmatpush2.bf16.msra.mxu0 0
      %4250 = vmatprep.subr.bf16.mxu0 0
      %4251 = vmatpush2.bf16.msra.mxu0 0
      %4252 = vmatprep.subr.bf16.mxu0 0
      %4253 = vmatpush2.bf16.msra.mxu0 0
      %4254 = vmatprep.subr.bf16.mxu0 0
      %4255 = vmatpush2.bf16.msra.mxu0 0
      %4256 = vmatprep.subr.bf16.mxu0 0
      %4257 = vmatpush2.bf16.msra.mxu0 0
      %4258 = vmatprep.mubr.bf16.mxu0 0
      %4259 = vmatmul.mubr.bf16.gmra.mxu0 %v4215
      %v4260 = vpop.f32.mrf.mxu0
      %v4261 = vadd.f32 0.0, %v4260
      %v4262 = vpop.f32.mrf.mxu0
      %v4263 = vpop.f32.mrf.mxu0
      %v4264 = vadd.f32 0.0, %v4263
      %v4265 = vpop.f32.mrf.mxu0
      %4266 = vmatprep.mubr.bf16.mxu0 0
      %4267 = vmatmul.mubr.bf16.gmra.mxu0 %v4218
      %v4268 = vpop.f32.mrf.mxu0
      %v4269 = vadd.f32 0.0, %v4268
      %v4270 = vpop.f32.mrf.mxu0
      %v4271 = vpop.f32.mrf.mxu0
      %v4272 = vadd.f32 0.0, %v4271
      %v4273 = vpop.f32.mrf.mxu0
      %4274 = vmatprep.mubr.bf16.mxu0 0
      %4275 = vmatmul.mubr.bf16.gmra.mxu0 %v4221
      %v4276 = vpop.f32.mrf.mxu0
      %v4277 = vadd.f32 0.0, %v4276
      %v4278 = vpop.f32.mrf.mxu0
      %v4279 = vpop.f32.mrf.mxu0
      %v4280 = vadd.f32 0.0, %v4279
      %v4281 = vpop.f32.mrf.mxu0
      %4282 = vmatprep.mubr.bf16.mxu0 0
      %4283 = vmatmul.mubr.bf16.gmra.mxu0 %v4224
      %v4284 = vpop.f32.mrf.mxu0
      %v4285 = vadd.f32 0.0, %v4284
      %v4286 = vpop.f32.mrf.mxu0
      %v4287 = vpop.f32.mrf.mxu0
      %v4288 = vadd.f32 0.0, %v4287
      %v4289 = vpop.f32.mrf.mxu0
      %4290 = vdwg.mxu0
      %v4293 = vunpack.c.l.b16 %v4199
      %v4294 = vunpack.c.l.b16 %v4200
      %v4295 = vpack.c.b16 %v4294, %v4293
      %v4298 = vsel %vm1580, %v4194, 0
      %v4301 = vsel %vm1580, %v4195, 0
      %v4304 = vsel %vm1580, %v4196, 0
      %v4307 = vsel %vm1580, %v4197, 0
      %4309 = vmatprep.subr.bf16.mxu0 0
      %4310 = vmatpush1.bf16.msra.mxu0 0
      %4311 = vmatprep.subr.bf16.mxu0 0
      %4312 = vmatpush1.bf16.msra.mxu0 0
      %4313 = vmatprep.subr.bf16.mxu0 0
      %4314 = vmatpush1.bf16.msra.mxu0 0
      %4315 = vmatprep.subr.bf16.mxu0 0
      %4316 = vmatpush1.bf16.msra.mxu0 0
      %4317 = vmatprep.subr.bf16.mxu0 0
      %4318 = vmatpush1.bf16.msra.mxu0 0
      %4319 = vmatprep.subr.bf16.mxu0 0
      %4320 = vmatpush1.bf16.msra.mxu0 0
      %4321 = vmatprep.subr.bf16.mxu0 0
      %4322 = vmatpush1.bf16.msra.mxu0 0
      %4323 = vmatprep.subr.bf16.mxu0 0
      %4324 = vmatpush1.bf16.msra.mxu0 %v4295
      %4325 = vmatprep.subr.bf16.mxu0 0
      %4326 = vmatpush2.bf16.msra.mxu0 0
      %4327 = vmatprep.subr.bf16.mxu0 0
      %4328 = vmatpush2.bf16.msra.mxu0 0
      %4329 = vmatprep.subr.bf16.mxu0 0
      %4330 = vmatpush2.bf16.msra.mxu0 0
      %4331 = vmatprep.subr.bf16.mxu0 0
      %4332 = vmatpush2.bf16.msra.mxu0 0
      %4333 = vmatprep.subr.bf16.mxu0 0
      %4334 = vmatpush2.bf16.msra.mxu0 0
      %4335 = vmatprep.subr.bf16.mxu0 0
      %4336 = vmatpush2.bf16.msra.mxu0 0
      %4337 = vmatprep.subr.bf16.mxu0 0
      %4338 = vmatpush2.bf16.msra.mxu0 0
      %4339 = vmatprep.subr.bf16.mxu0 0
      %4340 = vmatpush2.bf16.msra.mxu0 0
      %4341 = vmatprep.mubr.bf16.mxu0 0
      %4342 = vmatmul.mubr.bf16.gmra.mxu0 %v4298
      %v4343 = vpop.f32.mrf.mxu0
      %v4344 = vadd.f32 %v4261, %v4343
      %v4345 = vpop.f32.mrf.mxu0
      %v4346 = vpop.f32.mrf.mxu0
      %v4347 = vadd.f32 %v4264, %v4346
      %v4348 = vpop.f32.mrf.mxu0
      %4349 = vmatprep.mubr.bf16.mxu0 0
      %4350 = vmatmul.mubr.bf16.gmra.mxu0 %v4301
      %v4351 = vpop.f32.mrf.mxu0
      %v4352 = vadd.f32 %v4269, %v4351
      %v4353 = vpop.f32.mrf.mxu0
      %v4354 = vpop.f32.mrf.mxu0
      %v4355 = vadd.f32 %v4272, %v4354
      %v4356 = vpop.f32.mrf.mxu0
      %4357 = vmatprep.mubr.bf16.mxu0 0
      %4358 = vmatmul.mubr.bf16.gmra.mxu0 %v4304
      %v4359 = vpop.f32.mrf.mxu0
      %v4360 = vadd.f32 %v4277, %v4359
      %v4361 = vpop.f32.mrf.mxu0
      %v4362 = vpop.f32.mrf.mxu0
      %v4363 = vadd.f32 %v4280, %v4362
      %v4364 = vpop.f32.mrf.mxu0
      %4365 = vmatprep.mubr.bf16.mxu0 0
      %4366 = vmatmul.mubr.bf16.gmra.mxu0 %v4307
      %v4367 = vpop.f32.mrf.mxu0
      %v4368 = vadd.f32 %v4285, %v4367
      %v4369 = vpop.f32.mrf.mxu0
      %v4370 = vpop.f32.mrf.mxu0
      %v4371 = vadd.f32 %v4288, %v4370
      %v4372 = vpop.f32.mrf.mxu0
      %4373 = vdwg.mxu0
      %v4374 = vpack.c.bf16 %v3901, %v3900
      %v4375 = vpack.c.bf16 %v3903, %v3902
      %v4376 = vpack.c.bf16 %v3905, %v3904
      %v4377 = vpack.c.bf16 %v3907, %v3906
      %s4378 = scalar_lea.vmem %s7, 112
      %v4379 = vld [vmem:[%s4378] sm:$0xf]
      %v4380 = vld [vmem:[%s4378 + $0x4] sm:$0xf]
      %v4383 = vunpack.c.l.b16 %v4379
      %v4384 = vunpack.c.l.b16 %v4380
      %v4385 = vpack.c.b16 %v4384, %v4383
      %v4388 = vsel %vm1580, %v4374, 0
      %v4391 = vsel %vm1580, %v4375, 0
      %v4394 = vsel %vm1580, %v4376, 0
      %v4397 = vsel %vm1580, %v4377, 0
      %4399 = vmatprep.subr.bf16.mxu0 0
      %4400 = vmatpush1.bf16.msra.mxu0 0
      %4401 = vmatprep.subr.bf16.mxu0 0
      %4402 = vmatpush1.bf16.msra.mxu0 0
      %4403 = vmatprep.subr.bf16.mxu0 0
      %4404 = vmatpush1.bf16.msra.mxu0 0
      %4405 = vmatprep.subr.bf16.mxu0 0
      %4406 = vmatpush1.bf16.msra.mxu0 0
      %4407 = vmatprep.subr.bf16.mxu0 0
      %4408 = vmatpush1.bf16.msra.mxu0 0
      %4409 = vmatprep.subr.bf16.mxu0 0
      %4410 = vmatpush1.bf16.msra.mxu0 0
      %4411 = vmatprep.subr.bf16.mxu0 0
      %4412 = vmatpush1.bf16.msra.mxu0 0
      %4413 = vmatprep.subr.bf16.mxu0 0
      %4414 = vmatpush1.bf16.msra.mxu0 %v4385
      %4415 = vmatprep.subr.bf16.mxu0 0
      %4416 = vmatpush2.bf16.msra.mxu0 0
      %4417 = vmatprep.subr.bf16.mxu0 0
      %4418 = vmatpush2.bf16.msra.mxu0 0
      %4419 = vmatprep.subr.bf16.mxu0 0
      %4420 = vmatpush2.bf16.msra.mxu0 0
      %4421 = vmatprep.subr.bf16.mxu0 0
      %4422 = vmatpush2.bf16.msra.mxu0 0
      %4423 = vmatprep.subr.bf16.mxu0 0
      %4424 = vmatpush2.bf16.msra.mxu0 0
      %4425 = vmatprep.subr.bf16.mxu0 0
      %4426 = vmatpush2.bf16.msra.mxu0 0
      %4427 = vmatprep.subr.bf16.mxu0 0
      %4428 = vmatpush2.bf16.msra.mxu0 0
      %4429 = vmatprep.subr.bf16.mxu0 0
      %4430 = vmatpush2.bf16.msra.mxu0 0
      %4431 = vmatprep.mubr.bf16.mxu0 0
      %4432 = vmatmul.mubr.bf16.gmra.mxu0 %v4388
      %v4433 = vpop.f32.mrf.mxu0
      %v4434 = vadd.f32 0.0, %v4433
      %v4435 = vpop.f32.mrf.mxu0
      %v4436 = vpop.f32.mrf.mxu0
      %v4437 = vadd.f32 0.0, %v4436
      %v4438 = vpop.f32.mrf.mxu0
      %4439 = vmatprep.mubr.bf16.mxu0 0
      %4440 = vmatmul.mubr.bf16.gmra.mxu0 %v4391
      %v4441 = vpop.f32.mrf.mxu0
      %v4442 = vadd.f32 0.0, %v4441
      %v4443 = vpop.f32.mrf.mxu0
      %v4444 = vpop.f32.mrf.mxu0
      %v4445 = vadd.f32 0.0, %v4444
      %v4446 = vpop.f32.mrf.mxu0
      %4447 = vmatprep.mubr.bf16.mxu0 0
      %4448 = vmatmul.mubr.bf16.gmra.mxu0 %v4394
      %v4449 = vpop.f32.mrf.mxu0
      %v4450 = vadd.f32 0.0, %v4449
      %v4451 = vpop.f32.mrf.mxu0
      %v4452 = vpop.f32.mrf.mxu0
      %v4453 = vadd.f32 0.0, %v4452
      %v4454 = vpop.f32.mrf.mxu0
      %4455 = vmatprep.mubr.bf16.mxu0 0
      %4456 = vmatmul.mubr.bf16.gmra.mxu0 %v4397
      %v4457 = vpop.f32.mrf.mxu0
      %v4458 = vadd.f32 0.0, %v4457
      %v4459 = vpop.f32.mrf.mxu0
      %v4460 = vpop.f32.mrf.mxu0
      %v4461 = vadd.f32 0.0, %v4460
      %v4462 = vpop.f32.mrf.mxu0
      %4463 = vdwg.mxu0
      %v4464 = vadd.f32 %v4344, %v4434
      %v4465 = vadd.f32 %v4347, %v4437
      %v4466 = vadd.f32 %v4352, %v4442
      %v4467 = vadd.f32 %v4355, %v4445
      %v4468 = vadd.f32 %v4360, %v4450
      %v4469 = vadd.f32 %v4363, %v4453
      %v4470 = vadd.f32 %v4368, %v4458
      %v4471 = vadd.f32 %v4371, %v4461
      %v4472 = vadd.f32 %v4186, %v4464
      %v4473 = vadd.f32 %v4187, %v4465
      %v4474 = vadd.f32 %v4188, %v4466
      %v4475 = vadd.f32 %v4189, %v4467
      %v4476 = vadd.f32 %v4190, %v4468
      %v4477 = vadd.f32 %v4191, %v4469
      %v4478 = vadd.f32 %v4192, %v4470
      %v4479 = vadd.f32 %v4193, %v4471
      %s4480 = scalar_lea.vmem %s7, 120
      %v4481 = vld [vmem:[%s4480] sm:$0xf]
      %v4482 = vld [vmem:[%s4480 + $0x4] sm:$0xf]
      %s4483 = scalar_lea.vmem %s7, 128
      %v4484 = vld [vmem:[%s4483] sm:$0xf]
      %v4485 = vld [vmem:[%s4483 + $0x4] sm:$0xf]
      %v4488 = vunpack.c.l.b16 %v4484
      %v4489 = vunpack.c.l.b16 %v4485
      %v4490 = vpack.c.b16 %v4489, %v4488
      %4492 = vmatprep.subr.bf16.mxu0 0
      %4493 = vmatpush1.bf16.msra.mxu0 0
      %4494 = vmatprep.subr.bf16.mxu0 0
      %4495 = vmatpush1.bf16.msra.mxu0 0
      %4496 = vmatprep.subr.bf16.mxu0 0
      %4497 = vmatpush1.bf16.msra.mxu0 0
      %4498 = vmatprep.subr.bf16.mxu0 0
      %4499 = vmatpush1.bf16.msra.mxu0 0
      %4500 = vmatprep.subr.bf16.mxu0 0
      %4501 = vmatpush1.bf16.msra.mxu0 0
      %4502 = vmatprep.subr.bf16.mxu0 0
      %4503 = vmatpush1.bf16.msra.mxu0 0
      %4504 = vmatprep.subr.bf16.mxu0 0
      %4505 = vmatpush1.bf16.msra.mxu0 0
      %4506 = vmatprep.subr.bf16.mxu0 0
      %4507 = vmatpush1.bf16.msra.mxu0 %v4490
      %4508 = vmatprep.subr.bf16.mxu0 0
      %4509 = vmatpush2.bf16.msra.mxu0 0
      %4510 = vmatprep.subr.bf16.mxu0 0
      %4511 = vmatpush2.bf16.msra.mxu0 0
      %4512 = vmatprep.subr.bf16.mxu0 0
      %4513 = vmatpush2.bf16.msra.mxu0 0
      %4514 = vmatprep.subr.bf16.mxu0 0
      %4515 = vmatpush2.bf16.msra.mxu0 0
      %4516 = vmatprep.subr.bf16.mxu0 0
      %4517 = vmatpush2.bf16.msra.mxu0 0
      %4518 = vmatprep.subr.bf16.mxu0 0
      %4519 = vmatpush2.bf16.msra.mxu0 0
      %4520 = vmatprep.subr.bf16.mxu0 0
      %4521 = vmatpush2.bf16.msra.mxu0 0
      %4522 = vmatprep.subr.bf16.mxu0 0
      %4523 = vmatpush2.bf16.msra.mxu0 0
      %4524 = vmatprep.mubr.bf16.mxu0 0
      %4525 = vmatmul.mubr.bf16.gmra.mxu0 %v3932
      %v4526 = vpop.f32.mrf.mxu0
      %v4527 = vadd.f32 0.0, %v4526
      %v4528 = vpop.f32.mrf.mxu0
      %v4529 = vpop.f32.mrf.mxu0
      %v4530 = vadd.f32 0.0, %v4529
      %v4531 = vpop.f32.mrf.mxu0
      %4532 = vmatprep.mubr.bf16.mxu0 0
      %4533 = vmatmul.mubr.bf16.gmra.mxu0 %v3935
      %v4534 = vpop.f32.mrf.mxu0
      %v4535 = vadd.f32 0.0, %v4534
      %v4536 = vpop.f32.mrf.mxu0
      %v4537 = vpop.f32.mrf.mxu0
      %v4538 = vadd.f32 0.0, %v4537
      %v4539 = vpop.f32.mrf.mxu0
      %4540 = vmatprep.mubr.bf16.mxu0 0
      %4541 = vmatmul.mubr.bf16.gmra.mxu0 %v3938
      %v4542 = vpop.f32.mrf.mxu0
      %v4543 = vadd.f32 0.0, %v4542
      %v4544 = vpop.f32.mrf.mxu0
      %v4545 = vpop.f32.mrf.mxu0
      %v4546 = vadd.f32 0.0, %v4545
      %v4547 = vpop.f32.mrf.mxu0
      %4548 = vmatprep.mubr.bf16.mxu0 0
      %4549 = vmatmul.mubr.bf16.gmra.mxu0 %v3929
      %v4550 = vpop.f32.mrf.mxu0
      %v4551 = vadd.f32 0.0, %v4550
      %v4552 = vpop.f32.mrf.mxu0
      %v4553 = vpop.f32.mrf.mxu0
      %v4554 = vadd.f32 0.0, %v4553
      %v4555 = vpop.f32.mrf.mxu0
      %4556 = vdwg.mxu0
      %v4559 = vunpack.c.l.b16 %v4481
      %v4560 = vunpack.c.l.b16 %v4482
      %v4561 = vpack.c.b16 %v4560, %v4559
      %4563 = vmatprep.subr.bf16.mxu0 0
      %4564 = vmatpush1.bf16.msra.mxu0 0
      %4565 = vmatprep.subr.bf16.mxu0 0
      %4566 = vmatpush1.bf16.msra.mxu0 0
      %4567 = vmatprep.subr.bf16.mxu0 0
      %4568 = vmatpush1.bf16.msra.mxu0 0
      %4569 = vmatprep.subr.bf16.mxu0 0
      %4570 = vmatpush1.bf16.msra.mxu0 0
      %4571 = vmatprep.subr.bf16.mxu0 0
      %4572 = vmatpush1.bf16.msra.mxu0 0
      %4573 = vmatprep.subr.bf16.mxu0 0
      %4574 = vmatpush1.bf16.msra.mxu0 0
      %4575 = vmatprep.subr.bf16.mxu0 0
      %4576 = vmatpush1.bf16.msra.mxu0 0
      %4577 = vmatprep.subr.bf16.mxu0 0
      %4578 = vmatpush1.bf16.msra.mxu0 %v4561
      %4579 = vmatprep.subr.bf16.mxu0 0
      %4580 = vmatpush2.bf16.msra.mxu0 0
      %4581 = vmatprep.subr.bf16.mxu0 0
      %4582 = vmatpush2.bf16.msra.mxu0 0
      %4583 = vmatprep.subr.bf16.mxu0 0
      %4584 = vmatpush2.bf16.msra.mxu0 0
      %4585 = vmatprep.subr.bf16.mxu0 0
      %4586 = vmatpush2.bf16.msra.mxu0 0
      %4587 = vmatprep.subr.bf16.mxu0 0
      %4588 = vmatpush2.bf16.msra.mxu0 0
      %4589 = vmatprep.subr.bf16.mxu0 0
      %4590 = vmatpush2.bf16.msra.mxu0 0
      %4591 = vmatprep.subr.bf16.mxu0 0
      %4592 = vmatpush2.bf16.msra.mxu0 0
      %4593 = vmatprep.subr.bf16.mxu0 0
      %4594 = vmatpush2.bf16.msra.mxu0 0
      %4595 = vmatprep.mubr.bf16.mxu0 0
      %4596 = vmatmul.mubr.bf16.gmra.mxu0 %v4015
      %v4597 = vpop.f32.mrf.mxu0
      %v4598 = vadd.f32 %v4527, %v4597
      %v4599 = vpop.f32.mrf.mxu0
      %v4600 = vpop.f32.mrf.mxu0
      %v4601 = vadd.f32 %v4530, %v4600
      %v4602 = vpop.f32.mrf.mxu0
      %4603 = vmatprep.mubr.bf16.mxu0 0
      %4604 = vmatmul.mubr.bf16.gmra.mxu0 %v4018
      %v4605 = vpop.f32.mrf.mxu0
      %v4606 = vadd.f32 %v4535, %v4605
      %v4607 = vpop.f32.mrf.mxu0
      %v4608 = vpop.f32.mrf.mxu0
      %v4609 = vadd.f32 %v4538, %v4608
      %v4610 = vpop.f32.mrf.mxu0
      %4611 = vmatprep.mubr.bf16.mxu0 0
      %4612 = vmatmul.mubr.bf16.gmra.mxu0 %v4021
      %v4613 = vpop.f32.mrf.mxu0
      %v4614 = vadd.f32 %v4543, %v4613
      %v4615 = vpop.f32.mrf.mxu0
      %v4616 = vpop.f32.mrf.mxu0
      %v4617 = vadd.f32 %v4546, %v4616
      %v4618 = vpop.f32.mrf.mxu0
      %4619 = vmatprep.mubr.bf16.mxu0 0
      %4620 = vmatmul.mubr.bf16.gmra.mxu0 %v4012
      %v4621 = vpop.f32.mrf.mxu0
      %v4622 = vadd.f32 %v4551, %v4621
      %v4623 = vpop.f32.mrf.mxu0
      %v4624 = vpop.f32.mrf.mxu0
      %v4625 = vadd.f32 %v4554, %v4624
      %v4626 = vpop.f32.mrf.mxu0
      %4627 = vdwg.mxu0
      %s4628 = scalar_lea.vmem %s7, 136
      %v4629 = vld [vmem:[%s4628] sm:$0xf]
      %v4630 = vld [vmem:[%s4628 + $0x4] sm:$0xf]
      %v4633 = vunpack.c.l.b16 %v4629
      %v4634 = vunpack.c.l.b16 %v4630
      %v4635 = vpack.c.b16 %v4634, %v4633
      %4637 = vmatprep.subr.bf16.mxu0 0
      %4638 = vmatpush1.bf16.msra.mxu0 0
      %4639 = vmatprep.subr.bf16.mxu0 0
      %4640 = vmatpush1.bf16.msra.mxu0 0
      %4641 = vmatprep.subr.bf16.mxu0 0
      %4642 = vmatpush1.bf16.msra.mxu0 0
      %4643 = vmatprep.subr.bf16.mxu0 0
      %4644 = vmatpush1.bf16.msra.mxu0 0
      %4645 = vmatprep.subr.bf16.mxu0 0
      %4646 = vmatpush1.bf16.msra.mxu0 0
      %4647 = vmatprep.subr.bf16.mxu0 0
      %4648 = vmatpush1.bf16.msra.mxu0 0
      %4649 = vmatprep.subr.bf16.mxu0 0
      %4650 = vmatpush1.bf16.msra.mxu0 0
      %4651 = vmatprep.subr.bf16.mxu0 0
      %4652 = vmatpush1.bf16.msra.mxu0 %v4635
      %4653 = vmatprep.subr.bf16.mxu0 0
      %4654 = vmatpush2.bf16.msra.mxu0 0
      %4655 = vmatprep.subr.bf16.mxu0 0
      %4656 = vmatpush2.bf16.msra.mxu0 0
      %4657 = vmatprep.subr.bf16.mxu0 0
      %4658 = vmatpush2.bf16.msra.mxu0 0
      %4659 = vmatprep.subr.bf16.mxu0 0
      %4660 = vmatpush2.bf16.msra.mxu0 0
      %4661 = vmatprep.subr.bf16.mxu0 0
      %4662 = vmatpush2.bf16.msra.mxu0 0
      %4663 = vmatprep.subr.bf16.mxu0 0
      %4664 = vmatpush2.bf16.msra.mxu0 0
      %4665 = vmatprep.subr.bf16.mxu0 0
      %4666 = vmatpush2.bf16.msra.mxu0 0
      %4667 = vmatprep.subr.bf16.mxu0 0
      %4668 = vmatpush2.bf16.msra.mxu0 0
      %4669 = vmatprep.mubr.bf16.mxu0 0
      %4670 = vmatmul.mubr.bf16.gmra.mxu0 %v4105
      %v4671 = vpop.f32.mrf.mxu0
      %v4672 = vadd.f32 0.0, %v4671
      %v4673 = vpop.f32.mrf.mxu0
      %v4674 = vpop.f32.mrf.mxu0
      %v4675 = vadd.f32 0.0, %v4674
      %v4676 = vpop.f32.mrf.mxu0
      %4677 = vmatprep.mubr.bf16.mxu0 0
      %4678 = vmatmul.mubr.bf16.gmra.mxu0 %v4108
      %v4679 = vpop.f32.mrf.mxu0
      %v4680 = vadd.f32 0.0, %v4679
      %v4681 = vpop.f32.mrf.mxu0
      %v4682 = vpop.f32.mrf.mxu0
      %v4683 = vadd.f32 0.0, %v4682
      %v4684 = vpop.f32.mrf.mxu0
      %4685 = vmatprep.mubr.bf16.mxu0 0
      %4686 = vmatmul.mubr.bf16.gmra.mxu0 %v4111
      %v4687 = vpop.f32.mrf.mxu0
      %v4688 = vadd.f32 0.0, %v4687
      %v4689 = vpop.f32.mrf.mxu0
      %v4690 = vpop.f32.mrf.mxu0
      %v4691 = vadd.f32 0.0, %v4690
      %v4692 = vpop.f32.mrf.mxu0
      %4693 = vmatprep.mubr.bf16.mxu0 0
      %4694 = vmatmul.mubr.bf16.gmra.mxu0 %v4102
      %v4695 = vpop.f32.mrf.mxu0
      %v4696 = vadd.f32 0.0, %v4695
      %v4697 = vpop.f32.mrf.mxu0
      %v4698 = vpop.f32.mrf.mxu0
      %v4699 = vadd.f32 0.0, %v4698
      %v4700 = vpop.f32.mrf.mxu0
      %4701 = vdwg.mxu0
      %v4702 = vadd.f32 %v4598, %v4672
      %v4703 = vadd.f32 %v4601, %v4675
      %v4704 = vadd.f32 %v4606, %v4680
      %v4705 = vadd.f32 %v4609, %v4683
      %v4706 = vadd.f32 %v4614, %v4688
      %v4707 = vadd.f32 %v4617, %v4691
      %v4708 = vadd.f32 %v4622, %v4696
      %v4709 = vadd.f32 %v4625, %v4699
      %v4710 = vmul.f32 %v4702, %v590
      %v4711 = vmul.f32 %v4703, %v591
      %v4712 = vmul.f32 %v4704, %v592
      %v4713 = vmul.f32 %v4705, %v593
      %v4714 = vmul.f32 %v4706, %v594
      %v4715 = vmul.f32 %v4707, %v595
      %v4716 = vmul.f32 %v4708, %v596
      %v4717 = vmul.f32 %v4709, %v597
      %v4718 = vadd.f32 %v4472, %v4710
      %v4719 = vadd.f32 %v4473, %v4711
      %v4720 = vadd.f32 %v4474, %v4712
      %v4721 = vadd.f32 %v4475, %v4713
      %v4722 = vadd.f32 %v4476, %v4714
      %v4723 = vadd.f32 %v4477, %v4715
      %v4724 = vadd.f32 %v4478, %v4716
      %v4725 = vadd.f32 %v4479, %v4717
      %v4727 = vlaneseq
      %v4728 = vshrl.u32 %v4727, 7
      %v4729 = vsub.s32 0, %v4728
      %v4730 = vrot.slane %v3859, %v4729
      %v4732 = vadd.f32 %v4718, %v4730
      %v4733 = vadd.f32 %v4719, %v4730
      %v4734 = vadd.f32 %v4720, %v4730
      %v4735 = vadd.f32 %v4721, %v4730
      %v4736 = vadd.f32 %v4722, %v4730
      %v4737 = vadd.f32 %v4723, %v4730
      %v4738 = vadd.f32 %v4724, %v4730
      %v4739 = vadd.f32 %v4725, %v4730
      %v4740 = vpack.c.bf16 %v4733, %v4732
      %v4741 = vpack.c.bf16 %v4735, %v4734
      %v4742 = vpack.c.bf16 %v4737, %v4736
      %v4743 = vpack.c.bf16 %v4739, %v4738
      %v4745 = vsel %vm625, %v4740, 0
      %v4748 = vsel %vm625, %v4741, 0
      %v4751 = vsel %vm625, %v4742, 0
      %v4754 = vsel %vm625, %v4743, 0
      %4756 = vmatprep.subr.bf16.mxu0 0
      %4757 = vmatpush1.bf16.msra.mxu0 0
      %4758 = vmatprep.subr.bf16.mxu0 0
      %4759 = vmatpush1.bf16.msra.mxu0 0
      %4760 = vmatprep.subr.bf16.mxu0 0
      %4761 = vmatpush1.bf16.msra.mxu0 0
      %4762 = vmatprep.subr.bf16.mxu0 0
      %4763 = vmatpush1.bf16.msra.mxu0 0
      %4764 = vmatprep.subr.bf16.mxu0 0
      %4765 = vmatpush1.bf16.msra.mxu0 0
      %4766 = vmatprep.subr.bf16.mxu0 0
      %4767 = vmatpush1.bf16.msra.mxu0 0
      %4768 = vmatprep.subr.bf16.mxu0 0
      %4769 = vmatpush1.bf16.msra.mxu0 0
      %4770 = vmatprep.subr.bf16.mxu0 0
      %4771 = vmatpush1.bf16.msra.mxu0 %v2563
      %4772 = vmatprep.subr.bf16.mxu0 0
      %4773 = vmatpush2.bf16.msra.mxu0 0
      %4774 = vmatprep.subr.bf16.mxu0 0
      %4775 = vmatpush2.bf16.msra.mxu0 0
      %4776 = vmatprep.subr.bf16.mxu0 0
      %4777 = vmatpush2.bf16.msra.mxu0 0
      %4778 = vmatprep.subr.bf16.mxu0 0
      %4779 = vmatpush2.bf16.msra.mxu0 0
      %4780 = vmatprep.subr.bf16.mxu0 0
      %4781 = vmatpush2.bf16.msra.mxu0 0
      %4782 = vmatprep.subr.bf16.mxu0 0
      %4783 = vmatpush2.bf16.msra.mxu0 0
      %4784 = vmatprep.subr.bf16.mxu0 0
      %4785 = vmatpush2.bf16.msra.mxu0 0
      %4786 = vmatprep.subr.bf16.mxu0 0
      %4787 = vmatpush2.bf16.msra.mxu0 0
      %4788 = vmatprep.mubr.bf16.mxu0 0
      %4789 = vmatmul.mubr.bf16.gmra.mxu0 %v4745
      %v4790 = vpop.f32.mrf.mxu0
      %v4791 = vadd.f32 2.0, %v4790
      %v4792 = vpop.f32.mrf.mxu0
      %v4793 = vpop.f32.mrf.mxu0
      %v4794 = vadd.f32 2.0, %v4793
      %v4795 = vpop.f32.mrf.mxu0
      %4796 = vmatprep.mubr.bf16.mxu0 0
      %4797 = vmatmul.mubr.bf16.gmra.mxu0 %v4748
      %v4798 = vpop.f32.mrf.mxu0
      %v4799 = vadd.f32 2.0, %v4798
      %v4800 = vpop.f32.mrf.mxu0
      %v4801 = vpop.f32.mrf.mxu0
      %v4802 = vadd.f32 2.0, %v4801
      %v4803 = vpop.f32.mrf.mxu0
      %4804 = vmatprep.mubr.bf16.mxu0 0
      %4805 = vmatmul.mubr.bf16.gmra.mxu0 %v4751
      %v4806 = vpop.f32.mrf.mxu0
      %v4807 = vadd.f32 2.0, %v4806
      %v4808 = vpop.f32.mrf.mxu0
      %v4809 = vpop.f32.mrf.mxu0
      %v4810 = vadd.f32 2.0, %v4809
      %v4811 = vpop.f32.mrf.mxu0
      %4812 = vmatprep.mubr.bf16.mxu0 0
      %4813 = vmatmul.mubr.bf16.gmra.mxu0 %v4754
      %v4814 = vpop.f32.mrf.mxu0
      %v4815 = vadd.f32 2.0, %v4814
      %v4816 = vpop.f32.mrf.mxu0
      %v4817 = vpop.f32.mrf.mxu0
      %v4818 = vadd.f32 2.0, %v4817
      %v4819 = vpop.f32.mrf.mxu0
      %4820 = vdwg.mxu0
      %v4821 = vmin.f32 %v4791, 0.0
      %v4822 = vmin.f32 %v4794, 0.0
      %v4823 = vmin.f32 %v4799, 0.0
      %v4824 = vmin.f32 %v4802, 0.0
      %v4825 = vmin.f32 %v4807, 0.0
      %v4826 = vmin.f32 %v4810, 0.0
      %v4827 = vmin.f32 %v4815, 0.0
      %v4828 = vmin.f32 %v4818, 0.0
      %v4829 = vand.u32 2147483647, %v4791
      %v4830 = vand.u32 2147483647, %v4794
      %v4831 = vand.u32 2147483647, %v4799
      %v4832 = vand.u32 2147483647, %v4802
      %v4833 = vand.u32 2147483647, %v4807
      %v4834 = vand.u32 2147483647, %v4810
      %v4835 = vand.u32 2147483647, %v4815
      %v4836 = vand.u32 2147483647, %v4818
      %v4837 = vsub.f32 0.0, %v4829
      %v4838 = vsub.f32 0.0, %v4830
      %v4839 = vsub.f32 0.0, %v4831
      %v4840 = vsub.f32 0.0, %v4832
      %v4841 = vsub.f32 0.0, %v4833
      %v4842 = vsub.f32 0.0, %v4834
      %v4843 = vsub.f32 0.0, %v4835
      %v4844 = vsub.f32 0.0, %v4836
      %v4845 = vmul.f32 %v4837, 1.442695
      %v4846 = vpow.pop %v4845
      %v4847 = vmul.f32 %v4838, 1.442695
      %v4848 = vpow.pop %v4847
      %v4849 = vmul.f32 %v4839, 1.442695
      %v4850 = vpow.pop %v4849
      %v4851 = vmul.f32 %v4840, 1.442695
      %v4852 = vpow.pop %v4851
      %v4853 = vmul.f32 %v4841, 1.442695
      %v4854 = vpow.pop %v4853
      %v4855 = vmul.f32 %v4842, 1.442695
      %v4856 = vpow.pop %v4855
      %v4857 = vmul.f32 %v4843, 1.442695
      %v4858 = vpow.pop %v4857
      %v4859 = vmul.f32 %v4844, 1.442695
      %v4860 = vpow.pop %v4859
      %v4861 = vadd.f32 %v4846, 1.0
      %v4862 = vadd.f32 %v4848, 1.0
      %v4863 = vadd.f32 %v4850, 1.0
      %v4864 = vadd.f32 %v4852, 1.0
      %v4865 = vadd.f32 %v4854, 1.0
      %v4866 = vadd.f32 %v4856, 1.0
      %v4867 = vadd.f32 %v4858, 1.0
      %v4868 = vadd.f32 %v4860, 1.0
      %v4869 = vlog2.pop %v4861
      %v4870 = vmul.f32 %v4869, 0.6931472
      %v4871 = vlog2.pop %v4862
      %v4872 = vmul.f32 %v4871, 0.6931472
      %v4873 = vlog2.pop %v4863
      %v4874 = vmul.f32 %v4873, 0.6931472
      %v4875 = vlog2.pop %v4864
      %v4876 = vmul.f32 %v4875, 0.6931472
      %v4877 = vlog2.pop %v4865
      %v4878 = vmul.f32 %v4877, 0.6931472
      %v4879 = vlog2.pop %v4866
      %v4880 = vmul.f32 %v4879, 0.6931472
      %v4881 = vlog2.pop %v4867
      %v4882 = vmul.f32 %v4881, 0.6931472
      %v4883 = vlog2.pop %v4868
      %v4884 = vmul.f32 %v4883, 0.6931472
      %v4885 = vsub.f32 %v4821, %v4870
      %v4886 = vsub.f32 %v4822, %v4872
      %v4887 = vsub.f32 %v4823, %v4874
      %v4888 = vsub.f32 %v4824, %v4876
      %v4889 = vsub.f32 %v4825, %v4878
      %v4890 = vsub.f32 %v4826, %v4880
      %v4891 = vsub.f32 %v4827, %v4882
      %v4892 = vsub.f32 %v4828, %v4884
      %v4893 = vmul.f32 %v4885, 1.442695
      %v4894 = vpow.pop %v4893
      %v4895 = vmul.f32 %v4886, 1.442695
      %v4896 = vpow.pop %v4895
      %v4897 = vmul.f32 %v4887, 1.442695
      %v4898 = vpow.pop %v4897
      %v4899 = vmul.f32 %v4888, 1.442695
      %v4900 = vpow.pop %v4899
      %v4901 = vmul.f32 %v4889, 1.442695
      %v4902 = vpow.pop %v4901
      %v4903 = vmul.f32 %v4890, 1.442695
      %v4904 = vpow.pop %v4903
      %v4905 = vmul.f32 %v4891, 1.442695
      %v4906 = vpow.pop %v4905
      %v4907 = vmul.f32 %v4892, 1.442695
      %v4908 = vpow.pop %v4907
      %v4909 = vmul.f32 %v2868, %v603
      %v4910 = vmul.f32 %v2871, %v603
      %v4911 = vmul.f32 %v2876, %v603
      %v4912 = vmul.f32 %v2879, %v603
      %v4913 = vmul.f32 %v2884, %v603
      %v4914 = vmul.f32 %v2887, %v603
      %v4915 = vmul.f32 %v2892, %v603
      %v4916 = vmul.f32 %v2895, %v603
      %v4917 = vadd.f32 %v2868, %v4732
      %v4918 = vadd.f32 %v2871, %v4733
      %v4919 = vadd.f32 %v2876, %v4734
      %v4920 = vadd.f32 %v2879, %v4735
      %v4921 = vadd.f32 %v2884, %v4736
      %v4922 = vadd.f32 %v2887, %v4737
      %v4923 = vadd.f32 %v2892, %v4738
      %v4924 = vadd.f32 %v2895, %v4739
      %v4925 = vmul.f32 %v4917, %v602
      %v4926 = vmul.f32 %v4918, %v602
      %v4927 = vmul.f32 %v4919, %v602
      %v4928 = vmul.f32 %v4920, %v602
      %v4929 = vmul.f32 %v4921, %v602
      %v4930 = vmul.f32 %v4922, %v602
      %v4931 = vmul.f32 %v4923, %v602
      %v4932 = vmul.f32 %v4924, %v602
      %v4933 = vmul.f32 %v4925, %v4894
      %v4934 = vmul.f32 %v4926, %v4896
      %v4935 = vmul.f32 %v4927, %v4898
      %v4936 = vmul.f32 %v4928, %v4900
      %v4937 = vmul.f32 %v4929, %v4902
      %v4938 = vmul.f32 %v4930, %v4904
      %v4939 = vmul.f32 %v4931, %v4906
      %v4940 = vmul.f32 %v4932, %v4908
      %v4941 = vadd.f32 %v4909, %v4933
      %v4942 = vadd.f32 %v4910, %v4934
      %v4943 = vadd.f32 %v4911, %v4935
      %v4944 = vadd.f32 %v4912, %v4936
      %v4945 = vadd.f32 %v4913, %v4937
      %v4946 = vadd.f32 %v4914, %v4938
      %v4947 = vadd.f32 %v4915, %v4939
      %v4948 = vadd.f32 %v4916, %v4940
      %v4949 = vmul.f32 %v4885, %v602
      %v4950 = vmul.f32 %v4886, %v602
      %v4951 = vmul.f32 %v4887, %v602
      %v4952 = vmul.f32 %v4888, %v602
      %v4953 = vmul.f32 %v4889, %v602
      %v4954 = vmul.f32 %v4890, %v602
      %v4955 = vmul.f32 %v4891, %v602
      %v4956 = vmul.f32 %v4892, %v602
      %v4957 = vsel %vm625, %v4949, 0.0
      %4958 = vadd.xlane.f32.xlu0 %v4957
      %v4959 = vpop.xlane.xlu0 %4958
      %v4960 = vsel %vm625, %v4950, 0.0
      %4961 = vadd.xlane.f32.xlu0 %v4960
      %v4962 = vpop.xlane.xlu0 %4961
      %v4963 = vsel %vm625, %v4951, 0.0
      %4964 = vadd.xlane.f32.xlu0 %v4963
      %v4965 = vpop.xlane.xlu0 %4964
      %v4966 = vsel %vm625, %v4952, 0.0
      %4967 = vadd.xlane.f32.xlu0 %v4966
      %v4968 = vpop.xlane.xlu0 %4967
      %v4969 = vsel %vm625, %v4953, 0.0
      %4970 = vadd.xlane.f32.xlu0 %v4969
      %v4971 = vpop.xlane.xlu0 %4970
      %v4972 = vsel %vm625, %v4954, 0.0
      %4973 = vadd.xlane.f32.xlu0 %v4972
      %v4974 = vpop.xlane.xlu0 %4973
      %v4975 = vsel %vm625, %v4955, 0.0
      %4976 = vadd.xlane.f32.xlu0 %v4975
      %v4977 = vpop.xlane.xlu0 %4976
      %v4978 = vsel %vm625, %v4956, 0.0
      %4979 = vadd.xlane.f32.xlu0 %v4978
      %v4980 = vpop.xlane.xlu0 %4979
      %v4981 = vadd.f32 %v4959, %v4962
      %v4982 = vadd.f32 %v4981, %v4965
      %v4983 = vadd.f32 %v4982, %v4968
      %v4984 = vadd.f32 %v4983, %v4971
      %v4985 = vadd.f32 %v4984, %v4974
      %v4986 = vadd.f32 %v4985, %v4977
      %v4987 = vadd.f32 %v4986, %v4980
      %v4988 = vrot.slane %v4987, 4
      %v4989 = vadd.f32 %v4987, %v4988
      %v4990 = vrot.slane %v4989, 2
      %v4991 = vadd.f32 %v4989, %v4990
      %v4992 = vrot.slane %v4991, 1
      %v4993 = vadd.f32 %v4991, %v4992
      %v4994 = vadd.f32 %v2803, %v4993
      %4995 = vst.msk [vmem:[%s392] sm:$0xff] %vm625, %v4941
      %4996 = vst.msk [vmem:[%s392 + $0x8] sm:$0xff] %vm625, %v4942
      %4997 = vst.msk [vmem:[%s392 + $0x10] sm:$0xff] %vm625, %v4943
      %4998 = vst.msk [vmem:[%s392 + $0x18] sm:$0xff] %vm625, %v4944
      %4999 = vst.msk [vmem:[%s392 + $0x20] sm:$0xff] %vm625, %v4945
      %5000 = vst.msk [vmem:[%s392 + $0x28] sm:$0xff] %vm625, %v4946
      %5001 = vst.msk [vmem:[%s392 + $0x30] sm:$0xff] %vm625, %v4947
      %5002 = vst.msk [vmem:[%s392 + $0x38] sm:$0xff] %vm625, %v4948
      %s5003 = vtos %v4994
      %v5004 = vstv %s5003
      %v5005 = vadd.f32 %v5004, 0.0
      %5006 = vst [vmem:[%s395] sm:$0x1] %v5005
      %p5007 = scmp.lt.s32.totalorder %s23, 1
      %s5008 = scalar_select %p5007, %s23, 1
      %s5009 = smul.addr %s5008, 8
      %s5010 = smul.addr %s5009, 8
      %s5011 = scalar_lea.vmem %s10, %s5010
      %p5012 = scmp.lt.s32.totalorder %s23, 1
      %s5013 = scalar_select %p5012, %s23, 1
      %s5014 = scalar_lea.vmem %s11, %s5013
      // Predicated region
      $region61: #{_lambda_.2} parent=59 // pred_check
        %p5015 = pneg %p256
      $region62: #{_lambda_.2} parent=59 // pred_check_branch
        %5017 = sbr.rel (%p5015) target = $region64
      $region63: #{_lambda_.2} parent=59 // pred_region
        _
      $region64: #{_lambda_.2} parent=59 // pred_fallthru
        _
      // Predicated region
      $region65: #{_lambda_.2} parent=59 // pred_check
        %p5018 = pneg %p282
      $region66: #{_lambda_.2} parent=59 // pred_check_branch
        %5020 = sbr.rel (%p5018) target = $region68
      $region67: #{_lambda_.2} parent=59 // pred_region
        _
      $region68: #{_lambda_.2} parent=59 // pred_fallthru
        _
    $region60: #{_lambda_.2} parent=5 // pred_fallthru
      _
    %p5021 = scmp.le.s32.totalorder 2, %s18
    // Predicated region
    $region69: #{_lambda_.2} parent=5 // pred_check
      %p5022 = pneg %p5021
    $region70: #{_lambda_.2} parent=5 // pred_check_branch
      %5024 = sbr.rel (%p5022) target = $region72
    $region71: #{_lambda_.2} parent=5 // pred_region
      %s5025 = ssub.s32 %s18, 2
      // Predicated region
      $region73: #{_lambda_.2} parent=71 // pred_check
        %p5026 = pneg %p262
      $region74: #{_lambda_.2} parent=71 // pred_check_branch
        %5028 = sbr.rel (%p5026) target = $region76
      $region75: #{_lambda_.2} parent=71 // pred_region
        %p5029 = scmp.lt.s32.totalorder %s24, 1
        %s5030 = scalar_select %p5029, %s24, 1
        %s5031 = smul.addr %s5030, 8
        %s5032 = smul.addr %s5031, 8
        %s5033 = scalar_lea.vmem %s10, %s5032
      $region76: #{_lambda_.2} parent=71 // pred_fallthru
        _
      // Predicated region
      $region77: #{_lambda_.2} parent=71 // pred_check
        %p5034 = pneg %p288
      $region78: #{_lambda_.2} parent=71 // pred_check_branch
        %5036 = sbr.rel (%p5034) target = $region80
      $region79: #{_lambda_.2} parent=71 // pred_region
        %p5037 = scmp.lt.s32.totalorder %s24, 1
        %s5038 = scalar_select %p5037, %s24, 1
        %s5039 = scalar_lea.vmem %s11, %s5038
      $region80: #{_lambda_.2} parent=71 // pred_fallthru
        _
    $region72: #{_lambda_.2} parent=5 // pred_fallthru
      _
  $region6: #{_lambda_.2} parent=0 // loop_footer
    %s22 = sadd.s32 1, %s18
  $region7: #{_lambda_.2} parent=0 // loop_footer_branch
    %17 = sbr.rel target = $region3
  $region8: #{_lambda_.2} parent=0 // loop_exit
    _

</llo_original>
